<compile_context>
chip_gen: v5e
topology: v5e:2x2
jax: 0.10.0
libtpu: 0.0.40
codegen_flags: <defaults>
</compile_context>

<pallas_src>
import functools
import math

import jax
import jax.numpy as jnp
from jax import lax
from jax.experimental import pallas as pl
from jax.experimental.pallas import tpu as pltpu


# ---------------------------------------------------------------------------
# In-kernel helpers (pure jnp on values, f32)
# ---------------------------------------------------------------------------
def _adaln(x, scale, shift, eps=1e-5):
    """LayerNorm (no affine) modulated by (1 + scale), shift."""
    mu = jnp.mean(x, axis=-1, keepdims=True)
    var = jnp.mean((x - mu) ** 2, axis=-1, keepdims=True)
    xn = (x - mu) * lax.rsqrt(var + eps)
    return xn * (1.0 + scale) + shift


def _mha(q, k, v, num_heads):
    """Multi-head attention; returns concatenated head outputs (Nq, F)."""
    _, f = q.shape
    dh = f // num_heads
    inv = 1.0 / math.sqrt(dh)
    outs = []
    for h in range(num_heads):                       # static unroll, tiny H
        sl = slice(h * dh, (h + 1) * dh)
        s = lax.dot_general(q[:, sl], k[:, sl], (((1,), (1,)), ((), ())),
                            preferred_element_type=jnp.float32) * inv
        s = s - jnp.max(s, axis=-1, keepdims=True)
        p = jnp.exp(s)
        p = p * pl.reciprocal(jnp.sum(p, axis=-1, keepdims=True), approx=True)
        outs.append(jnp.dot(p, v[:, sl], preferred_element_type=jnp.float32))
    # concatenate head outputs -> single (F, F) output projection in the caller
    return jnp.concatenate(outs, axis=-1)


# ---------------------------------------------------------------------------
# Fused transformer-layer-stack kernel: grid = (batch, layer)
# ---------------------------------------------------------------------------
def _layer_stack_kernel(*refs, num_heads, cross):
    if cross:
        (t_ref, x_ref, mem_ref,
         wada1, bada1, wqkv, bqkv, wo, bo,
         wada2, bada2, wf1, bf1, wf2, bf2,
         o_ref, x_scr) = refs
    else:
        (t_ref, x_ref,
         wada1, bada1, wqkv, bqkv, wo, bo,
         wada2, bada2, wf1, bf1, wf2, bf2,
         o_ref, x_scr) = refs
        mem_ref = None

    layer = pl.program_id(1)

    @pl.when(layer == 0)
    def _():
        x_scr[...] = x_ref[0].astype(jnp.float32)

    x = x_scr[...]                                   # (N, F) f32, VMEM-resident
    t = t_ref[0]                                     # (1, F) silu(time_embs), hoisted
    f = x.shape[-1]

    # ---- AdaLN 1 (per-layer modulation linear fused here) + attention ----
    ss1 = jnp.dot(t, wada1[0], preferred_element_type=jnp.float32) + bada1[0]
    # TODO(synk): assumes torch chunk order (scale, shift) in the AdaLN MLP.
    h = _adaln(x, ss1[:, :f], ss1[:, f:])

    w = wqkv[0]                                      # (F, 3F) fused QKV weight
    bq = bqkv[0]                                     # (1, 3F)
    if cross:
        mem = mem_ref[0].astype(jnp.float32)
        q = jnp.dot(h, w[:, :f], preferred_element_type=jnp.float32) + bq[:, :f]
        kv = jnp.dot(mem, w[:, f:], preferred_element_type=jnp.float32) + bq[:, f:]
        k, v = kv[:, :f], kv[:, f:]
    else:
        qkv = jnp.dot(h, w, preferred_element_type=jnp.float32) + bq
        q, k, v = qkv[:, :f], qkv[:, f:2 * f], qkv[:, 2 * f:]

    attn = _mha(q, k, v, num_heads)                  # (N, F)
    x = x + jnp.dot(attn, wo[0], preferred_element_type=jnp.float32) + bo[0]

    # ---- AdaLN 2 + FFN ----
    ss2 = jnp.dot(t, wada2[0], preferred_element_type=jnp.float32) + bada2[0]
    h2 = _adaln(x, ss2[:, :f], ss2[:, f:])
    ff = jnp.maximum(
        jnp.dot(h2, wf1[0], preferred_element_type=jnp.float32) + bf1[0], 0.0)
    x = x + jnp.dot(ff, wf2[0], preferred_element_type=jnp.float32) + bf2[0]

    x_scr[...] = x

    @pl.when(layer == pl.num_programs(1) - 1)
    def _():
        o_ref[0] = x.astype(o_ref.dtype)


_STACK_WEIGHT_NAMES = ('wada1', 'bada1', 'wqkv', 'bqkv', 'wo', 'bo',
                       'wada2', 'bada2', 'wf1', 'bf1', 'wf2', 'bf2')


def pallas_layer_stack(x, t_act, stack_params, num_heads, memory=None):
    """Run a full stack of AdaLN transformer layers in one pallas_call."""
    b, n, f = x.shape
    num_layers = stack_params['wqkv'].shape[0]
    cross = memory is not None

    in_specs = [
        pl.BlockSpec((1, 1, f), lambda bb, ll: (bb, 0, 0)),   # silu(time_embs)
        pl.BlockSpec((1, n, f), lambda bb, ll: (bb, 0, 0)),   # x (read at layer 0)
    ]
    args = [t_act, x]
    if cross:
        nk = memory.shape[1]
        in_specs.append(pl.BlockSpec((1, nk, f), lambda bb, ll: (bb, 0, 0)))
        args.append(memory)
    for name in _STACK_WEIGHT_NAMES:                          # stacked (L, ...) weights
        arr = stack_params[name]
        in_specs.append(pl.BlockSpec((1,) + arr.shape[1:], lambda bb, ll: (ll, 0, 0)))
        args.append(arr)

    return pl.pallas_call(
        functools.partial(_layer_stack_kernel, num_heads=num_heads, cross=cross),
        out_shape=jax.ShapeDtypeStruct((b, n, f), x.dtype),
        grid=(b, num_layers),
        in_specs=in_specs,
        out_specs=pl.BlockSpec((1, n, f), lambda bb, ll: (bb, 0, 0)),
        scratch_shapes=[pltpu.VMEM((n, f), jnp.float32)],
        compiler_params=pltpu.CompilerParams(
            dimension_semantics=("parallel", "arbitrary")),
    )(*args)


# ---------------------------------------------------------------------------
# Fused denoising-timestep + gripper conditioning kernel (outputs silu'd cond)
# ---------------------------------------------------------------------------
def _time_encoder_kernel(sin_ref, grip_ref, wt1, bt1, wt2, bt2,
                         wg1, bg1, wg2, bg2, o_ref):
    t = jnp.maximum(
        jnp.dot(sin_ref[...], wt1[...], preferred_element_type=jnp.float32) + bt1[...], 0.0)
    t = jnp.dot(t, wt2[...], preferred_element_type=jnp.float32) + bt2[...]
    g = jnp.maximum(
        jnp.dot(grip_ref[...], wg1[...], preferred_element_type=jnp.float32) + bg1[...], 0.0)
    g = jnp.dot(g, wg2[...], preferred_element_type=jnp.float32) + bg2[...]
    e = t + g
    # hoisted SiLU for the per-layer AdaLN modulation MLPs
    o_ref[...] = (e * (1.0 / (1.0 + jnp.exp(-e)))).astype(o_ref.dtype)


def pallas_time_encoder(sin_t, grip_flat, params):
    b, f = sin_t.shape
    te0, te1 = params['time_emb']
    ge0, ge1 = params['curr_gripper_emb']
    vmem = pl.BlockSpec(memory_space=pltpu.MemorySpace.VMEM)
    return pl.pallas_call(
        _time_encoder_kernel,
        out_shape=jax.ShapeDtypeStruct((b, f), jnp.float32),
        in_specs=[vmem] * 10,
        out_specs=vmem,
    )(sin_t, grip_flat,
      te0['w'], te0['b'].reshape(1, -1), te1['w'], te1['b'].reshape(1, -1),
      ge0['w'], ge0['b'].reshape(1, -1), ge1['w'], ge1['b'].reshape(1, -1))


# ---------------------------------------------------------------------------
# Fused prediction heads (rotation / position / openess) in one kernel
# ---------------------------------------------------------------------------
def _heads_kernel(rot_ref, pos_ref,
                  w_rproj, b_rproj, w_r1, b_r1, w_r2, b_r2,
                  w_pproj, b_pproj, w_po1, b_po1, w_po2, b_po2,
                  pos_out, rot_out, opn_out):
    r = jnp.dot(rot_ref[...], w_rproj[...], preferred_element_type=jnp.float32) + b_rproj[...]
    hr = jnp.maximum(jnp.dot(r, w_r1[...], preferred_element_type=jnp.float32) + b_r1[...], 0.0)
    rot = jnp.dot(hr, w_r2[...], preferred_element_type=jnp.float32) + b_r2[...]

    p = jnp.dot(pos_ref[...], w_pproj[...], preferred_element_type=jnp.float32) + b_pproj[...]
    hpo = jnp.maximum(jnp.dot(p, w_po1[...], preferred_element_type=jnp.float32) + b_po1[...], 0.0)
    po = jnp.dot(hpo, w_po2[...], preferred_element_type=jnp.float32) + b_po2[...]

    pos_out[...] = po[:, :3].astype(pos_out.dtype)
    opn_out[...] = po[:, 3:4].astype(opn_out.dtype)
    rot_out[...] = rot.astype(rot_out.dtype)


def pallas_prediction_heads(rot_feat, pos_feat, params):
    b, n, f = rot_feat.shape
    m = b * n
    rot2 = rot_feat.reshape(m, f)
    pos2 = pos_feat.reshape(m, f)

    rp = params['rotation_proj']
    r0, r1 = params['rotation_predictor']
    pp = params['position_proj']
    p0, p1 = params['position_predictor']
    o0, o1 = params['openess_predictor']

    # pack position + openess predictors: one hidden + one block-diagonal output
    w_po1 = jnp.concatenate([p0['w'], o0['w']], axis=1)               # (F, 2F)
    b_po1 = jnp.concatenate([p0['b'], o0['b']], axis=0)               # (2F,)
    w_po2 = jnp.zeros((2 * f, 4), jnp.float32)
    w_po2 = w_po2.at[:f, :3].set(p1['w']).at[f:, 3:].set(o1['w'])     # (2F, 4)
    b_po2 = jnp.concatenate([p1['b'], o1['b']], axis=0)               # (4,)

    vmem = pl.BlockSpec(memory_space=pltpu.MemorySpace.VMEM)
    pos, rot, opn = pl.pallas_call(
        _heads_kernel,
        out_shape=(jax.ShapeDtypeStruct((m, 3), jnp.float32),
                   jax.ShapeDtypeStruct((m, 4), jnp.float32),
                   jax.ShapeDtypeStruct((m, 1), jnp.float32)),
        in_specs=[vmem] * 14,
        out_specs=(vmem, vmem, vmem),
    )(rot2, pos2,
      rp['w'], rp['b'].reshape(1, -1), r0['w'], r0['b'].reshape(1, -1),
      r1['w'], r1['b'].reshape(1, -1),
      pp['w'], pp['b'].reshape(1, -1), w_po1, b_po1.reshape(1, -1),
      w_po2, b_po2.reshape(1, -1))
    return pos.reshape(b, n, 3), rot.reshape(b, n, 4), opn.reshape(b, n, 1)


# ---------------------------------------------------------------------------
# Model glue (plain JAX around the fused kernels)
# ---------------------------------------------------------------------------
def sinusoidal_pos_emb(x, dim):
    half = dim // 2
    freqs = jnp.exp(-math.log(10000.0) * jnp.arange(half, dtype=jnp.float32) / (half - 1))
    ang = x.astype(jnp.float32)[..., None] * freqs
    return jnp.concatenate([jnp.sin(ang), jnp.cos(ang)], axis=-1)


def diffusion_head_forward(params, trajectory_geom_args, timestep, context_feats,
                           context_geom_args, fps_feats, fps_geom_args,
                           instr_feats, adaln_gripper_feats, gripper_geom_args,
                           *, num_heads):
    f = params['trajectory_feats'].shape[-1]
    b = trajectory_geom_args['centers'].shape[0]

    # trajectory query token (learned) + sinusoidal trajectory-time pos
    traj_feats = jnp.broadcast_to(params['trajectory_feats'][None], (b, 1, f))
    traj_time_pos = sinusoidal_pos_emb(jnp.arange(1, dtype=jnp.float32), f)[None]
    traj_feats = traj_feats + jnp.broadcast_to(traj_time_pos, (b, 1, f))
    # use_instruction=False -> skip ParallelAttention language path

    # fused timestep + gripper conditioning; returns silu(time_embs): (B, F)
    sin_t = sinusoidal_pos_emb(timestep, f)
    grip_flat = adaln_gripper_feats.reshape(b, -1)            # flatten(1, 2)
    t_act = pallas_time_encoder(sin_t, grip_flat, params)[:, None, :]   # (B, 1, F)

    # ------------------- prediction_head -------------------
    memory = jnp.concatenate([context_feats, adaln_gripper_feats], axis=1)

    trajectory_features = pallas_layer_stack(
        traj_feats, t_act, params['cross_attn'], num_heads, memory=memory)

    features = jnp.concatenate(
        [trajectory_features, fps_feats, adaln_gripper_feats], axis=1)
    features = pallas_layer_stack(features, t_act, params['self_attn'], num_heads)

    n_act = trajectory_features.shape[1]

    rot_feat = pallas_layer_stack(
        features, t_act, params['rotation_self_attn'], num_heads)[:, :n_act]
    pos_feat = pallas_layer_stack(
        features, t_act, params['position_self_attn'], num_heads)[:, :n_act]

    position, rotation, openess = pallas_prediction_heads(rot_feat, pos_feat, params)
    return [jnp.concatenate([position, rotation, openess], axis=-1)]


# ---------------------------------------------------------------------------
# Deterministic parameter init (stacked per-layer weights)
# ---------------------------------------------------------------------------
def init_params(key, f=32, nhist=3, ffn=64, rot_dim=4):
    keys = iter(jax.random.split(key, 256))

    def rnd(shape):
        return 0.05 * jax.random.normal(next(keys), shape, jnp.float32)

    def lin(din, dout):
        return {'w': rnd((din, dout)), 'b': jnp.zeros((dout,), jnp.float32)}

    def attn_stack(num_layers):
        return {
            'wada1': rnd((num_layers, f, 2 * f)), 'bada1': jnp.zeros((num_layers, 1, 2 * f), jnp.float32),
            'wqkv':  rnd((num_layers, f, 3 * f)), 'bqkv':  jnp.zeros((num_layers, 1, 3 * f), jnp.float32),
            'wo':    rnd((num_layers, f, f)),     'bo':    jnp.zeros((num_layers, 1, f), jnp.float32),
            'wada2': rnd((num_layers, f, 2 * f)), 'bada2': jnp.zeros((num_layers, 1, 2 * f), jnp.float32),
            'wf1':   rnd((num_layers, f, ffn)),   'bf1':   jnp.zeros((num_layers, 1, ffn), jnp.float32),
            'wf2':   rnd((num_layers, ffn, f)),   'bf2':   jnp.zeros((num_layers, 1, f), jnp.float32),
        }

    return {
        'trajectory_feats': jax.random.normal(next(keys), (1, f), jnp.float32),
        'time_emb': [lin(f, f), lin(f, f)],
        'curr_gripper_emb': [lin(f * nhist, f), lin(f, f)],
        'cross_attn': attn_stack(2),
        'self_attn': attn_stack(4),
        'rotation_proj': lin(f, f),
        'rotation_self_attn': attn_stack(2),
        'rotation_predictor': [lin(f, f), lin(f, rot_dim)],
        'position_proj': lin(f, f),
        'position_self_attn': attn_stack(2),
        'position_predictor': [lin(f, f), lin(f, 3)],
        'openess_predictor': [lin(f, f), lin(f, 1)],
    }


# ---------------------------------------------------------------------------
if __name__ == "__main__":
    B = 2
    F = 32          # embedding_dim (small, kernel-friendly stand-in for 60)
    H = 4           # num_attn_heads (F % H == 0)
    NHIST = 3
    N_CTX = 16
    K_FPS = 8
    L_INSTR = 5

    key = jax.random.PRNGKey(0)
    k_par, k_in = jax.random.split(key)
    params = init_params(k_par, f=F, nhist=NHIST)

    ks = jax.random.split(k_in, 8)
    trajectory_geom_args = {'centers': jax.random.normal(ks[0], (B, 1, 3), jnp.float32)}
    context_geom_args = {'centers': jax.random.normal(ks[1], (B, N_CTX, 3), jnp.float32)}
    fps_geom_args = {'centers': jax.random.normal(ks[2], (B, K_FPS, 3), jnp.float32)}
    gripper_geom_args = {'centers': jax.random.normal(ks[3], (B, NHIST, 3), jnp.float32)}
    timestep = jnp.array([3.0, 17.0], dtype=jnp.float32)                  # (B,)
    context_feats = jax.random.normal(ks[4], (B, N_CTX, F), jnp.float32)
    fps_feats = jax.random.normal(ks[5], (B, K_FPS, F), jnp.float32)
    instr_feats = jax.random.normal(ks[6], (B, L_INSTR, F), jnp.float32)
    adaln_gripper_feats = jax.random.normal(ks[7], (B, NHIST, F), jnp.float32)

    fwd = jax.jit(functools.partial(diffusion_head_forward, num_heads=H))
    out = fwd(params, trajectory_geom_args, timestep, context_feats,
              context_geom_args, fps_feats, fps_geom_args, instr_feats,
              adaln_gripper_feats, gripper_geom_args)

    result = jax.block_until_ready(out[0])
    assert result.shape == (B, 1, 3 + 4 + 1)
    assert bool(jnp.all(jnp.isfinite(result)))
    print("KERNEL_OK")
</pallas_src>

<mosaic_0001>
module attributes {stable_mosaic.version = 11 : i64} {
  func.func @_time_encoder_kernel(%arg0: memref<2x32xf32, #tpu.memory_space<vmem>>, %arg1: memref<2x96xf32, #tpu.memory_space<vmem>>, %arg2: memref<32x32xf32, #tpu.memory_space<vmem>>, %arg3: memref<1x32xf32, #tpu.memory_space<vmem>>, %arg4: memref<32x32xf32, #tpu.memory_space<vmem>>, %arg5: memref<1x32xf32, #tpu.memory_space<vmem>>, %arg6: memref<96x32xf32, #tpu.memory_space<vmem>>, %arg7: memref<1x32xf32, #tpu.memory_space<vmem>>, %arg8: memref<32x32xf32, #tpu.memory_space<vmem>>, %arg9: memref<1x32xf32, #tpu.memory_space<vmem>>, %arg10: memref<2x32xf32, #tpu.memory_space<vmem>>) attributes {dimension_semantics = [], scalar_prefetch = 0 : i64, scratch_operands = 0 : i64, tpu.core_type = #tpu.core_type<tc>} {
    %c0 = arith.constant 0 : index
    %c0_0 = arith.constant 0 : index
    %0 = vector.load %arg0[%c0, %c0_0] : memref<2x32xf32, #tpu.memory_space<vmem>>, vector<2x32xf32>
    %c0_1 = arith.constant 0 : index
    %c0_2 = arith.constant 0 : index
    %1 = vector.load %arg2[%c0_1, %c0_2] : memref<32x32xf32, #tpu.memory_space<vmem>>, vector<32x32xf32>
    %cst = arith.constant dense<0.000000e+00> : vector<2x32xf32>
    %2 = tpu.matmul %0, %1, %cst {dimension_numbers = #tpu.dot_dimension_numbers<[1], [0], [0], [1], [0, 0, 1, 1], [], []>} : vector<2x32xf32>, vector<32x32xf32>, vector<2x32xf32> -> vector<2x32xf32>
    %c0_3 = arith.constant 0 : index
    %c0_4 = arith.constant 0 : index
    %3 = vector.load %arg3[%c0_3, %c0_4] : memref<1x32xf32, #tpu.memory_space<vmem>>, vector<1x32xf32>
    %4 = vector.broadcast %3 : vector<1x32xf32> to vector<2x32xf32>
    %5 = arith.addf %2, %4 : vector<2x32xf32>
    %cst_5 = arith.constant 0.000000e+00 : f32
    %6 = vector.broadcast %cst_5 : f32 to vector<2x32xf32>
    %7 = arith.maximumf %5, %6 : vector<2x32xf32>
    %c0_6 = arith.constant 0 : index
    %c0_7 = arith.constant 0 : index
    %8 = vector.load %arg4[%c0_6, %c0_7] : memref<32x32xf32, #tpu.memory_space<vmem>>, vector<32x32xf32>
    %cst_8 = arith.constant dense<0.000000e+00> : vector<2x32xf32>
    %9 = tpu.matmul %7, %8, %cst_8 {dimension_numbers = #tpu.dot_dimension_numbers<[1], [0], [0], [1], [0, 0, 1, 1], [], []>} : vector<2x32xf32>, vector<32x32xf32>, vector<2x32xf32> -> vector<2x32xf32>
    %c0_9 = arith.constant 0 : index
    %c0_10 = arith.constant 0 : index
    %10 = vector.load %arg5[%c0_9, %c0_10] : memref<1x32xf32, #tpu.memory_space<vmem>>, vector<1x32xf32>
    %11 = vector.broadcast %10 : vector<1x32xf32> to vector<2x32xf32>
    %12 = arith.addf %9, %11 : vector<2x32xf32>
    %c0_11 = arith.constant 0 : index
    %c0_12 = arith.constant 0 : index
    %13 = vector.load %arg1[%c0_11, %c0_12] : memref<2x96xf32, #tpu.memory_space<vmem>>, vector<2x96xf32>
    %c0_13 = arith.constant 0 : index
    %c0_14 = arith.constant 0 : index
    %14 = vector.load %arg6[%c0_13, %c0_14] : memref<96x32xf32, #tpu.memory_space<vmem>>, vector<96x32xf32>
    %cst_15 = arith.constant dense<0.000000e+00> : vector<2x32xf32>
    %15 = tpu.matmul %13, %14, %cst_15 {dimension_numbers = #tpu.dot_dimension_numbers<[1], [0], [0], [1], [0, 0, 1, 1], [], []>} : vector<2x96xf32>, vector<96x32xf32>, vector<2x32xf32> -> vector<2x32xf32>
    %c0_16 = arith.constant 0 : index
    %c0_17 = arith.constant 0 : index
    %16 = vector.load %arg7[%c0_16, %c0_17] : memref<1x32xf32, #tpu.memory_space<vmem>>, vector<1x32xf32>
    %17 = vector.broadcast %16 : vector<1x32xf32> to vector<2x32xf32>
    %18 = arith.addf %15, %17 : vector<2x32xf32>
    %cst_18 = arith.constant 0.000000e+00 : f32
    %19 = vector.broadcast %cst_18 : f32 to vector<2x32xf32>
    %20 = arith.maximumf %18, %19 : vector<2x32xf32>
    %c0_19 = arith.constant 0 : index
    %c0_20 = arith.constant 0 : index
    %21 = vector.load %arg8[%c0_19, %c0_20] : memref<32x32xf32, #tpu.memory_space<vmem>>, vector<32x32xf32>
    %cst_21 = arith.constant dense<0.000000e+00> : vector<2x32xf32>
    %22 = tpu.matmul %20, %21, %cst_21 {dimension_numbers = #tpu.dot_dimension_numbers<[1], [0], [0], [1], [0, 0, 1, 1], [], []>} : vector<2x32xf32>, vector<32x32xf32>, vector<2x32xf32> -> vector<2x32xf32>
    %c0_22 = arith.constant 0 : index
    %c0_23 = arith.constant 0 : index
    %23 = vector.load %arg9[%c0_22, %c0_23] : memref<1x32xf32, #tpu.memory_space<vmem>>, vector<1x32xf32>
    %24 = vector.broadcast %23 : vector<1x32xf32> to vector<2x32xf32>
    %25 = arith.addf %22, %24 : vector<2x32xf32>
    %26 = arith.addf %12, %25 : vector<2x32xf32>
    %cst_24 = arith.constant 0.000000e+00 : f32
    %27 = vector.broadcast %cst_24 : f32 to vector<2x32xf32>
    %28 = arith.subf %27, %26 : vector<2x32xf32>
    %29 = math.exp %28 : vector<2x32xf32>
    %cst_25 = arith.constant 1.000000e+00 : f32
    %30 = vector.broadcast %cst_25 : f32 to vector<2x32xf32>
    %31 = arith.addf %30, %29 : vector<2x32xf32>
    %cst_26 = arith.constant 1.000000e+00 : f32
    %32 = vector.broadcast %cst_26 : f32 to vector<2x32xf32>
    %33 = arith.divf %32, %31 : vector<2x32xf32>
    %34 = arith.mulf %26, %33 : vector<2x32xf32>
    %c0_27 = arith.constant 0 : index
    %c0_28 = arith.constant 0 : index
    %35 = vector.load %arg10[%c0_27, %c0_28] : memref<2x32xf32, #tpu.memory_space<vmem>>, vector<2x32xf32>
    tpu.vector_store %arg10[%c0_27, %c0_28], %34 {strides = array<i32>} : memref<2x32xf32, #tpu.memory_space<vmem>>, vector<2x32xf32>,
    return
  }
}

module attributes {stable_mosaic.version = 11 : i64} {
  func.func @_layer_stack_kernel(%arg0: i32, %arg1: i32, %arg2: memref<1x1x32xf32, #tpu.memory_space<vmem>>, %arg3: memref<1x1x32xf32, #tpu.memory_space<vmem>>, %arg4: memref<1x19x32xf32, #tpu.memory_space<vmem>>, %arg5: memref<1x32x64xf32, #tpu.memory_space<vmem>>, %arg6: memref<1x1x64xf32, #tpu.memory_space<vmem>>, %arg7: memref<1x32x96xf32, #tpu.memory_space<vmem>>, %arg8: memref<1x1x96xf32, #tpu.memory_space<vmem>>, %arg9: memref<1x32x32xf32, #tpu.memory_space<vmem>>, %arg10: memref<1x1x32xf32, #tpu.memory_space<vmem>>, %arg11: memref<1x32x64xf32, #tpu.memory_space<vmem>>, %arg12: memref<1x1x64xf32, #tpu.memory_space<vmem>>, %arg13: memref<1x32x64xf32, #tpu.memory_space<vmem>>, %arg14: memref<1x1x64xf32, #tpu.memory_space<vmem>>, %arg15: memref<1x64x32xf32, #tpu.memory_space<vmem>>, %arg16: memref<1x1x32xf32, #tpu.memory_space<vmem>>, %arg17: memref<1x1x32xf32, #tpu.memory_space<vmem>>, %arg18: memref<1x32xf32, #tpu.memory_space<vmem>>) attributes {dimension_semantics = [#tpu.dimension_semantics<parallel>, #tpu.dimension_semantics<arbitrary>], iteration_bounds = array<i64: 2, 2>, scalar_prefetch = 0 : i64, scratch_operands = 1 : i64, tpu.core_type = #tpu.core_type<tc>, window_params = [{transform_indices = @transform_0, window_bounds = array<i64: 1, 1, 32>}, {transform_indices = @transform_1, window_bounds = array<i64: 1, 1, 32>}, {transform_indices = @transform_2, window_bounds = array<i64: 1, 19, 32>}, {transform_indices = @transform_3, window_bounds = array<i64: 1, 32, 64>}, {transform_indices = @transform_4, window_bounds = array<i64: 1, 1, 64>}, {transform_indices = @transform_5, window_bounds = array<i64: 1, 32, 96>}, {transform_indices = @transform_6, window_bounds = array<i64: 1, 1, 96>}, {transform_indices = @transform_7, window_bounds = array<i64: 1, 32, 32>}, {transform_indices = @transform_8, window_bounds = array<i64: 1, 1, 32>}, {transform_indices = @transform_9, window_bounds = array<i64: 1, 32, 64>}, {transform_indices = @transform_10, window_bounds = array<i64: 1, 1, 64>}, {transform_indices = @transform_11, window_bounds = array<i64: 1, 32, 64>}, {transform_indices = @transform_12, window_bounds = array<i64: 1, 1, 64>}, {transform_indices = @transform_13, window_bounds = array<i64: 1, 64, 32>}, {transform_indices = @transform_14, window_bounds = array<i64: 1, 1, 32>}, {transform_indices = @transform_15, window_bounds = array<i64: 1, 1, 32>}]} {
    %c0_i32 = arith.constant 0 : i32
    %0 = arith.cmpi eq, %arg1, %c0_i32 : i32
    %1 = arith.extui %0 : i1 to i32
    %c0_i32_0 = arith.constant 0 : i32
    %2 = arith.cmpi ne, %1, %c0_i32_0 : i32
    scf.if %2 {
      %c0_86 = arith.constant 0 : index
      %c0_87 = arith.constant 0 : index
      %c0_88 = arith.constant 0 : index
      %178 = vector.load %arg3[%c0_86, %c0_87, %c0_88] : memref<1x1x32xf32, #tpu.memory_space<vmem>>, vector<1x1x32xf32>
      %179 = vector.shape_cast %178 : vector<1x1x32xf32> to vector<1x32xf32>
      %c0_89 = arith.constant 0 : index
      %c0_90 = arith.constant 0 : index
      %180 = vector.load %arg18[%c0_89, %c0_90] : memref<1x32xf32, #tpu.memory_space<vmem>>, vector<1x32xf32>
      tpu.vector_store %arg18[%c0_89, %c0_90], %179 {strides = array<i32>} : memref<1x32xf32, #tpu.memory_space<vmem>>, vector<1x32xf32>,
    } else {
    }
    %c0 = arith.constant 0 : index
    %c0_1 = arith.constant 0 : index
    %3 = vector.load %arg18[%c0, %c0_1] : memref<1x32xf32, #tpu.memory_space<vmem>>, vector<1x32xf32>
    %c0_2 = arith.constant 0 : index
    %c0_3 = arith.constant 0 : index
    %c0_4 = arith.constant 0 : index
    %4 = vector.load %arg2[%c0_2, %c0_3, %c0_4] : memref<1x1x32xf32, #tpu.memory_space<vmem>>, vector<1x1x32xf32>
    %5 = vector.shape_cast %4 : vector<1x1x32xf32> to vector<1x32xf32>
    %c0_5 = arith.constant 0 : index
    %c0_6 = arith.constant 0 : index
    %c0_7 = arith.constant 0 : index
    %6 = vector.load %arg5[%c0_5, %c0_6, %c0_7] : memref<1x32x64xf32, #tpu.memory_space<vmem>>, vector<1x32x64xf32>
    %7 = vector.shape_cast %6 : vector<1x32x64xf32> to vector<32x64xf32>
    %cst = arith.constant dense<0.000000e+00> : vector<1x64xf32>
    %8 = tpu.matmul %5, %7, %cst {dimension_numbers = #tpu.dot_dimension_numbers<[1], [0], [0], [1], [0, 0, 1, 1], [], []>} : vector<1x32xf32>, vector<32x64xf32>, vector<1x64xf32> -> vector<1x64xf32>
    %c0_8 = arith.constant 0 : index
    %c0_9 = arith.constant 0 : index
    %c0_10 = arith.constant 0 : index
    %9 = vector.load %arg6[%c0_8, %c0_9, %c0_10] : memref<1x1x64xf32, #tpu.memory_space<vmem>>, vector<1x1x64xf32>
    %10 = vector.shape_cast %9 : vector<1x1x64xf32> to vector<1x64xf32>
    %11 = arith.addf %8, %10 : vector<1x64xf32>
    %12 = vector.extract_strided_slice %11 {offsets = [0, 0], sizes = [1, 32], strides = [1, 1]} : vector<1x64xf32> to vector<1x32xf32>
    %13 = vector.extract_strided_slice %11 {offsets = [0, 32], sizes = [1, 32], strides = [1, 1]} : vector<1x64xf32> to vector<1x32xf32>
    %cst_11 = arith.constant dense<0.000000e+00> : vector<1xf32>
    %14 = vector.multi_reduction <add>, %3, %cst_11 [1] : vector<1x32xf32> to vector<1xf32>
    %15 = vector.shape_cast %14 : vector<1xf32> to vector<1x1xf32>
    %cst_12 = arith.constant 3.200000e+01 : f32
    %16 = vector.broadcast %cst_12 : f32 to vector<1x1xf32>
    %17 = arith.divf %15, %16 : vector<1x1xf32>
    %18 = vector.broadcast %17 : vector<1x1xf32> to vector<1x32xf32>
    %19 = arith.subf %3, %18 : vector<1x32xf32>
    %20 = arith.mulf %19, %19 : vector<1x32xf32>
    %cst_13 = arith.constant dense<0.000000e+00> : vector<1xf32>
    %21 = vector.multi_reduction <add>, %20, %cst_13 [1] : vector<1x32xf32> to vector<1xf32>
    %22 = vector.shape_cast %21 : vector<1xf32> to vector<1x1xf32>
    %cst_14 = arith.constant 3.200000e+01 : f32
    %23 = vector.broadcast %cst_14 : f32 to vector<1x1xf32>
    %24 = arith.divf %22, %23 : vector<1x1xf32>
    %25 = vector.broadcast %17 : vector<1x1xf32> to vector<1x32xf32>
    %26 = arith.subf %3, %25 : vector<1x32xf32>
    %cst_15 = arith.constant 9.99999974E-6 : f32
    %27 = vector.broadcast %cst_15 : f32 to vector<1x1xf32>
    %28 = arith.addf %24, %27 : vector<1x1xf32>
    %29 = math.rsqrt %28 : vector<1x1xf32>
    %30 = vector.broadcast %29 : vector<1x1xf32> to vector<1x32xf32>
    %31 = arith.mulf %26, %30 : vector<1x32xf32>
    %cst_16 = arith.constant 1.000000e+00 : f32
    %32 = vector.broadcast %cst_16 : f32 to vector<1x32xf32>
    %33 = arith.addf %32, %12 : vector<1x32xf32>
    %34 = arith.mulf %31, %33 : vector<1x32xf32>
    %35 = arith.addf %34, %13 : vector<1x32xf32>
    %c0_17 = arith.constant 0 : index
    %c0_18 = arith.constant 0 : index
    %c0_19 = arith.constant 0 : index
    %36 = vector.load %arg7[%c0_17, %c0_18, %c0_19] : memref<1x32x96xf32, #tpu.memory_space<vmem>>, vector<1x32x96xf32>
    %37 = vector.shape_cast %36 : vector<1x32x96xf32> to vector<32x96xf32>
    %c0_20 = arith.constant 0 : index
    %c0_21 = arith.constant 0 : index
    %c0_22 = arith.constant 0 : index
    %38 = vector.load %arg8[%c0_20, %c0_21, %c0_22] : memref<1x1x96xf32, #tpu.memory_space<vmem>>, vector<1x1x96xf32>
    %39 = vector.shape_cast %38 : vector<1x1x96xf32> to vector<1x96xf32>
    %c0_23 = arith.constant 0 : index
    %c0_24 = arith.constant 0 : index
    %c0_25 = arith.constant 0 : index
    %40 = vector.load %arg4[%c0_23, %c0_24, %c0_25] : memref<1x19x32xf32, #tpu.memory_space<vmem>>, vector<1x19x32xf32>
    %41 = vector.shape_cast %40 : vector<1x19x32xf32> to vector<19x32xf32>
    %42 = vector.extract_strided_slice %37 {offsets = [0, 0], sizes = [32, 32], strides = [1, 1]} : vector<32x96xf32> to vector<32x32xf32>
    %cst_26 = arith.constant dense<0.000000e+00> : vector<1x32xf32>
    %43 = tpu.matmul %35, %42, %cst_26 {dimension_numbers = #tpu.dot_dimension_numbers<[1], [0], [0], [1], [0, 0, 1, 1], [], []>} : vector<1x32xf32>, vector<32x32xf32>, vector<1x32xf32> -> vector<1x32xf32>
    %44 = vector.extract_strided_slice %39 {offsets = [0, 0], sizes = [1, 32], strides = [1, 1]} : vector<1x96xf32> to vector<1x32xf32>
    %45 = arith.addf %43, %44 : vector<1x32xf32>
    %46 = vector.extract_strided_slice %37 {offsets = [0, 32], sizes = [32, 64], strides = [1, 1]} : vector<32x96xf32> to vector<32x64xf32>
    %cst_27 = arith.constant dense<0.000000e+00> : vector<19x64xf32>
    %47 = tpu.matmul %41, %46, %cst_27 {dimension_numbers = #tpu.dot_dimension_numbers<[1], [0], [0], [1], [0, 0, 1, 1], [], []>} : vector<19x32xf32>, vector<32x64xf32>, vector<19x64xf32> -> vector<19x64xf32>
    %48 = vector.extract_strided_slice %39 {offsets = [0, 32], sizes = [1, 64], strides = [1, 1]} : vector<1x96xf32> to vector<1x64xf32>
    %49 = vector.broadcast %48 : vector<1x64xf32> to vector<19x64xf32>
    %50 = arith.addf %47, %49 : vector<19x64xf32>
    %51 = vector.extract_strided_slice %50 {offsets = [0, 0], sizes = [19, 32], strides = [1, 1]} : vector<19x64xf32> to vector<19x32xf32>
    %52 = vector.extract_strided_slice %50 {offsets = [0, 32], sizes = [19, 32], strides = [1, 1]} : vector<19x64xf32> to vector<19x32xf32>
    %53 = vector.extract_strided_slice %45 {offsets = [0, 0], sizes = [1, 8], strides = [1, 1]} : vector<1x32xf32> to vector<1x8xf32>
    %54 = vector.extract_strided_slice %51 {offsets = [0, 0], sizes = [19, 8], strides = [1, 1]} : vector<19x32xf32> to vector<19x8xf32>
    %cst_28 = arith.constant dense<0.000000e+00> : vector<1x19xf32>
    %55 = tpu.matmul %53, %54, %cst_28 {dimension_numbers = #tpu.dot_dimension_numbers<[1], [1], [0], [0], [0, 0, 1, 0], [], []>} : vector<1x8xf32>, vector<19x8xf32>, vector<1x19xf32> -> vector<1x19xf32>
    %cst_29 = arith.constant 0.353553385 : f32
    %56 = vector.broadcast %cst_29 : f32 to vector<1x19xf32>
    %57 = arith.mulf %55, %56 : vector<1x19xf32>
    %cst_30 = arith.constant dense<0xFF800000> : vector<1xf32>
    %58 = vector.multi_reduction <maximumf>, %57, %cst_30 [1] : vector<1x19xf32> to vector<1xf32>
    %59 = vector.shape_cast %58 : vector<1xf32> to vector<1x1xf32>
    %60 = vector.broadcast %59 : vector<1x1xf32> to vector<1x19xf32>
    %61 = arith.subf %57, %60 : vector<1x19xf32>
    %62 = math.exp %61 : vector<1x19xf32>
    %cst_31 = arith.constant dense<0.000000e+00> : vector<1xf32>
    %63 = vector.multi_reduction <add>, %62, %cst_31 [1] : vector<1x19xf32> to vector<1xf32>
    %64 = vector.shape_cast %63 : vector<1xf32> to vector<1x1xf32>
    %65 = tpu.reciprocal %64 {approx = true} : vector<1x1xf32> -> vector<1x1xf32>
    %66 = vector.broadcast %65 : vector<1x1xf32> to vector<1x19xf32>
    %67 = arith.mulf %62, %66 : vector<1x19xf32>
    %68 = vector.extract_strided_slice %52 {offsets = [0, 0], sizes = [19, 8], strides = [1, 1]} : vector<19x32xf32> to vector<19x8xf32>
    %cst_32 = arith.constant dense<0.000000e+00> : vector<1x8xf32>
    %69 = tpu.matmul %67, %68, %cst_32 {dimension_numbers = #tpu.dot_dimension_numbers<[1], [0], [0], [1], [0, 0, 1, 1], [], []>} : vector<1x19xf32>, vector<19x8xf32>, vector<1x8xf32> -> vector<1x8xf32>
    %70 = vector.extract_strided_slice %45 {offsets = [0, 8], sizes = [1, 8], strides = [1, 1]} : vector<1x32xf32> to vector<1x8xf32>
    %71 = vector.extract_strided_slice %51 {offsets = [0, 8], sizes = [19, 8], strides = [1, 1]} : vector<19x32xf32> to vector<19x8xf32>
    %cst_33 = arith.constant dense<0.000000e+00> : vector<1x19xf32>
    %72 = tpu.matmul %70, %71, %cst_33 {dimension_numbers = #tpu.dot_dimension_numbers<[1], [1], [0], [0], [0, 0, 1, 0], [], []>} : vector<1x8xf32>, vector<19x8xf32>, vector<1x19xf32> -> vector<1x19xf32>
    %cst_34 = arith.constant 0.353553385 : f32
    %73 = vector.broadcast %cst_34 : f32 to vector<1x19xf32>
    %74 = arith.mulf %72, %73 : vector<1x19xf32>
    %cst_35 = arith.constant dense<0xFF800000> : vector<1xf32>
    %75 = vector.multi_reduction <maximumf>, %74, %cst_35 [1] : vector<1x19xf32> to vector<1xf32>
    %76 = vector.shape_cast %75 : vector<1xf32> to vector<1x1xf32>
    %77 = vector.broadcast %76 : vector<1x1xf32> to vector<1x19xf32>
    %78 = arith.subf %74, %77 : vector<1x19xf32>
    %79 = math.exp %78 : vector<1x19xf32>
    %cst_36 = arith.constant dense<0.000000e+00> : vector<1xf32>
    %80 = vector.multi_reduction <add>, %79, %cst_36 [1] : vector<1x19xf32> to vector<1xf32>
    %81 = vector.shape_cast %80 : vector<1xf32> to vector<1x1xf32>
    %82 = tpu.reciprocal %81 {approx = true} : vector<1x1xf32> -> vector<1x1xf32>
    %83 = vector.broadcast %82 : vector<1x1xf32> to vector<1x19xf32>
    %84 = arith.mulf %79, %83 : vector<1x19xf32>
    %85 = vector.extract_strided_slice %52 {offsets = [0, 8], sizes = [19, 8], strides = [1, 1]} : vector<19x32xf32> to vector<19x8xf32>
    %cst_37 = arith.constant dense<0.000000e+00> : vector<1x8xf32>
    %86 = tpu.matmul %84, %85, %cst_37 {dimension_numbers = #tpu.dot_dimension_numbers<[1], [0], [0], [1], [0, 0, 1, 1], [], []>} : vector<1x19xf32>, vector<19x8xf32>, vector<1x8xf32> -> vector<1x8xf32>
    %87 = vector.extract_strided_slice %45 {offsets = [0, 16], sizes = [1, 8], strides = [1, 1]} : vector<1x32xf32> to vector<1x8xf32>
    %88 = vector.extract_strided_slice %51 {offsets = [0, 16], sizes = [19, 8], strides = [1, 1]} : vector<19x32xf32> to vector<19x8xf32>
    %cst_38 = arith.constant dense<0.000000e+00> : vector<1x19xf32>
    %89 = tpu.matmul %87, %88, %cst_38 {dimension_numbers = #tpu.dot_dimension_numbers<[1], [1], [0], [0], [0, 0, 1, 0], [], []>} : vector<1x8xf32>, vector<19x8xf32>, vector<1x19xf32> -> vector<1x19xf32>
    %cst_39 = arith.constant 0.353553385 : f32
    %90 = vector.broadcast %cst_39 : f32 to vector<1x19xf32>
    %91 = arith.mulf %89, %90 : vector<1x19xf32>
    %cst_40 = arith.constant dense<0xFF800000> : vector<1xf32>
    %92 = vector.multi_reduction <maximumf>, %91, %cst_40 [1] : vector<1x19xf32> to vector<1xf32>
    %93 = vector.shape_cast %92 : vector<1xf32> to vector<1x1xf32>
    %94 = vector.broadcast %93 : vector<1x1xf32> to vector<1x19xf32>
    %95 = arith.subf %91, %94 : vector<1x19xf32>
    %96 = math.exp %95 : vector<1x19xf32>
    %cst_41 = arith.constant dense<0.000000e+00> : vector<1xf32>
    %97 = vector.multi_reduction <add>, %96, %cst_41 [1] : vector<1x19xf32> to vector<1xf32>
    %98 = vector.shape_cast %97 : vector<1xf32> to vector<1x1xf32>
    %99 = tpu.reciprocal %98 {approx = true} : vector<1x1xf32> -> vector<1x1xf32>
    %100 = vector.broadcast %99 : vector<1x1xf32> to vector<1x19xf32>
    %101 = arith.mulf %96, %100 : vector<1x19xf32>
    %102 = vector.extract_strided_slice %52 {offsets = [0, 16], sizes = [19, 8], strides = [1, 1]} : vector<19x32xf32> to vector<19x8xf32>
    %cst_42 = arith.constant dense<0.000000e+00> : vector<1x8xf32>
    %103 = tpu.matmul %101, %102, %cst_42 {dimension_numbers = #tpu.dot_dimension_numbers<[1], [0], [0], [1], [0, 0, 1, 1], [], []>} : vector<1x19xf32>, vector<19x8xf32>, vector<1x8xf32> -> vector<1x8xf32>
    %104 = vector.extract_strided_slice %45 {offsets = [0, 24], sizes = [1, 8], strides = [1, 1]} : vector<1x32xf32> to vector<1x8xf32>
    %105 = vector.extract_strided_slice %51 {offsets = [0, 24], sizes = [19, 8], strides = [1, 1]} : vector<19x32xf32> to vector<19x8xf32>
    %cst_43 = arith.constant dense<0.000000e+00> : vector<1x19xf32>
    %106 = tpu.matmul %104, %105, %cst_43 {dimension_numbers = #tpu.dot_dimension_numbers<[1], [1], [0], [0], [0, 0, 1, 0], [], []>} : vector<1x8xf32>, vector<19x8xf32>, vector<1x19xf32> -> vector<1x19xf32>
    %cst_44 = arith.constant 0.353553385 : f32
    %107 = vector.broadcast %cst_44 : f32 to vector<1x19xf32>
    %108 = arith.mulf %106, %107 : vector<1x19xf32>
    %cst_45 = arith.constant dense<0xFF800000> : vector<1xf32>
    %109 = vector.multi_reduction <maximumf>, %108, %cst_45 [1] : vector<1x19xf32> to vector<1xf32>
    %110 = vector.shape_cast %109 : vector<1xf32> to vector<1x1xf32>
    %111 = vector.broadcast %110 : vector<1x1xf32> to vector<1x19xf32>
    %112 = arith.subf %108, %111 : vector<1x19xf32>
    %113 = math.exp %112 : vector<1x19xf32>
    %cst_46 = arith.constant dense<0.000000e+00> : vector<1xf32>
    %114 = vector.multi_reduction <add>, %113, %cst_46 [1] : vector<1x19xf32> to vector<1xf32>
    %115 = vector.shape_cast %114 : vector<1xf32> to vector<1x1xf32>
    %116 = tpu.reciprocal %115 {approx = true} : vector<1x1xf32> -> vector<1x1xf32>
    %117 = vector.broadcast %116 : vector<1x1xf32> to vector<1x19xf32>
    %118 = arith.mulf %113, %117 : vector<1x19xf32>
    %119 = vector.extract_strided_slice %52 {offsets = [0, 24], sizes = [19, 8], strides = [1, 1]} : vector<19x32xf32> to vector<19x8xf32>
    %cst_47 = arith.constant dense<0.000000e+00> : vector<1x8xf32>
    %120 = tpu.matmul %118, %119, %cst_47 {dimension_numbers = #tpu.dot_dimension_numbers<[1], [0], [0], [1], [0, 0, 1, 1], [], []>} : vector<1x19xf32>, vector<19x8xf32>, vector<1x8xf32> -> vector<1x8xf32>
    %121 = tpu.concatenate %69, %86, %103, %120 in 1 : vector<1x8xf32>, vector<1x8xf32>, vector<1x8xf32>, vector<1x8xf32> -> vector<1x32xf32>
    %c0_48 = arith.constant 0 : index
    %c0_49 = arith.constant 0 : index
    %c0_50 = arith.constant 0 : index
    %122 = vector.load %arg9[%c0_48, %c0_49, %c0_50] : memref<1x32x32xf32, #tpu.memory_space<vmem>>, vector<1x32x32xf32>
    %123 = vector.shape_cast %122 : vector<1x32x32xf32> to vector<32x32xf32>
    %cst_51 = arith.constant dense<0.000000e+00> : vector<1x32xf32>
    %124 = tpu.matmul %121, %123, %cst_51 {dimension_numbers = #tpu.dot_dimension_numbers<[1], [0], [0], [1], [0, 0, 1, 1], [], []>} : vector<1x32xf32>, vector<32x32xf32>, vector<1x32xf32> -> vector<1x32xf32>
    %125 = arith.addf %3, %124 : vector<1x32xf32>
    %c0_52 = arith.constant 0 : index
    %c0_53 = arith.constant 0 : index
    %c0_54 = arith.constant 0 : index
    %126 = vector.load %arg10[%c0_52, %c0_53, %c0_54] : memref<1x1x32xf32, #tpu.memory_space<vmem>>, vector<1x1x32xf32>
    %127 = vector.shape_cast %126 : vector<1x1x32xf32> to vector<1x32xf32>
    %128 = arith.addf %125, %127 : vector<1x32xf32>
    %c0_55 = arith.constant 0 : index
    %c0_56 = arith.constant 0 : index
    %c0_57 = arith.constant 0 : index
    %129 = vector.load %arg11[%c0_55, %c0_56, %c0_57] : memref<1x32x64xf32, #tpu.memory_space<vmem>>, vector<1x32x64xf32>
    %130 = vector.shape_cast %129 : vector<1x32x64xf32> to vector<32x64xf32>
    %cst_58 = arith.constant dense<0.000000e+00> : vector<1x64xf32>
    %131 = tpu.matmul %5, %130, %cst_58 {dimension_numbers = #tpu.dot_dimension_numbers<[1], [0], [0], [1], [0, 0, 1, 1], [], []>} : vector<1x32xf32>, vector<32x64xf32>, vector<1x64xf32> -> vector<1x64xf32>
    %c0_59 = arith.constant 0 : index
    %c0_60 = arith.constant 0 : index
    %c0_61 = arith.constant 0 : index
    %132 = vector.load %arg12[%c0_59, %c0_60, %c0_61] : memref<1x1x64xf32, #tpu.memory_space<vmem>>, vector<1x1x64xf32>
    %133 = vector.shape_cast %132 : vector<1x1x64xf32> to vector<1x64xf32>
    %134 = arith.addf %131, %133 : vector<1x64xf32>
    %135 = vector.extract_strided_slice %134 {offsets = [0, 0], sizes = [1, 32], strides = [1, 1]} : vector<1x64xf32> to vector<1x32xf32>
    %136 = vector.extract_strided_slice %134 {offsets = [0, 32], sizes = [1, 32], strides = [1, 1]} : vector<1x64xf32> to vector<1x32xf32>
    %cst_62 = arith.constant dense<0.000000e+00> : vector<1xf32>
    %137 = vector.multi_reduction <add>, %128, %cst_62 [1] : vector<1x32xf32> to vector<1xf32>
    %138 = vector.shape_cast %137 : vector<1xf32> to vector<1x1xf32>
    %cst_63 = arith.constant 3.200000e+01 : f32
    %139 = vector.broadcast %cst_63 : f32 to vector<1x1xf32>
    %140 = arith.divf %138, %139 : vector<1x1xf32>
    %141 = vector.broadcast %140 : vector<1x1xf32> to vector<1x32xf32>
    %142 = arith.subf %128, %141 : vector<1x32xf32>
    %143 = arith.mulf %142, %142 : vector<1x32xf32>
    %cst_64 = arith.constant dense<0.000000e+00> : vector<1xf32>
    %144 = vector.multi_reduction <add>, %143, %cst_64 [1] : vector<1x32xf32> to vector<1xf32>
    %145 = vector.shape_cast %144 : vector<1xf32> to vector<1x1xf32>
    %cst_65 = arith.constant 3.200000e+01 : f32
    %146 = vector.broadcast %cst_65 : f32 to vector<1x1xf32>
    %147 = arith.divf %145, %146 : vector<1x1xf32>
    %148 = vector.broadcast %140 : vector<1x1xf32> to vector<1x32xf32>
    %149 = arith.subf %128, %148 : vector<1x32xf32>
    %cst_66 = arith.constant 9.99999974E-6 : f32
    %150 = vector.broadcast %cst_66 : f32 to vector<1x1xf32>
    %151 = arith.addf %147, %150 : vector<1x1xf32>
    %152 = math.rsqrt %151 : vector<1x1xf32>
    %153 = vector.broadcast %152 : vector<1x1xf32> to vector<1x32xf32>
    %154 = arith.mulf %149, %153 : vector<1x32xf32>
    %cst_67 = arith.constant 1.000000e+00 : f32
    %155 = vector.broadcast %cst_67 : f32 to vector<1x32xf32>
    %156 = arith.addf %155, %135 : vector<1x32xf32>
    %157 = arith.mulf %154, %156 : vector<1x32xf32>
    %158 = arith.addf %157, %136 : vector<1x32xf32>
    %c0_68 = arith.constant 0 : index
    %c0_69 = arith.constant 0 : index
    %c0_70 = arith.constant 0 : index
    %159 = vector.load %arg13[%c0_68, %c0_69, %c0_70] : memref<1x32x64xf32, #tpu.memory_space<vmem>>, vector<1x32x64xf32>
    %160 = vector.shape_cast %159 : vector<1x32x64xf32> to vector<32x64xf32>
    %cst_71 = arith.constant dense<0.000000e+00> : vector<1x64xf32>
    %161 = tpu.matmul %158, %160, %cst_71 {dimension_numbers = #tpu.dot_dimension_numbers<[1], [0], [0], [1], [0, 0, 1, 1], [], []>} : vector<1x32xf32>, vector<32x64xf32>, vector<1x64xf32> -> vector<1x64xf32>
    %c0_72 = arith.constant 0 : index
    %c0_73 = arith.constant 0 : index
    %c0_74 = arith.constant 0 : index
    %162 = vector.load %arg14[%c0_72, %c0_73, %c0_74] : memref<1x1x64xf32, #tpu.memory_space<vmem>>, vector<1x1x64xf32>
    %163 = vector.shape_cast %162 : vector<1x1x64xf32> to vector<1x64xf32>
    %164 = arith.addf %161, %163 : vector<1x64xf32>
    %cst_75 = arith.constant 0.000000e+00 : f32
    %165 = vector.broadcast %cst_75 : f32 to vector<1x64xf32>
    %166 = arith.maximumf %164, %165 : vector<1x64xf32>
    %c0_76 = arith.constant 0 : index
    %c0_77 = arith.constant 0 : index
    %c0_78 = arith.constant 0 : index
    %167 = vector.load %arg15[%c0_76, %c0_77, %c0_78] : memref<1x64x32xf32, #tpu.memory_space<vmem>>, vector<1x64x32xf32>
    %168 = vector.shape_cast %167 : vector<1x64x32xf32> to vector<64x32xf32>
    %cst_79 = arith.constant dense<0.000000e+00> : vector<1x32xf32>
    %169 = tpu.matmul %166, %168, %cst_79 {dimension_numbers = #tpu.dot_dimension_numbers<[1], [0], [0], [1], [0, 0, 1, 1], [], []>} : vector<1x64xf32>, vector<64x32xf32>, vector<1x32xf32> -> vector<1x32xf32>
    %170 = arith.addf %128, %169 : vector<1x32xf32>
    %c0_80 = arith.constant 0 : index
    %c0_81 = arith.constant 0 : index
    %c0_82 = arith.constant 0 : index
    %171 = vector.load %arg16[%c0_80, %c0_81, %c0_82] : memref<1x1x32xf32, #tpu.memory_space<vmem>>, vector<1x1x32xf32>
    %172 = vector.shape_cast %171 : vector<1x1x32xf32> to vector<1x32xf32>
    %173 = arith.addf %170, %172 : vector<1x32xf32>
    %c0_83 = arith.constant 0 : index
    %c0_84 = arith.constant 0 : index
    %174 = vector.load %arg18[%c0_83, %c0_84] : memref<1x32xf32, #tpu.memory_space<vmem>>, vector<1x32xf32>
    tpu.vector_store %arg18[%c0_83, %c0_84], %173 {strides = array<i32>} : memref<1x32xf32, #tpu.memory_space<vmem>>, vector<1x32xf32>,
    %c1_i32 = arith.constant 1 : i32
    %175 = arith.cmpi eq, %arg1, %c1_i32 : i32
    %176 = arith.extui %175 : i1 to i32
    %c0_i32_85 = arith.constant 0 : i32
    %177 = arith.cmpi ne, %176, %c0_i32_85 : i32
    scf.if %177 {
      %c0_86 = arith.constant 0 : index
      %c0_87 = arith.constant 0 : index
      %c0_88 = arith.constant 0 : index
      %178 = vector.load %arg17[%c0_86, %c0_87, %c0_88] : memref<1x1x32xf32, #tpu.memory_space<vmem>>, vector<1x1x32xf32>
      %179 = vector.shape_cast %178 : vector<1x1x32xf32> to vector<1x32xf32>
      %180 = vector.shape_cast %173 : vector<1x32xf32> to vector<1x1x32xf32>
      tpu.vector_store %arg17[%c0_86, %c0_87, %c0_88], %180 {strides = array<i32>} : memref<1x1x32xf32, #tpu.memory_space<vmem>>, vector<1x1x32xf32>,
    } else {
    }
    return
  }
  func.func @transform_0(%arg0: i32, %arg1: i32) -> (i32, i32, i32) {
    %c0_i32 = arith.constant 0 : i32
    %c0_i32_0 = arith.constant 0 : i32
    %c0_i32_1 = arith.constant 0 : i32
    return %arg0, %c0_i32, %c0_i32_0 : i32, i32, i32
  }
  func.func @transform_1(%arg0: i32, %arg1: i32) -> (i32, i32, i32) {
    %c0_i32 = arith.constant 0 : i32
    %c0_i32_0 = arith.constant 0 : i32
    %c0_i32_1 = arith.constant 0 : i32
    return %arg0, %c0_i32, %c0_i32_0 : i32, i32, i32
  }
  func.func @transform_2(%arg0: i32, %arg1: i32) -> (i32, i32, i32) {
    %c0_i32 = arith.constant 0 : i32
    %c0_i32_0 = arith.constant 0 : i32
    %c0_i32_1 = arith.constant 0 : i32
    return %arg0, %c0_i32, %c0_i32_0 : i32, i32, i32
  }
  func.func @transform_3(%arg0: i32, %arg1: i32) -> (i32, i32, i32) {
    %c0_i32 = arith.constant 0 : i32
    %c0_i32_0 = arith.constant 0 : i32
    %c0_i32_1 = arith.constant 0 : i32
    return %arg1, %c0_i32, %c0_i32_0 : i32, i32, i32
  }
  func.func @transform_4(%arg0: i32, %arg1: i32) -> (i32, i32, i32) {
    %c0_i32 = arith.constant 0 : i32
    %c0_i32_0 = arith.constant 0 : i32
    %c0_i32_1 = arith.constant 0 : i32
    return %arg1, %c0_i32, %c0_i32_0 : i32, i32, i32
  }
  func.func @transform_5(%arg0: i32, %arg1: i32) -> (i32, i32, i32) {
    %c0_i32 = arith.constant 0 : i32
    %c0_i32_0 = arith.constant 0 : i32
    %c0_i32_1 = arith.constant 0 : i32
    return %arg1, %c0_i32, %c0_i32_0 : i32, i32, i32
  }
  func.func @transform_6(%arg0: i32, %arg1: i32) -> (i32, i32, i32) {
    %c0_i32 = arith.constant 0 : i32
    %c0_i32_0 = arith.constant 0 : i32
    %c0_i32_1 = arith.constant 0 : i32
    return %arg1, %c0_i32, %c0_i32_0 : i32, i32, i32
  }
  func.func @transform_7(%arg0: i32, %arg1: i32) -> (i32, i32, i32) {
    %c0_i32 = arith.constant 0 : i32
    %c0_i32_0 = arith.constant 0 : i32
    %c0_i32_1 = arith.constant 0 : i32
    return %arg1, %c0_i32, %c0_i32_0 : i32, i32, i32
  }
  func.func @transform_8(%arg0: i32, %arg1: i32) -> (i32, i32, i32) {
    %c0_i32 = arith.constant 0 : i32
    %c0_i32_0 = arith.constant 0 : i32
    %c0_i32_1 = arith.constant 0 : i32
    return %arg1, %c0_i32, %c0_i32_0 : i32, i32, i32
  }
  func.func @transform_9(%arg0: i32, %arg1: i32) -> (i32, i32, i32) {
    %c0_i32 = arith.constant 0 : i32
    %c0_i32_0 = arith.constant 0 : i32
    %c0_i32_1 = arith.constant 0 : i32
    return %arg1, %c0_i32, %c0_i32_0 : i32, i32, i32
  }
  func.func @transform_10(%arg0: i32, %arg1: i32) -> (i32, i32, i32) {
    %c0_i32 = arith.constant 0 : i32
    %c0_i32_0 = arith.constant 0 : i32
    %c0_i32_1 = arith.constant 0 : i32
    return %arg1, %c0_i32, %c0_i32_0 : i32, i32, i32
  }
  func.func @transform_11(%arg0: i32, %arg1: i32) -> (i32, i32, i32) {
    %c0_i32 = arith.constant 0 : i32
    %c0_i32_0 = arith.constant 0 : i32
    %c0_i32_1 = arith.constant 0 : i32
    return %arg1, %c0_i32, %c0_i32_0 : i32, i32, i32
  }
  func.func @transform_12(%arg0: i32, %arg1: i32) -> (i32, i32, i32) {
    %c0_i32 = arith.constant 0 : i32
    %c0_i32_0 = arith.constant 0 : i32
    %c0_i32_1 = arith.constant 0 : i32
    return %arg1, %c0_i32, %c0_i32_0 : i32, i32, i32
  }
  func.func @transform_13(%arg0: i32, %arg1: i32) -> (i32, i32, i32) {
    %c0_i32 = arith.constant 0 : i32
    %c0_i32_0 = arith.constant 0 : i32
    %c0_i32_1 = arith.constant 0 : i32
    return %arg1, %c0_i32, %c0_i32_0 : i32, i32, i32
  }
  func.func @transform_14(%arg0: i32, %arg1: i32) -> (i32, i32, i32) {
    %c0_i32 = arith.constant 0 : i32
    %c0_i32_0 = arith.constant 0 : i32
    %c0_i32_1 = arith.constant 0 : i32
    return %arg1, %c0_i32, %c0_i32_0 : i32, i32, i32
  }
  func.func @transform_15(%arg0: i32, %arg1: i32) -> (i32, i32, i32) {
    %c0_i32 = arith.constant 0 : i32
    %c0_i32_0 = arith.constant 0 : i32
    %c0_i32_1 = arith.constant 0 : i32
    return %arg0, %c0_i32, %c0_i32_0 : i32, i32, i32
  }
}

module attributes {stable_mosaic.version = 11 : i64} {
  func.func @_layer_stack_kernel(%arg0: i32, %arg1: i32, %arg2: memref<1x1x32xf32, #tpu.memory_space<vmem>>, %arg3: memref<1x12x32xf32, #tpu.memory_space<vmem>>, %arg4: memref<1x32x64xf32, #tpu.memory_space<vmem>>, %arg5: memref<1x1x64xf32, #tpu.memory_space<vmem>>, %arg6: memref<1x32x96xf32, #tpu.memory_space<vmem>>, %arg7: memref<1x1x96xf32, #tpu.memory_space<vmem>>, %arg8: memref<1x32x32xf32, #tpu.memory_space<vmem>>, %arg9: memref<1x1x32xf32, #tpu.memory_space<vmem>>, %arg10: memref<1x32x64xf32, #tpu.memory_space<vmem>>, %arg11: memref<1x1x64xf32, #tpu.memory_space<vmem>>, %arg12: memref<1x32x64xf32, #tpu.memory_space<vmem>>, %arg13: memref<1x1x64xf32, #tpu.memory_space<vmem>>, %arg14: memref<1x64x32xf32, #tpu.memory_space<vmem>>, %arg15: memref<1x1x32xf32, #tpu.memory_space<vmem>>, %arg16: memref<1x12x32xf32, #tpu.memory_space<vmem>>, %arg17: memref<12x32xf32, #tpu.memory_space<vmem>>) attributes {dimension_semantics = [#tpu.dimension_semantics<parallel>, #tpu.dimension_semantics<arbitrary>], iteration_bounds = array<i64: 2, 4>, scalar_prefetch = 0 : i64, scratch_operands = 1 : i64, tpu.core_type = #tpu.core_type<tc>, window_params = [{transform_indices = @transform_0, window_bounds = array<i64: 1, 1, 32>}, {transform_indices = @transform_1, window_bounds = array<i64: 1, 12, 32>}, {transform_indices = @transform_2, window_bounds = array<i64: 1, 32, 64>}, {transform_indices = @transform_3, window_bounds = array<i64: 1, 1, 64>}, {transform_indices = @transform_4, window_bounds = array<i64: 1, 32, 96>}, {transform_indices = @transform_5, window_bounds = array<i64: 1, 1, 96>}, {transform_indices = @transform_6, window_bounds = array<i64: 1, 32, 32>}, {transform_indices = @transform_7, window_bounds = array<i64: 1, 1, 32>}, {transform_indices = @transform_8, window_bounds = array<i64: 1, 32, 64>}, {transform_indices = @transform_9, window_bounds = array<i64: 1, 1, 64>}, {transform_indices = @transform_10, window_bounds = array<i64: 1, 32, 64>}, {transform_indices = @transform_11, window_bounds = array<i64: 1, 1, 64>}, {transform_indices = @transform_12, window_bounds = array<i64: 1, 64, 32>}, {transform_indices = @transform_13, window_bounds = array<i64: 1, 1, 32>}, {transform_indices = @transform_14, window_bounds = array<i64: 1, 12, 32>}]} {
    %c0_i32 = arith.constant 0 : i32
    %0 = arith.cmpi eq, %arg1, %c0_i32 : i32
    %1 = arith.extui %0 : i1 to i32
    %c0_i32_0 = arith.constant 0 : i32
    %2 = arith.cmpi ne, %1, %c0_i32_0 : i32
    scf.if %2 {
      %c0_82 = arith.constant 0 : index
      %c0_83 = arith.constant 0 : index
      %c0_84 = arith.constant 0 : index
      %178 = vector.load %arg3[%c0_82, %c0_83, %c0_84] : memref<1x12x32xf32, #tpu.memory_space<vmem>>, vector<1x12x32xf32>
      %179 = vector.shape_cast %178 : vector<1x12x32xf32> to vector<12x32xf32>
      %c0_85 = arith.constant 0 : index
      %c0_86 = arith.constant 0 : index
      %180 = vector.load %arg17[%c0_85, %c0_86] : memref<12x32xf32, #tpu.memory_space<vmem>>, vector<12x32xf32>
      tpu.vector_store %arg17[%c0_85, %c0_86], %179 {strides = array<i32>} : memref<12x32xf32, #tpu.memory_space<vmem>>, vector<12x32xf32>,
    } else {
    }
    %c0 = arith.constant 0 : index
    %c0_1 = arith.constant 0 : index
    %3 = vector.load %arg17[%c0, %c0_1] : memref<12x32xf32, #tpu.memory_space<vmem>>, vector<12x32xf32>
    %c0_2 = arith.constant 0 : index
    %c0_3 = arith.constant 0 : index
    %c0_4 = arith.constant 0 : index
    %4 = vector.load %arg2[%c0_2, %c0_3, %c0_4] : memref<1x1x32xf32, #tpu.memory_space<vmem>>, vector<1x1x32xf32>
    %5 = vector.shape_cast %4 : vector<1x1x32xf32> to vector<1x32xf32>
    %c0_5 = arith.constant 0 : index
    %c0_6 = arith.constant 0 : index
    %c0_7 = arith.constant 0 : index
    %6 = vector.load %arg4[%c0_5, %c0_6, %c0_7] : memref<1x32x64xf32, #tpu.memory_space<vmem>>, vector<1x32x64xf32>
    %7 = vector.shape_cast %6 : vector<1x32x64xf32> to vector<32x64xf32>
    %cst = arith.constant dense<0.000000e+00> : vector<1x64xf32>
    %8 = tpu.matmul %5, %7, %cst {dimension_numbers = #tpu.dot_dimension_numbers<[1], [0], [0], [1], [0, 0, 1, 1], [], []>} : vector<1x32xf32>, vector<32x64xf32>, vector<1x64xf32> -> vector<1x64xf32>
    %c0_8 = arith.constant 0 : index
    %c0_9 = arith.constant 0 : index
    %c0_10 = arith.constant 0 : index
    %9 = vector.load %arg5[%c0_8, %c0_9, %c0_10] : memref<1x1x64xf32, #tpu.memory_space<vmem>>, vector<1x1x64xf32>
    %10 = vector.shape_cast %9 : vector<1x1x64xf32> to vector<1x64xf32>
    %11 = arith.addf %8, %10 : vector<1x64xf32>
    %12 = vector.extract_strided_slice %11 {offsets = [0, 0], sizes = [1, 32], strides = [1, 1]} : vector<1x64xf32> to vector<1x32xf32>
    %13 = vector.extract_strided_slice %11 {offsets = [0, 32], sizes = [1, 32], strides = [1, 1]} : vector<1x64xf32> to vector<1x32xf32>
    %cst_11 = arith.constant dense<0.000000e+00> : vector<12xf32>
    %14 = vector.multi_reduction <add>, %3, %cst_11 [1] : vector<12x32xf32> to vector<12xf32>
    %15 = vector.shape_cast %14 : vector<12xf32> to vector<12x1xf32>
    %cst_12 = arith.constant 3.200000e+01 : f32
    %16 = vector.broadcast %cst_12 : f32 to vector<12x1xf32>
    %17 = arith.divf %15, %16 : vector<12x1xf32>
    %18 = vector.broadcast %17 : vector<12x1xf32> to vector<12x32xf32>
    %19 = arith.subf %3, %18 : vector<12x32xf32>
    %20 = arith.mulf %19, %19 : vector<12x32xf32>
    %cst_13 = arith.constant dense<0.000000e+00> : vector<12xf32>
    %21 = vector.multi_reduction <add>, %20, %cst_13 [1] : vector<12x32xf32> to vector<12xf32>
    %22 = vector.shape_cast %21 : vector<12xf32> to vector<12x1xf32>
    %cst_14 = arith.constant 3.200000e+01 : f32
    %23 = vector.broadcast %cst_14 : f32 to vector<12x1xf32>
    %24 = arith.divf %22, %23 : vector<12x1xf32>
    %25 = vector.broadcast %17 : vector<12x1xf32> to vector<12x32xf32>
    %26 = arith.subf %3, %25 : vector<12x32xf32>
    %cst_15 = arith.constant 9.99999974E-6 : f32
    %27 = vector.broadcast %cst_15 : f32 to vector<12x1xf32>
    %28 = arith.addf %24, %27 : vector<12x1xf32>
    %29 = math.rsqrt %28 : vector<12x1xf32>
    %30 = vector.broadcast %29 : vector<12x1xf32> to vector<12x32xf32>
    %31 = arith.mulf %26, %30 : vector<12x32xf32>
    %cst_16 = arith.constant 1.000000e+00 : f32
    %32 = vector.broadcast %cst_16 : f32 to vector<1x32xf32>
    %33 = arith.addf %32, %12 : vector<1x32xf32>
    %34 = vector.broadcast %33 : vector<1x32xf32> to vector<12x32xf32>
    %35 = arith.mulf %31, %34 : vector<12x32xf32>
    %36 = vector.broadcast %13 : vector<1x32xf32> to vector<12x32xf32>
    %37 = arith.addf %35, %36 : vector<12x32xf32>
    %c0_17 = arith.constant 0 : index
    %c0_18 = arith.constant 0 : index
    %c0_19 = arith.constant 0 : index
    %38 = vector.load %arg6[%c0_17, %c0_18, %c0_19] : memref<1x32x96xf32, #tpu.memory_space<vmem>>, vector<1x32x96xf32>
    %39 = vector.shape_cast %38 : vector<1x32x96xf32> to vector<32x96xf32>
    %c0_20 = arith.constant 0 : index
    %c0_21 = arith.constant 0 : index
    %c0_22 = arith.constant 0 : index
    %40 = vector.load %arg7[%c0_20, %c0_21, %c0_22] : memref<1x1x96xf32, #tpu.memory_space<vmem>>, vector<1x1x96xf32>
    %41 = vector.shape_cast %40 : vector<1x1x96xf32> to vector<1x96xf32>
    %cst_23 = arith.constant dense<0.000000e+00> : vector<12x96xf32>
    %42 = tpu.matmul %37, %39, %cst_23 {dimension_numbers = #tpu.dot_dimension_numbers<[1], [0], [0], [1], [0, 0, 1, 1], [], []>} : vector<12x32xf32>, vector<32x96xf32>, vector<12x96xf32> -> vector<12x96xf32>
    %43 = vector.broadcast %41 : vector<1x96xf32> to vector<12x96xf32>
    %44 = arith.addf %42, %43 : vector<12x96xf32>
    %45 = vector.extract_strided_slice %44 {offsets = [0, 0], sizes = [12, 32], strides = [1, 1]} : vector<12x96xf32> to vector<12x32xf32>
    %46 = vector.extract_strided_slice %44 {offsets = [0, 32], sizes = [12, 32], strides = [1, 1]} : vector<12x96xf32> to vector<12x32xf32>
    %47 = vector.extract_strided_slice %44 {offsets = [0, 64], sizes = [12, 32], strides = [1, 1]} : vector<12x96xf32> to vector<12x32xf32>
    %48 = vector.extract_strided_slice %45 {offsets = [0, 0], sizes = [12, 8], strides = [1, 1]} : vector<12x32xf32> to vector<12x8xf32>
    %49 = vector.extract_strided_slice %46 {offsets = [0, 0], sizes = [12, 8], strides = [1, 1]} : vector<12x32xf32> to vector<12x8xf32>
    %cst_24 = arith.constant dense<0.000000e+00> : vector<12x12xf32>
    %50 = tpu.matmul %48, %49, %cst_24 {dimension_numbers = #tpu.dot_dimension_numbers<[1], [1], [0], [0], [0, 0, 1, 0], [], []>} : vector<12x8xf32>, vector<12x8xf32>, vector<12x12xf32> -> vector<12x12xf32>
    %cst_25 = arith.constant 0.353553385 : f32
    %51 = vector.broadcast %cst_25 : f32 to vector<12x12xf32>
    %52 = arith.mulf %50, %51 : vector<12x12xf32>
    %cst_26 = arith.constant dense<0xFF800000> : vector<12xf32>
    %53 = vector.multi_reduction <maximumf>, %52, %cst_26 [1] : vector<12x12xf32> to vector<12xf32>
    %54 = vector.shape_cast %53 : vector<12xf32> to vector<12x1xf32>
    %55 = vector.broadcast %54 : vector<12x1xf32> to vector<12x12xf32>
    %56 = arith.subf %52, %55 : vector<12x12xf32>
    %57 = math.exp %56 : vector<12x12xf32>
    %cst_27 = arith.constant dense<0.000000e+00> : vector<12xf32>
    %58 = vector.multi_reduction <add>, %57, %cst_27 [1] : vector<12x12xf32> to vector<12xf32>
    %59 = vector.shape_cast %58 : vector<12xf32> to vector<12x1xf32>
    %60 = tpu.reciprocal %59 {approx = true} : vector<12x1xf32> -> vector<12x1xf32>
    %61 = vector.broadcast %60 : vector<12x1xf32> to vector<12x12xf32>
    %62 = arith.mulf %57, %61 : vector<12x12xf32>
    %63 = vector.extract_strided_slice %47 {offsets = [0, 0], sizes = [12, 8], strides = [1, 1]} : vector<12x32xf32> to vector<12x8xf32>
    %cst_28 = arith.constant dense<0.000000e+00> : vector<12x8xf32>
    %64 = tpu.matmul %62, %63, %cst_28 {dimension_numbers = #tpu.dot_dimension_numbers<[1], [0], [0], [1], [0, 0, 1, 1], [], []>} : vector<12x12xf32>, vector<12x8xf32>, vector<12x8xf32> -> vector<12x8xf32>
    %65 = vector.extract_strided_slice %45 {offsets = [0, 8], sizes = [12, 8], strides = [1, 1]} : vector<12x32xf32> to vector<12x8xf32>
    %66 = vector.extract_strided_slice %46 {offsets = [0, 8], sizes = [12, 8], strides = [1, 1]} : vector<12x32xf32> to vector<12x8xf32>
    %cst_29 = arith.constant dense<0.000000e+00> : vector<12x12xf32>
    %67 = tpu.matmul %65, %66, %cst_29 {dimension_numbers = #tpu.dot_dimension_numbers<[1], [1], [0], [0], [0, 0, 1, 0], [], []>} : vector<12x8xf32>, vector<12x8xf32>, vector<12x12xf32> -> vector<12x12xf32>
    %cst_30 = arith.constant 0.353553385 : f32
    %68 = vector.broadcast %cst_30 : f32 to vector<12x12xf32>
    %69 = arith.mulf %67, %68 : vector<12x12xf32>
    %cst_31 = arith.constant dense<0xFF800000> : vector<12xf32>
    %70 = vector.multi_reduction <maximumf>, %69, %cst_31 [1] : vector<12x12xf32> to vector<12xf32>
    %71 = vector.shape_cast %70 : vector<12xf32> to vector<12x1xf32>
    %72 = vector.broadcast %71 : vector<12x1xf32> to vector<12x12xf32>
    %73 = arith.subf %69, %72 : vector<12x12xf32>
    %74 = math.exp %73 : vector<12x12xf32>
    %cst_32 = arith.constant dense<0.000000e+00> : vector<12xf32>
    %75 = vector.multi_reduction <add>, %74, %cst_32 [1] : vector<12x12xf32> to vector<12xf32>
    %76 = vector.shape_cast %75 : vector<12xf32> to vector<12x1xf32>
    %77 = tpu.reciprocal %76 {approx = true} : vector<12x1xf32> -> vector<12x1xf32>
    %78 = vector.broadcast %77 : vector<12x1xf32> to vector<12x12xf32>
    %79 = arith.mulf %74, %78 : vector<12x12xf32>
    %80 = vector.extract_strided_slice %47 {offsets = [0, 8], sizes = [12, 8], strides = [1, 1]} : vector<12x32xf32> to vector<12x8xf32>
    %cst_33 = arith.constant dense<0.000000e+00> : vector<12x8xf32>
    %81 = tpu.matmul %79, %80, %cst_33 {dimension_numbers = #tpu.dot_dimension_numbers<[1], [0], [0], [1], [0, 0, 1, 1], [], []>} : vector<12x12xf32>, vector<12x8xf32>, vector<12x8xf32> -> vector<12x8xf32>
    %82 = vector.extract_strided_slice %45 {offsets = [0, 16], sizes = [12, 8], strides = [1, 1]} : vector<12x32xf32> to vector<12x8xf32>
    %83 = vector.extract_strided_slice %46 {offsets = [0, 16], sizes = [12, 8], strides = [1, 1]} : vector<12x32xf32> to vector<12x8xf32>
    %cst_34 = arith.constant dense<0.000000e+00> : vector<12x12xf32>
    %84 = tpu.matmul %82, %83, %cst_34 {dimension_numbers = #tpu.dot_dimension_numbers<[1], [1], [0], [0], [0, 0, 1, 0], [], []>} : vector<12x8xf32>, vector<12x8xf32>, vector<12x12xf32> -> vector<12x12xf32>
    %cst_35 = arith.constant 0.353553385 : f32
    %85 = vector.broadcast %cst_35 : f32 to vector<12x12xf32>
    %86 = arith.mulf %84, %85 : vector<12x12xf32>
    %cst_36 = arith.constant dense<0xFF800000> : vector<12xf32>
    %87 = vector.multi_reduction <maximumf>, %86, %cst_36 [1] : vector<12x12xf32> to vector<12xf32>
    %88 = vector.shape_cast %87 : vector<12xf32> to vector<12x1xf32>
    %89 = vector.broadcast %88 : vector<12x1xf32> to vector<12x12xf32>
    %90 = arith.subf %86, %89 : vector<12x12xf32>
    %91 = math.exp %90 : vector<12x12xf32>
    %cst_37 = arith.constant dense<0.000000e+00> : vector<12xf32>
    %92 = vector.multi_reduction <add>, %91, %cst_37 [1] : vector<12x12xf32> to vector<12xf32>
    %93 = vector.shape_cast %92 : vector<12xf32> to vector<12x1xf32>
    %94 = tpu.reciprocal %93 {approx = true} : vector<12x1xf32> -> vector<12x1xf32>
    %95 = vector.broadcast %94 : vector<12x1xf32> to vector<12x12xf32>
    %96 = arith.mulf %91, %95 : vector<12x12xf32>
    %97 = vector.extract_strided_slice %47 {offsets = [0, 16], sizes = [12, 8], strides = [1, 1]} : vector<12x32xf32> to vector<12x8xf32>
    %cst_38 = arith.constant dense<0.000000e+00> : vector<12x8xf32>
    %98 = tpu.matmul %96, %97, %cst_38 {dimension_numbers = #tpu.dot_dimension_numbers<[1], [0], [0], [1], [0, 0, 1, 1], [], []>} : vector<12x12xf32>, vector<12x8xf32>, vector<12x8xf32> -> vector<12x8xf32>
    %99 = vector.extract_strided_slice %45 {offsets = [0, 24], sizes = [12, 8], strides = [1, 1]} : vector<12x32xf32> to vector<12x8xf32>
    %100 = vector.extract_strided_slice %46 {offsets = [0, 24], sizes = [12, 8], strides = [1, 1]} : vector<12x32xf32> to vector<12x8xf32>
    %cst_39 = arith.constant dense<0.000000e+00> : vector<12x12xf32>
    %101 = tpu.matmul %99, %100, %cst_39 {dimension_numbers = #tpu.dot_dimension_numbers<[1], [1], [0], [0], [0, 0, 1, 0], [], []>} : vector<12x8xf32>, vector<12x8xf32>, vector<12x12xf32> -> vector<12x12xf32>
    %cst_40 = arith.constant 0.353553385 : f32
    %102 = vector.broadcast %cst_40 : f32 to vector<12x12xf32>
    %103 = arith.mulf %101, %102 : vector<12x12xf32>
    %cst_41 = arith.constant dense<0xFF800000> : vector<12xf32>
    %104 = vector.multi_reduction <maximumf>, %103, %cst_41 [1] : vector<12x12xf32> to vector<12xf32>
    %105 = vector.shape_cast %104 : vector<12xf32> to vector<12x1xf32>
    %106 = vector.broadcast %105 : vector<12x1xf32> to vector<12x12xf32>
    %107 = arith.subf %103, %106 : vector<12x12xf32>
    %108 = math.exp %107 : vector<12x12xf32>
    %cst_42 = arith.constant dense<0.000000e+00> : vector<12xf32>
    %109 = vector.multi_reduction <add>, %108, %cst_42 [1] : vector<12x12xf32> to vector<12xf32>
    %110 = vector.shape_cast %109 : vector<12xf32> to vector<12x1xf32>
    %111 = tpu.reciprocal %110 {approx = true} : vector<12x1xf32> -> vector<12x1xf32>
    %112 = vector.broadcast %111 : vector<12x1xf32> to vector<12x12xf32>
    %113 = arith.mulf %108, %112 : vector<12x12xf32>
    %114 = vector.extract_strided_slice %47 {offsets = [0, 24], sizes = [12, 8], strides = [1, 1]} : vector<12x32xf32> to vector<12x8xf32>
    %cst_43 = arith.constant dense<0.000000e+00> : vector<12x8xf32>
    %115 = tpu.matmul %113, %114, %cst_43 {dimension_numbers = #tpu.dot_dimension_numbers<[1], [0], [0], [1], [0, 0, 1, 1], [], []>} : vector<12x12xf32>, vector<12x8xf32>, vector<12x8xf32> -> vector<12x8xf32>
    %116 = tpu.concatenate %64, %81, %98, %115 in 1 : vector<12x8xf32>, vector<12x8xf32>, vector<12x8xf32>, vector<12x8xf32> -> vector<12x32xf32>
    %c0_44 = arith.constant 0 : index
    %c0_45 = arith.constant 0 : index
    %c0_46 = arith.constant 0 : index
    %117 = vector.load %arg8[%c0_44, %c0_45, %c0_46] : memref<1x32x32xf32, #tpu.memory_space<vmem>>, vector<1x32x32xf32>
    %118 = vector.shape_cast %117 : vector<1x32x32xf32> to vector<32x32xf32>
    %cst_47 = arith.constant dense<0.000000e+00> : vector<12x32xf32>
    %119 = tpu.matmul %116, %118, %cst_47 {dimension_numbers = #tpu.dot_dimension_numbers<[1], [0], [0], [1], [0, 0, 1, 1], [], []>} : vector<12x32xf32>, vector<32x32xf32>, vector<12x32xf32> -> vector<12x32xf32>
    %120 = arith.addf %3, %119 : vector<12x32xf32>
    %c0_48 = arith.constant 0 : index
    %c0_49 = arith.constant 0 : index
    %c0_50 = arith.constant 0 : index
    %121 = vector.load %arg9[%c0_48, %c0_49, %c0_50] : memref<1x1x32xf32, #tpu.memory_space<vmem>>, vector<1x1x32xf32>
    %122 = vector.shape_cast %121 : vector<1x1x32xf32> to vector<1x32xf32>
    %123 = vector.broadcast %122 : vector<1x32xf32> to vector<12x32xf32>
    %124 = arith.addf %120, %123 : vector<12x32xf32>
    %c0_51 = arith.constant 0 : index
    %c0_52 = arith.constant 0 : index
    %c0_53 = arith.constant 0 : index
    %125 = vector.load %arg10[%c0_51, %c0_52, %c0_53] : memref<1x32x64xf32, #tpu.memory_space<vmem>>, vector<1x32x64xf32>
    %126 = vector.shape_cast %125 : vector<1x32x64xf32> to vector<32x64xf32>
    %cst_54 = arith.constant dense<0.000000e+00> : vector<1x64xf32>
    %127 = tpu.matmul %5, %126, %cst_54 {dimension_numbers = #tpu.dot_dimension_numbers<[1], [0], [0], [1], [0, 0, 1, 1], [], []>} : vector<1x32xf32>, vector<32x64xf32>, vector<1x64xf32> -> vector<1x64xf32>
    %c0_55 = arith.constant 0 : index
    %c0_56 = arith.constant 0 : index
    %c0_57 = arith.constant 0 : index
    %128 = vector.load %arg11[%c0_55, %c0_56, %c0_57] : memref<1x1x64xf32, #tpu.memory_space<vmem>>, vector<1x1x64xf32>
    %129 = vector.shape_cast %128 : vector<1x1x64xf32> to vector<1x64xf32>
    %130 = arith.addf %127, %129 : vector<1x64xf32>
    %131 = vector.extract_strided_slice %130 {offsets = [0, 0], sizes = [1, 32], strides = [1, 1]} : vector<1x64xf32> to vector<1x32xf32>
    %132 = vector.extract_strided_slice %130 {offsets = [0, 32], sizes = [1, 32], strides = [1, 1]} : vector<1x64xf32> to vector<1x32xf32>
    %cst_58 = arith.constant dense<0.000000e+00> : vector<12xf32>
    %133 = vector.multi_reduction <add>, %124, %cst_58 [1] : vector<12x32xf32> to vector<12xf32>
    %134 = vector.shape_cast %133 : vector<12xf32> to vector<12x1xf32>
    %cst_59 = arith.constant 3.200000e+01 : f32
    %135 = vector.broadcast %cst_59 : f32 to vector<12x1xf32>
    %136 = arith.divf %134, %135 : vector<12x1xf32>
    %137 = vector.broadcast %136 : vector<12x1xf32> to vector<12x32xf32>
    %138 = arith.subf %124, %137 : vector<12x32xf32>
    %139 = arith.mulf %138, %138 : vector<12x32xf32>
    %cst_60 = arith.constant dense<0.000000e+00> : vector<12xf32>
    %140 = vector.multi_reduction <add>, %139, %cst_60 [1] : vector<12x32xf32> to vector<12xf32>
    %141 = vector.shape_cast %140 : vector<12xf32> to vector<12x1xf32>
    %cst_61 = arith.constant 3.200000e+01 : f32
    %142 = vector.broadcast %cst_61 : f32 to vector<12x1xf32>
    %143 = arith.divf %141, %142 : vector<12x1xf32>
    %144 = vector.broadcast %136 : vector<12x1xf32> to vector<12x32xf32>
    %145 = arith.subf %124, %144 : vector<12x32xf32>
    %cst_62 = arith.constant 9.99999974E-6 : f32
    %146 = vector.broadcast %cst_62 : f32 to vector<12x1xf32>
    %147 = arith.addf %143, %146 : vector<12x1xf32>
    %148 = math.rsqrt %147 : vector<12x1xf32>
    %149 = vector.broadcast %148 : vector<12x1xf32> to vector<12x32xf32>
    %150 = arith.mulf %145, %149 : vector<12x32xf32>
    %cst_63 = arith.constant 1.000000e+00 : f32
    %151 = vector.broadcast %cst_63 : f32 to vector<1x32xf32>
    %152 = arith.addf %151, %131 : vector<1x32xf32>
    %153 = vector.broadcast %152 : vector<1x32xf32> to vector<12x32xf32>
    %154 = arith.mulf %150, %153 : vector<12x32xf32>
    %155 = vector.broadcast %132 : vector<1x32xf32> to vector<12x32xf32>
    %156 = arith.addf %154, %155 : vector<12x32xf32>
    %c0_64 = arith.constant 0 : index
    %c0_65 = arith.constant 0 : index
    %c0_66 = arith.constant 0 : index
    %157 = vector.load %arg12[%c0_64, %c0_65, %c0_66] : memref<1x32x64xf32, #tpu.memory_space<vmem>>, vector<1x32x64xf32>
    %158 = vector.shape_cast %157 : vector<1x32x64xf32> to vector<32x64xf32>
    %cst_67 = arith.constant dense<0.000000e+00> : vector<12x64xf32>
    %159 = tpu.matmul %156, %158, %cst_67 {dimension_numbers = #tpu.dot_dimension_numbers<[1], [0], [0], [1], [0, 0, 1, 1], [], []>} : vector<12x32xf32>, vector<32x64xf32>, vector<12x64xf32> -> vector<12x64xf32>
    %c0_68 = arith.constant 0 : index
    %c0_69 = arith.constant 0 : index
    %c0_70 = arith.constant 0 : index
    %160 = vector.load %arg13[%c0_68, %c0_69, %c0_70] : memref<1x1x64xf32, #tpu.memory_space<vmem>>, vector<1x1x64xf32>
    %161 = vector.shape_cast %160 : vector<1x1x64xf32> to vector<1x64xf32>
    %162 = vector.broadcast %161 : vector<1x64xf32> to vector<12x64xf32>
    %163 = arith.addf %159, %162 : vector<12x64xf32>
    %cst_71 = arith.constant 0.000000e+00 : f32
    %164 = vector.broadcast %cst_71 : f32 to vector<12x64xf32>
    %165 = arith.maximumf %163, %164 : vector<12x64xf32>
    %c0_72 = arith.constant 0 : index
    %c0_73 = arith.constant 0 : index
    %c0_74 = arith.constant 0 : index
    %166 = vector.load %arg14[%c0_72, %c0_73, %c0_74] : memref<1x64x32xf32, #tpu.memory_space<vmem>>, vector<1x64x32xf32>
    %167 = vector.shape_cast %166 : vector<1x64x32xf32> to vector<64x32xf32>
    %cst_75 = arith.constant dense<0.000000e+00> : vector<12x32xf32>
    %168 = tpu.matmul %165, %167, %cst_75 {dimension_numbers = #tpu.dot_dimension_numbers<[1], [0], [0], [1], [0, 0, 1, 1], [], []>} : vector<12x64xf32>, vector<64x32xf32>, vector<12x32xf32> -> vector<12x32xf32>
    %169 = arith.addf %124, %168 : vector<12x32xf32>
    %c0_76 = arith.constant 0 : index
    %c0_77 = arith.constant 0 : index
    %c0_78 = arith.constant 0 : index
    %170 = vector.load %arg15[%c0_76, %c0_77, %c0_78] : memref<1x1x32xf32, #tpu.memory_space<vmem>>, vector<1x1x32xf32>
    %171 = vector.shape_cast %170 : vector<1x1x32xf32> to vector<1x32xf32>
    %172 = vector.broadcast %171 : vector<1x32xf32> to vector<12x32xf32>
    %173 = arith.addf %169, %172 : vector<12x32xf32>
    %c0_79 = arith.constant 0 : index
    %c0_80 = arith.constant 0 : index
    %174 = vector.load %arg17[%c0_79, %c0_80] : memref<12x32xf32, #tpu.memory_space<vmem>>, vector<12x32xf32>
    tpu.vector_store %arg17[%c0_79, %c0_80], %173 {strides = array<i32>} : memref<12x32xf32, #tpu.memory_space<vmem>>, vector<12x32xf32>,
    %c3_i32 = arith.constant 3 : i32
    %175 = arith.cmpi eq, %arg1, %c3_i32 : i32
    %176 = arith.extui %175 : i1 to i32
    %c0_i32_81 = arith.constant 0 : i32
    %177 = arith.cmpi ne, %176, %c0_i32_81 : i32
    scf.if %177 {
      %c0_82 = arith.constant 0 : index
      %c0_83 = arith.constant 0 : index
      %c0_84 = arith.constant 0 : index
      %178 = vector.load %arg16[%c0_82, %c0_83, %c0_84] : memref<1x12x32xf32, #tpu.memory_space<vmem>>, vector<1x12x32xf32>
      %179 = vector.shape_cast %178 : vector<1x12x32xf32> to vector<12x32xf32>
      %180 = vector.shape_cast %173 : vector<12x32xf32> to vector<1x12x32xf32>
      tpu.vector_store %arg16[%c0_82, %c0_83, %c0_84], %180 {strides = array<i32>} : memref<1x12x32xf32, #tpu.memory_space<vmem>>, vector<1x12x32xf32>,
    } else {
    }
    return
  }
  func.func @transform_0(%arg0: i32, %arg1: i32) -> (i32, i32, i32) {
    %c0_i32 = arith.constant 0 : i32
    %c0_i32_0 = arith.constant 0 : i32
    %c0_i32_1 = arith.constant 0 : i32
    return %arg0, %c0_i32, %c0_i32_0 : i32, i32, i32
  }
  func.func @transform_1(%arg0: i32, %arg1: i32) -> (i32, i32, i32) {
    %c0_i32 = arith.constant 0 : i32
    %c0_i32_0 = arith.constant 0 : i32
    %c0_i32_1 = arith.constant 0 : i32
    return %arg0, %c0_i32, %c0_i32_0 : i32, i32, i32
  }
  func.func @transform_2(%arg0: i32, %arg1: i32) -> (i32, i32, i32) {
    %c0_i32 = arith.constant 0 : i32
    %c0_i32_0 = arith.constant 0 : i32
    %c0_i32_1 = arith.constant 0 : i32
    return %arg1, %c0_i32, %c0_i32_0 : i32, i32, i32
  }
  func.func @transform_3(%arg0: i32, %arg1: i32) -> (i32, i32, i32) {
    %c0_i32 = arith.constant 0 : i32
    %c0_i32_0 = arith.constant 0 : i32
    %c0_i32_1 = arith.constant 0 : i32
    return %arg1, %c0_i32, %c0_i32_0 : i32, i32, i32
  }
  func.func @transform_4(%arg0: i32, %arg1: i32) -> (i32, i32, i32) {
    %c0_i32 = arith.constant 0 : i32
    %c0_i32_0 = arith.constant 0 : i32
    %c0_i32_1 = arith.constant 0 : i32
    return %arg1, %c0_i32, %c0_i32_0 : i32, i32, i32
  }
  func.func @transform_5(%arg0: i32, %arg1: i32) -> (i32, i32, i32) {
    %c0_i32 = arith.constant 0 : i32
    %c0_i32_0 = arith.constant 0 : i32
    %c0_i32_1 = arith.constant 0 : i32
    return %arg1, %c0_i32, %c0_i32_0 : i32, i32, i32
  }
  func.func @transform_6(%arg0: i32, %arg1: i32) -> (i32, i32, i32) {
    %c0_i32 = arith.constant 0 : i32
    %c0_i32_0 = arith.constant 0 : i32
    %c0_i32_1 = arith.constant 0 : i32
    return %arg1, %c0_i32, %c0_i32_0 : i32, i32, i32
  }
  func.func @transform_7(%arg0: i32, %arg1: i32) -> (i32, i32, i32) {
    %c0_i32 = arith.constant 0 : i32
    %c0_i32_0 = arith.constant 0 : i32
    %c0_i32_1 = arith.constant 0 : i32
    return %arg1, %c0_i32, %c0_i32_0 : i32, i32, i32
  }
  func.func @transform_8(%arg0: i32, %arg1: i32) -> (i32, i32, i32) {
    %c0_i32 = arith.constant 0 : i32
    %c0_i32_0 = arith.constant 0 : i32
    %c0_i32_1 = arith.constant 0 : i32
    return %arg1, %c0_i32, %c0_i32_0 : i32, i32, i32
  }
  func.func @transform_9(%arg0: i32, %arg1: i32) -> (i32, i32, i32) {
    %c0_i32 = arith.constant 0 : i32
    %c0_i32_0 = arith.constant 0 : i32
    %c0_i32_1 = arith.constant 0 : i32
    return %arg1, %c0_i32, %c0_i32_0 : i32, i32, i32
  }
  func.func @transform_10(%arg0: i32, %arg1: i32) -> (i32, i32, i32) {
    %c0_i32 = arith.constant 0 : i32
    %c0_i32_0 = arith.constant 0 : i32
    %c0_i32_1 = arith.constant 0 : i32
    return %arg1, %c0_i32, %c0_i32_0 : i32, i32, i32
  }
  func.func @transform_11(%arg0: i32, %arg1: i32) -> (i32, i32, i32) {
    %c0_i32 = arith.constant 0 : i32
    %c0_i32_0 = arith.constant 0 : i32
    %c0_i32_1 = arith.constant 0 : i32
    return %arg1, %c0_i32, %c0_i32_0 : i32, i32, i32
  }
  func.func @transform_12(%arg0: i32, %arg1: i32) -> (i32, i32, i32) {
    %c0_i32 = arith.constant 0 : i32
    %c0_i32_0 = arith.constant 0 : i32
    %c0_i32_1 = arith.constant 0 : i32
    return %arg1, %c0_i32, %c0_i32_0 : i32, i32, i32
  }
  func.func @transform_13(%arg0: i32, %arg1: i32) -> (i32, i32, i32) {
    %c0_i32 = arith.constant 0 : i32
    %c0_i32_0 = arith.constant 0 : i32
    %c0_i32_1 = arith.constant 0 : i32
    return %arg1, %c0_i32, %c0_i32_0 : i32, i32, i32
  }
  func.func @transform_14(%arg0: i32, %arg1: i32) -> (i32, i32, i32) {
    %c0_i32 = arith.constant 0 : i32
    %c0_i32_0 = arith.constant 0 : i32
    %c0_i32_1 = arith.constant 0 : i32
    return %arg0, %c0_i32, %c0_i32_0 : i32, i32, i32
  }
}

module attributes {stable_mosaic.version = 11 : i64} {
  func.func @_layer_stack_kernel(%arg0: i32, %arg1: i32, %arg2: memref<1x1x32xf32, #tpu.memory_space<vmem>>, %arg3: memref<1x12x32xf32, #tpu.memory_space<vmem>>, %arg4: memref<1x32x64xf32, #tpu.memory_space<vmem>>, %arg5: memref<1x1x64xf32, #tpu.memory_space<vmem>>, %arg6: memref<1x32x96xf32, #tpu.memory_space<vmem>>, %arg7: memref<1x1x96xf32, #tpu.memory_space<vmem>>, %arg8: memref<1x32x32xf32, #tpu.memory_space<vmem>>, %arg9: memref<1x1x32xf32, #tpu.memory_space<vmem>>, %arg10: memref<1x32x64xf32, #tpu.memory_space<vmem>>, %arg11: memref<1x1x64xf32, #tpu.memory_space<vmem>>, %arg12: memref<1x32x64xf32, #tpu.memory_space<vmem>>, %arg13: memref<1x1x64xf32, #tpu.memory_space<vmem>>, %arg14: memref<1x64x32xf32, #tpu.memory_space<vmem>>, %arg15: memref<1x1x32xf32, #tpu.memory_space<vmem>>, %arg16: memref<1x12x32xf32, #tpu.memory_space<vmem>>, %arg17: memref<12x32xf32, #tpu.memory_space<vmem>>) attributes {dimension_semantics = [#tpu.dimension_semantics<parallel>, #tpu.dimension_semantics<arbitrary>], iteration_bounds = array<i64: 2, 2>, scalar_prefetch = 0 : i64, scratch_operands = 1 : i64, tpu.core_type = #tpu.core_type<tc>, window_params = [{transform_indices = @transform_0, window_bounds = array<i64: 1, 1, 32>}, {transform_indices = @transform_1, window_bounds = array<i64: 1, 12, 32>}, {transform_indices = @transform_2, window_bounds = array<i64: 1, 32, 64>}, {transform_indices = @transform_3, window_bounds = array<i64: 1, 1, 64>}, {transform_indices = @transform_4, window_bounds = array<i64: 1, 32, 96>}, {transform_indices = @transform_5, window_bounds = array<i64: 1, 1, 96>}, {transform_indices = @transform_6, window_bounds = array<i64: 1, 32, 32>}, {transform_indices = @transform_7, window_bounds = array<i64: 1, 1, 32>}, {transform_indices = @transform_8, window_bounds = array<i64: 1, 32, 64>}, {transform_indices = @transform_9, window_bounds = array<i64: 1, 1, 64>}, {transform_indices = @transform_10, window_bounds = array<i64: 1, 32, 64>}, {transform_indices = @transform_11, window_bounds = array<i64: 1, 1, 64>}, {transform_indices = @transform_12, window_bounds = array<i64: 1, 64, 32>}, {transform_indices = @transform_13, window_bounds = array<i64: 1, 1, 32>}, {transform_indices = @transform_14, window_bounds = array<i64: 1, 12, 32>}]} {
    %c0_i32 = arith.constant 0 : i32
    %0 = arith.cmpi eq, %arg1, %c0_i32 : i32
    %1 = arith.extui %0 : i1 to i32
    %c0_i32_0 = arith.constant 0 : i32
    %2 = arith.cmpi ne, %1, %c0_i32_0 : i32
    scf.if %2 {
      %c0_82 = arith.constant 0 : index
      %c0_83 = arith.constant 0 : index
      %c0_84 = arith.constant 0 : index
      %178 = vector.load %arg3[%c0_82, %c0_83, %c0_84] : memref<1x12x32xf32, #tpu.memory_space<vmem>>, vector<1x12x32xf32>
      %179 = vector.shape_cast %178 : vector<1x12x32xf32> to vector<12x32xf32>
      %c0_85 = arith.constant 0 : index
      %c0_86 = arith.constant 0 : index
      %180 = vector.load %arg17[%c0_85, %c0_86] : memref<12x32xf32, #tpu.memory_space<vmem>>, vector<12x32xf32>
      tpu.vector_store %arg17[%c0_85, %c0_86], %179 {strides = array<i32>} : memref<12x32xf32, #tpu.memory_space<vmem>>, vector<12x32xf32>,
    } else {
    }
    %c0 = arith.constant 0 : index
    %c0_1 = arith.constant 0 : index
    %3 = vector.load %arg17[%c0, %c0_1] : memref<12x32xf32, #tpu.memory_space<vmem>>, vector<12x32xf32>
    %c0_2 = arith.constant 0 : index
    %c0_3 = arith.constant 0 : index
    %c0_4 = arith.constant 0 : index
    %4 = vector.load %arg2[%c0_2, %c0_3, %c0_4] : memref<1x1x32xf32, #tpu.memory_space<vmem>>, vector<1x1x32xf32>
    %5 = vector.shape_cast %4 : vector<1x1x32xf32> to vector<1x32xf32>
    %c0_5 = arith.constant 0 : index
    %c0_6 = arith.constant 0 : index
    %c0_7 = arith.constant 0 : index
    %6 = vector.load %arg4[%c0_5, %c0_6, %c0_7] : memref<1x32x64xf32, #tpu.memory_space<vmem>>, vector<1x32x64xf32>
    %7 = vector.shape_cast %6 : vector<1x32x64xf32> to vector<32x64xf32>
    %cst = arith.constant dense<0.000000e+00> : vector<1x64xf32>
    %8 = tpu.matmul %5, %7, %cst {dimension_numbers = #tpu.dot_dimension_numbers<[1], [0], [0], [1], [0, 0, 1, 1], [], []>} : vector<1x32xf32>, vector<32x64xf32>, vector<1x64xf32> -> vector<1x64xf32>
    %c0_8 = arith.constant 0 : index
    %c0_9 = arith.constant 0 : index
    %c0_10 = arith.constant 0 : index
    %9 = vector.load %arg5[%c0_8, %c0_9, %c0_10] : memref<1x1x64xf32, #tpu.memory_space<vmem>>, vector<1x1x64xf32>
    %10 = vector.shape_cast %9 : vector<1x1x64xf32> to vector<1x64xf32>
    %11 = arith.addf %8, %10 : vector<1x64xf32>
    %12 = vector.extract_strided_slice %11 {offsets = [0, 0], sizes = [1, 32], strides = [1, 1]} : vector<1x64xf32> to vector<1x32xf32>
    %13 = vector.extract_strided_slice %11 {offsets = [0, 32], sizes = [1, 32], strides = [1, 1]} : vector<1x64xf32> to vector<1x32xf32>
    %cst_11 = arith.constant dense<0.000000e+00> : vector<12xf32>
    %14 = vector.multi_reduction <add>, %3, %cst_11 [1] : vector<12x32xf32> to vector<12xf32>
    %15 = vector.shape_cast %14 : vector<12xf32> to vector<12x1xf32>
    %cst_12 = arith.constant 3.200000e+01 : f32
    %16 = vector.broadcast %cst_12 : f32 to vector<12x1xf32>
    %17 = arith.divf %15, %16 : vector<12x1xf32>
    %18 = vector.broadcast %17 : vector<12x1xf32> to vector<12x32xf32>
    %19 = arith.subf %3, %18 : vector<12x32xf32>
    %20 = arith.mulf %19, %19 : vector<12x32xf32>
    %cst_13 = arith.constant dense<0.000000e+00> : vector<12xf32>
    %21 = vector.multi_reduction <add>, %20, %cst_13 [1] : vector<12x32xf32> to vector<12xf32>
    %22 = vector.shape_cast %21 : vector<12xf32> to vector<12x1xf32>
    %cst_14 = arith.constant 3.200000e+01 : f32
    %23 = vector.broadcast %cst_14 : f32 to vector<12x1xf32>
    %24 = arith.divf %22, %23 : vector<12x1xf32>
    %25 = vector.broadcast %17 : vector<12x1xf32> to vector<12x32xf32>
    %26 = arith.subf %3, %25 : vector<12x32xf32>
    %cst_15 = arith.constant 9.99999974E-6 : f32
    %27 = vector.broadcast %cst_15 : f32 to vector<12x1xf32>
    %28 = arith.addf %24, %27 : vector<12x1xf32>
    %29 = math.rsqrt %28 : vector<12x1xf32>
    %30 = vector.broadcast %29 : vector<12x1xf32> to vector<12x32xf32>
    %31 = arith.mulf %26, %30 : vector<12x32xf32>
    %cst_16 = arith.constant 1.000000e+00 : f32
    %32 = vector.broadcast %cst_16 : f32 to vector<1x32xf32>
    %33 = arith.addf %32, %12 : vector<1x32xf32>
    %34 = vector.broadcast %33 : vector<1x32xf32> to vector<12x32xf32>
    %35 = arith.mulf %31, %34 : vector<12x32xf32>
    %36 = vector.broadcast %13 : vector<1x32xf32> to vector<12x32xf32>
    %37 = arith.addf %35, %36 : vector<12x32xf32>
    %c0_17 = arith.constant 0 : index
    %c0_18 = arith.constant 0 : index
    %c0_19 = arith.constant 0 : index
    %38 = vector.load %arg6[%c0_17, %c0_18, %c0_19] : memref<1x32x96xf32, #tpu.memory_space<vmem>>, vector<1x32x96xf32>
    %39 = vector.shape_cast %38 : vector<1x32x96xf32> to vector<32x96xf32>
    %c0_20 = arith.constant 0 : index
    %c0_21 = arith.constant 0 : index
    %c0_22 = arith.constant 0 : index
    %40 = vector.load %arg7[%c0_20, %c0_21, %c0_22] : memref<1x1x96xf32, #tpu.memory_space<vmem>>, vector<1x1x96xf32>
    %41 = vector.shape_cast %40 : vector<1x1x96xf32> to vector<1x96xf32>
    %cst_23 = arith.constant dense<0.000000e+00> : vector<12x96xf32>
    %42 = tpu.matmul %37, %39, %cst_23 {dimension_numbers = #tpu.dot_dimension_numbers<[1], [0], [0], [1], [0, 0, 1, 1], [], []>} : vector<12x32xf32>, vector<32x96xf32>, vector<12x96xf32> -> vector<12x96xf32>
    %43 = vector.broadcast %41 : vector<1x96xf32> to vector<12x96xf32>
    %44 = arith.addf %42, %43 : vector<12x96xf32>
    %45 = vector.extract_strided_slice %44 {offsets = [0, 0], sizes = [12, 32], strides = [1, 1]} : vector<12x96xf32> to vector<12x32xf32>
    %46 = vector.extract_strided_slice %44 {offsets = [0, 32], sizes = [12, 32], strides = [1, 1]} : vector<12x96xf32> to vector<12x32xf32>
    %47 = vector.extract_strided_slice %44 {offsets = [0, 64], sizes = [12, 32], strides = [1, 1]} : vector<12x96xf32> to vector<12x32xf32>
    %48 = vector.extract_strided_slice %45 {offsets = [0, 0], sizes = [12, 8], strides = [1, 1]} : vector<12x32xf32> to vector<12x8xf32>
    %49 = vector.extract_strided_slice %46 {offsets = [0, 0], sizes = [12, 8], strides = [1, 1]} : vector<12x32xf32> to vector<12x8xf32>
    %cst_24 = arith.constant dense<0.000000e+00> : vector<12x12xf32>
    %50 = tpu.matmul %48, %49, %cst_24 {dimension_numbers = #tpu.dot_dimension_numbers<[1], [1], [0], [0], [0, 0, 1, 0], [], []>} : vector<12x8xf32>, vector<12x8xf32>, vector<12x12xf32> -> vector<12x12xf32>
    %cst_25 = arith.constant 0.353553385 : f32
    %51 = vector.broadcast %cst_25 : f32 to vector<12x12xf32>
    %52 = arith.mulf %50, %51 : vector<12x12xf32>
    %cst_26 = arith.constant dense<0xFF800000> : vector<12xf32>
    %53 = vector.multi_reduction <maximumf>, %52, %cst_26 [1] : vector<12x12xf32> to vector<12xf32>
    %54 = vector.shape_cast %53 : vector<12xf32> to vector<12x1xf32>
    %55 = vector.broadcast %54 : vector<12x1xf32> to vector<12x12xf32>
    %56 = arith.subf %52, %55 : vector<12x12xf32>
    %57 = math.exp %56 : vector<12x12xf32>
    %cst_27 = arith.constant dense<0.000000e+00> : vector<12xf32>
    %58 = vector.multi_reduction <add>, %57, %cst_27 [1] : vector<12x12xf32> to vector<12xf32>
    %59 = vector.shape_cast %58 : vector<12xf32> to vector<12x1xf32>
    %60 = tpu.reciprocal %59 {approx = true} : vector<12x1xf32> -> vector<12x1xf32>
    %61 = vector.broadcast %60 : vector<12x1xf32> to vector<12x12xf32>
    %62 = arith.mulf %57, %61 : vector<12x12xf32>
    %63 = vector.extract_strided_slice %47 {offsets = [0, 0], sizes = [12, 8], strides = [1, 1]} : vector<12x32xf32> to vector<12x8xf32>
    %cst_28 = arith.constant dense<0.000000e+00> : vector<12x8xf32>
    %64 = tpu.matmul %62, %63, %cst_28 {dimension_numbers = #tpu.dot_dimension_numbers<[1], [0], [0], [1], [0, 0, 1, 1], [], []>} : vector<12x12xf32>, vector<12x8xf32>, vector<12x8xf32> -> vector<12x8xf32>
    %65 = vector.extract_strided_slice %45 {offsets = [0, 8], sizes = [12, 8], strides = [1, 1]} : vector<12x32xf32> to vector<12x8xf32>
    %66 = vector.extract_strided_slice %46 {offsets = [0, 8], sizes = [12, 8], strides = [1, 1]} : vector<12x32xf32> to vector<12x8xf32>
    %cst_29 = arith.constant dense<0.000000e+00> : vector<12x12xf32>
    %67 = tpu.matmul %65, %66, %cst_29 {dimension_numbers = #tpu.dot_dimension_numbers<[1], [1], [0], [0], [0, 0, 1, 0], [], []>} : vector<12x8xf32>, vector<12x8xf32>, vector<12x12xf32> -> vector<12x12xf32>
    %cst_30 = arith.constant 0.353553385 : f32
    %68 = vector.broadcast %cst_30 : f32 to vector<12x12xf32>
    %69 = arith.mulf %67, %68 : vector<12x12xf32>
    %cst_31 = arith.constant dense<0xFF800000> : vector<12xf32>
    %70 = vector.multi_reduction <maximumf>, %69, %cst_31 [1] : vector<12x12xf32> to vector<12xf32>
    %71 = vector.shape_cast %70 : vector<12xf32> to vector<12x1xf32>
    %72 = vector.broadcast %71 : vector<12x1xf32> to vector<12x12xf32>
    %73 = arith.subf %69, %72 : vector<12x12xf32>
    %74 = math.exp %73 : vector<12x12xf32>
    %cst_32 = arith.constant dense<0.000000e+00> : vector<12xf32>
    %75 = vector.multi_reduction <add>, %74, %cst_32 [1] : vector<12x12xf32> to vector<12xf32>
    %76 = vector.shape_cast %75 : vector<12xf32> to vector<12x1xf32>
    %77 = tpu.reciprocal %76 {approx = true} : vector<12x1xf32> -> vector<12x1xf32>
    %78 = vector.broadcast %77 : vector<12x1xf32> to vector<12x12xf32>
    %79 = arith.mulf %74, %78 : vector<12x12xf32>
    %80 = vector.extract_strided_slice %47 {offsets = [0, 8], sizes = [12, 8], strides = [1, 1]} : vector<12x32xf32> to vector<12x8xf32>
    %cst_33 = arith.constant dense<0.000000e+00> : vector<12x8xf32>
    %81 = tpu.matmul %79, %80, %cst_33 {dimension_numbers = #tpu.dot_dimension_numbers<[1], [0], [0], [1], [0, 0, 1, 1], [], []>} : vector<12x12xf32>, vector<12x8xf32>, vector<12x8xf32> -> vector<12x8xf32>
    %82 = vector.extract_strided_slice %45 {offsets = [0, 16], sizes = [12, 8], strides = [1, 1]} : vector<12x32xf32> to vector<12x8xf32>
    %83 = vector.extract_strided_slice %46 {offsets = [0, 16], sizes = [12, 8], strides = [1, 1]} : vector<12x32xf32> to vector<12x8xf32>
    %cst_34 = arith.constant dense<0.000000e+00> : vector<12x12xf32>
    %84 = tpu.matmul %82, %83, %cst_34 {dimension_numbers = #tpu.dot_dimension_numbers<[1], [1], [0], [0], [0, 0, 1, 0], [], []>} : vector<12x8xf32>, vector<12x8xf32>, vector<12x12xf32> -> vector<12x12xf32>
    %cst_35 = arith.constant 0.353553385 : f32
    %85 = vector.broadcast %cst_35 : f32 to vector<12x12xf32>
    %86 = arith.mulf %84, %85 : vector<12x12xf32>
    %cst_36 = arith.constant dense<0xFF800000> : vector<12xf32>
    %87 = vector.multi_reduction <maximumf>, %86, %cst_36 [1] : vector<12x12xf32> to vector<12xf32>
    %88 = vector.shape_cast %87 : vector<12xf32> to vector<12x1xf32>
    %89 = vector.broadcast %88 : vector<12x1xf32> to vector<12x12xf32>
    %90 = arith.subf %86, %89 : vector<12x12xf32>
    %91 = math.exp %90 : vector<12x12xf32>
    %cst_37 = arith.constant dense<0.000000e+00> : vector<12xf32>
    %92 = vector.multi_reduction <add>, %91, %cst_37 [1] : vector<12x12xf32> to vector<12xf32>
    %93 = vector.shape_cast %92 : vector<12xf32> to vector<12x1xf32>
    %94 = tpu.reciprocal %93 {approx = true} : vector<12x1xf32> -> vector<12x1xf32>
    %95 = vector.broadcast %94 : vector<12x1xf32> to vector<12x12xf32>
    %96 = arith.mulf %91, %95 : vector<12x12xf32>
    %97 = vector.extract_strided_slice %47 {offsets = [0, 16], sizes = [12, 8], strides = [1, 1]} : vector<12x32xf32> to vector<12x8xf32>
    %cst_38 = arith.constant dense<0.000000e+00> : vector<12x8xf32>
    %98 = tpu.matmul %96, %97, %cst_38 {dimension_numbers = #tpu.dot_dimension_numbers<[1], [0], [0], [1], [0, 0, 1, 1], [], []>} : vector<12x12xf32>, vector<12x8xf32>, vector<12x8xf32> -> vector<12x8xf32>
    %99 = vector.extract_strided_slice %45 {offsets = [0, 24], sizes = [12, 8], strides = [1, 1]} : vector<12x32xf32> to vector<12x8xf32>
    %100 = vector.extract_strided_slice %46 {offsets = [0, 24], sizes = [12, 8], strides = [1, 1]} : vector<12x32xf32> to vector<12x8xf32>
    %cst_39 = arith.constant dense<0.000000e+00> : vector<12x12xf32>
    %101 = tpu.matmul %99, %100, %cst_39 {dimension_numbers = #tpu.dot_dimension_numbers<[1], [1], [0], [0], [0, 0, 1, 0], [], []>} : vector<12x8xf32>, vector<12x8xf32>, vector<12x12xf32> -> vector<12x12xf32>
    %cst_40 = arith.constant 0.353553385 : f32
    %102 = vector.broadcast %cst_40 : f32 to vector<12x12xf32>
    %103 = arith.mulf %101, %102 : vector<12x12xf32>
    %cst_41 = arith.constant dense<0xFF800000> : vector<12xf32>
    %104 = vector.multi_reduction <maximumf>, %103, %cst_41 [1] : vector<12x12xf32> to vector<12xf32>
    %105 = vector.shape_cast %104 : vector<12xf32> to vector<12x1xf32>
    %106 = vector.broadcast %105 : vector<12x1xf32> to vector<12x12xf32>
    %107 = arith.subf %103, %106 : vector<12x12xf32>
    %108 = math.exp %107 : vector<12x12xf32>
    %cst_42 = arith.constant dense<0.000000e+00> : vector<12xf32>
    %109 = vector.multi_reduction <add>, %108, %cst_42 [1] : vector<12x12xf32> to vector<12xf32>
    %110 = vector.shape_cast %109 : vector<12xf32> to vector<12x1xf32>
    %111 = tpu.reciprocal %110 {approx = true} : vector<12x1xf32> -> vector<12x1xf32>
    %112 = vector.broadcast %111 : vector<12x1xf32> to vector<12x12xf32>
    %113 = arith.mulf %108, %112 : vector<12x12xf32>
    %114 = vector.extract_strided_slice %47 {offsets = [0, 24], sizes = [12, 8], strides = [1, 1]} : vector<12x32xf32> to vector<12x8xf32>
    %cst_43 = arith.constant dense<0.000000e+00> : vector<12x8xf32>
    %115 = tpu.matmul %113, %114, %cst_43 {dimension_numbers = #tpu.dot_dimension_numbers<[1], [0], [0], [1], [0, 0, 1, 1], [], []>} : vector<12x12xf32>, vector<12x8xf32>, vector<12x8xf32> -> vector<12x8xf32>
    %116 = tpu.concatenate %64, %81, %98, %115 in 1 : vector<12x8xf32>, vector<12x8xf32>, vector<12x8xf32>, vector<12x8xf32> -> vector<12x32xf32>
    %c0_44 = arith.constant 0 : index
    %c0_45 = arith.constant 0 : index
    %c0_46 = arith.constant 0 : index
    %117 = vector.load %arg8[%c0_44, %c0_45, %c0_46] : memref<1x32x32xf32, #tpu.memory_space<vmem>>, vector<1x32x32xf32>
    %118 = vector.shape_cast %117 : vector<1x32x32xf32> to vector<32x32xf32>
    %cst_47 = arith.constant dense<0.000000e+00> : vector<12x32xf32>
    %119 = tpu.matmul %116, %118, %cst_47 {dimension_numbers = #tpu.dot_dimension_numbers<[1], [0], [0], [1], [0, 0, 1, 1], [], []>} : vector<12x32xf32>, vector<32x32xf32>, vector<12x32xf32> -> vector<12x32xf32>
    %120 = arith.addf %3, %119 : vector<12x32xf32>
    %c0_48 = arith.constant 0 : index
    %c0_49 = arith.constant 0 : index
    %c0_50 = arith.constant 0 : index
    %121 = vector.load %arg9[%c0_48, %c0_49, %c0_50] : memref<1x1x32xf32, #tpu.memory_space<vmem>>, vector<1x1x32xf32>
    %122 = vector.shape_cast %121 : vector<1x1x32xf32> to vector<1x32xf32>
    %123 = vector.broadcast %122 : vector<1x32xf32> to vector<12x32xf32>
    %124 = arith.addf %120, %123 : vector<12x32xf32>
    %c0_51 = arith.constant 0 : index
    %c0_52 = arith.constant 0 : index
    %c0_53 = arith.constant 0 : index
    %125 = vector.load %arg10[%c0_51, %c0_52, %c0_53] : memref<1x32x64xf32, #tpu.memory_space<vmem>>, vector<1x32x64xf32>
    %126 = vector.shape_cast %125 : vector<1x32x64xf32> to vector<32x64xf32>
    %cst_54 = arith.constant dense<0.000000e+00> : vector<1x64xf32>
    %127 = tpu.matmul %5, %126, %cst_54 {dimension_numbers = #tpu.dot_dimension_numbers<[1], [0], [0], [1], [0, 0, 1, 1], [], []>} : vector<1x32xf32>, vector<32x64xf32>, vector<1x64xf32> -> vector<1x64xf32>
    %c0_55 = arith.constant 0 : index
    %c0_56 = arith.constant 0 : index
    %c0_57 = arith.constant 0 : index
    %128 = vector.load %arg11[%c0_55, %c0_56, %c0_57] : memref<1x1x64xf32, #tpu.memory_space<vmem>>, vector<1x1x64xf32>
    %129 = vector.shape_cast %128 : vector<1x1x64xf32> to vector<1x64xf32>
    %130 = arith.addf %127, %129 : vector<1x64xf32>
    %131 = vector.extract_strided_slice %130 {offsets = [0, 0], sizes = [1, 32], strides = [1, 1]} : vector<1x64xf32> to vector<1x32xf32>
    %132 = vector.extract_strided_slice %130 {offsets = [0, 32], sizes = [1, 32], strides = [1, 1]} : vector<1x64xf32> to vector<1x32xf32>
    %cst_58 = arith.constant dense<0.000000e+00> : vector<12xf32>
    %133 = vector.multi_reduction <add>, %124, %cst_58 [1] : vector<12x32xf32> to vector<12xf32>
    %134 = vector.shape_cast %133 : vector<12xf32> to vector<12x1xf32>
    %cst_59 = arith.constant 3.200000e+01 : f32
    %135 = vector.broadcast %cst_59 : f32 to vector<12x1xf32>
    %136 = arith.divf %134, %135 : vector<12x1xf32>
    %137 = vector.broadcast %136 : vector<12x1xf32> to vector<12x32xf32>
    %138 = arith.subf %124, %137 : vector<12x32xf32>
    %139 = arith.mulf %138, %138 : vector<12x32xf32>
    %cst_60 = arith.constant dense<0.000000e+00> : vector<12xf32>
    %140 = vector.multi_reduction <add>, %139, %cst_60 [1] : vector<12x32xf32> to vector<12xf32>
    %141 = vector.shape_cast %140 : vector<12xf32> to vector<12x1xf32>
    %cst_61 = arith.constant 3.200000e+01 : f32
    %142 = vector.broadcast %cst_61 : f32 to vector<12x1xf32>
    %143 = arith.divf %141, %142 : vector<12x1xf32>
    %144 = vector.broadcast %136 : vector<12x1xf32> to vector<12x32xf32>
    %145 = arith.subf %124, %144 : vector<12x32xf32>
    %cst_62 = arith.constant 9.99999974E-6 : f32
    %146 = vector.broadcast %cst_62 : f32 to vector<12x1xf32>
    %147 = arith.addf %143, %146 : vector<12x1xf32>
    %148 = math.rsqrt %147 : vector<12x1xf32>
    %149 = vector.broadcast %148 : vector<12x1xf32> to vector<12x32xf32>
    %150 = arith.mulf %145, %149 : vector<12x32xf32>
    %cst_63 = arith.constant 1.000000e+00 : f32
    %151 = vector.broadcast %cst_63 : f32 to vector<1x32xf32>
    %152 = arith.addf %151, %131 : vector<1x32xf32>
    %153 = vector.broadcast %152 : vector<1x32xf32> to vector<12x32xf32>
    %154 = arith.mulf %150, %153 : vector<12x32xf32>
    %155 = vector.broadcast %132 : vector<1x32xf32> to vector<12x32xf32>
    %156 = arith.addf %154, %155 : vector<12x32xf32>
    %c0_64 = arith.constant 0 : index
    %c0_65 = arith.constant 0 : index
    %c0_66 = arith.constant 0 : index
    %157 = vector.load %arg12[%c0_64, %c0_65, %c0_66] : memref<1x32x64xf32, #tpu.memory_space<vmem>>, vector<1x32x64xf32>
    %158 = vector.shape_cast %157 : vector<1x32x64xf32> to vector<32x64xf32>
    %cst_67 = arith.constant dense<0.000000e+00> : vector<12x64xf32>
    %159 = tpu.matmul %156, %158, %cst_67 {dimension_numbers = #tpu.dot_dimension_numbers<[1], [0], [0], [1], [0, 0, 1, 1], [], []>} : vector<12x32xf32>, vector<32x64xf32>, vector<12x64xf32> -> vector<12x64xf32>
    %c0_68 = arith.constant 0 : index
    %c0_69 = arith.constant 0 : index
    %c0_70 = arith.constant 0 : index
    %160 = vector.load %arg13[%c0_68, %c0_69, %c0_70] : memref<1x1x64xf32, #tpu.memory_space<vmem>>, vector<1x1x64xf32>
    %161 = vector.shape_cast %160 : vector<1x1x64xf32> to vector<1x64xf32>
    %162 = vector.broadcast %161 : vector<1x64xf32> to vector<12x64xf32>
    %163 = arith.addf %159, %162 : vector<12x64xf32>
    %cst_71 = arith.constant 0.000000e+00 : f32
    %164 = vector.broadcast %cst_71 : f32 to vector<12x64xf32>
    %165 = arith.maximumf %163, %164 : vector<12x64xf32>
    %c0_72 = arith.constant 0 : index
    %c0_73 = arith.constant 0 : index
    %c0_74 = arith.constant 0 : index
    %166 = vector.load %arg14[%c0_72, %c0_73, %c0_74] : memref<1x64x32xf32, #tpu.memory_space<vmem>>, vector<1x64x32xf32>
    %167 = vector.shape_cast %166 : vector<1x64x32xf32> to vector<64x32xf32>
    %cst_75 = arith.constant dense<0.000000e+00> : vector<12x32xf32>
    %168 = tpu.matmul %165, %167, %cst_75 {dimension_numbers = #tpu.dot_dimension_numbers<[1], [0], [0], [1], [0, 0, 1, 1], [], []>} : vector<12x64xf32>, vector<64x32xf32>, vector<12x32xf32> -> vector<12x32xf32>
    %169 = arith.addf %124, %168 : vector<12x32xf32>
    %c0_76 = arith.constant 0 : index
    %c0_77 = arith.constant 0 : index
    %c0_78 = arith.constant 0 : index
    %170 = vector.load %arg15[%c0_76, %c0_77, %c0_78] : memref<1x1x32xf32, #tpu.memory_space<vmem>>, vector<1x1x32xf32>
    %171 = vector.shape_cast %170 : vector<1x1x32xf32> to vector<1x32xf32>
    %172 = vector.broadcast %171 : vector<1x32xf32> to vector<12x32xf32>
    %173 = arith.addf %169, %172 : vector<12x32xf32>
    %c0_79 = arith.constant 0 : index
    %c0_80 = arith.constant 0 : index
    %174 = vector.load %arg17[%c0_79, %c0_80] : memref<12x32xf32, #tpu.memory_space<vmem>>, vector<12x32xf32>
    tpu.vector_store %arg17[%c0_79, %c0_80], %173 {strides = array<i32>} : memref<12x32xf32, #tpu.memory_space<vmem>>, vector<12x32xf32>,
    %c1_i32 = arith.constant 1 : i32
    %175 = arith.cmpi eq, %arg1, %c1_i32 : i32
    %176 = arith.extui %175 : i1 to i32
    %c0_i32_81 = arith.constant 0 : i32
    %177 = arith.cmpi ne, %176, %c0_i32_81 : i32
    scf.if %177 {
      %c0_82 = arith.constant 0 : index
      %c0_83 = arith.constant 0 : index
      %c0_84 = arith.constant 0 : index
      %178 = vector.load %arg16[%c0_82, %c0_83, %c0_84] : memref<1x12x32xf32, #tpu.memory_space<vmem>>, vector<1x12x32xf32>
      %179 = vector.shape_cast %178 : vector<1x12x32xf32> to vector<12x32xf32>
      %180 = vector.shape_cast %173 : vector<12x32xf32> to vector<1x12x32xf32>
      tpu.vector_store %arg16[%c0_82, %c0_83, %c0_84], %180 {strides = array<i32>} : memref<1x12x32xf32, #tpu.memory_space<vmem>>, vector<1x12x32xf32>,
    } else {
    }
    return
  }
  func.func @transform_0(%arg0: i32, %arg1: i32) -> (i32, i32, i32) {
    %c0_i32 = arith.constant 0 : i32
    %c0_i32_0 = arith.constant 0 : i32
    %c0_i32_1 = arith.constant 0 : i32
    return %arg0, %c0_i32, %c0_i32_0 : i32, i32, i32
  }
  func.func @transform_1(%arg0: i32, %arg1: i32) -> (i32, i32, i32) {
    %c0_i32 = arith.constant 0 : i32
    %c0_i32_0 = arith.constant 0 : i32
    %c0_i32_1 = arith.constant 0 : i32
    return %arg0, %c0_i32, %c0_i32_0 : i32, i32, i32
  }
  func.func @transform_2(%arg0: i32, %arg1: i32) -> (i32, i32, i32) {
    %c0_i32 = arith.constant 0 : i32
    %c0_i32_0 = arith.constant 0 : i32
    %c0_i32_1 = arith.constant 0 : i32
    return %arg1, %c0_i32, %c0_i32_0 : i32, i32, i32
  }
  func.func @transform_3(%arg0: i32, %arg1: i32) -> (i32, i32, i32) {
    %c0_i32 = arith.constant 0 : i32
    %c0_i32_0 = arith.constant 0 : i32
    %c0_i32_1 = arith.constant 0 : i32
    return %arg1, %c0_i32, %c0_i32_0 : i32, i32, i32
  }
  func.func @transform_4(%arg0: i32, %arg1: i32) -> (i32, i32, i32) {
    %c0_i32 = arith.constant 0 : i32
    %c0_i32_0 = arith.constant 0 : i32
    %c0_i32_1 = arith.constant 0 : i32
    return %arg1, %c0_i32, %c0_i32_0 : i32, i32, i32
  }
  func.func @transform_5(%arg0: i32, %arg1: i32) -> (i32, i32, i32) {
    %c0_i32 = arith.constant 0 : i32
    %c0_i32_0 = arith.constant 0 : i32
    %c0_i32_1 = arith.constant 0 : i32
    return %arg1, %c0_i32, %c0_i32_0 : i32, i32, i32
  }
  func.func @transform_6(%arg0: i32, %arg1: i32) -> (i32, i32, i32) {
    %c0_i32 = arith.constant 0 : i32
    %c0_i32_0 = arith.constant 0 : i32
    %c0_i32_1 = arith.constant 0 : i32
    return %arg1, %c0_i32, %c0_i32_0 : i32, i32, i32
  }
  func.func @transform_7(%arg0: i32, %arg1: i32) -> (i32, i32, i32) {
    %c0_i32 = arith.constant 0 : i32
    %c0_i32_0 = arith.constant 0 : i32
    %c0_i32_1 = arith.constant 0 : i32
    return %arg1, %c0_i32, %c0_i32_0 : i32, i32, i32
  }
  func.func @transform_8(%arg0: i32, %arg1: i32) -> (i32, i32, i32) {
    %c0_i32 = arith.constant 0 : i32
    %c0_i32_0 = arith.constant 0 : i32
    %c0_i32_1 = arith.constant 0 : i32
    return %arg1, %c0_i32, %c0_i32_0 : i32, i32, i32
  }
  func.func @transform_9(%arg0: i32, %arg1: i32) -> (i32, i32, i32) {
    %c0_i32 = arith.constant 0 : i32
    %c0_i32_0 = arith.constant 0 : i32
    %c0_i32_1 = arith.constant 0 : i32
    return %arg1, %c0_i32, %c0_i32_0 : i32, i32, i32
  }
  func.func @transform_10(%arg0: i32, %arg1: i32) -> (i32, i32, i32) {
    %c0_i32 = arith.constant 0 : i32
    %c0_i32_0 = arith.constant 0 : i32
    %c0_i32_1 = arith.constant 0 : i32
    return %arg1, %c0_i32, %c0_i32_0 : i32, i32, i32
  }
  func.func @transform_11(%arg0: i32, %arg1: i32) -> (i32, i32, i32) {
    %c0_i32 = arith.constant 0 : i32
    %c0_i32_0 = arith.constant 0 : i32
    %c0_i32_1 = arith.constant 0 : i32
    return %arg1, %c0_i32, %c0_i32_0 : i32, i32, i32
  }
  func.func @transform_12(%arg0: i32, %arg1: i32) -> (i32, i32, i32) {
    %c0_i32 = arith.constant 0 : i32
    %c0_i32_0 = arith.constant 0 : i32
    %c0_i32_1 = arith.constant 0 : i32
    return %arg1, %c0_i32, %c0_i32_0 : i32, i32, i32
  }
  func.func @transform_13(%arg0: i32, %arg1: i32) -> (i32, i32, i32) {
    %c0_i32 = arith.constant 0 : i32
    %c0_i32_0 = arith.constant 0 : i32
    %c0_i32_1 = arith.constant 0 : i32
    return %arg1, %c0_i32, %c0_i32_0 : i32, i32, i32
  }
  func.func @transform_14(%arg0: i32, %arg1: i32) -> (i32, i32, i32) {
    %c0_i32 = arith.constant 0 : i32
    %c0_i32_0 = arith.constant 0 : i32
    %c0_i32_1 = arith.constant 0 : i32
    return %arg0, %c0_i32, %c0_i32_0 : i32, i32, i32
  }
}

module attributes {stable_mosaic.version = 11 : i64} {
  func.func @_layer_stack_kernel(%arg0: i32, %arg1: i32, %arg2: memref<1x1x32xf32, #tpu.memory_space<vmem>>, %arg3: memref<1x12x32xf32, #tpu.memory_space<vmem>>, %arg4: memref<1x32x64xf32, #tpu.memory_space<vmem>>, %arg5: memref<1x1x64xf32, #tpu.memory_space<vmem>>, %arg6: memref<1x32x96xf32, #tpu.memory_space<vmem>>, %arg7: memref<1x1x96xf32, #tpu.memory_space<vmem>>, %arg8: memref<1x32x32xf32, #tpu.memory_space<vmem>>, %arg9: memref<1x1x32xf32, #tpu.memory_space<vmem>>, %arg10: memref<1x32x64xf32, #tpu.memory_space<vmem>>, %arg11: memref<1x1x64xf32, #tpu.memory_space<vmem>>, %arg12: memref<1x32x64xf32, #tpu.memory_space<vmem>>, %arg13: memref<1x1x64xf32, #tpu.memory_space<vmem>>, %arg14: memref<1x64x32xf32, #tpu.memory_space<vmem>>, %arg15: memref<1x1x32xf32, #tpu.memory_space<vmem>>, %arg16: memref<1x12x32xf32, #tpu.memory_space<vmem>>, %arg17: memref<12x32xf32, #tpu.memory_space<vmem>>) attributes {dimension_semantics = [#tpu.dimension_semantics<parallel>, #tpu.dimension_semantics<arbitrary>], iteration_bounds = array<i64: 2, 2>, scalar_prefetch = 0 : i64, scratch_operands = 1 : i64, tpu.core_type = #tpu.core_type<tc>, window_params = [{transform_indices = @transform_0, window_bounds = array<i64: 1, 1, 32>}, {transform_indices = @transform_1, window_bounds = array<i64: 1, 12, 32>}, {transform_indices = @transform_2, window_bounds = array<i64: 1, 32, 64>}, {transform_indices = @transform_3, window_bounds = array<i64: 1, 1, 64>}, {transform_indices = @transform_4, window_bounds = array<i64: 1, 32, 96>}, {transform_indices = @transform_5, window_bounds = array<i64: 1, 1, 96>}, {transform_indices = @transform_6, window_bounds = array<i64: 1, 32, 32>}, {transform_indices = @transform_7, window_bounds = array<i64: 1, 1, 32>}, {transform_indices = @transform_8, window_bounds = array<i64: 1, 32, 64>}, {transform_indices = @transform_9, window_bounds = array<i64: 1, 1, 64>}, {transform_indices = @transform_10, window_bounds = array<i64: 1, 32, 64>}, {transform_indices = @transform_11, window_bounds = array<i64: 1, 1, 64>}, {transform_indices = @transform_12, window_bounds = array<i64: 1, 64, 32>}, {transform_indices = @transform_13, window_bounds = array<i64: 1, 1, 32>}, {transform_indices = @transform_14, window_bounds = array<i64: 1, 12, 32>}]} {
    %c0_i32 = arith.constant 0 : i32
    %0 = arith.cmpi eq, %arg1, %c0_i32 : i32
    %1 = arith.extui %0 : i1 to i32
    %c0_i32_0 = arith.constant 0 : i32
    %2 = arith.cmpi ne, %1, %c0_i32_0 : i32
    scf.if %2 {
      %c0_82 = arith.constant 0 : index
      %c0_83 = arith.constant 0 : index
      %c0_84 = arith.constant 0 : index
      %178 = vector.load %arg3[%c0_82, %c0_83, %c0_84] : memref<1x12x32xf32, #tpu.memory_space<vmem>>, vector<1x12x32xf32>
      %179 = vector.shape_cast %178 : vector<1x12x32xf32> to vector<12x32xf32>
      %c0_85 = arith.constant 0 : index
      %c0_86 = arith.constant 0 : index
      %180 = vector.load %arg17[%c0_85, %c0_86] : memref<12x32xf32, #tpu.memory_space<vmem>>, vector<12x32xf32>
      tpu.vector_store %arg17[%c0_85, %c0_86], %179 {strides = array<i32>} : memref<12x32xf32, #tpu.memory_space<vmem>>, vector<12x32xf32>,
    } else {
    }
    %c0 = arith.constant 0 : index
    %c0_1 = arith.constant 0 : index
    %3 = vector.load %arg17[%c0, %c0_1] : memref<12x32xf32, #tpu.memory_space<vmem>>, vector<12x32xf32>
    %c0_2 = arith.constant 0 : index
    %c0_3 = arith.constant 0 : index
    %c0_4 = arith.constant 0 : index
    %4 = vector.load %arg2[%c0_2, %c0_3, %c0_4] : memref<1x1x32xf32, #tpu.memory_space<vmem>>, vector<1x1x32xf32>
    %5 = vector.shape_cast %4 : vector<1x1x32xf32> to vector<1x32xf32>
    %c0_5 = arith.constant 0 : index
    %c0_6 = arith.constant 0 : index
    %c0_7 = arith.constant 0 : index
    %6 = vector.load %arg4[%c0_5, %c0_6, %c0_7] : memref<1x32x64xf32, #tpu.memory_space<vmem>>, vector<1x32x64xf32>
    %7 = vector.shape_cast %6 : vector<1x32x64xf32> to vector<32x64xf32>
    %cst = arith.constant dense<0.000000e+00> : vector<1x64xf32>
    %8 = tpu.matmul %5, %7, %cst {dimension_numbers = #tpu.dot_dimension_numbers<[1], [0], [0], [1], [0, 0, 1, 1], [], []>} : vector<1x32xf32>, vector<32x64xf32>, vector<1x64xf32> -> vector<1x64xf32>
    %c0_8 = arith.constant 0 : index
    %c0_9 = arith.constant 0 : index
    %c0_10 = arith.constant 0 : index
    %9 = vector.load %arg5[%c0_8, %c0_9, %c0_10] : memref<1x1x64xf32, #tpu.memory_space<vmem>>, vector<1x1x64xf32>
    %10 = vector.shape_cast %9 : vector<1x1x64xf32> to vector<1x64xf32>
    %11 = arith.addf %8, %10 : vector<1x64xf32>
    %12 = vector.extract_strided_slice %11 {offsets = [0, 0], sizes = [1, 32], strides = [1, 1]} : vector<1x64xf32> to vector<1x32xf32>
    %13 = vector.extract_strided_slice %11 {offsets = [0, 32], sizes = [1, 32], strides = [1, 1]} : vector<1x64xf32> to vector<1x32xf32>
    %cst_11 = arith.constant dense<0.000000e+00> : vector<12xf32>
    %14 = vector.multi_reduction <add>, %3, %cst_11 [1] : vector<12x32xf32> to vector<12xf32>
    %15 = vector.shape_cast %14 : vector<12xf32> to vector<12x1xf32>
    %cst_12 = arith.constant 3.200000e+01 : f32
    %16 = vector.broadcast %cst_12 : f32 to vector<12x1xf32>
    %17 = arith.divf %15, %16 : vector<12x1xf32>
    %18 = vector.broadcast %17 : vector<12x1xf32> to vector<12x32xf32>
    %19 = arith.subf %3, %18 : vector<12x32xf32>
    %20 = arith.mulf %19, %19 : vector<12x32xf32>
    %cst_13 = arith.constant dense<0.000000e+00> : vector<12xf32>
    %21 = vector.multi_reduction <add>, %20, %cst_13 [1] : vector<12x32xf32> to vector<12xf32>
    %22 = vector.shape_cast %21 : vector<12xf32> to vector<12x1xf32>
    %cst_14 = arith.constant 3.200000e+01 : f32
    %23 = vector.broadcast %cst_14 : f32 to vector<12x1xf32>
    %24 = arith.divf %22, %23 : vector<12x1xf32>
    %25 = vector.broadcast %17 : vector<12x1xf32> to vector<12x32xf32>
    %26 = arith.subf %3, %25 : vector<12x32xf32>
    %cst_15 = arith.constant 9.99999974E-6 : f32
    %27 = vector.broadcast %cst_15 : f32 to vector<12x1xf32>
    %28 = arith.addf %24, %27 : vector<12x1xf32>
    %29 = math.rsqrt %28 : vector<12x1xf32>
    %30 = vector.broadcast %29 : vector<12x1xf32> to vector<12x32xf32>
    %31 = arith.mulf %26, %30 : vector<12x32xf32>
    %cst_16 = arith.constant 1.000000e+00 : f32
    %32 = vector.broadcast %cst_16 : f32 to vector<1x32xf32>
    %33 = arith.addf %32, %12 : vector<1x32xf32>
    %34 = vector.broadcast %33 : vector<1x32xf32> to vector<12x32xf32>
    %35 = arith.mulf %31, %34 : vector<12x32xf32>
    %36 = vector.broadcast %13 : vector<1x32xf32> to vector<12x32xf32>
    %37 = arith.addf %35, %36 : vector<12x32xf32>
    %c0_17 = arith.constant 0 : index
    %c0_18 = arith.constant 0 : index
    %c0_19 = arith.constant 0 : index
    %38 = vector.load %arg6[%c0_17, %c0_18, %c0_19] : memref<1x32x96xf32, #tpu.memory_space<vmem>>, vector<1x32x96xf32>
    %39 = vector.shape_cast %38 : vector<1x32x96xf32> to vector<32x96xf32>
    %c0_20 = arith.constant 0 : index
    %c0_21 = arith.constant 0 : index
    %c0_22 = arith.constant 0 : index
    %40 = vector.load %arg7[%c0_20, %c0_21, %c0_22] : memref<1x1x96xf32, #tpu.memory_space<vmem>>, vector<1x1x96xf32>
    %41 = vector.shape_cast %40 : vector<1x1x96xf32> to vector<1x96xf32>
    %cst_23 = arith.constant dense<0.000000e+00> : vector<12x96xf32>
    %42 = tpu.matmul %37, %39, %cst_23 {dimension_numbers = #tpu.dot_dimension_numbers<[1], [0], [0], [1], [0, 0, 1, 1], [], []>} : vector<12x32xf32>, vector<32x96xf32>, vector<12x96xf32> -> vector<12x96xf32>
    %43 = vector.broadcast %41 : vector<1x96xf32> to vector<12x96xf32>
    %44 = arith.addf %42, %43 : vector<12x96xf32>
    %45 = vector.extract_strided_slice %44 {offsets = [0, 0], sizes = [12, 32], strides = [1, 1]} : vector<12x96xf32> to vector<12x32xf32>
    %46 = vector.extract_strided_slice %44 {offsets = [0, 32], sizes = [12, 32], strides = [1, 1]} : vector<12x96xf32> to vector<12x32xf32>
    %47 = vector.extract_strided_slice %44 {offsets = [0, 64], sizes = [12, 32], strides = [1, 1]} : vector<12x96xf32> to vector<12x32xf32>
    %48 = vector.extract_strided_slice %45 {offsets = [0, 0], sizes = [12, 8], strides = [1, 1]} : vector<12x32xf32> to vector<12x8xf32>
    %49 = vector.extract_strided_slice %46 {offsets = [0, 0], sizes = [12, 8], strides = [1, 1]} : vector<12x32xf32> to vector<12x8xf32>
    %cst_24 = arith.constant dense<0.000000e+00> : vector<12x12xf32>
    %50 = tpu.matmul %48, %49, %cst_24 {dimension_numbers = #tpu.dot_dimension_numbers<[1], [1], [0], [0], [0, 0, 1, 0], [], []>} : vector<12x8xf32>, vector<12x8xf32>, vector<12x12xf32> -> vector<12x12xf32>
    %cst_25 = arith.constant 0.353553385 : f32
    %51 = vector.broadcast %cst_25 : f32 to vector<12x12xf32>
    %52 = arith.mulf %50, %51 : vector<12x12xf32>
    %cst_26 = arith.constant dense<0xFF800000> : vector<12xf32>
    %53 = vector.multi_reduction <maximumf>, %52, %cst_26 [1] : vector<12x12xf32> to vector<12xf32>
    %54 = vector.shape_cast %53 : vector<12xf32> to vector<12x1xf32>
    %55 = vector.broadcast %54 : vector<12x1xf32> to vector<12x12xf32>
    %56 = arith.subf %52, %55 : vector<12x12xf32>
    %57 = math.exp %56 : vector<12x12xf32>
    %cst_27 = arith.constant dense<0.000000e+00> : vector<12xf32>
    %58 = vector.multi_reduction <add>, %57, %cst_27 [1] : vector<12x12xf32> to vector<12xf32>
    %59 = vector.shape_cast %58 : vector<12xf32> to vector<12x1xf32>
    %60 = tpu.reciprocal %59 {approx = true} : vector<12x1xf32> -> vector<12x1xf32>
    %61 = vector.broadcast %60 : vector<12x1xf32> to vector<12x12xf32>
    %62 = arith.mulf %57, %61 : vector<12x12xf32>
    %63 = vector.extract_strided_slice %47 {offsets = [0, 0], sizes = [12, 8], strides = [1, 1]} : vector<12x32xf32> to vector<12x8xf32>
    %cst_28 = arith.constant dense<0.000000e+00> : vector<12x8xf32>
    %64 = tpu.matmul %62, %63, %cst_28 {dimension_numbers = #tpu.dot_dimension_numbers<[1], [0], [0], [1], [0, 0, 1, 1], [], []>} : vector<12x12xf32>, vector<12x8xf32>, vector<12x8xf32> -> vector<12x8xf32>
    %65 = vector.extract_strided_slice %45 {offsets = [0, 8], sizes = [12, 8], strides = [1, 1]} : vector<12x32xf32> to vector<12x8xf32>
    %66 = vector.extract_strided_slice %46 {offsets = [0, 8], sizes = [12, 8], strides = [1, 1]} : vector<12x32xf32> to vector<12x8xf32>
    %cst_29 = arith.constant dense<0.000000e+00> : vector<12x12xf32>
    %67 = tpu.matmul %65, %66, %cst_29 {dimension_numbers = #tpu.dot_dimension_numbers<[1], [1], [0], [0], [0, 0, 1, 0], [], []>} : vector<12x8xf32>, vector<12x8xf32>, vector<12x12xf32> -> vector<12x12xf32>
    %cst_30 = arith.constant 0.353553385 : f32
    %68 = vector.broadcast %cst_30 : f32 to vector<12x12xf32>
    %69 = arith.mulf %67, %68 : vector<12x12xf32>
    %cst_31 = arith.constant dense<0xFF800000> : vector<12xf32>
    %70 = vector.multi_reduction <maximumf>, %69, %cst_31 [1] : vector<12x12xf32> to vector<12xf32>
    %71 = vector.shape_cast %70 : vector<12xf32> to vector<12x1xf32>
    %72 = vector.broadcast %71 : vector<12x1xf32> to vector<12x12xf32>
    %73 = arith.subf %69, %72 : vector<12x12xf32>
    %74 = math.exp %73 : vector<12x12xf32>
    %cst_32 = arith.constant dense<0.000000e+00> : vector<12xf32>
    %75 = vector.multi_reduction <add>, %74, %cst_32 [1] : vector<12x12xf32> to vector<12xf32>
    %76 = vector.shape_cast %75 : vector<12xf32> to vector<12x1xf32>
    %77 = tpu.reciprocal %76 {approx = true} : vector<12x1xf32> -> vector<12x1xf32>
    %78 = vector.broadcast %77 : vector<12x1xf32> to vector<12x12xf32>
    %79 = arith.mulf %74, %78 : vector<12x12xf32>
    %80 = vector.extract_strided_slice %47 {offsets = [0, 8], sizes = [12, 8], strides = [1, 1]} : vector<12x32xf32> to vector<12x8xf32>
    %cst_33 = arith.constant dense<0.000000e+00> : vector<12x8xf32>
    %81 = tpu.matmul %79, %80, %cst_33 {dimension_numbers = #tpu.dot_dimension_numbers<[1], [0], [0], [1], [0, 0, 1, 1], [], []>} : vector<12x12xf32>, vector<12x8xf32>, vector<12x8xf32> -> vector<12x8xf32>
    %82 = vector.extract_strided_slice %45 {offsets = [0, 16], sizes = [12, 8], strides = [1, 1]} : vector<12x32xf32> to vector<12x8xf32>
    %83 = vector.extract_strided_slice %46 {offsets = [0, 16], sizes = [12, 8], strides = [1, 1]} : vector<12x32xf32> to vector<12x8xf32>
    %cst_34 = arith.constant dense<0.000000e+00> : vector<12x12xf32>
    %84 = tpu.matmul %82, %83, %cst_34 {dimension_numbers = #tpu.dot_dimension_numbers<[1], [1], [0], [0], [0, 0, 1, 0], [], []>} : vector<12x8xf32>, vector<12x8xf32>, vector<12x12xf32> -> vector<12x12xf32>
    %cst_35 = arith.constant 0.353553385 : f32
    %85 = vector.broadcast %cst_35 : f32 to vector<12x12xf32>
    %86 = arith.mulf %84, %85 : vector<12x12xf32>
    %cst_36 = arith.constant dense<0xFF800000> : vector<12xf32>
    %87 = vector.multi_reduction <maximumf>, %86, %cst_36 [1] : vector<12x12xf32> to vector<12xf32>
    %88 = vector.shape_cast %87 : vector<12xf32> to vector<12x1xf32>
    %89 = vector.broadcast %88 : vector<12x1xf32> to vector<12x12xf32>
    %90 = arith.subf %86, %89 : vector<12x12xf32>
    %91 = math.exp %90 : vector<12x12xf32>
    %cst_37 = arith.constant dense<0.000000e+00> : vector<12xf32>
    %92 = vector.multi_reduction <add>, %91, %cst_37 [1] : vector<12x12xf32> to vector<12xf32>
    %93 = vector.shape_cast %92 : vector<12xf32> to vector<12x1xf32>
    %94 = tpu.reciprocal %93 {approx = true} : vector<12x1xf32> -> vector<12x1xf32>
    %95 = vector.broadcast %94 : vector<12x1xf32> to vector<12x12xf32>
    %96 = arith.mulf %91, %95 : vector<12x12xf32>
    %97 = vector.extract_strided_slice %47 {offsets = [0, 16], sizes = [12, 8], strides = [1, 1]} : vector<12x32xf32> to vector<12x8xf32>
    %cst_38 = arith.constant dense<0.000000e+00> : vector<12x8xf32>
    %98 = tpu.matmul %96, %97, %cst_38 {dimension_numbers = #tpu.dot_dimension_numbers<[1], [0], [0], [1], [0, 0, 1, 1], [], []>} : vector<12x12xf32>, vector<12x8xf32>, vector<12x8xf32> -> vector<12x8xf32>
    %99 = vector.extract_strided_slice %45 {offsets = [0, 24], sizes = [12, 8], strides = [1, 1]} : vector<12x32xf32> to vector<12x8xf32>
    %100 = vector.extract_strided_slice %46 {offsets = [0, 24], sizes = [12, 8], strides = [1, 1]} : vector<12x32xf32> to vector<12x8xf32>
    %cst_39 = arith.constant dense<0.000000e+00> : vector<12x12xf32>
    %101 = tpu.matmul %99, %100, %cst_39 {dimension_numbers = #tpu.dot_dimension_numbers<[1], [1], [0], [0], [0, 0, 1, 0], [], []>} : vector<12x8xf32>, vector<12x8xf32>, vector<12x12xf32> -> vector<12x12xf32>
    %cst_40 = arith.constant 0.353553385 : f32
    %102 = vector.broadcast %cst_40 : f32 to vector<12x12xf32>
    %103 = arith.mulf %101, %102 : vector<12x12xf32>
    %cst_41 = arith.constant dense<0xFF800000> : vector<12xf32>
    %104 = vector.multi_reduction <maximumf>, %103, %cst_41 [1] : vector<12x12xf32> to vector<12xf32>
    %105 = vector.shape_cast %104 : vector<12xf32> to vector<12x1xf32>
    %106 = vector.broadcast %105 : vector<12x1xf32> to vector<12x12xf32>
    %107 = arith.subf %103, %106 : vector<12x12xf32>
    %108 = math.exp %107 : vector<12x12xf32>
    %cst_42 = arith.constant dense<0.000000e+00> : vector<12xf32>
    %109 = vector.multi_reduction <add>, %108, %cst_42 [1] : vector<12x12xf32> to vector<12xf32>
    %110 = vector.shape_cast %109 : vector<12xf32> to vector<12x1xf32>
    %111 = tpu.reciprocal %110 {approx = true} : vector<12x1xf32> -> vector<12x1xf32>
    %112 = vector.broadcast %111 : vector<12x1xf32> to vector<12x12xf32>
    %113 = arith.mulf %108, %112 : vector<12x12xf32>
    %114 = vector.extract_strided_slice %47 {offsets = [0, 24], sizes = [12, 8], strides = [1, 1]} : vector<12x32xf32> to vector<12x8xf32>
    %cst_43 = arith.constant dense<0.000000e+00> : vector<12x8xf32>
    %115 = tpu.matmul %113, %114, %cst_43 {dimension_numbers = #tpu.dot_dimension_numbers<[1], [0], [0], [1], [0, 0, 1, 1], [], []>} : vector<12x12xf32>, vector<12x8xf32>, vector<12x8xf32> -> vector<12x8xf32>
    %116 = tpu.concatenate %64, %81, %98, %115 in 1 : vector<12x8xf32>, vector<12x8xf32>, vector<12x8xf32>, vector<12x8xf32> -> vector<12x32xf32>
    %c0_44 = arith.constant 0 : index
    %c0_45 = arith.constant 0 : index
    %c0_46 = arith.constant 0 : index
    %117 = vector.load %arg8[%c0_44, %c0_45, %c0_46] : memref<1x32x32xf32, #tpu.memory_space<vmem>>, vector<1x32x32xf32>
    %118 = vector.shape_cast %117 : vector<1x32x32xf32> to vector<32x32xf32>
    %cst_47 = arith.constant dense<0.000000e+00> : vector<12x32xf32>
    %119 = tpu.matmul %116, %118, %cst_47 {dimension_numbers = #tpu.dot_dimension_numbers<[1], [0], [0], [1], [0, 0, 1, 1], [], []>} : vector<12x32xf32>, vector<32x32xf32>, vector<12x32xf32> -> vector<12x32xf32>
    %120 = arith.addf %3, %119 : vector<12x32xf32>
    %c0_48 = arith.constant 0 : index
    %c0_49 = arith.constant 0 : index
    %c0_50 = arith.constant 0 : index
    %121 = vector.load %arg9[%c0_48, %c0_49, %c0_50] : memref<1x1x32xf32, #tpu.memory_space<vmem>>, vector<1x1x32xf32>
    %122 = vector.shape_cast %121 : vector<1x1x32xf32> to vector<1x32xf32>
    %123 = vector.broadcast %122 : vector<1x32xf32> to vector<12x32xf32>
    %124 = arith.addf %120, %123 : vector<12x32xf32>
    %c0_51 = arith.constant 0 : index
    %c0_52 = arith.constant 0 : index
    %c0_53 = arith.constant 0 : index
    %125 = vector.load %arg10[%c0_51, %c0_52, %c0_53] : memref<1x32x64xf32, #tpu.memory_space<vmem>>, vector<1x32x64xf32>
    %126 = vector.shape_cast %125 : vector<1x32x64xf32> to vector<32x64xf32>
    %cst_54 = arith.constant dense<0.000000e+00> : vector<1x64xf32>
    %127 = tpu.matmul %5, %126, %cst_54 {dimension_numbers = #tpu.dot_dimension_numbers<[1], [0], [0], [1], [0, 0, 1, 1], [], []>} : vector<1x32xf32>, vector<32x64xf32>, vector<1x64xf32> -> vector<1x64xf32>
    %c0_55 = arith.constant 0 : index
    %c0_56 = arith.constant 0 : index
    %c0_57 = arith.constant 0 : index
    %128 = vector.load %arg11[%c0_55, %c0_56, %c0_57] : memref<1x1x64xf32, #tpu.memory_space<vmem>>, vector<1x1x64xf32>
    %129 = vector.shape_cast %128 : vector<1x1x64xf32> to vector<1x64xf32>
    %130 = arith.addf %127, %129 : vector<1x64xf32>
    %131 = vector.extract_strided_slice %130 {offsets = [0, 0], sizes = [1, 32], strides = [1, 1]} : vector<1x64xf32> to vector<1x32xf32>
    %132 = vector.extract_strided_slice %130 {offsets = [0, 32], sizes = [1, 32], strides = [1, 1]} : vector<1x64xf32> to vector<1x32xf32>
    %cst_58 = arith.constant dense<0.000000e+00> : vector<12xf32>
    %133 = vector.multi_reduction <add>, %124, %cst_58 [1] : vector<12x32xf32> to vector<12xf32>
    %134 = vector.shape_cast %133 : vector<12xf32> to vector<12x1xf32>
    %cst_59 = arith.constant 3.200000e+01 : f32
    %135 = vector.broadcast %cst_59 : f32 to vector<12x1xf32>
    %136 = arith.divf %134, %135 : vector<12x1xf32>
    %137 = vector.broadcast %136 : vector<12x1xf32> to vector<12x32xf32>
    %138 = arith.subf %124, %137 : vector<12x32xf32>
    %139 = arith.mulf %138, %138 : vector<12x32xf32>
    %cst_60 = arith.constant dense<0.000000e+00> : vector<12xf32>
    %140 = vector.multi_reduction <add>, %139, %cst_60 [1] : vector<12x32xf32> to vector<12xf32>
    %141 = vector.shape_cast %140 : vector<12xf32> to vector<12x1xf32>
    %cst_61 = arith.constant 3.200000e+01 : f32
    %142 = vector.broadcast %cst_61 : f32 to vector<12x1xf32>
    %143 = arith.divf %141, %142 : vector<12x1xf32>
    %144 = vector.broadcast %136 : vector<12x1xf32> to vector<12x32xf32>
    %145 = arith.subf %124, %144 : vector<12x32xf32>
    %cst_62 = arith.constant 9.99999974E-6 : f32
    %146 = vector.broadcast %cst_62 : f32 to vector<12x1xf32>
    %147 = arith.addf %143, %146 : vector<12x1xf32>
    %148 = math.rsqrt %147 : vector<12x1xf32>
    %149 = vector.broadcast %148 : vector<12x1xf32> to vector<12x32xf32>
    %150 = arith.mulf %145, %149 : vector<12x32xf32>
    %cst_63 = arith.constant 1.000000e+00 : f32
    %151 = vector.broadcast %cst_63 : f32 to vector<1x32xf32>
    %152 = arith.addf %151, %131 : vector<1x32xf32>
    %153 = vector.broadcast %152 : vector<1x32xf32> to vector<12x32xf32>
    %154 = arith.mulf %150, %153 : vector<12x32xf32>
    %155 = vector.broadcast %132 : vector<1x32xf32> to vector<12x32xf32>
    %156 = arith.addf %154, %155 : vector<12x32xf32>
    %c0_64 = arith.constant 0 : index
    %c0_65 = arith.constant 0 : index
    %c0_66 = arith.constant 0 : index
    %157 = vector.load %arg12[%c0_64, %c0_65, %c0_66] : memref<1x32x64xf32, #tpu.memory_space<vmem>>, vector<1x32x64xf32>
    %158 = vector.shape_cast %157 : vector<1x32x64xf32> to vector<32x64xf32>
    %cst_67 = arith.constant dense<0.000000e+00> : vector<12x64xf32>
    %159 = tpu.matmul %156, %158, %cst_67 {dimension_numbers = #tpu.dot_dimension_numbers<[1], [0], [0], [1], [0, 0, 1, 1], [], []>} : vector<12x32xf32>, vector<32x64xf32>, vector<12x64xf32> -> vector<12x64xf32>
    %c0_68 = arith.constant 0 : index
    %c0_69 = arith.constant 0 : index
    %c0_70 = arith.constant 0 : index
    %160 = vector.load %arg13[%c0_68, %c0_69, %c0_70] : memref<1x1x64xf32, #tpu.memory_space<vmem>>, vector<1x1x64xf32>
    %161 = vector.shape_cast %160 : vector<1x1x64xf32> to vector<1x64xf32>
    %162 = vector.broadcast %161 : vector<1x64xf32> to vector<12x64xf32>
    %163 = arith.addf %159, %162 : vector<12x64xf32>
    %cst_71 = arith.constant 0.000000e+00 : f32
    %164 = vector.broadcast %cst_71 : f32 to vector<12x64xf32>
    %165 = arith.maximumf %163, %164 : vector<12x64xf32>
    %c0_72 = arith.constant 0 : index
    %c0_73 = arith.constant 0 : index
    %c0_74 = arith.constant 0 : index
    %166 = vector.load %arg14[%c0_72, %c0_73, %c0_74] : memref<1x64x32xf32, #tpu.memory_space<vmem>>, vector<1x64x32xf32>
    %167 = vector.shape_cast %166 : vector<1x64x32xf32> to vector<64x32xf32>
    %cst_75 = arith.constant dense<0.000000e+00> : vector<12x32xf32>
    %168 = tpu.matmul %165, %167, %cst_75 {dimension_numbers = #tpu.dot_dimension_numbers<[1], [0], [0], [1], [0, 0, 1, 1], [], []>} : vector<12x64xf32>, vector<64x32xf32>, vector<12x32xf32> -> vector<12x32xf32>
    %169 = arith.addf %124, %168 : vector<12x32xf32>
    %c0_76 = arith.constant 0 : index
    %c0_77 = arith.constant 0 : index
    %c0_78 = arith.constant 0 : index
    %170 = vector.load %arg15[%c0_76, %c0_77, %c0_78] : memref<1x1x32xf32, #tpu.memory_space<vmem>>, vector<1x1x32xf32>
    %171 = vector.shape_cast %170 : vector<1x1x32xf32> to vector<1x32xf32>
    %172 = vector.broadcast %171 : vector<1x32xf32> to vector<12x32xf32>
    %173 = arith.addf %169, %172 : vector<12x32xf32>
    %c0_79 = arith.constant 0 : index
    %c0_80 = arith.constant 0 : index
    %174 = vector.load %arg17[%c0_79, %c0_80] : memref<12x32xf32, #tpu.memory_space<vmem>>, vector<12x32xf32>
    tpu.vector_store %arg17[%c0_79, %c0_80], %173 {strides = array<i32>} : memref<12x32xf32, #tpu.memory_space<vmem>>, vector<12x32xf32>,
    %c1_i32 = arith.constant 1 : i32
    %175 = arith.cmpi eq, %arg1, %c1_i32 : i32
    %176 = arith.extui %175 : i1 to i32
    %c0_i32_81 = arith.constant 0 : i32
    %177 = arith.cmpi ne, %176, %c0_i32_81 : i32
    scf.if %177 {
      %c0_82 = arith.constant 0 : index
      %c0_83 = arith.constant 0 : index
      %c0_84 = arith.constant 0 : index
      %178 = vector.load %arg16[%c0_82, %c0_83, %c0_84] : memref<1x12x32xf32, #tpu.memory_space<vmem>>, vector<1x12x32xf32>
      %179 = vector.shape_cast %178 : vector<1x12x32xf32> to vector<12x32xf32>
      %180 = vector.shape_cast %173 : vector<12x32xf32> to vector<1x12x32xf32>
      tpu.vector_store %arg16[%c0_82, %c0_83, %c0_84], %180 {strides = array<i32>} : memref<1x12x32xf32, #tpu.memory_space<vmem>>, vector<1x12x32xf32>,
    } else {
    }
    return
  }
  func.func @transform_0(%arg0: i32, %arg1: i32) -> (i32, i32, i32) {
    %c0_i32 = arith.constant 0 : i32
    %c0_i32_0 = arith.constant 0 : i32
    %c0_i32_1 = arith.constant 0 : i32
    return %arg0, %c0_i32, %c0_i32_0 : i32, i32, i32
  }
  func.func @transform_1(%arg0: i32, %arg1: i32) -> (i32, i32, i32) {
    %c0_i32 = arith.constant 0 : i32
    %c0_i32_0 = arith.constant 0 : i32
    %c0_i32_1 = arith.constant 0 : i32
    return %arg0, %c0_i32, %c0_i32_0 : i32, i32, i32
  }
  func.func @transform_2(%arg0: i32, %arg1: i32) -> (i32, i32, i32) {
    %c0_i32 = arith.constant 0 : i32
    %c0_i32_0 = arith.constant 0 : i32
    %c0_i32_1 = arith.constant 0 : i32
    return %arg1, %c0_i32, %c0_i32_0 : i32, i32, i32
  }
  func.func @transform_3(%arg0: i32, %arg1: i32) -> (i32, i32, i32) {
    %c0_i32 = arith.constant 0 : i32
    %c0_i32_0 = arith.constant 0 : i32
    %c0_i32_1 = arith.constant 0 : i32
    return %arg1, %c0_i32, %c0_i32_0 : i32, i32, i32
  }
  func.func @transform_4(%arg0: i32, %arg1: i32) -> (i32, i32, i32) {
    %c0_i32 = arith.constant 0 : i32
    %c0_i32_0 = arith.constant 0 : i32
    %c0_i32_1 = arith.constant 0 : i32
    return %arg1, %c0_i32, %c0_i32_0 : i32, i32, i32
  }
  func.func @transform_5(%arg0: i32, %arg1: i32) -> (i32, i32, i32) {
    %c0_i32 = arith.constant 0 : i32
    %c0_i32_0 = arith.constant 0 : i32
    %c0_i32_1 = arith.constant 0 : i32
    return %arg1, %c0_i32, %c0_i32_0 : i32, i32, i32
  }
  func.func @transform_6(%arg0: i32, %arg1: i32) -> (i32, i32, i32) {
    %c0_i32 = arith.constant 0 : i32
    %c0_i32_0 = arith.constant 0 : i32
    %c0_i32_1 = arith.constant 0 : i32
    return %arg1, %c0_i32, %c0_i32_0 : i32, i32, i32
  }
  func.func @transform_7(%arg0: i32, %arg1: i32) -> (i32, i32, i32) {
    %c0_i32 = arith.constant 0 : i32
    %c0_i32_0 = arith.constant 0 : i32
    %c0_i32_1 = arith.constant 0 : i32
    return %arg1, %c0_i32, %c0_i32_0 : i32, i32, i32
  }
  func.func @transform_8(%arg0: i32, %arg1: i32) -> (i32, i32, i32) {
    %c0_i32 = arith.constant 0 : i32
    %c0_i32_0 = arith.constant 0 : i32
    %c0_i32_1 = arith.constant 0 : i32
    return %arg1, %c0_i32, %c0_i32_0 : i32, i32, i32
  }
  func.func @transform_9(%arg0: i32, %arg1: i32) -> (i32, i32, i32) {
    %c0_i32 = arith.constant 0 : i32
    %c0_i32_0 = arith.constant 0 : i32
    %c0_i32_1 = arith.constant 0 : i32
    return %arg1, %c0_i32, %c0_i32_0 : i32, i32, i32
  }
  func.func @transform_10(%arg0: i32, %arg1: i32) -> (i32, i32, i32) {
    %c0_i32 = arith.constant 0 : i32
    %c0_i32_0 = arith.constant 0 : i32
    %c0_i32_1 = arith.constant 0 : i32
    return %arg1, %c0_i32, %c0_i32_0 : i32, i32, i32
  }
  func.func @transform_11(%arg0: i32, %arg1: i32) -> (i32, i32, i32) {
    %c0_i32 = arith.constant 0 : i32
    %c0_i32_0 = arith.constant 0 : i32
    %c0_i32_1 = arith.constant 0 : i32
    return %arg1, %c0_i32, %c0_i32_0 : i32, i32, i32
  }
  func.func @transform_12(%arg0: i32, %arg1: i32) -> (i32, i32, i32) {
    %c0_i32 = arith.constant 0 : i32
    %c0_i32_0 = arith.constant 0 : i32
    %c0_i32_1 = arith.constant 0 : i32
    return %arg1, %c0_i32, %c0_i32_0 : i32, i32, i32
  }
  func.func @transform_13(%arg0: i32, %arg1: i32) -> (i32, i32, i32) {
    %c0_i32 = arith.constant 0 : i32
    %c0_i32_0 = arith.constant 0 : i32
    %c0_i32_1 = arith.constant 0 : i32
    return %arg1, %c0_i32, %c0_i32_0 : i32, i32, i32
  }
  func.func @transform_14(%arg0: i32, %arg1: i32) -> (i32, i32, i32) {
    %c0_i32 = arith.constant 0 : i32
    %c0_i32_0 = arith.constant 0 : i32
    %c0_i32_1 = arith.constant 0 : i32
    return %arg0, %c0_i32, %c0_i32_0 : i32, i32, i32
  }
}

module attributes {stable_mosaic.version = 11 : i64} {
  func.func @_heads_kernel(%arg0: memref<2x32xf32, #tpu.memory_space<vmem>>, %arg1: memref<2x32xf32, #tpu.memory_space<vmem>>, %arg2: memref<32x32xf32, #tpu.memory_space<vmem>>, %arg3: memref<1x32xf32, #tpu.memory_space<vmem>>, %arg4: memref<32x32xf32, #tpu.memory_space<vmem>>, %arg5: memref<1x32xf32, #tpu.memory_space<vmem>>, %arg6: memref<32x4xf32, #tpu.memory_space<vmem>>, %arg7: memref<1x4xf32, #tpu.memory_space<vmem>>, %arg8: memref<32x32xf32, #tpu.memory_space<vmem>>, %arg9: memref<1x32xf32, #tpu.memory_space<vmem>>, %arg10: memref<32x64xf32, #tpu.memory_space<vmem>>, %arg11: memref<1x64xf32, #tpu.memory_space<vmem>>, %arg12: memref<64x4xf32, #tpu.memory_space<vmem>>, %arg13: memref<1x4xf32, #tpu.memory_space<vmem>>, %arg14: memref<2x3xf32, #tpu.memory_space<vmem>>, %arg15: memref<2x4xf32, #tpu.memory_space<vmem>>, %arg16: memref<2x1xf32, #tpu.memory_space<vmem>>) attributes {dimension_semantics = [], scalar_prefetch = 0 : i64, scratch_operands = 0 : i64, tpu.core_type = #tpu.core_type<tc>} {
    %c0 = arith.constant 0 : index
    %c0_0 = arith.constant 0 : index
    %0 = vector.load %arg0[%c0, %c0_0] : memref<2x32xf32, #tpu.memory_space<vmem>>, vector<2x32xf32>
    %c0_1 = arith.constant 0 : index
    %c0_2 = arith.constant 0 : index
    %1 = vector.load %arg2[%c0_1, %c0_2] : memref<32x32xf32, #tpu.memory_space<vmem>>, vector<32x32xf32>
    %cst = arith.constant dense<0.000000e+00> : vector<2x32xf32>
    %2 = tpu.matmul %0, %1, %cst {dimension_numbers = #tpu.dot_dimension_numbers<[1], [0], [0], [1], [0, 0, 1, 1], [], []>} : vector<2x32xf32>, vector<32x32xf32>, vector<2x32xf32> -> vector<2x32xf32>
    %c0_3 = arith.constant 0 : index
    %c0_4 = arith.constant 0 : index
    %3 = vector.load %arg3[%c0_3, %c0_4] : memref<1x32xf32, #tpu.memory_space<vmem>>, vector<1x32xf32>
    %4 = vector.broadcast %3 : vector<1x32xf32> to vector<2x32xf32>
    %5 = arith.addf %2, %4 : vector<2x32xf32>
    %c0_5 = arith.constant 0 : index
    %c0_6 = arith.constant 0 : index
    %6 = vector.load %arg4[%c0_5, %c0_6] : memref<32x32xf32, #tpu.memory_space<vmem>>, vector<32x32xf32>
    %cst_7 = arith.constant dense<0.000000e+00> : vector<2x32xf32>
    %7 = tpu.matmul %5, %6, %cst_7 {dimension_numbers = #tpu.dot_dimension_numbers<[1], [0], [0], [1], [0, 0, 1, 1], [], []>} : vector<2x32xf32>, vector<32x32xf32>, vector<2x32xf32> -> vector<2x32xf32>
    %c0_8 = arith.constant 0 : index
    %c0_9 = arith.constant 0 : index
    %8 = vector.load %arg5[%c0_8, %c0_9] : memref<1x32xf32, #tpu.memory_space<vmem>>, vector<1x32xf32>
    %9 = vector.broadcast %8 : vector<1x32xf32> to vector<2x32xf32>
    %10 = arith.addf %7, %9 : vector<2x32xf32>
    %cst_10 = arith.constant 0.000000e+00 : f32
    %11 = vector.broadcast %cst_10 : f32 to vector<2x32xf32>
    %12 = arith.maximumf %10, %11 : vector<2x32xf32>
    %c0_11 = arith.constant 0 : index
    %c0_12 = arith.constant 0 : index
    %13 = vector.load %arg6[%c0_11, %c0_12] : memref<32x4xf32, #tpu.memory_space<vmem>>, vector<32x4xf32>
    %cst_13 = arith.constant dense<0.000000e+00> : vector<2x4xf32>
    %14 = tpu.matmul %12, %13, %cst_13 {dimension_numbers = #tpu.dot_dimension_numbers<[1], [0], [0], [1], [0, 0, 1, 1], [], []>} : vector<2x32xf32>, vector<32x4xf32>, vector<2x4xf32> -> vector<2x4xf32>
    %c0_14 = arith.constant 0 : index
    %c0_15 = arith.constant 0 : index
    %15 = vector.load %arg7[%c0_14, %c0_15] : memref<1x4xf32, #tpu.memory_space<vmem>>, vector<1x4xf32>
    %16 = vector.broadcast %15 : vector<1x4xf32> to vector<2x4xf32>
    %17 = arith.addf %14, %16 : vector<2x4xf32>
    %c0_16 = arith.constant 0 : index
    %c0_17 = arith.constant 0 : index
    %18 = vector.load %arg1[%c0_16, %c0_17] : memref<2x32xf32, #tpu.memory_space<vmem>>, vector<2x32xf32>
    %c0_18 = arith.constant 0 : index
    %c0_19 = arith.constant 0 : index
    %19 = vector.load %arg8[%c0_18, %c0_19] : memref<32x32xf32, #tpu.memory_space<vmem>>, vector<32x32xf32>
    %cst_20 = arith.constant dense<0.000000e+00> : vector<2x32xf32>
    %20 = tpu.matmul %18, %19, %cst_20 {dimension_numbers = #tpu.dot_dimension_numbers<[1], [0], [0], [1], [0, 0, 1, 1], [], []>} : vector<2x32xf32>, vector<32x32xf32>, vector<2x32xf32> -> vector<2x32xf32>
    %c0_21 = arith.constant 0 : index
    %c0_22 = arith.constant 0 : index
    %21 = vector.load %arg9[%c0_21, %c0_22] : memref<1x32xf32, #tpu.memory_space<vmem>>, vector<1x32xf32>
    %22 = vector.broadcast %21 : vector<1x32xf32> to vector<2x32xf32>
    %23 = arith.addf %20, %22 : vector<2x32xf32>
    %c0_23 = arith.constant 0 : index
    %c0_24 = arith.constant 0 : index
    %24 = vector.load %arg10[%c0_23, %c0_24] : memref<32x64xf32, #tpu.memory_space<vmem>>, vector<32x64xf32>
    %cst_25 = arith.constant dense<0.000000e+00> : vector<2x64xf32>
    %25 = tpu.matmul %23, %24, %cst_25 {dimension_numbers = #tpu.dot_dimension_numbers<[1], [0], [0], [1], [0, 0, 1, 1], [], []>} : vector<2x32xf32>, vector<32x64xf32>, vector<2x64xf32> -> vector<2x64xf32>
    %c0_26 = arith.constant 0 : index
    %c0_27 = arith.constant 0 : index
    %26 = vector.load %arg11[%c0_26, %c0_27] : memref<1x64xf32, #tpu.memory_space<vmem>>, vector<1x64xf32>
    %27 = vector.broadcast %26 : vector<1x64xf32> to vector<2x64xf32>
    %28 = arith.addf %25, %27 : vector<2x64xf32>
    %cst_28 = arith.constant 0.000000e+00 : f32
    %29 = vector.broadcast %cst_28 : f32 to vector<2x64xf32>
    %30 = arith.maximumf %28, %29 : vector<2x64xf32>
    %c0_29 = arith.constant 0 : index
    %c0_30 = arith.constant 0 : index
    %31 = vector.load %arg12[%c0_29, %c0_30] : memref<64x4xf32, #tpu.memory_space<vmem>>, vector<64x4xf32>
    %cst_31 = arith.constant dense<0.000000e+00> : vector<2x4xf32>
    %32 = tpu.matmul %30, %31, %cst_31 {dimension_numbers = #tpu.dot_dimension_numbers<[1], [0], [0], [1], [0, 0, 1, 1], [], []>} : vector<2x64xf32>, vector<64x4xf32>, vector<2x4xf32> -> vector<2x4xf32>
    %c0_32 = arith.constant 0 : index
    %c0_33 = arith.constant 0 : index
    %33 = vector.load %arg13[%c0_32, %c0_33] : memref<1x4xf32, #tpu.memory_space<vmem>>, vector<1x4xf32>
    %34 = vector.broadcast %33 : vector<1x4xf32> to vector<2x4xf32>
    %35 = arith.addf %32, %34 : vector<2x4xf32>
    %36 = vector.extract_strided_slice %35 {offsets = [0, 0], sizes = [2, 3], strides = [1, 1]} : vector<2x4xf32> to vector<2x3xf32>
    %c0_34 = arith.constant 0 : index
    %c0_35 = arith.constant 0 : index
    %37 = vector.load %arg14[%c0_34, %c0_35] : memref<2x3xf32, #tpu.memory_space<vmem>>, vector<2x3xf32>
    tpu.vector_store %arg14[%c0_34, %c0_35], %36 {strides = array<i32>} : memref<2x3xf32, #tpu.memory_space<vmem>>, vector<2x3xf32>,
    %38 = vector.extract_strided_slice %35 {offsets = [0, 3], sizes = [2, 1], strides = [1, 1]} : vector<2x4xf32> to vector<2x1xf32>
    %c0_36 = arith.constant 0 : index
    %c0_37 = arith.constant 0 : index
    %39 = vector.load %arg16[%c0_36, %c0_37] : memref<2x1xf32, #tpu.memory_space<vmem>>, vector<2x1xf32>
    tpu.vector_store %arg16[%c0_36, %c0_37], %38 {strides = array<i32>} : memref<2x1xf32, #tpu.memory_space<vmem>>, vector<2x1xf32>,
    %c0_38 = arith.constant 0 : index
    %c0_39 = arith.constant 0 : index
    %40 = vector.load %arg15[%c0_38, %c0_39] : memref<2x4xf32, #tpu.memory_space<vmem>>, vector<2x4xf32>
    tpu.vector_store %arg15[%c0_38, %c0_39], %17 {strides = array<i32>} : memref<2x4xf32, #tpu.memory_space<vmem>>, vector<2x4xf32>,
    return
  }
}

</mosaic_0001>

<llo_original>
// kernel: diffusion_head_forward.6
$region0: #{diffusion_head_forward.6}
  #allocation0 [shape = 'u32[]', space=smem, size = 0x4, offset = 0x4, fixed_abs, tag = 'smem constant byte address 0x4 - core index']
  #allocation1 [shape = 'u32[72,128]{1,0:T(1,128)}', space=vmem, size = 0x9000, scoped, tag = 'internal scratch']
  %s0 = inlined_call_operand.vmem [shape: f32[2,32], index: 0, kind: input, shape index: {}]
  %s1 = inlined_call_operand.vmem [shape: f32[2,96], index: 1, kind: input, shape index: {}]
  %s2 = inlined_call_operand.vmem [shape: f32[32,32], index: 2, kind: input, shape index: {}]
  %s3 = inlined_call_operand.vmem [shape: f32[1,32], index: 3, kind: input, shape index: {}]
  %s4 = inlined_call_operand.vmem [shape: f32[32,32], index: 4, kind: input, shape index: {}]
  %s5 = inlined_call_operand.vmem [shape: f32[1,32], index: 5, kind: input, shape index: {}]
  %s6 = inlined_call_operand.vmem [shape: f32[96,32], index: 6, kind: input, shape index: {}]
  %s7 = inlined_call_operand.vmem [shape: f32[1,32], index: 7, kind: input, shape index: {}]
  %s8 = inlined_call_operand.hbm [shape: f32[32,32], index: 8, kind: input, shape index: {}]
  %s9 = inlined_call_operand.vmem [shape: f32[1,32], index: 9, kind: input, shape index: {}]
  %s10 = inlined_call_operand.vmem [shape: f32[2,32], index: 10, kind: output, shape index: {}]
  %s11 = sld [smem:[#allocation0]]
  $region54: #{diffusion_head_forward.6} parent=0
    _
  %s13 = ssub.s32 1, %s11
  %s14 = scalar_select 0, %s13, %s11
  $region1: #{diffusion_head_forward.6} parent=0
    #allocation2 [shape = 'u8[16384]{0}', space=vmem, size = 0x4000, scoped, tag = 'input window, operand 8, single buffered']
    #allocation3 [shape = 's32[1]{0}', space=sflag, size = 0x4, scoped, tag = 'scoped memory for diffusion_head_forward.6']
    %15 = vsyncpa [#allocation3], 0
    // Predicated region
    $region2: #{diffusion_head_forward.6} parent=1 // pred_check
      _
    $region3: #{diffusion_head_forward.6} parent=1 // pred_check_branch
      %17 = sbr.rel (0) target = $region5
    $region4: #{diffusion_head_forward.6} parent=1 // pred_region
      _
    $region5: #{diffusion_head_forward.6} parent=1 // pred_fallthru
      _
    // Predicated region
    $region6: #{diffusion_head_forward.6} parent=1 // pred_check
      _
    $region7: #{diffusion_head_forward.6} parent=1 // pred_check_branch
      %19 = sbr.rel (0) target = $region9
    $region8: #{diffusion_head_forward.6} parent=1 // pred_region
      _
    $region9: #{diffusion_head_forward.6} parent=1 // pred_fallthru
      _
    // Predicated region
    $region10: #{diffusion_head_forward.6} parent=1 // pred_check
      _
    $region11: #{diffusion_head_forward.6} parent=1 // pred_check_branch
      %21 = sbr.rel (0) target = $region13
    $region12: #{diffusion_head_forward.6} parent=1 // pred_region
      _
    $region13: #{diffusion_head_forward.6} parent=1 // pred_fallthru
      _
    // Predicated region
    $region14: #{diffusion_head_forward.6} parent=1 // pred_check
      _
    $region15: #{diffusion_head_forward.6} parent=1 // pred_check_branch
      %23 = sbr.rel (0) target = $region17
    $region16: #{diffusion_head_forward.6} parent=1 // pred_region
      _
    $region17: #{diffusion_head_forward.6} parent=1 // pred_fallthru
      _
    // Predicated region
    $region18: #{diffusion_head_forward.6} parent=1 // pred_check
      _
    $region19: #{diffusion_head_forward.6} parent=1 // pred_check_branch
      %25 = sbr.rel (0) target = $region21
    $region20: #{diffusion_head_forward.6} parent=1 // pred_region
      _
    $region21: #{diffusion_head_forward.6} parent=1 // pred_fallthru
      _
    // Predicated region
    $region22: #{diffusion_head_forward.6} parent=1 // pred_check
      _
    $region23: #{diffusion_head_forward.6} parent=1 // pred_check_branch
      %27 = sbr.rel (0) target = $region25
    $region24: #{diffusion_head_forward.6} parent=1 // pred_region
      _
    $region25: #{diffusion_head_forward.6} parent=1 // pred_fallthru
      _
    // Predicated region
    $region26: #{diffusion_head_forward.6} parent=1 // pred_check
      _
    $region27: #{diffusion_head_forward.6} parent=1 // pred_check_branch
      %29 = sbr.rel (0) target = $region29
    $region28: #{diffusion_head_forward.6} parent=1 // pred_region
      _
    $region29: #{diffusion_head_forward.6} parent=1 // pred_fallthru
      _
    // Predicated region
    $region30: #{diffusion_head_forward.6} parent=1 // pred_check
      _
    $region31: #{diffusion_head_forward.6} parent=1 // pred_check_branch
      %31 = sbr.rel (0) target = $region33
    $region32: #{diffusion_head_forward.6} parent=1 // pred_region
      _
    $region33: #{diffusion_head_forward.6} parent=1 // pred_fallthru
      _
    // Predicated region
    $region34: #{diffusion_head_forward.6} parent=1 // pred_check
      _
    $region35: #{diffusion_head_forward.6} parent=1 // pred_check_branch
      %33 = sbr.rel (0) target = $region37
    $region36: #{diffusion_head_forward.6} parent=1 // pred_region
      %35 = vsyncadd [#allocation3], 0
      %s36 = sshll.u32 %s8, 4
      %s37 = int_to_ptr.hbm [resolvable:$true] %s36
      %s38 = sshll.u32 [#allocation2], 4
      %s39 = int_to_ptr.vmem [resolvable:$true] %s38
      %44 = dma.hbm_to_vmem [thread:$0]  %s37, 512, %s39, [#allocation3], 128, 128, 8
    $region37: #{diffusion_head_forward.6} parent=1 // pred_fallthru
      _
    // Predicated region
    $region38: #{diffusion_head_forward.6} parent=1 // pred_check
      _
    $region39: #{diffusion_head_forward.6} parent=1 // pred_check_branch
      %46 = sbr.rel (0) target = $region41
    $region40: #{diffusion_head_forward.6} parent=1 // pred_region
      _
    $region41: #{diffusion_head_forward.6} parent=1 // pred_fallthru
      _
    // Predicated region
    $region42: #{diffusion_head_forward.6} parent=1 // pred_check
      _
    $region43: #{diffusion_head_forward.6} parent=1 // pred_check_branch
      %48 = sbr.rel (0) target = $region45
    $region44: #{diffusion_head_forward.6} parent=1 // pred_region
      %50 = dma.done [#allocation3], 512
    $region45: #{diffusion_head_forward.6} parent=1 // pred_fallthru
      _
    %v51 = vld [vmem:[%s0] sm:$0x3]
    %v52 = vld [vmem:[%s2] sm:$0xff]
    %v53 = vld [vmem:[%s2 + $0x8] sm:$0xff]
    %v54 = vld [vmem:[%s2 + $0x10] sm:$0xff]
    %v55 = vld [vmem:[%s2 + $0x18] sm:$0xff]
    %v56 = vld [vmem:[%s3] sm:$0x1]
    %v58 = vperm.slane %v56, 0
    %vm60 = vcmask 261120
    %v62 = vsel %vm60, %v51, 0
    %64 = vmatpush.msra.mxu0 0.0
    %65 = vmatpush.msra.mxu0 0.0
    %66 = vmatpush.msra.mxu0 0.0
    %67 = vmatpush.msra.mxu0 0.0
    %68 = vmatpush.msra.mxu0 0.0
    %69 = vmatpush.msra.mxu0 0.0
    %70 = vmatpush.msra.mxu0 0.0
    %71 = vmatpush.msra.mxu0 0.0
    %72 = vmatpush.msra.mxu0 0.0
    %73 = vmatpush.msra.mxu0 0.0
    %74 = vmatpush.msra.mxu0 0.0
    %75 = vmatpush.msra.mxu0 0.0
    %76 = vmatpush.msra.mxu0 %v55
    %77 = vmatpush.msra.mxu0 %v54
    %78 = vmatpush.msra.mxu0 %v53
    %79 = vmatpush.msra.mxu0 %v52
    %80 = vmatmul.f32.gmra.mxu0 %v62
    %v81 = vpop.f32.mrf.mxu0
    %v82 = vadd.f32 %v58, %v81
    %83 = vdwg.mxu0
    %v84 = vmax.f32 %v82, 0.0
    %v85 = vld [vmem:[%s4] sm:$0xff]
    %v86 = vld [vmem:[%s4 + $0x8] sm:$0xff]
    %v87 = vld [vmem:[%s4 + $0x10] sm:$0xff]
    %v88 = vld [vmem:[%s4 + $0x18] sm:$0xff]
    %v89 = vld [vmem:[%s5] sm:$0x1]
    %v91 = vperm.slane %v89, 0
    %v94 = vsel %vm60, %v84, 0
    %96 = vmatpush.msra.mxu0 0.0
    %97 = vmatpush.msra.mxu0 0.0
    %98 = vmatpush.msra.mxu0 0.0
    %99 = vmatpush.msra.mxu0 0.0
    %100 = vmatpush.msra.mxu0 0.0
    %101 = vmatpush.msra.mxu0 0.0
    %102 = vmatpush.msra.mxu0 0.0
    %103 = vmatpush.msra.mxu0 0.0
    %104 = vmatpush.msra.mxu0 0.0
    %105 = vmatpush.msra.mxu0 0.0
    %106 = vmatpush.msra.mxu0 0.0
    %107 = vmatpush.msra.mxu0 0.0
    %108 = vmatpush.msra.mxu0 %v88
    %109 = vmatpush.msra.mxu0 %v87
    %110 = vmatpush.msra.mxu0 %v86
    %111 = vmatpush.msra.mxu0 %v85
    %112 = vmatmul.f32.gmra.mxu0 %v94
    %v113 = vpop.f32.mrf.mxu0
    %v114 = vadd.f32 %v91, %v113
    %115 = vdwg.mxu0
    %v116 = vld [vmem:[%s1] sm:$0x3]
    %v117 = vld [vmem:[%s6] sm:$0xff]
    %v118 = vld [vmem:[%s6 + $0x8] sm:$0xff]
    %v119 = vld [vmem:[%s6 + $0x10] sm:$0xff]
    %v120 = vld [vmem:[%s6 + $0x18] sm:$0xff]
    %v121 = vld [vmem:[%s6 + $0x20] sm:$0xff]
    %v122 = vld [vmem:[%s6 + $0x28] sm:$0xff]
    %v123 = vld [vmem:[%s6 + $0x30] sm:$0xff]
    %v124 = vld [vmem:[%s6 + $0x38] sm:$0xff]
    %v125 = vld [vmem:[%s6 + $0x40] sm:$0xff]
    %v126 = vld [vmem:[%s6 + $0x48] sm:$0xff]
    %v127 = vld [vmem:[%s6 + $0x50] sm:$0xff]
    %v128 = vld [vmem:[%s6 + $0x58] sm:$0xff]
    %v129 = vld [vmem:[%s7] sm:$0x1]
    %v131 = vperm.slane %v129, 0
    %vm133 = vcmask 785408
    %v135 = vsel %vm133, %v116, 0
    %137 = vmatpush.msra.mxu0 0.0
    %138 = vmatpush.msra.mxu0 0.0
    %139 = vmatpush.msra.mxu0 0.0
    %140 = vmatpush.msra.mxu0 0.0
    %141 = vmatpush.msra.mxu0 %v128
    %142 = vmatpush.msra.mxu0 %v127
    %143 = vmatpush.msra.mxu0 %v126
    %144 = vmatpush.msra.mxu0 %v125
    %145 = vmatpush.msra.mxu0 %v124
    %146 = vmatpush.msra.mxu0 %v123
    %147 = vmatpush.msra.mxu0 %v122
    %148 = vmatpush.msra.mxu0 %v121
    %149 = vmatpush.msra.mxu0 %v120
    %150 = vmatpush.msra.mxu0 %v119
    %151 = vmatpush.msra.mxu0 %v118
    %152 = vmatpush.msra.mxu0 %v117
    %153 = vmatmul.f32.gmra.mxu0 %v135
    %v154 = vpop.f32.mrf.mxu0
    %v155 = vadd.f32 %v131, %v154
    %156 = vdwg.mxu0
    %v157 = vmax.f32 %v155, 0.0
    %v158 = vld [vmem:[#allocation2] sm:$0xff]
    %v159 = vld [vmem:[#allocation2 + $0x8] sm:$0xff]
    %v160 = vld [vmem:[#allocation2 + $0x10] sm:$0xff]
    %v161 = vld [vmem:[#allocation2 + $0x18] sm:$0xff]
    %v162 = vld [vmem:[%s9] sm:$0x1]
    %v164 = vperm.slane %v162, 0
    %v167 = vsel %vm60, %v157, 0
    %169 = vmatpush.msra.mxu0 0.0
    %170 = vmatpush.msra.mxu0 0.0
    %171 = vmatpush.msra.mxu0 0.0
    %172 = vmatpush.msra.mxu0 0.0
    %173 = vmatpush.msra.mxu0 0.0
    %174 = vmatpush.msra.mxu0 0.0
    %175 = vmatpush.msra.mxu0 0.0
    %176 = vmatpush.msra.mxu0 0.0
    %177 = vmatpush.msra.mxu0 0.0
    %178 = vmatpush.msra.mxu0 0.0
    %179 = vmatpush.msra.mxu0 0.0
    %180 = vmatpush.msra.mxu0 0.0
    %181 = vmatpush.msra.mxu0 %v161
    %182 = vmatpush.msra.mxu0 %v160
    %183 = vmatpush.msra.mxu0 %v159
    %184 = vmatpush.msra.mxu0 %v158
    %185 = vmatmul.f32.gmra.mxu0 %v167
    %v186 = vpop.f32.mrf.mxu0
    %v187 = vadd.f32 %v164, %v186
    %188 = vdwg.mxu0
    %v189 = vadd.f32 %v114, %v187
    %v190 = vsub.f32 0.0, %v189
    %v191 = vmul.f32 %v190, 1.442695
    %v192 = vpow.pop %v191
    %v193 = vadd.f32 %v192, 1.0
    %v194 = vrcp.pop %v193
    %v195 = vmul.f32 %v193, %v194
    %v196 = vsub.f32 1.0, %v195
    %v197 = vmul.f32 %v194, %v196
    %v198 = vadd.f32 %v194, %v197
    %vm199 = vweird.f32 %v193
    %vm200 = vweird.f32 %v194
    %vm201 = vmor %vm199, %vm200
    %v202 = vsel %vm201, %v194, %v198
    %v203 = vand.u32 2147483647, %v193
    %vm204 = vcmp.eq.f32.partialorder %v203, 8.507059e+37
    %v205 = vand.u32 %v193, 2147483648
    %v206 = vor.u32 1.1754944e-38, %v205
    %v207 = vsel %vm204, %v206, %v202
    %v208 = vmul.f32 1.0, %v207
    %v209 = vmul.f32 %v189, %v208
    %vm210 = vcmask 254976
    %211 = vst.msk [vmem:[%s10] sm:$0x3] %vm210, %v209
    // Predicated region
    $region46: #{diffusion_head_forward.6} parent=1 // pred_check
      _
    $region47: #{diffusion_head_forward.6} parent=1 // pred_check_branch
      %213 = sbr.rel (0) target = $region49
    $region48: #{diffusion_head_forward.6} parent=1 // pred_region
      _
    $region49: #{diffusion_head_forward.6} parent=1 // pred_fallthru
      _
    // Predicated region
    $region50: #{diffusion_head_forward.6} parent=1 // pred_check
      _
    $region51: #{diffusion_head_forward.6} parent=1 // pred_check_branch
      %215 = sbr.rel (0) target = $region53
    $region52: #{diffusion_head_forward.6} parent=1 // pred_region
      _
    $region53: #{diffusion_head_forward.6} parent=1 // pred_fallthru
      _
    %216 = vsyncpa [#allocation3], 1

// kernel: diffusion_head_forward.7
$region0: #{diffusion_head_forward.7}
  #allocation0 [shape = 'u32[]', space=smem, size = 0x4, offset = 0x4, fixed_abs, tag = 'smem constant byte address 0x4 - core index']
  #allocation1 [shape = 'u32[72,128]{1,0:T(1,128)}', space=vmem, size = 0x9000, scoped, tag = 'internal scratch']
  #allocation2 [shape = 'f32[1,32]{1,0:T(1,128)}', space=vmem, size = 0x200, scoped, tag = 'scratch operand']
  %s0 = inlined_call_operand.vmem [shape: f32[2,1,32], index: 0, kind: input, shape index: {}]
  %s1 = inlined_call_operand.vmem [shape: f32[2,1,32], index: 1, kind: input, shape index: {}]
  %s2 = inlined_call_operand.vmem [shape: f32[2,19,32], index: 2, kind: input, shape index: {}]
  %s3 = inlined_call_operand.vmem [shape: f32[2,32,64], index: 3, kind: input, shape index: {}]
  %s4 = inlined_call_operand.vmem [shape: f32[2,1,64], index: 4, kind: input, shape index: {}]
  %s5 = inlined_call_operand.vmem [shape: f32[2,32,96], index: 5, kind: input, shape index: {}]
  %s6 = inlined_call_operand.vmem [shape: f32[2,1,96], index: 6, kind: input, shape index: {}]
  %s7 = inlined_call_operand.hbm [shape: f32[2,32,32], index: 7, kind: input, shape index: {}]
  %s8 = inlined_call_operand.vmem [shape: f32[2,1,32], index: 8, kind: input, shape index: {}]
  %s9 = inlined_call_operand.hbm [shape: f32[2,32,64], index: 9, kind: input, shape index: {}]
  %s10 = inlined_call_operand.vmem [shape: f32[2,1,64], index: 10, kind: input, shape index: {}]
  %s11 = inlined_call_operand.hbm [shape: f32[2,32,64], index: 11, kind: input, shape index: {}]
  %s12 = inlined_call_operand.vmem [shape: f32[2,1,64], index: 12, kind: input, shape index: {}]
  %s13 = inlined_call_operand.vmem [shape: f32[2,64,32], index: 13, kind: input, shape index: {}]
  %s14 = inlined_call_operand.vmem [shape: f32[2,1,32], index: 14, kind: input, shape index: {}]
  %s15 = inlined_call_operand.vmem [shape: f32[2,1,32], index: 15, kind: output, shape index: {}]
  %s16 = sld [smem:[#allocation0]]
  $region113: #{diffusion_head_forward.7} parent=0
    _
  %s18 = ssub.s32 1, %s16
  %s19 = scalar_select 0, %s18, %s16
  $region1: #{diffusion_head_forward.7} parent=0
    #allocation3 [shape = 'u8[32768]{0}', space=vmem, size = 0x8000, scoped, tag = 'input window, operand 7']
    #allocation4 [shape = 's32[2]{0}', space=sflag, size = 0x8, scoped, tag = 'scoped memory for diffusion_head_forward.7']
    #allocation5 [shape = 'u8[32768]{0}', space=vmem, size = 0x8000, scoped, tag = 'input window, operand 9']
    #allocation6 [shape = 's32[2]{0}', space=sflag, size = 0x8, scoped, tag = 'scoped memory for diffusion_head_forward.7']
    #allocation7 [shape = 'u8[32768]{0}', space=vmem, size = 0x8000, scoped, tag = 'input window, operand 11']
    %20 = vsyncpa [#allocation4], 0
    %s21 = scalar_lea.sflag [#allocation4], 1
    %22 = vsyncpa %s21, 0
    %23 = vsyncpa [#allocation6], 0
    %s24 = scalar_lea.sflag [#allocation6], 1
    %25 = vsyncpa %s24, 0
    loop: start=0, step=1, limit=6
    $region2: #{diffusion_head_forward.7} parent=1 // loop_pre_header
      _
    $region3: #{diffusion_head_forward.7} parent=1 // loop_header
      %s27 = sphi 0, %s31
      %p28 = scmp.ge.s32.totalorder %s27, 6
      %s34 = sphi 0, %s46
      %s35 = sphi 0, %s42
      %s36 = sphi 0, %s34
      %s37 = sphi 0, %s35
      %s38 = sphi 0, %s36
      %s39 = sphi 0, %s37
      %s49 = sphi 0, %s51
      %s52 = sphi 0, %s49
      %s53 = sphi 0, %s52
      %s69 = sphi 0, %s53
      %s75 = sphi 0, %s77
      %s78 = sphi 0, %s75
      %s79 = sphi 0, %s78
      %s95 = sphi 0, %s79
      %s101 = sphi 0, %s103
      %s104 = sphi 0, %s101
      %s105 = sphi 0, %s104
      %s121 = sphi 0, %s105
      %s127 = sphi 0, %s129
      %s130 = sphi 0, %s127
      %s131 = sphi 0, %s130
      %s147 = sphi 0, %s131
      %s153 = sphi 0, %s155
      %s156 = sphi 0, %s153
      %s157 = sphi 0, %s156
      %s173 = sphi 0, %s157
      %s179 = sphi 0, %s181
      %s182 = sphi 0, %s179
      %s183 = sphi 0, %s182
      %s199 = sphi 0, %s183
      %s205 = sphi 0, %s207
      %s208 = sphi 0, %s205
      %s209 = sphi 0, %s208
      %s225 = sphi 0, %s209
      %s231 = sphi 0, %s233
      %s234 = sphi 0, %s231
      %s235 = sphi 0, %s234
      %s251 = sphi 0, %s235
      %s257 = sphi 0, %s259
      %s260 = sphi 0, %s257
      %s261 = sphi 0, %s260
      %s277 = sphi 0, %s261
      %s283 = sphi 0, %s285
      %s286 = sphi 0, %s283
      %s287 = sphi 0, %s286
      %s303 = sphi 0, %s287
      %s309 = sphi 0, %s311
      %s312 = sphi 0, %s309
      %s313 = sphi 0, %s312
      %s329 = sphi 0, %s313
      %s335 = sphi 0, %s337
      %s338 = sphi 0, %s335
      %s339 = sphi 0, %s338
      %s355 = sphi 0, %s339
      %s361 = sphi 0, %s363
      %s364 = sphi 0, %s361
      %s365 = sphi 0, %s364
      %s381 = sphi 0, %s365
      %s387 = sphi 0, %s389
      %s390 = sphi 0, %s387
      %s391 = sphi 0, %s390
      %s407 = sphi 0, %s391
      %s413 = sphi 0, %s415
      %s416 = sphi 0, %s413
      %s417 = sphi 0, %s416
      %s433 = sphi 0, %s417
      %s439 = sphi 0, %s441
      %s442 = sphi 0, %s439
      %s443 = sphi 0, %s442
      %s459 = sphi 0, %s443
    $region4: #{diffusion_head_forward.7} parent=1 // loop_header_branch
      %30 = sbr.rel (%p28) target = $region8
    $region5: #{diffusion_head_forward.7} parent=1 // loop_body
      %s32 = ssub.s32 %s27, 1
      %s33 = ssub.s32 %s27, 2
      %s40 = sadd.s32 1, %s35
      %p41 = scmp.ge.s32.totalorder %s40, 2
      %s42 = scalar_select %p41, 0, %s40
      %s43 = sadd.s32 1, %s34
      %s44 = scalar_select %p41, %s43, %s34
      %p45 = scmp.ge.s32.totalorder %s44, 2
      %s46 = scalar_select %p45, 0, %s44
      %s47 = ssub.s32 %s34, %s46
      %p48 = scmp.eq.s32.totalorder %s47, 0
      %s50 = sadd.s32 %s49, 1
      %s51 = scalar_select %p48, %s49, %s50
      %p54 = pneg %p48
      %p55 = scmp.eq.s32.totalorder %s27, 3
      %p56 = por %p54, %p55
      %p57 = scmp.ne.s32.totalorder %s49, %s52
      %p58 = scmp.eq.s32.totalorder %s27, 0
      %p59 = por %p57, %p58
      %p60 = scmp.ne.s32.totalorder %s49, %s52
      %p61 = scmp.eq.s32.totalorder %s32, 3
      %p62 = por %p60, %p61
      %p63 = scmp.ne.s32.totalorder %s52, %s53
      %p64 = scmp.eq.s32.totalorder %s32, 0
      %p65 = por %p63, %p64
      %p66 = scmp.ne.s32.totalorder %s52, %s53
      %p67 = scmp.eq.s32.totalorder %s33, 3
      %p68 = por %p66, %p67
      %p70 = scmp.ne.s32.totalorder %s53, %s69
      %p71 = scmp.eq.s32.totalorder %s33, 0
      %p72 = por %p70, %p71
      %s73 = ssub.s32 %s34, %s46
      %p74 = scmp.eq.s32.totalorder %s73, 0
      %s76 = sadd.s32 %s75, 1
      %s77 = scalar_select %p74, %s75, %s76
      %p80 = pneg %p74
      %p81 = scmp.eq.s32.totalorder %s27, 3
      %p82 = por %p80, %p81
      %p83 = scmp.ne.s32.totalorder %s75, %s78
      %p84 = scmp.eq.s32.totalorder %s27, 0
      %p85 = por %p83, %p84
      %p86 = scmp.ne.s32.totalorder %s75, %s78
      %p87 = scmp.eq.s32.totalorder %s32, 3
      %p88 = por %p86, %p87
      %p89 = scmp.ne.s32.totalorder %s78, %s79
      %p90 = scmp.eq.s32.totalorder %s32, 0
      %p91 = por %p89, %p90
      %p92 = scmp.ne.s32.totalorder %s78, %s79
      %p93 = scmp.eq.s32.totalorder %s33, 3
      %p94 = por %p92, %p93
      %p96 = scmp.ne.s32.totalorder %s79, %s95
      %p97 = scmp.eq.s32.totalorder %s33, 0
      %p98 = por %p96, %p97
      %s99 = ssub.s32 %s34, %s46
      %p100 = scmp.eq.s32.totalorder %s99, 0
      %s102 = sadd.s32 %s101, 1
      %s103 = scalar_select %p100, %s101, %s102
      %p106 = pneg %p100
      %p107 = scmp.eq.s32.totalorder %s27, 3
      %p108 = por %p106, %p107
      %p109 = scmp.ne.s32.totalorder %s101, %s104
      %p110 = scmp.eq.s32.totalorder %s27, 0
      %p111 = por %p109, %p110
      %p112 = scmp.ne.s32.totalorder %s101, %s104
      %p113 = scmp.eq.s32.totalorder %s32, 3
      %p114 = por %p112, %p113
      %p115 = scmp.ne.s32.totalorder %s104, %s105
      %p116 = scmp.eq.s32.totalorder %s32, 0
      %p117 = por %p115, %p116
      %p118 = scmp.ne.s32.totalorder %s104, %s105
      %p119 = scmp.eq.s32.totalorder %s33, 3
      %p120 = por %p118, %p119
      %p122 = scmp.ne.s32.totalorder %s105, %s121
      %p123 = scmp.eq.s32.totalorder %s33, 0
      %p124 = por %p122, %p123
      %s125 = ssub.s32 %s35, %s42
      %p126 = scmp.eq.s32.totalorder %s125, 0
      %s128 = sadd.s32 %s127, 1
      %s129 = scalar_select %p126, %s127, %s128
      %p132 = pneg %p126
      %p133 = scmp.eq.s32.totalorder %s27, 3
      %p134 = por %p132, %p133
      %p135 = scmp.ne.s32.totalorder %s127, %s130
      %p136 = scmp.eq.s32.totalorder %s27, 0
      %p137 = por %p135, %p136
      %p138 = scmp.ne.s32.totalorder %s127, %s130
      %p139 = scmp.eq.s32.totalorder %s32, 3
      %p140 = por %p138, %p139
      %p141 = scmp.ne.s32.totalorder %s130, %s131
      %p142 = scmp.eq.s32.totalorder %s32, 0
      %p143 = por %p141, %p142
      %p144 = scmp.ne.s32.totalorder %s130, %s131
      %p145 = scmp.eq.s32.totalorder %s33, 3
      %p146 = por %p144, %p145
      %p148 = scmp.ne.s32.totalorder %s131, %s147
      %p149 = scmp.eq.s32.totalorder %s33, 0
      %p150 = por %p148, %p149
      %s151 = ssub.s32 %s35, %s42
      %p152 = scmp.eq.s32.totalorder %s151, 0
      %s154 = sadd.s32 %s153, 1
      %s155 = scalar_select %p152, %s153, %s154
      %p158 = pneg %p152
      %p159 = scmp.eq.s32.totalorder %s27, 3
      %p160 = por %p158, %p159
      %p161 = scmp.ne.s32.totalorder %s153, %s156
      %p162 = scmp.eq.s32.totalorder %s27, 0
      %p163 = por %p161, %p162
      %p164 = scmp.ne.s32.totalorder %s153, %s156
      %p165 = scmp.eq.s32.totalorder %s32, 3
      %p166 = por %p164, %p165
      %p167 = scmp.ne.s32.totalorder %s156, %s157
      %p168 = scmp.eq.s32.totalorder %s32, 0
      %p169 = por %p167, %p168
      %p170 = scmp.ne.s32.totalorder %s156, %s157
      %p171 = scmp.eq.s32.totalorder %s33, 3
      %p172 = por %p170, %p171
      %p174 = scmp.ne.s32.totalorder %s157, %s173
      %p175 = scmp.eq.s32.totalorder %s33, 0
      %p176 = por %p174, %p175
      %s177 = ssub.s32 %s35, %s42
      %p178 = scmp.eq.s32.totalorder %s177, 0
      %s180 = sadd.s32 %s179, 1
      %s181 = scalar_select %p178, %s179, %s180
      %p184 = pneg %p178
      %p185 = scmp.eq.s32.totalorder %s27, 3
      %p186 = por %p184, %p185
      %p187 = scmp.ne.s32.totalorder %s179, %s182
      %p188 = scmp.eq.s32.totalorder %s27, 0
      %p189 = por %p187, %p188
      %p190 = scmp.ne.s32.totalorder %s179, %s182
      %p191 = scmp.eq.s32.totalorder %s32, 3
      %p192 = por %p190, %p191
      %p193 = scmp.ne.s32.totalorder %s182, %s183
      %p194 = scmp.eq.s32.totalorder %s32, 0
      %p195 = por %p193, %p194
      %p196 = scmp.ne.s32.totalorder %s182, %s183
      %p197 = scmp.eq.s32.totalorder %s33, 3
      %p198 = por %p196, %p197
      %p200 = scmp.ne.s32.totalorder %s183, %s199
      %p201 = scmp.eq.s32.totalorder %s33, 0
      %p202 = por %p200, %p201
      %s203 = ssub.s32 %s35, %s42
      %p204 = scmp.eq.s32.totalorder %s203, 0
      %s206 = sadd.s32 %s205, 1
      %s207 = scalar_select %p204, %s205, %s206
      %p210 = pneg %p204
      %p211 = scmp.eq.s32.totalorder %s27, 3
      %p212 = por %p210, %p211
      %p213 = scmp.ne.s32.totalorder %s205, %s208
      %p214 = scmp.eq.s32.totalorder %s27, 0
      %p215 = por %p213, %p214
      %p216 = scmp.ne.s32.totalorder %s205, %s208
      %p217 = scmp.eq.s32.totalorder %s32, 3
      %p218 = por %p216, %p217
      %p219 = scmp.ne.s32.totalorder %s208, %s209
      %p220 = scmp.eq.s32.totalorder %s32, 0
      %p221 = por %p219, %p220
      %p222 = scmp.ne.s32.totalorder %s208, %s209
      %p223 = scmp.eq.s32.totalorder %s33, 3
      %p224 = por %p222, %p223
      %p226 = scmp.ne.s32.totalorder %s209, %s225
      %p227 = scmp.eq.s32.totalorder %s33, 0
      %p228 = por %p226, %p227
      %s229 = ssub.s32 %s35, %s42
      %p230 = scmp.eq.s32.totalorder %s229, 0
      %s232 = sadd.s32 %s231, 1
      %s233 = scalar_select %p230, %s231, %s232
      %p236 = pneg %p230
      %p237 = scmp.eq.s32.totalorder %s27, 3
      %p238 = por %p236, %p237
      %p239 = scmp.ne.s32.totalorder %s231, %s234
      %p240 = scmp.eq.s32.totalorder %s27, 0
      %p241 = por %p239, %p240
      %p242 = scmp.ne.s32.totalorder %s231, %s234
      %p243 = scmp.eq.s32.totalorder %s32, 3
      %p244 = por %p242, %p243
      %p245 = scmp.ne.s32.totalorder %s234, %s235
      %p246 = scmp.eq.s32.totalorder %s32, 0
      %p247 = por %p245, %p246
      %p248 = scmp.ne.s32.totalorder %s234, %s235
      %p249 = scmp.eq.s32.totalorder %s33, 3
      %p250 = por %p248, %p249
      %p252 = scmp.ne.s32.totalorder %s235, %s251
      %p253 = scmp.eq.s32.totalorder %s33, 0
      %p254 = por %p252, %p253
      %s255 = ssub.s32 %s35, %s42
      %p256 = scmp.eq.s32.totalorder %s255, 0
      %s258 = sadd.s32 %s257, 1
      %s259 = scalar_select %p256, %s257, %s258
      %p262 = pneg %p256
      %p263 = scmp.eq.s32.totalorder %s27, 3
      %p264 = por %p262, %p263
      %p265 = scmp.ne.s32.totalorder %s257, %s260
      %p266 = scmp.eq.s32.totalorder %s27, 0
      %p267 = por %p265, %p266
      %p268 = scmp.ne.s32.totalorder %s257, %s260
      %p269 = scmp.eq.s32.totalorder %s32, 3
      %p270 = por %p268, %p269
      %p271 = scmp.ne.s32.totalorder %s260, %s261
      %p272 = scmp.eq.s32.totalorder %s32, 0
      %p273 = por %p271, %p272
      %p274 = scmp.ne.s32.totalorder %s260, %s261
      %p275 = scmp.eq.s32.totalorder %s33, 3
      %p276 = por %p274, %p275
      %p278 = scmp.ne.s32.totalorder %s261, %s277
      %p279 = scmp.eq.s32.totalorder %s33, 0
      %p280 = por %p278, %p279
      %s281 = ssub.s32 %s35, %s42
      %p282 = scmp.eq.s32.totalorder %s281, 0
      %s284 = sadd.s32 %s283, 1
      %s285 = scalar_select %p282, %s283, %s284
      %p288 = pneg %p282
      %p289 = scmp.eq.s32.totalorder %s27, 3
      %p290 = por %p288, %p289
      %p291 = scmp.ne.s32.totalorder %s283, %s286
      %p292 = scmp.eq.s32.totalorder %s27, 0
      %p293 = por %p291, %p292
      %p294 = scmp.ne.s32.totalorder %s283, %s286
      %p295 = scmp.eq.s32.totalorder %s32, 3
      %p296 = por %p294, %p295
      %p297 = scmp.ne.s32.totalorder %s286, %s287
      %p298 = scmp.eq.s32.totalorder %s32, 0
      %p299 = por %p297, %p298
      %p300 = scmp.ne.s32.totalorder %s286, %s287
      %p301 = scmp.eq.s32.totalorder %s33, 3
      %p302 = por %p300, %p301
      %p304 = scmp.ne.s32.totalorder %s287, %s303
      %p305 = scmp.eq.s32.totalorder %s33, 0
      %p306 = por %p304, %p305
      %s307 = ssub.s32 %s35, %s42
      %p308 = scmp.eq.s32.totalorder %s307, 0
      %s310 = sadd.s32 %s309, 1
      %s311 = scalar_select %p308, %s309, %s310
      %p314 = pneg %p308
      %p315 = scmp.eq.s32.totalorder %s27, 3
      %p316 = por %p314, %p315
      %p317 = scmp.ne.s32.totalorder %s309, %s312
      %p318 = scmp.eq.s32.totalorder %s27, 0
      %p319 = por %p317, %p318
      %p320 = scmp.ne.s32.totalorder %s309, %s312
      %p321 = scmp.eq.s32.totalorder %s32, 3
      %p322 = por %p320, %p321
      %p323 = scmp.ne.s32.totalorder %s312, %s313
      %p324 = scmp.eq.s32.totalorder %s32, 0
      %p325 = por %p323, %p324
      %p326 = scmp.ne.s32.totalorder %s312, %s313
      %p327 = scmp.eq.s32.totalorder %s33, 3
      %p328 = por %p326, %p327
      %p330 = scmp.ne.s32.totalorder %s313, %s329
      %p331 = scmp.eq.s32.totalorder %s33, 0
      %p332 = por %p330, %p331
      %s333 = ssub.s32 %s35, %s42
      %p334 = scmp.eq.s32.totalorder %s333, 0
      %s336 = sadd.s32 %s335, 1
      %s337 = scalar_select %p334, %s335, %s336
      %p340 = pneg %p334
      %p341 = scmp.eq.s32.totalorder %s27, 3
      %p342 = por %p340, %p341
      %p343 = scmp.ne.s32.totalorder %s335, %s338
      %p344 = scmp.eq.s32.totalorder %s27, 0
      %p345 = por %p343, %p344
      %p346 = scmp.ne.s32.totalorder %s335, %s338
      %p347 = scmp.eq.s32.totalorder %s32, 3
      %p348 = por %p346, %p347
      %p349 = scmp.ne.s32.totalorder %s338, %s339
      %p350 = scmp.eq.s32.totalorder %s32, 0
      %p351 = por %p349, %p350
      %p352 = scmp.ne.s32.totalorder %s338, %s339
      %p353 = scmp.eq.s32.totalorder %s33, 3
      %p354 = por %p352, %p353
      %p356 = scmp.ne.s32.totalorder %s339, %s355
      %p357 = scmp.eq.s32.totalorder %s33, 0
      %p358 = por %p356, %p357
      %s359 = ssub.s32 %s35, %s42
      %p360 = scmp.eq.s32.totalorder %s359, 0
      %s362 = sadd.s32 %s361, 1
      %s363 = scalar_select %p360, %s361, %s362
      %p366 = pneg %p360
      %p367 = scmp.eq.s32.totalorder %s27, 3
      %p368 = por %p366, %p367
      %p369 = scmp.ne.s32.totalorder %s361, %s364
      %p370 = scmp.eq.s32.totalorder %s27, 0
      %p371 = por %p369, %p370
      %p372 = scmp.ne.s32.totalorder %s361, %s364
      %p373 = scmp.eq.s32.totalorder %s32, 3
      %p374 = por %p372, %p373
      %p375 = scmp.ne.s32.totalorder %s364, %s365
      %p376 = scmp.eq.s32.totalorder %s32, 0
      %p377 = por %p375, %p376
      %p378 = scmp.ne.s32.totalorder %s364, %s365
      %p379 = scmp.eq.s32.totalorder %s33, 3
      %p380 = por %p378, %p379
      %p382 = scmp.ne.s32.totalorder %s365, %s381
      %p383 = scmp.eq.s32.totalorder %s33, 0
      %p384 = por %p382, %p383
      %s385 = ssub.s32 %s35, %s42
      %p386 = scmp.eq.s32.totalorder %s385, 0
      %s388 = sadd.s32 %s387, 1
      %s389 = scalar_select %p386, %s387, %s388
      %p392 = pneg %p386
      %p393 = scmp.eq.s32.totalorder %s27, 3
      %p394 = por %p392, %p393
      %p395 = scmp.ne.s32.totalorder %s387, %s390
      %p396 = scmp.eq.s32.totalorder %s27, 0
      %p397 = por %p395, %p396
      %p398 = scmp.ne.s32.totalorder %s387, %s390
      %p399 = scmp.eq.s32.totalorder %s32, 3
      %p400 = por %p398, %p399
      %p401 = scmp.ne.s32.totalorder %s390, %s391
      %p402 = scmp.eq.s32.totalorder %s32, 0
      %p403 = por %p401, %p402
      %p404 = scmp.ne.s32.totalorder %s390, %s391
      %p405 = scmp.eq.s32.totalorder %s33, 3
      %p406 = por %p404, %p405
      %p408 = scmp.ne.s32.totalorder %s391, %s407
      %p409 = scmp.eq.s32.totalorder %s33, 0
      %p410 = por %p408, %p409
      %s411 = ssub.s32 %s35, %s42
      %p412 = scmp.eq.s32.totalorder %s411, 0
      %s414 = sadd.s32 %s413, 1
      %s415 = scalar_select %p412, %s413, %s414
      %p418 = pneg %p412
      %p419 = scmp.eq.s32.totalorder %s27, 3
      %p420 = por %p418, %p419
      %p421 = scmp.ne.s32.totalorder %s413, %s416
      %p422 = scmp.eq.s32.totalorder %s27, 0
      %p423 = por %p421, %p422
      %p424 = scmp.ne.s32.totalorder %s413, %s416
      %p425 = scmp.eq.s32.totalorder %s32, 3
      %p426 = por %p424, %p425
      %p427 = scmp.ne.s32.totalorder %s416, %s417
      %p428 = scmp.eq.s32.totalorder %s32, 0
      %p429 = por %p427, %p428
      %p430 = scmp.ne.s32.totalorder %s416, %s417
      %p431 = scmp.eq.s32.totalorder %s33, 3
      %p432 = por %p430, %p431
      %p434 = scmp.ne.s32.totalorder %s417, %s433
      %p435 = scmp.eq.s32.totalorder %s33, 0
      %p436 = por %p434, %p435
      %s437 = ssub.s32 %s34, %s46
      %p438 = scmp.eq.s32.totalorder %s437, 0
      %s440 = sadd.s32 %s439, 1
      %s441 = scalar_select %p438, %s439, %s440
      %p444 = pneg %p438
      %p445 = scmp.eq.s32.totalorder %s27, 3
      %p446 = por %p444, %p445
      %p447 = scmp.ne.s32.totalorder %s439, %s442
      %p448 = scmp.eq.s32.totalorder %s27, 0
      %p449 = por %p447, %p448
      %p450 = scmp.ne.s32.totalorder %s439, %s442
      %p451 = scmp.eq.s32.totalorder %s32, 3
      %p452 = por %p450, %p451
      %p453 = scmp.ne.s32.totalorder %s442, %s443
      %p454 = scmp.eq.s32.totalorder %s32, 0
      %p455 = por %p453, %p454
      %p456 = scmp.ne.s32.totalorder %s442, %s443
      %p457 = scmp.eq.s32.totalorder %s33, 3
      %p458 = por %p456, %p457
      %p460 = scmp.ne.s32.totalorder %s443, %s459
      %p461 = scmp.eq.s32.totalorder %s33, 0
      %p462 = por %p460, %p461
      %p463 = scmp.le.s32.totalorder 1, %s27
      %p464 = scmp.lt.s32.totalorder %s27, 5
      %p465 = pnand %p463, %p464
      %p466 = pneg %p465
      // Predicated region
      $region9: #{diffusion_head_forward.7} parent=5 // pred_check
        _
      $region10: #{diffusion_head_forward.7} parent=5 // pred_check_branch
        %468 = sbr.rel (%p465) target = $region12
      $region11: #{diffusion_head_forward.7} parent=5 // pred_region
        %s469 = ssub.s32 %s27, 1
      $region12: #{diffusion_head_forward.7} parent=5 // pred_fallthru
        _
      %p470 = scmp.lt.s32.totalorder %s27, 4
      // Predicated region
      $region13: #{diffusion_head_forward.7} parent=5 // pred_check
        %p471 = pneg %p470
      $region14: #{diffusion_head_forward.7} parent=5 // pred_check_branch
        %473 = sbr.rel (%p471) target = $region16
      $region15: #{diffusion_head_forward.7} parent=5 // pred_region
        // Predicated region
        $region17: #{diffusion_head_forward.7} parent=15 // pred_check
          %p474 = pneg %p59
        $region18: #{diffusion_head_forward.7} parent=15 // pred_check_branch
          %476 = sbr.rel (%p474) target = $region20
        $region19: #{diffusion_head_forward.7} parent=15 // pred_region
          %p477 = scmp.lt.s32.totalorder %s34, 1
          %s478 = scalar_select %p477, %s34, 1
          %s479 = scalar_lea.vmem %s0, %s478
        $region20: #{diffusion_head_forward.7} parent=15 // pred_fallthru
          _
        // Predicated region
        $region21: #{diffusion_head_forward.7} parent=15 // pred_check
          %p480 = pneg %p85
        $region22: #{diffusion_head_forward.7} parent=15 // pred_check_branch
          %482 = sbr.rel (%p480) target = $region24
        $region23: #{diffusion_head_forward.7} parent=15 // pred_region
          %p483 = scmp.lt.s32.totalorder %s34, 1
          %s484 = scalar_select %p483, %s34, 1
          %s485 = scalar_lea.vmem %s1, %s484
        $region24: #{diffusion_head_forward.7} parent=15 // pred_fallthru
          _
        // Predicated region
        $region25: #{diffusion_head_forward.7} parent=15 // pred_check
          %p486 = pneg %p111
        $region26: #{diffusion_head_forward.7} parent=15 // pred_check_branch
          %488 = sbr.rel (%p486) target = $region28
        $region27: #{diffusion_head_forward.7} parent=15 // pred_region
          %p489 = scmp.lt.s32.totalorder %s34, 1
          %s490 = scalar_select %p489, %s34, 1
          %s491 = smul.addr %s490, 3
          %s492 = smul.addr %s491, 8
          %s493 = scalar_lea.vmem %s2, %s492
        $region28: #{diffusion_head_forward.7} parent=15 // pred_fallthru
          _
        // Predicated region
        $region29: #{diffusion_head_forward.7} parent=15 // pred_check
          %p494 = pneg %p137
        $region30: #{diffusion_head_forward.7} parent=15 // pred_check_branch
          %496 = sbr.rel (%p494) target = $region32
        $region31: #{diffusion_head_forward.7} parent=15 // pred_region
          %p497 = scmp.lt.s32.totalorder %s35, 1
          %s498 = scalar_select %p497, %s35, 1
          %s499 = smul.addr %s498, 4
          %s500 = smul.addr %s499, 8
          %s501 = scalar_lea.vmem %s3, %s500
        $region32: #{diffusion_head_forward.7} parent=15 // pred_fallthru
          _
        // Predicated region
        $region33: #{diffusion_head_forward.7} parent=15 // pred_check
          %p502 = pneg %p163
        $region34: #{diffusion_head_forward.7} parent=15 // pred_check_branch
          %504 = sbr.rel (%p502) target = $region36
        $region35: #{diffusion_head_forward.7} parent=15 // pred_region
          %p505 = scmp.lt.s32.totalorder %s35, 1
          %s506 = scalar_select %p505, %s35, 1
          %s507 = scalar_lea.vmem %s4, %s506
        $region36: #{diffusion_head_forward.7} parent=15 // pred_fallthru
          _
        // Predicated region
        $region37: #{diffusion_head_forward.7} parent=15 // pred_check
          %p508 = pneg %p189
        $region38: #{diffusion_head_forward.7} parent=15 // pred_check_branch
          %510 = sbr.rel (%p508) target = $region40
        $region39: #{diffusion_head_forward.7} parent=15 // pred_region
          %p511 = scmp.lt.s32.totalorder %s35, 1
          %s512 = scalar_select %p511, %s35, 1
          %s513 = smul.addr %s512, 4
          %s514 = smul.addr %s513, 8
          %s515 = scalar_lea.vmem %s5, %s514
        $region40: #{diffusion_head_forward.7} parent=15 // pred_fallthru
          _
        // Predicated region
        $region41: #{diffusion_head_forward.7} parent=15 // pred_check
          %p516 = pneg %p215
        $region42: #{diffusion_head_forward.7} parent=15 // pred_check_branch
          %518 = sbr.rel (%p516) target = $region44
        $region43: #{diffusion_head_forward.7} parent=15 // pred_region
          %p519 = scmp.lt.s32.totalorder %s35, 1
          %s520 = scalar_select %p519, %s35, 1
          %s521 = scalar_lea.vmem %s6, %s520
        $region44: #{diffusion_head_forward.7} parent=15 // pred_fallthru
          _
        // Predicated region
        $region45: #{diffusion_head_forward.7} parent=15 // pred_check
          %p522 = pneg %p241
        $region46: #{diffusion_head_forward.7} parent=15 // pred_check_branch
          %524 = sbr.rel (%p522) target = $region48
        $region47: #{diffusion_head_forward.7} parent=15 // pred_region
          %s525 = sand.u32 %s231, 1
          %s526 = scalar_lea.sflag [#allocation4], %s525
          %s527 = sand.u32 %s231, 1
          %s528 = smul.addr %s527, 32
          %s529 = scalar_lea.vmem [#allocation3], %s528
          %531 = vsyncadd %s526, 0
          %s532 = smul.addr %s35, 4
          %s533 = smul.addr %s532, 8
          %s534 = scalar_lea.hbm %s7, %s533
          %s535 = sshll.u32 %s534, 4
          %s536 = int_to_ptr.hbm [resolvable:$true] %s535
          %s537 = sshll.u32 %s529, 4
          %s538 = int_to_ptr.vmem [resolvable:$true] %s537
          %543 = dma.hbm_to_vmem [thread:$0]  %s536, 512, %s538, %s526, 128, 128, 8
        $region48: #{diffusion_head_forward.7} parent=15 // pred_fallthru
          _
        // Predicated region
        $region49: #{diffusion_head_forward.7} parent=15 // pred_check
          %p544 = pneg %p267
        $region50: #{diffusion_head_forward.7} parent=15 // pred_check_branch
          %546 = sbr.rel (%p544) target = $region52
        $region51: #{diffusion_head_forward.7} parent=15 // pred_region
          %p547 = scmp.lt.s32.totalorder %s35, 1
          %s548 = scalar_select %p547, %s35, 1
          %s549 = scalar_lea.vmem %s8, %s548
        $region52: #{diffusion_head_forward.7} parent=15 // pred_fallthru
          _
        // Predicated region
        $region53: #{diffusion_head_forward.7} parent=15 // pred_check
          %p550 = pneg %p293
        $region54: #{diffusion_head_forward.7} parent=15 // pred_check_branch
          %552 = sbr.rel (%p550) target = $region56
        $region55: #{diffusion_head_forward.7} parent=15 // pred_region
          %s553 = sand.u32 %s27, 1
          %s554 = scalar_lea.sflag [#allocation6], %s553
          %s555 = sand.u32 %s283, 1
          %s556 = smul.addr %s555, 32
          %s557 = scalar_lea.vmem [#allocation5], %s556
          %559 = vsyncadd %s554, 0
          %s560 = smul.addr %s35, 4
          %s561 = smul.addr %s560, 8
          %s562 = scalar_lea.hbm %s9, %s561
          %s563 = sshll.u32 %s562, 4
          %s564 = int_to_ptr.hbm [resolvable:$true] %s563
          %s565 = sshll.u32 %s557, 4
          %s566 = int_to_ptr.vmem [resolvable:$true] %s565
          %571 = dma.hbm_to_vmem [thread:$0]  %s564, 512, %s566, %s554, 128, 128, 8
        $region56: #{diffusion_head_forward.7} parent=15 // pred_fallthru
          _
        // Predicated region
        $region57: #{diffusion_head_forward.7} parent=15 // pred_check
          %p572 = pneg %p319
        $region58: #{diffusion_head_forward.7} parent=15 // pred_check_branch
          %574 = sbr.rel (%p572) target = $region60
        $region59: #{diffusion_head_forward.7} parent=15 // pred_region
          %p575 = scmp.lt.s32.totalorder %s35, 1
          %s576 = scalar_select %p575, %s35, 1
          %s577 = scalar_lea.vmem %s10, %s576
        $region60: #{diffusion_head_forward.7} parent=15 // pred_fallthru
          _
        // Predicated region
        $region61: #{diffusion_head_forward.7} parent=15 // pred_check
          %p578 = pneg %p345
        $region62: #{diffusion_head_forward.7} parent=15 // pred_check_branch
          %580 = sbr.rel (%p578) target = $region64
        $region63: #{diffusion_head_forward.7} parent=15 // pred_region
          %s581 = sand.u32 %s27, 1
          %s582 = scalar_lea.sflag [#allocation6], %s581
          %s583 = sand.u32 %s335, 1
          %s584 = smul.addr %s583, 32
          %s585 = scalar_lea.vmem [#allocation7], %s584
          %587 = vsyncadd %s582, 0
          %s588 = smul.addr %s35, 4
          %s589 = smul.addr %s588, 8
          %s590 = scalar_lea.hbm %s11, %s589
          %s591 = sshll.u32 %s590, 4
          %s592 = int_to_ptr.hbm [resolvable:$true] %s591
          %s593 = sshll.u32 %s585, 4
          %s594 = int_to_ptr.vmem [resolvable:$true] %s593
          %599 = dma.hbm_to_vmem [thread:$0]  %s592, 512, %s594, %s582, 128, 128, 8
        $region64: #{diffusion_head_forward.7} parent=15 // pred_fallthru
          _
        // Predicated region
        $region65: #{diffusion_head_forward.7} parent=15 // pred_check
          %p600 = pneg %p371
        $region66: #{diffusion_head_forward.7} parent=15 // pred_check_branch
          %602 = sbr.rel (%p600) target = $region68
        $region67: #{diffusion_head_forward.7} parent=15 // pred_region
          %p603 = scmp.lt.s32.totalorder %s35, 1
          %s604 = scalar_select %p603, %s35, 1
          %s605 = scalar_lea.vmem %s12, %s604
        $region68: #{diffusion_head_forward.7} parent=15 // pred_fallthru
          _
        // Predicated region
        $region69: #{diffusion_head_forward.7} parent=15 // pred_check
          %p606 = pneg %p397
        $region70: #{diffusion_head_forward.7} parent=15 // pred_check_branch
          %608 = sbr.rel (%p606) target = $region72
        $region71: #{diffusion_head_forward.7} parent=15 // pred_region
          %p609 = scmp.lt.s32.totalorder %s35, 1
          %s610 = scalar_select %p609, %s35, 1
          %s611 = smul.addr %s610, 8
          %s612 = smul.addr %s611, 8
          %s613 = scalar_lea.vmem %s13, %s612
        $region72: #{diffusion_head_forward.7} parent=15 // pred_fallthru
          _
        // Predicated region
        $region73: #{diffusion_head_forward.7} parent=15 // pred_check
          %p614 = pneg %p423
        $region74: #{diffusion_head_forward.7} parent=15 // pred_check_branch
          %616 = sbr.rel (%p614) target = $region76
        $region75: #{diffusion_head_forward.7} parent=15 // pred_region
          %p617 = scmp.lt.s32.totalorder %s35, 1
          %s618 = scalar_select %p617, %s35, 1
          %s619 = scalar_lea.vmem %s14, %s618
        $region76: #{diffusion_head_forward.7} parent=15 // pred_fallthru
          _
      $region16: #{diffusion_head_forward.7} parent=5 // pred_fallthru
        _
      %p620 = scmp.le.s32.totalorder 1, %s27
      %p621 = scmp.lt.s32.totalorder %s27, 5
      %p622 = pnand %p620, %p621
      %p623 = pneg %p622
      // Predicated region
      $region77: #{diffusion_head_forward.7} parent=5 // pred_check
        _
      $region78: #{diffusion_head_forward.7} parent=5 // pred_check_branch
        %625 = sbr.rel (%p622) target = $region80
      $region79: #{diffusion_head_forward.7} parent=5 // pred_region
        %s626 = ssub.s32 %s27, 1
        %s627 = sand.u32 %s234, 1
        %s628 = scalar_lea.sflag [#allocation4], %s627
        %s629 = sand.u32 %s234, 1
        %s630 = smul.addr %s629, 32
        %s631 = scalar_lea.vmem [#allocation3], %s630
        // Predicated region
        $region81: #{diffusion_head_forward.7} parent=79 // pred_check
          %p632 = pneg %p247
        $region82: #{diffusion_head_forward.7} parent=79 // pred_check_branch
          %634 = sbr.rel (%p632) target = $region84
        $region83: #{diffusion_head_forward.7} parent=79 // pred_region
          %636 = dma.done %s628, 512
        $region84: #{diffusion_head_forward.7} parent=79 // pred_fallthru
          _
        %s637 = sand.u32 %s32, 1
        %s638 = scalar_lea.sflag [#allocation6], %s637
        %s639 = sand.u32 %s286, 1
        %s640 = smul.addr %s639, 32
        %s641 = scalar_lea.vmem [#allocation5], %s640
        // Predicated region
        $region85: #{diffusion_head_forward.7} parent=79 // pred_check
          %p642 = pneg %p299
        $region86: #{diffusion_head_forward.7} parent=79 // pred_check_branch
          %644 = sbr.rel (%p642) target = $region88
        $region87: #{diffusion_head_forward.7} parent=79 // pred_region
          %646 = dma.done %s638, 512
        $region88: #{diffusion_head_forward.7} parent=79 // pred_fallthru
          _
        %s647 = sand.u32 %s32, 1
        %s648 = scalar_lea.sflag [#allocation6], %s647
        %s649 = sand.u32 %s338, 1
        %s650 = smul.addr %s649, 32
        %s651 = scalar_lea.vmem [#allocation7], %s650
        // Predicated region
        $region89: #{diffusion_head_forward.7} parent=79 // pred_check
          %p652 = pneg %p351
        $region90: #{diffusion_head_forward.7} parent=79 // pred_check_branch
          %654 = sbr.rel (%p652) target = $region92
        $region91: #{diffusion_head_forward.7} parent=79 // pred_region
          %656 = dma.done %s648, 512
        $region92: #{diffusion_head_forward.7} parent=79 // pred_fallthru
          _
        %p657 = scmp.lt.s32.totalorder %s36, 1
        %s658 = scalar_select %p657, %s36, 1
        %s659 = scalar_lea.vmem %s0, %s658
        %p660 = pneg %p65
        %p661 = pneg %p62
        %p662 = scmp.lt.s32.totalorder %s36, 1
        %s663 = scalar_select %p662, %s36, 1
        %s664 = scalar_lea.vmem %s1, %s663
        %p665 = pneg %p91
        %p666 = pneg %p88
        %p667 = scmp.lt.s32.totalorder %s36, 1
        %s668 = scalar_select %p667, %s36, 1
        %s669 = smul.addr %s668, 3
        %s670 = smul.addr %s669, 8
        %s671 = scalar_lea.vmem %s2, %s670
        %p672 = pneg %p117
        %p673 = pneg %p114
        %p674 = scmp.lt.s32.totalorder %s37, 1
        %s675 = scalar_select %p674, %s37, 1
        %s676 = smul.addr %s675, 4
        %s677 = smul.addr %s676, 8
        %s678 = scalar_lea.vmem %s3, %s677
        %p679 = pneg %p143
        %p680 = pneg %p140
        %p681 = scmp.lt.s32.totalorder %s37, 1
        %s682 = scalar_select %p681, %s37, 1
        %s683 = scalar_lea.vmem %s4, %s682
        %p684 = pneg %p169
        %p685 = pneg %p166
        %p686 = scmp.lt.s32.totalorder %s37, 1
        %s687 = scalar_select %p686, %s37, 1
        %s688 = smul.addr %s687, 4
        %s689 = smul.addr %s688, 8
        %s690 = scalar_lea.vmem %s5, %s689
        %p691 = pneg %p195
        %p692 = pneg %p192
        %p693 = scmp.lt.s32.totalorder %s37, 1
        %s694 = scalar_select %p693, %s37, 1
        %s695 = scalar_lea.vmem %s6, %s694
        %p696 = pneg %p221
        %p697 = pneg %p218
        %s698 = sand.u32 %s234, 1
        %s699 = scalar_lea.sflag [#allocation4], %s698
        %s700 = sand.u32 %s234, 1
        %s701 = smul.addr %s700, 32
        %s702 = scalar_lea.vmem [#allocation3], %s701
        %p703 = pneg %p247
        %p704 = pneg %p244
        %p705 = scmp.lt.s32.totalorder %s37, 1
        %s706 = scalar_select %p705, %s37, 1
        %s707 = scalar_lea.vmem %s8, %s706
        %p708 = pneg %p273
        %p709 = pneg %p270
        %s710 = sand.u32 %s32, 1
        %s711 = scalar_lea.sflag [#allocation6], %s710
        %s712 = sand.u32 %s286, 1
        %s713 = smul.addr %s712, 32
        %s714 = scalar_lea.vmem [#allocation5], %s713
        %p715 = pneg %p299
        %p716 = pneg %p296
        %p717 = scmp.lt.s32.totalorder %s37, 1
        %s718 = scalar_select %p717, %s37, 1
        %s719 = scalar_lea.vmem %s10, %s718
        %p720 = pneg %p325
        %p721 = pneg %p322
        %s722 = sand.u32 %s32, 1
        %s723 = scalar_lea.sflag [#allocation6], %s722
        %s724 = sand.u32 %s338, 1
        %s725 = smul.addr %s724, 32
        %s726 = scalar_lea.vmem [#allocation7], %s725
        %p727 = pneg %p351
        %p728 = pneg %p348
        %p729 = scmp.lt.s32.totalorder %s37, 1
        %s730 = scalar_select %p729, %s37, 1
        %s731 = scalar_lea.vmem %s12, %s730
        %p732 = pneg %p377
        %p733 = pneg %p374
        %p734 = scmp.lt.s32.totalorder %s37, 1
        %s735 = scalar_select %p734, %s37, 1
        %s736 = smul.addr %s735, 8
        %s737 = smul.addr %s736, 8
        %s738 = scalar_lea.vmem %s13, %s737
        %p739 = pneg %p403
        %p740 = pneg %p400
        %p741 = scmp.lt.s32.totalorder %s37, 1
        %s742 = scalar_select %p741, %s37, 1
        %s743 = scalar_lea.vmem %s14, %s742
        %p744 = pneg %p429
        %p745 = pneg %p426
        %p746 = pneg %p455
        %p747 = pneg %p452
        %p748 = scmp.lt.s32.totalorder %s36, 1
        %s749 = scalar_select %p748, %s36, 1
        %s750 = scalar_lea.vmem %s15, %s749
        %p751 = scmp.lt.s32.totalorder %s36, 1
        %s752 = scalar_select %p751, %s36, 1
        %s753 = scalar_lea.vmem %s0, %s752
        %p754 = scmp.lt.s32.totalorder %s36, 1
        %s755 = scalar_select %p754, %s36, 1
        %s756 = scalar_lea.vmem %s1, %s755
        %p757 = scmp.lt.s32.totalorder %s36, 1
        %s758 = scalar_select %p757, %s36, 1
        %s759 = smul.addr %s758, 3
        %s760 = smul.addr %s759, 8
        %s761 = scalar_lea.vmem %s2, %s760
        %p762 = scmp.lt.s32.totalorder %s37, 1
        %s763 = scalar_select %p762, %s37, 1
        %s764 = smul.addr %s763, 4
        %s765 = smul.addr %s764, 8
        %s766 = scalar_lea.vmem %s3, %s765
        %p767 = scmp.lt.s32.totalorder %s37, 1
        %s768 = scalar_select %p767, %s37, 1
        %s769 = scalar_lea.vmem %s4, %s768
        %p770 = scmp.lt.s32.totalorder %s37, 1
        %s771 = scalar_select %p770, %s37, 1
        %s772 = smul.addr %s771, 4
        %s773 = smul.addr %s772, 8
        %s774 = scalar_lea.vmem %s5, %s773
        %p775 = scmp.lt.s32.totalorder %s37, 1
        %s776 = scalar_select %p775, %s37, 1
        %s777 = scalar_lea.vmem %s6, %s776
        %p778 = scmp.lt.s32.totalorder %s37, 1
        %s779 = scalar_select %p778, %s37, 1
        %s780 = scalar_lea.vmem %s8, %s779
        %p781 = scmp.lt.s32.totalorder %s37, 1
        %s782 = scalar_select %p781, %s37, 1
        %s783 = scalar_lea.vmem %s10, %s782
        %p784 = scmp.lt.s32.totalorder %s37, 1
        %s785 = scalar_select %p784, %s37, 1
        %s786 = scalar_lea.vmem %s12, %s785
        %p787 = scmp.lt.s32.totalorder %s37, 1
        %s788 = scalar_select %p787, %s37, 1
        %s789 = smul.addr %s788, 8
        %s790 = smul.addr %s789, 8
        %s791 = scalar_lea.vmem %s13, %s790
        %p792 = scmp.lt.s32.totalorder %s37, 1
        %s793 = scalar_select %p792, %s37, 1
        %s794 = scalar_lea.vmem %s14, %s793
        %p795 = scmp.lt.s32.totalorder %s36, 1
        %s796 = scalar_select %p795, %s36, 1
        %s797 = scalar_lea.vmem %s15, %s796
        %p798 = scmp.eq.s32.totalorder %s37, 0
        // Predicated region
        $region93: #{diffusion_head_forward.7} parent=79 // pred_check
          %p799 = pneg %p798
        $region94: #{diffusion_head_forward.7} parent=79 // pred_check_branch
          %801 = sbr.rel (%p799) target = $region96
        $region95: #{diffusion_head_forward.7} parent=79 // pred_region
          %v802 = vld [vmem:[%s756] sm:$0x1]
          %vm803 = vcmask 253952
          %804 = vst.msk [vmem:[#allocation2] sm:$0x1] %vm803, %v802
        $region96: #{diffusion_head_forward.7} parent=79 // pred_fallthru
          _
        %v805 = vld [vmem:[#allocation2] sm:$0x1]
        %v806 = vld [vmem:[%s753] sm:$0x1]
        %v807 = vld [vmem:[%s766] sm:$0xff]
        %v808 = vld [vmem:[%s766 + $0x8] sm:$0xff]
        %v809 = vld [vmem:[%s766 + $0x10] sm:$0xff]
        %v810 = vld [vmem:[%s766 + $0x18] sm:$0xff]
        %v811 = vld [vmem:[%s769] sm:$0x1]
        %vm812 = vcmask 261120
        %v814 = vsel %vm812, %v806, 0
        %816 = vmatpush.msra.mxu0 0.0
        %817 = vmatpush.msra.mxu0 0.0
        %818 = vmatpush.msra.mxu0 0.0
        %819 = vmatpush.msra.mxu0 0.0
        %820 = vmatpush.msra.mxu0 0.0
        %821 = vmatpush.msra.mxu0 0.0
        %822 = vmatpush.msra.mxu0 0.0
        %823 = vmatpush.msra.mxu0 0.0
        %824 = vmatpush.msra.mxu0 0.0
        %825 = vmatpush.msra.mxu0 0.0
        %826 = vmatpush.msra.mxu0 0.0
        %827 = vmatpush.msra.mxu0 0.0
        %828 = vmatpush.msra.mxu0 %v810
        %829 = vmatpush.msra.mxu0 %v809
        %830 = vmatpush.msra.mxu0 %v808
        %831 = vmatpush.msra.mxu0 %v807
        %832 = vmatmul.f32.gmra.mxu0 %v814
        %v833 = vpop.f32.mrf.mxu0
        %v834 = vadd.f32 %v811, %v833
        %835 = vdwg.mxu0
        %vm836 = vcmask 253952
        %v837 = vsel %vm836, %v805, 0.0
        %838 = vadd.xlane.f32.xlu0 %v837
        %v839 = vpop.xlane.xlu0 %838
        %v840 = vrcp.pop 32.0
        %v841 = vmul.f32 32.0, %v840
        %v842 = vsub.f32 1.0, %v841
        %v843 = vmul.f32 %v840, %v842
        %v844 = vadd.f32 %v840, %v843
        %vm845 = vweird.f32 %v840
        %v846 = vsel %vm845, %v840, %v844
        %v847 = vmul.f32 %v839, %v846
        %v848 = vsub.f32 %v805, %v847
        %v849 = vmul.f32 %v848, %v848
        %v850 = vsel %vm836, %v849, 0.0
        %851 = vadd.xlane.f32.xlu0 %v850
        %v852 = vpop.xlane.xlu0 %851
        %v853 = vmul.f32 %v852, %v846
        %v854 = vadd.f32 %v853, 1e-05
        %v855 = vrsqrt.pop %v854
        %v856 = vmul.f32 %v855, %v854
        %v857 = vmul.f32 %v856, %v855
        %v858 = vmul.f32 0.5, %v857
        %v859 = vsub.f32 1.5, %v858
        %v860 = vmul.f32 %v855, %v859
        %vm861 = vweird.f32 %v854
        %vm862 = vweird.f32 %v855
        %vm863 = vmor %vm861, %vm862
        %v864 = vsel %vm863, %v855, %v860
        %v865 = vmul.f32 %v848, %v864
        %v866 = vadd.f32 %v834, 1.0
        %v867 = vmul.f32 %v865, %v866
        %869 = vrot.lane.b32.xlu0 %v834, 96
        %v870 = vpop.permute.xlu0 %869
        %v872 = vadd.f32 %v867, %v870
        %v873 = vld [vmem:[%s774] sm:$0xff]
        %v874 = vld [vmem:[%s774 + $0x8] sm:$0xff]
        %v875 = vld [vmem:[%s774 + $0x10] sm:$0xff]
        %v876 = vld [vmem:[%s774 + $0x18] sm:$0xff]
        %v877 = vld [vmem:[%s777] sm:$0x1]
        %v878 = vld [vmem:[%s761] sm:$0xff]
        %v879 = vld [vmem:[%s761 + $0x8] sm:$0xff]
        %v880 = vld [vmem:[%s761 + $0x10] sm:$0x7]
        %v882 = vsel %vm812, %v872, 0
        %884 = vmatpush.msra.mxu0 0.0
        %885 = vmatpush.msra.mxu0 0.0
        %886 = vmatpush.msra.mxu0 0.0
        %887 = vmatpush.msra.mxu0 0.0
        %888 = vmatpush.msra.mxu0 0.0
        %889 = vmatpush.msra.mxu0 0.0
        %890 = vmatpush.msra.mxu0 0.0
        %891 = vmatpush.msra.mxu0 0.0
        %892 = vmatpush.msra.mxu0 0.0
        %893 = vmatpush.msra.mxu0 0.0
        %894 = vmatpush.msra.mxu0 0.0
        %895 = vmatpush.msra.mxu0 0.0
        %896 = vmatpush.msra.mxu0 %v876
        %897 = vmatpush.msra.mxu0 %v875
        %898 = vmatpush.msra.mxu0 %v874
        %899 = vmatpush.msra.mxu0 %v873
        %900 = vmatmul.f32.gmra.mxu0 %v882
        %v901 = vpop.f32.mrf.mxu0
        %v902 = vadd.f32 %v877, %v901
        %903 = vdwg.mxu0
        %v905 = vperm.slane %v877, 0
        %910 = vrot.lane.b32.xlu0 %v873, 96
        %v911 = vpop.permute.xlu0 %910
        %912 = vrot.lane.b32.xlu0 %v874, 96
        %v913 = vpop.permute.xlu0 %912
        %914 = vrot.lane.b32.xlu0 %v875, 96
        %v915 = vpop.permute.xlu0 %914
        %916 = vrot.lane.b32.xlu0 %v876, 96
        %v917 = vpop.permute.xlu0 %916
        %922 = vrot.lane.b32.xlu0 %v905, 96
        %v923 = vpop.permute.xlu0 %922
        %v926 = vsel %vm812, %v878, 0
        %v929 = vsel %vm812, %v879, 0
        %v932 = vsel %vm812, %v880, 0
        %934 = vmatpush.msra.mxu0 0.0
        %935 = vmatpush.msra.mxu0 0.0
        %936 = vmatpush.msra.mxu0 0.0
        %937 = vmatpush.msra.mxu0 0.0
        %938 = vmatpush.msra.mxu0 0.0
        %939 = vmatpush.msra.mxu0 0.0
        %940 = vmatpush.msra.mxu0 0.0
        %941 = vmatpush.msra.mxu0 0.0
        %942 = vmatpush.msra.mxu0 0.0
        %943 = vmatpush.msra.mxu0 0.0
        %944 = vmatpush.msra.mxu0 0.0
        %945 = vmatpush.msra.mxu0 0.0
        %946 = vmatpush.msra.mxu0 %v917
        %947 = vmatpush.msra.mxu0 %v915
        %948 = vmatpush.msra.mxu0 %v913
        %949 = vmatpush.msra.mxu0 %v911
        %950 = vmatmul.f32.gmra.mxu0 %v926
        %v951 = vpop.f32.mrf.mxu0
        %v952 = vadd.f32 %v923, %v951
        %953 = vmatmul.f32.gmra.mxu0 %v929
        %v954 = vpop.f32.mrf.mxu0
        %v955 = vadd.f32 %v923, %v954
        %956 = vmatmul.f32.gmra.mxu0 %v932
        %v957 = vpop.f32.mrf.mxu0
        %v958 = vadd.f32 %v923, %v957
        %959 = vdwg.mxu0
        %vm960 = vcmask 64512
        %v962 = vsel %vm960, %v902, 0
        %v965 = vsel %vm960, %v952, 0
        %v968 = vsel %vm960, %v955, 0
        %v971 = vsel %vm960, %v958, 0
        %973 = vmatpush.xpose.msra.mxu0 0.0
        %974 = vmatpush.xpose.msra.mxu0 0.0
        %975 = vmatpush.xpose.msra.mxu0 0.0
        %976 = vmatpush.xpose.msra.mxu0 0.0
        %977 = vmatpush.xpose.msra.mxu0 0.0
        %978 = vmatpush.xpose.msra.mxu0 0.0
        %979 = vmatpush.xpose.msra.mxu0 0.0
        %980 = vmatpush.xpose.msra.mxu0 0.0
        %981 = vmatpush.xpose.msra.mxu0 0.0
        %982 = vmatpush.xpose.msra.mxu0 0.0
        %983 = vmatpush.xpose.msra.mxu0 0.0
        %984 = vmatpush.xpose.msra.mxu0 0.0
        %985 = vmatpush.xpose.msra.mxu0 0.0
        %986 = vmatpush.xpose.msra.mxu0 %v971
        %987 = vmatpush.xpose.msra.mxu0 %v968
        %988 = vmatpush.xpose.msra.mxu0 %v965
        %989 = vmatmul.f32.gmra.mxu0 %v962
        %v990 = vpop.f32.mrf.mxu0
        %v991 = vadd.f32 0.0, %v990
        %992 = vdwg.mxu0
        %v993 = vmul.f32 %v991, 0.35355338
        %vm994 = vcmask 147456
        %v995 = vsel %vm994, %v993, -inf
        %996 = vmax.xlane.f32.xlu0 %v995
        %v997 = vpop.xlane.xlu0 %996
        %v998 = vsub.f32 %v993, %v997
        %v999 = vmul.f32 %v998, 1.442695
        %v1000 = vpow.pop %v999
        %v1001 = vsel %vm994, %v1000, 0.0
        %1002 = vadd.xlane.f32.xlu0 %v1001
        %v1003 = vpop.xlane.xlu0 %1002
        %v1004 = vrcp.pop %v1003
        %v1005 = vmul.f32 %v1000, %v1004
        %1006 = vrot.lane.b32.xlu0 %v952, 96
        %v1007 = vpop.permute.xlu0 %1006
        %1008 = vrot.lane.b32.xlu0 %v955, 96
        %v1009 = vpop.permute.xlu0 %1008
        %1010 = vrot.lane.b32.xlu0 %v958, 96
        %v1011 = vpop.permute.xlu0 %1010
        %vm1014 = vcmask 154624
        %v1016 = vsel %vm1014, %v1005, 0
        %vm1018 = vcmask 1042432
        %v1019 = vsel %vm1018, %v1011, 0
        %1021 = vmatpush.msra.mxu0 0.0
        %1022 = vmatpush.msra.mxu0 0.0
        %1023 = vmatpush.msra.mxu0 0.0
        %1024 = vmatpush.msra.mxu0 0.0
        %1025 = vmatpush.msra.mxu0 0.0
        %1026 = vmatpush.msra.mxu0 0.0
        %1027 = vmatpush.msra.mxu0 0.0
        %1028 = vmatpush.msra.mxu0 0.0
        %1029 = vmatpush.msra.mxu0 0.0
        %1030 = vmatpush.msra.mxu0 0.0
        %1031 = vmatpush.msra.mxu0 0.0
        %1032 = vmatpush.msra.mxu0 0.0
        %1033 = vmatpush.msra.mxu0 0.0
        %1034 = vmatpush.msra.mxu0 %v1019
        %1035 = vmatpush.msra.mxu0 %v1009
        %1036 = vmatpush.msra.mxu0 %v1007
        %1037 = vmatmul.f32.gmra.mxu0 %v1016
        %v1038 = vpop.f32.mrf.mxu0
        %v1039 = vadd.f32 0.0, %v1038
        %1040 = vdwg.mxu0
        %1041 = vrot.lane.b32.xlu0 %v902, 120
        %v1042 = vpop.permute.xlu0 %1041
        %1043 = vrot.lane.b32.xlu0 %v952, 120
        %v1044 = vpop.permute.xlu0 %1043
        %1045 = vrot.lane.b32.xlu0 %v955, 120
        %v1046 = vpop.permute.xlu0 %1045
        %1047 = vrot.lane.b32.xlu0 %v958, 120
        %v1048 = vpop.permute.xlu0 %1047
        %v1049 = vsel %vm960, %v1042, 0
        %v1051 = vsel %vm960, %v1044, 0
        %v1053 = vsel %vm960, %v1046, 0
        %v1055 = vsel %vm960, %v1048, 0
        %1057 = vmatpush.xpose.msra.mxu0 0.0
        %1058 = vmatpush.xpose.msra.mxu0 0.0
        %1059 = vmatpush.xpose.msra.mxu0 0.0
        %1060 = vmatpush.xpose.msra.mxu0 0.0
        %1061 = vmatpush.xpose.msra.mxu0 0.0
        %1062 = vmatpush.xpose.msra.mxu0 0.0
        %1063 = vmatpush.xpose.msra.mxu0 0.0
        %1064 = vmatpush.xpose.msra.mxu0 0.0
        %1065 = vmatpush.xpose.msra.mxu0 0.0
        %1066 = vmatpush.xpose.msra.mxu0 0.0
        %1067 = vmatpush.xpose.msra.mxu0 0.0
        %1068 = vmatpush.xpose.msra.mxu0 0.0
        %1069 = vmatpush.xpose.msra.mxu0 0.0
        %1070 = vmatpush.xpose.msra.mxu0 %v1055
        %1071 = vmatpush.xpose.msra.mxu0 %v1053
        %1072 = vmatpush.xpose.msra.mxu0 %v1051
        %1073 = vmatmul.f32.gmra.mxu0 %v1049
        %v1074 = vpop.f32.mrf.mxu0
        %v1075 = vadd.f32 0.0, %v1074
        %1076 = vdwg.mxu0
        %v1077 = vmul.f32 %v1075, 0.35355338
        %v1078 = vsel %vm994, %v1077, -inf
        %1079 = vmax.xlane.f32.xlu0 %v1078
        %v1080 = vpop.xlane.xlu0 %1079
        %v1081 = vsub.f32 %v1077, %v1080
        %v1082 = vmul.f32 %v1081, 1.442695
        %v1083 = vpow.pop %v1082
        %v1084 = vsel %vm994, %v1083, 0.0
        %1085 = vadd.xlane.f32.xlu0 %v1084
        %v1086 = vpop.xlane.xlu0 %1085
        %v1087 = vrcp.pop %v1086
        %v1088 = vmul.f32 %v1083, %v1087
        %1089 = vrot.lane.b32.xlu0 %v952, 88
        %v1090 = vpop.permute.xlu0 %1089
        %1091 = vrot.lane.b32.xlu0 %v955, 88
        %v1092 = vpop.permute.xlu0 %1091
        %1093 = vrot.lane.b32.xlu0 %v958, 88
        %v1094 = vpop.permute.xlu0 %1093
        %v1098 = vsel %vm1014, %v1088, 0
        %v1100 = vsel %vm1018, %v1094, 0
        %1102 = vmatpush.msra.mxu0 0.0
        %1103 = vmatpush.msra.mxu0 0.0
        %1104 = vmatpush.msra.mxu0 0.0
        %1105 = vmatpush.msra.mxu0 0.0
        %1106 = vmatpush.msra.mxu0 0.0
        %1107 = vmatpush.msra.mxu0 0.0
        %1108 = vmatpush.msra.mxu0 0.0
        %1109 = vmatpush.msra.mxu0 0.0
        %1110 = vmatpush.msra.mxu0 0.0
        %1111 = vmatpush.msra.mxu0 0.0
        %1112 = vmatpush.msra.mxu0 0.0
        %1113 = vmatpush.msra.mxu0 0.0
        %1114 = vmatpush.msra.mxu0 0.0
        %1115 = vmatpush.msra.mxu0 %v1100
        %1116 = vmatpush.msra.mxu0 %v1092
        %1117 = vmatpush.msra.mxu0 %v1090
        %1118 = vmatmul.f32.gmra.mxu0 %v1098
        %v1119 = vpop.f32.mrf.mxu0
        %v1120 = vadd.f32 0.0, %v1119
        %1121 = vdwg.mxu0
        %1122 = vrot.lane.b32.xlu0 %v902, 112
        %v1123 = vpop.permute.xlu0 %1122
        %1124 = vrot.lane.b32.xlu0 %v952, 112
        %v1125 = vpop.permute.xlu0 %1124
        %1126 = vrot.lane.b32.xlu0 %v955, 112
        %v1127 = vpop.permute.xlu0 %1126
        %1128 = vrot.lane.b32.xlu0 %v958, 112
        %v1129 = vpop.permute.xlu0 %1128
        %v1130 = vsel %vm960, %v1123, 0
        %v1132 = vsel %vm960, %v1125, 0
        %v1134 = vsel %vm960, %v1127, 0
        %v1136 = vsel %vm960, %v1129, 0
        %1138 = vmatpush.xpose.msra.mxu0 0.0
        %1139 = vmatpush.xpose.msra.mxu0 0.0
        %1140 = vmatpush.xpose.msra.mxu0 0.0
        %1141 = vmatpush.xpose.msra.mxu0 0.0
        %1142 = vmatpush.xpose.msra.mxu0 0.0
        %1143 = vmatpush.xpose.msra.mxu0 0.0
        %1144 = vmatpush.xpose.msra.mxu0 0.0
        %1145 = vmatpush.xpose.msra.mxu0 0.0
        %1146 = vmatpush.xpose.msra.mxu0 0.0
        %1147 = vmatpush.xpose.msra.mxu0 0.0
        %1148 = vmatpush.xpose.msra.mxu0 0.0
        %1149 = vmatpush.xpose.msra.mxu0 0.0
        %1150 = vmatpush.xpose.msra.mxu0 0.0
        %1151 = vmatpush.xpose.msra.mxu0 %v1136
        %1152 = vmatpush.xpose.msra.mxu0 %v1134
        %1153 = vmatpush.xpose.msra.mxu0 %v1132
        %1154 = vmatmul.f32.gmra.mxu0 %v1130
        %v1155 = vpop.f32.mrf.mxu0
        %v1156 = vadd.f32 0.0, %v1155
        %1157 = vdwg.mxu0
        %v1158 = vmul.f32 %v1156, 0.35355338
        %v1159 = vsel %vm994, %v1158, -inf
        %1160 = vmax.xlane.f32.xlu0 %v1159
        %v1161 = vpop.xlane.xlu0 %1160
        %v1162 = vsub.f32 %v1158, %v1161
        %v1163 = vmul.f32 %v1162, 1.442695
        %v1164 = vpow.pop %v1163
        %v1165 = vsel %vm994, %v1164, 0.0
        %1166 = vadd.xlane.f32.xlu0 %v1165
        %v1167 = vpop.xlane.xlu0 %1166
        %v1168 = vrcp.pop %v1167
        %v1169 = vmul.f32 %v1164, %v1168
        %1170 = vrot.lane.b32.xlu0 %v952, 80
        %v1171 = vpop.permute.xlu0 %1170
        %1172 = vrot.lane.b32.xlu0 %v955, 80
        %v1173 = vpop.permute.xlu0 %1172
        %1174 = vrot.lane.b32.xlu0 %v958, 80
        %v1175 = vpop.permute.xlu0 %1174
        %v1179 = vsel %vm1014, %v1169, 0
        %v1181 = vsel %vm1018, %v1175, 0
        %1183 = vmatpush.msra.mxu0 0.0
        %1184 = vmatpush.msra.mxu0 0.0
        %1185 = vmatpush.msra.mxu0 0.0
        %1186 = vmatpush.msra.mxu0 0.0
        %1187 = vmatpush.msra.mxu0 0.0
        %1188 = vmatpush.msra.mxu0 0.0
        %1189 = vmatpush.msra.mxu0 0.0
        %1190 = vmatpush.msra.mxu0 0.0
        %1191 = vmatpush.msra.mxu0 0.0
        %1192 = vmatpush.msra.mxu0 0.0
        %1193 = vmatpush.msra.mxu0 0.0
        %1194 = vmatpush.msra.mxu0 0.0
        %1195 = vmatpush.msra.mxu0 0.0
        %1196 = vmatpush.msra.mxu0 %v1181
        %1197 = vmatpush.msra.mxu0 %v1173
        %1198 = vmatpush.msra.mxu0 %v1171
        %1199 = vmatmul.f32.gmra.mxu0 %v1179
        %v1200 = vpop.f32.mrf.mxu0
        %v1201 = vadd.f32 0.0, %v1200
        %1202 = vdwg.mxu0
        %1203 = vrot.lane.b32.xlu0 %v902, 104
        %v1204 = vpop.permute.xlu0 %1203
        %1205 = vrot.lane.b32.xlu0 %v952, 104
        %v1206 = vpop.permute.xlu0 %1205
        %1207 = vrot.lane.b32.xlu0 %v955, 104
        %v1208 = vpop.permute.xlu0 %1207
        %1209 = vrot.lane.b32.xlu0 %v958, 104
        %v1210 = vpop.permute.xlu0 %1209
        %v1211 = vsel %vm960, %v1204, 0
        %v1213 = vsel %vm960, %v1206, 0
        %v1215 = vsel %vm960, %v1208, 0
        %v1217 = vsel %vm960, %v1210, 0
        %1219 = vmatpush.xpose.msra.mxu0 0.0
        %1220 = vmatpush.xpose.msra.mxu0 0.0
        %1221 = vmatpush.xpose.msra.mxu0 0.0
        %1222 = vmatpush.xpose.msra.mxu0 0.0
        %1223 = vmatpush.xpose.msra.mxu0 0.0
        %1224 = vmatpush.xpose.msra.mxu0 0.0
        %1225 = vmatpush.xpose.msra.mxu0 0.0
        %1226 = vmatpush.xpose.msra.mxu0 0.0
        %1227 = vmatpush.xpose.msra.mxu0 0.0
        %1228 = vmatpush.xpose.msra.mxu0 0.0
        %1229 = vmatpush.xpose.msra.mxu0 0.0
        %1230 = vmatpush.xpose.msra.mxu0 0.0
        %1231 = vmatpush.xpose.msra.mxu0 0.0
        %1232 = vmatpush.xpose.msra.mxu0 %v1217
        %1233 = vmatpush.xpose.msra.mxu0 %v1215
        %1234 = vmatpush.xpose.msra.mxu0 %v1213
        %1235 = vmatmul.f32.gmra.mxu0 %v1211
        %v1236 = vpop.f32.mrf.mxu0
        %v1237 = vadd.f32 0.0, %v1236
        %1238 = vdwg.mxu0
        %v1239 = vmul.f32 %v1237, 0.35355338
        %v1240 = vsel %vm994, %v1239, -inf
        %1241 = vmax.xlane.f32.xlu0 %v1240
        %v1242 = vpop.xlane.xlu0 %1241
        %v1243 = vsub.f32 %v1239, %v1242
        %v1244 = vmul.f32 %v1243, 1.442695
        %v1245 = vpow.pop %v1244
        %v1246 = vsel %vm994, %v1245, 0.0
        %1247 = vadd.xlane.f32.xlu0 %v1246
        %v1248 = vpop.xlane.xlu0 %1247
        %v1249 = vrcp.pop %v1248
        %v1250 = vmul.f32 %v1245, %v1249
        %1251 = vrot.lane.b32.xlu0 %v952, 72
        %v1252 = vpop.permute.xlu0 %1251
        %1253 = vrot.lane.b32.xlu0 %v955, 72
        %v1254 = vpop.permute.xlu0 %1253
        %1255 = vrot.lane.b32.xlu0 %v958, 72
        %v1256 = vpop.permute.xlu0 %1255
        %v1260 = vsel %vm1014, %v1250, 0
        %v1262 = vsel %vm1018, %v1256, 0
        %1264 = vmatpush.msra.mxu0 0.0
        %1265 = vmatpush.msra.mxu0 0.0
        %1266 = vmatpush.msra.mxu0 0.0
        %1267 = vmatpush.msra.mxu0 0.0
        %1268 = vmatpush.msra.mxu0 0.0
        %1269 = vmatpush.msra.mxu0 0.0
        %1270 = vmatpush.msra.mxu0 0.0
        %1271 = vmatpush.msra.mxu0 0.0
        %1272 = vmatpush.msra.mxu0 0.0
        %1273 = vmatpush.msra.mxu0 0.0
        %1274 = vmatpush.msra.mxu0 0.0
        %1275 = vmatpush.msra.mxu0 0.0
        %1276 = vmatpush.msra.mxu0 0.0
        %1277 = vmatpush.msra.mxu0 %v1262
        %1278 = vmatpush.msra.mxu0 %v1254
        %1279 = vmatpush.msra.mxu0 %v1252
        %1280 = vmatmul.f32.gmra.mxu0 %v1260
        %v1281 = vpop.f32.mrf.mxu0
        %v1282 = vadd.f32 0.0, %v1281
        %1283 = vdwg.mxu0
        %1285 = vrot.lane.b32.xlu0 %v1120, 8
        %v1286 = vpop.permute.xlu0 %1285
        %1289 = vrot.lane.b32.xlu0 %v1201, 16
        %v1290 = vpop.permute.xlu0 %1289
        %1293 = vrot.lane.b32.xlu0 %v1282, 24
        %v1294 = vpop.permute.xlu0 %1293
        %v1296 = vsel %vm960, %v1039, %v1286
        %vm1297 = vcmask 130048
        %v1298 = vsel %vm1297, %v1296, %v1290
        %vm1299 = vcmask 195584
        %v1300 = vsel %vm1299, %v1298, %v1294
        %v1301 = vld [vmem:[%s631] sm:$0xff]
        %v1302 = vld [vmem:[%s631 + $0x8] sm:$0xff]
        %v1303 = vld [vmem:[%s631 + $0x10] sm:$0xff]
        %v1304 = vld [vmem:[%s631 + $0x18] sm:$0xff]
        %v1306 = vsel %vm812, %v1300, 0
        %1308 = vmatpush.msra.mxu0 0.0
        %1309 = vmatpush.msra.mxu0 0.0
        %1310 = vmatpush.msra.mxu0 0.0
        %1311 = vmatpush.msra.mxu0 0.0
        %1312 = vmatpush.msra.mxu0 0.0
        %1313 = vmatpush.msra.mxu0 0.0
        %1314 = vmatpush.msra.mxu0 0.0
        %1315 = vmatpush.msra.mxu0 0.0
        %1316 = vmatpush.msra.mxu0 0.0
        %1317 = vmatpush.msra.mxu0 0.0
        %1318 = vmatpush.msra.mxu0 0.0
        %1319 = vmatpush.msra.mxu0 0.0
        %1320 = vmatpush.msra.mxu0 %v1304
        %1321 = vmatpush.msra.mxu0 %v1303
        %1322 = vmatpush.msra.mxu0 %v1302
        %1323 = vmatpush.msra.mxu0 %v1301
        %1324 = vmatmul.f32.gmra.mxu0 %v1306
        %v1325 = vpop.f32.mrf.mxu0
        %v1326 = vadd.f32 0.0, %v1325
        %1327 = vdwg.mxu0
        %v1328 = vadd.f32 %v805, %v1326
        %v1329 = vld [vmem:[%s780] sm:$0x1]
        %v1330 = vadd.f32 %v1328, %v1329
        %v1331 = vld [vmem:[%s641] sm:$0xff]
        %v1332 = vld [vmem:[%s641 + $0x8] sm:$0xff]
        %v1333 = vld [vmem:[%s641 + $0x10] sm:$0xff]
        %v1334 = vld [vmem:[%s641 + $0x18] sm:$0xff]
        %v1335 = vld [vmem:[%s783] sm:$0x1]
        %1336 = vmatpush.msra.mxu0 0.0
        %1337 = vmatpush.msra.mxu0 0.0
        %1338 = vmatpush.msra.mxu0 0.0
        %1339 = vmatpush.msra.mxu0 0.0
        %1340 = vmatpush.msra.mxu0 0.0
        %1341 = vmatpush.msra.mxu0 0.0
        %1342 = vmatpush.msra.mxu0 0.0
        %1343 = vmatpush.msra.mxu0 0.0
        %1344 = vmatpush.msra.mxu0 0.0
        %1345 = vmatpush.msra.mxu0 0.0
        %1346 = vmatpush.msra.mxu0 0.0
        %1347 = vmatpush.msra.mxu0 0.0
        %1348 = vmatpush.msra.mxu0 %v1334
        %1349 = vmatpush.msra.mxu0 %v1333
        %1350 = vmatpush.msra.mxu0 %v1332
        %1351 = vmatpush.msra.mxu0 %v1331
        %1352 = vmatmul.f32.gmra.mxu0 %v814
        %v1353 = vpop.f32.mrf.mxu0
        %v1354 = vadd.f32 %v1335, %v1353
        %1355 = vdwg.mxu0
        %v1356 = vsel %vm836, %v1330, 0.0
        %1357 = vadd.xlane.f32.xlu0 %v1356
        %v1358 = vpop.xlane.xlu0 %1357
        %v1359 = vmul.f32 %v1358, %v846
        %v1360 = vsub.f32 %v1330, %v1359
        %v1361 = vmul.f32 %v1360, %v1360
        %v1362 = vsel %vm836, %v1361, 0.0
        %1363 = vadd.xlane.f32.xlu0 %v1362
        %v1364 = vpop.xlane.xlu0 %1363
        %v1365 = vmul.f32 %v1364, %v846
        %v1366 = vadd.f32 %v1365, 1e-05
        %v1367 = vrsqrt.pop %v1366
        %v1368 = vmul.f32 %v1367, %v1366
        %v1369 = vmul.f32 %v1368, %v1367
        %v1370 = vmul.f32 0.5, %v1369
        %v1371 = vsub.f32 1.5, %v1370
        %v1372 = vmul.f32 %v1367, %v1371
        %vm1373 = vweird.f32 %v1366
        %vm1374 = vweird.f32 %v1367
        %vm1375 = vmor %vm1373, %vm1374
        %v1376 = vsel %vm1375, %v1367, %v1372
        %v1377 = vmul.f32 %v1360, %v1376
        %v1378 = vadd.f32 %v1354, 1.0
        %v1379 = vmul.f32 %v1377, %v1378
        %1381 = vrot.lane.b32.xlu0 %v1354, 96
        %v1382 = vpop.permute.xlu0 %1381
        %v1384 = vadd.f32 %v1379, %v1382
        %v1385 = vld [vmem:[%s651] sm:$0xff]
        %v1386 = vld [vmem:[%s651 + $0x8] sm:$0xff]
        %v1387 = vld [vmem:[%s651 + $0x10] sm:$0xff]
        %v1388 = vld [vmem:[%s651 + $0x18] sm:$0xff]
        %v1389 = vld [vmem:[%s786] sm:$0x1]
        %v1391 = vsel %vm812, %v1384, 0
        %1393 = vmatpush.msra.mxu0 0.0
        %1394 = vmatpush.msra.mxu0 0.0
        %1395 = vmatpush.msra.mxu0 0.0
        %1396 = vmatpush.msra.mxu0 0.0
        %1397 = vmatpush.msra.mxu0 0.0
        %1398 = vmatpush.msra.mxu0 0.0
        %1399 = vmatpush.msra.mxu0 0.0
        %1400 = vmatpush.msra.mxu0 0.0
        %1401 = vmatpush.msra.mxu0 0.0
        %1402 = vmatpush.msra.mxu0 0.0
        %1403 = vmatpush.msra.mxu0 0.0
        %1404 = vmatpush.msra.mxu0 0.0
        %1405 = vmatpush.msra.mxu0 %v1388
        %1406 = vmatpush.msra.mxu0 %v1387
        %1407 = vmatpush.msra.mxu0 %v1386
        %1408 = vmatpush.msra.mxu0 %v1385
        %1409 = vmatmul.f32.gmra.mxu0 %v1391
        %v1410 = vpop.f32.mrf.mxu0
        %v1411 = vadd.f32 %v1389, %v1410
        %1412 = vdwg.mxu0
        %v1413 = vmax.f32 %v1411, 0.0
        %v1414 = vld [vmem:[%s791] sm:$0xff]
        %v1415 = vld [vmem:[%s791 + $0x8] sm:$0xff]
        %v1416 = vld [vmem:[%s791 + $0x10] sm:$0xff]
        %v1417 = vld [vmem:[%s791 + $0x18] sm:$0xff]
        %v1418 = vld [vmem:[%s791 + $0x20] sm:$0xff]
        %v1419 = vld [vmem:[%s791 + $0x28] sm:$0xff]
        %v1420 = vld [vmem:[%s791 + $0x30] sm:$0xff]
        %v1421 = vld [vmem:[%s791 + $0x38] sm:$0xff]
        %vm1422 = vcmask 523264
        %v1424 = vsel %vm1422, %v1413, 0
        %1426 = vmatpush.msra.mxu0 0.0
        %1427 = vmatpush.msra.mxu0 0.0
        %1428 = vmatpush.msra.mxu0 0.0
        %1429 = vmatpush.msra.mxu0 0.0
        %1430 = vmatpush.msra.mxu0 0.0
        %1431 = vmatpush.msra.mxu0 0.0
        %1432 = vmatpush.msra.mxu0 0.0
        %1433 = vmatpush.msra.mxu0 0.0
        %1434 = vmatpush.msra.mxu0 %v1421
        %1435 = vmatpush.msra.mxu0 %v1420
        %1436 = vmatpush.msra.mxu0 %v1419
        %1437 = vmatpush.msra.mxu0 %v1418
        %1438 = vmatpush.msra.mxu0 %v1417
        %1439 = vmatpush.msra.mxu0 %v1416
        %1440 = vmatpush.msra.mxu0 %v1415
        %1441 = vmatpush.msra.mxu0 %v1414
        %1442 = vmatmul.f32.gmra.mxu0 %v1424
        %v1443 = vpop.f32.mrf.mxu0
        %v1444 = vadd.f32 0.0, %v1443
        %1445 = vdwg.mxu0
        %v1446 = vadd.f32 %v1330, %v1444
        %v1447 = vld [vmem:[%s794] sm:$0x1]
        %v1448 = vadd.f32 %v1446, %v1447
        %1449 = vst.msk [vmem:[#allocation2] sm:$0x1] %vm836, %v1448
        %p1450 = scmp.eq.s32.totalorder %s37, 1
        // Predicated region
        $region97: #{diffusion_head_forward.7} parent=79 // pred_check
          %p1451 = pneg %p1450
        $region98: #{diffusion_head_forward.7} parent=79 // pred_check_branch
          %1453 = sbr.rel (%p1451) target = $region100
        $region99: #{diffusion_head_forward.7} parent=79 // pred_region
          %1454 = vst.msk [vmem:[%s797] sm:$0x1] %vm836, %v1448
        $region100: #{diffusion_head_forward.7} parent=79 // pred_fallthru
          _
        %p1455 = scmp.lt.s32.totalorder %s36, 1
        %s1456 = scalar_select %p1455, %s36, 1
        %s1457 = scalar_lea.vmem %s15, %s1456
        // Predicated region
        $region101: #{diffusion_head_forward.7} parent=79 // pred_check
          %p1458 = pneg %p452
        $region102: #{diffusion_head_forward.7} parent=79 // pred_check_branch
          %1460 = sbr.rel (%p1458) target = $region104
        $region103: #{diffusion_head_forward.7} parent=79 // pred_region
          _
        $region104: #{diffusion_head_forward.7} parent=79 // pred_fallthru
          _
      $region80: #{diffusion_head_forward.7} parent=5 // pred_fallthru
        _
      %p1461 = scmp.le.s32.totalorder 2, %s27
      // Predicated region
      $region105: #{diffusion_head_forward.7} parent=5 // pred_check
        %p1462 = pneg %p1461
      $region106: #{diffusion_head_forward.7} parent=5 // pred_check_branch
        %1464 = sbr.rel (%p1462) target = $region108
      $region107: #{diffusion_head_forward.7} parent=5 // pred_region
        %s1465 = ssub.s32 %s27, 2
        // Predicated region
        $region109: #{diffusion_head_forward.7} parent=107 // pred_check
          %p1466 = pneg %p458
        $region110: #{diffusion_head_forward.7} parent=107 // pred_check_branch
          %1468 = sbr.rel (%p1466) target = $region112
        $region111: #{diffusion_head_forward.7} parent=107 // pred_region
          %p1469 = scmp.lt.s32.totalorder %s38, 1
          %s1470 = scalar_select %p1469, %s38, 1
          %s1471 = scalar_lea.vmem %s15, %s1470
        $region112: #{diffusion_head_forward.7} parent=107 // pred_fallthru
          _
      $region108: #{diffusion_head_forward.7} parent=5 // pred_fallthru
        _
    $region6: #{diffusion_head_forward.7} parent=1 // loop_footer
      %s31 = sadd.s32 1, %s27
    $region7: #{diffusion_head_forward.7} parent=1 // loop_footer_branch
      %26 = sbr.rel target = $region3
    $region8: #{diffusion_head_forward.7} parent=1 // loop_exit
      _
    %1472 = vsyncpa [#allocation4], 1
    %s1473 = scalar_lea.sflag [#allocation4], 1
    %1474 = vsyncpa %s1473, 1
    %1475 = vsyncpa [#allocation6], 1
    %s1476 = scalar_lea.sflag [#allocation6], 1
    %1477 = vsyncpa %s1476, 1

// kernel: diffusion_head_forward.8
$region0: #{diffusion_head_forward.8}
  #allocation0 [shape = 'u32[]', space=smem, size = 0x4, offset = 0x4, fixed_abs, tag = 'smem constant byte address 0x4 - core index']
  #allocation1 [shape = 'u32[72,128]{1,0:T(1,128)}', space=vmem, size = 0x9000, scoped, tag = 'internal scratch']
  #allocation2 [shape = 'f32[12,32]{1,0:T(8,128)}', space=vmem, size = 0x2000, scoped, tag = 'scratch operand']
  %s0 = inlined_call_operand.vmem [shape: f32[2,1,32], index: 0, kind: input, shape index: {}]
  %s1 = inlined_call_operand.vmem [shape: f32[2,12,32], index: 1, kind: input, shape index: {}]
  %s2 = inlined_call_operand.vmem [shape: f32[4,32,64], index: 2, kind: input, shape index: {}]
  %s3 = inlined_call_operand.vmem [shape: f32[4,1,64], index: 3, kind: input, shape index: {}]
  %s4 = inlined_call_operand.vmem [shape: f32[4,32,96], index: 4, kind: input, shape index: {}]
  %s5 = inlined_call_operand.vmem [shape: f32[4,1,96], index: 5, kind: input, shape index: {}]
  %s6 = inlined_call_operand.vmem [shape: f32[4,32,32], index: 6, kind: input, shape index: {}]
  %s7 = inlined_call_operand.vmem [shape: f32[4,1,32], index: 7, kind: input, shape index: {}]
  %s8 = inlined_call_operand.hbm [shape: f32[4,32,64], index: 8, kind: input, shape index: {}]
  %s9 = inlined_call_operand.vmem [shape: f32[4,1,64], index: 9, kind: input, shape index: {}]
  %s10 = inlined_call_operand.hbm [shape: f32[4,32,64], index: 10, kind: input, shape index: {}]
  %s11 = inlined_call_operand.vmem [shape: f32[4,1,64], index: 11, kind: input, shape index: {}]
  %s12 = inlined_call_operand.vmem [shape: f32[4,64,32], index: 12, kind: input, shape index: {}]
  %s13 = inlined_call_operand.vmem [shape: f32[4,1,32], index: 13, kind: input, shape index: {}]
  %s14 = inlined_call_operand.vmem [shape: f32[2,12,32], index: 14, kind: output, shape index: {}]
  %s15 = sld [smem:[#allocation0]]
  $region105: #{diffusion_head_forward.8} parent=0
    _
  %s17 = ssub.s32 1, %s15
  %s18 = scalar_select 0, %s17, %s15
  $region1: #{diffusion_head_forward.8} parent=0
    #allocation3 [shape = 'u8[32768]{0}', space=vmem, size = 0x8000, scoped, tag = 'input window, operand 8']
    #allocation4 [shape = 's32[2]{0}', space=sflag, size = 0x8, scoped, tag = 'scoped memory for diffusion_head_forward.8']
    #allocation5 [shape = 'u8[32768]{0}', space=vmem, size = 0x8000, scoped, tag = 'input window, operand 10']
    #allocation6 [shape = 's32[2]{0}', space=sflag, size = 0x8, scoped, tag = 'scoped memory for diffusion_head_forward.8']
    %19 = vsyncpa [#allocation4], 0
    %s20 = scalar_lea.sflag [#allocation4], 1
    %21 = vsyncpa %s20, 0
    %22 = vsyncpa [#allocation6], 0
    %s23 = scalar_lea.sflag [#allocation6], 1
    %24 = vsyncpa %s23, 0
    loop: start=0, step=1, limit=10
    $region2: #{diffusion_head_forward.8} parent=1 // loop_pre_header
      _
    $region3: #{diffusion_head_forward.8} parent=1 // loop_header
      %s26 = sphi 0, %s30
      %p27 = scmp.ge.s32.totalorder %s26, 10
      %s33 = sphi 0, %s45
      %s34 = sphi 0, %s41
      %s35 = sphi 0, %s33
      %s36 = sphi 0, %s34
      %s37 = sphi 0, %s35
      %s38 = sphi 0, %s36
      %s48 = sphi 0, %s50
      %s51 = sphi 0, %s48
      %s52 = sphi 0, %s51
      %s68 = sphi 0, %s52
      %s74 = sphi 0, %s76
      %s77 = sphi 0, %s74
      %s78 = sphi 0, %s77
      %s94 = sphi 0, %s78
      %s100 = sphi 0, %s102
      %s103 = sphi 0, %s100
      %s104 = sphi 0, %s103
      %s120 = sphi 0, %s104
      %s126 = sphi 0, %s128
      %s129 = sphi 0, %s126
      %s130 = sphi 0, %s129
      %s146 = sphi 0, %s130
      %s152 = sphi 0, %s154
      %s155 = sphi 0, %s152
      %s156 = sphi 0, %s155
      %s172 = sphi 0, %s156
      %s178 = sphi 0, %s180
      %s181 = sphi 0, %s178
      %s182 = sphi 0, %s181
      %s198 = sphi 0, %s182
      %s204 = sphi 0, %s206
      %s207 = sphi 0, %s204
      %s208 = sphi 0, %s207
      %s224 = sphi 0, %s208
      %s230 = sphi 0, %s232
      %s233 = sphi 0, %s230
      %s234 = sphi 0, %s233
      %s250 = sphi 0, %s234
      %s256 = sphi 0, %s258
      %s259 = sphi 0, %s256
      %s260 = sphi 0, %s259
      %s276 = sphi 0, %s260
      %s282 = sphi 0, %s284
      %s285 = sphi 0, %s282
      %s286 = sphi 0, %s285
      %s302 = sphi 0, %s286
      %s308 = sphi 0, %s310
      %s311 = sphi 0, %s308
      %s312 = sphi 0, %s311
      %s328 = sphi 0, %s312
      %s334 = sphi 0, %s336
      %s337 = sphi 0, %s334
      %s338 = sphi 0, %s337
      %s354 = sphi 0, %s338
      %s360 = sphi 0, %s362
      %s363 = sphi 0, %s360
      %s364 = sphi 0, %s363
      %s380 = sphi 0, %s364
      %s386 = sphi 0, %s388
      %s389 = sphi 0, %s386
      %s390 = sphi 0, %s389
      %s406 = sphi 0, %s390
      %s412 = sphi 0, %s414
      %s415 = sphi 0, %s412
      %s416 = sphi 0, %s415
      %s432 = sphi 0, %s416
    $region4: #{diffusion_head_forward.8} parent=1 // loop_header_branch
      %29 = sbr.rel (%p27) target = $region8
    $region5: #{diffusion_head_forward.8} parent=1 // loop_body
      %s31 = ssub.s32 %s26, 1
      %s32 = ssub.s32 %s26, 2
      %s39 = sadd.s32 1, %s34
      %p40 = scmp.ge.s32.totalorder %s39, 4
      %s41 = scalar_select %p40, 0, %s39
      %s42 = sadd.s32 1, %s33
      %s43 = scalar_select %p40, %s42, %s33
      %p44 = scmp.ge.s32.totalorder %s43, 2
      %s45 = scalar_select %p44, 0, %s43
      %s46 = ssub.s32 %s33, %s45
      %p47 = scmp.eq.s32.totalorder %s46, 0
      %s49 = sadd.s32 %s48, 1
      %s50 = scalar_select %p47, %s48, %s49
      %p53 = pneg %p47
      %p54 = scmp.eq.s32.totalorder %s26, 7
      %p55 = por %p53, %p54
      %p56 = scmp.ne.s32.totalorder %s48, %s51
      %p57 = scmp.eq.s32.totalorder %s26, 0
      %p58 = por %p56, %p57
      %p59 = scmp.ne.s32.totalorder %s48, %s51
      %p60 = scmp.eq.s32.totalorder %s31, 7
      %p61 = por %p59, %p60
      %p62 = scmp.ne.s32.totalorder %s51, %s52
      %p63 = scmp.eq.s32.totalorder %s31, 0
      %p64 = por %p62, %p63
      %p65 = scmp.ne.s32.totalorder %s51, %s52
      %p66 = scmp.eq.s32.totalorder %s32, 7
      %p67 = por %p65, %p66
      %p69 = scmp.ne.s32.totalorder %s52, %s68
      %p70 = scmp.eq.s32.totalorder %s32, 0
      %p71 = por %p69, %p70
      %s72 = ssub.s32 %s33, %s45
      %p73 = scmp.eq.s32.totalorder %s72, 0
      %s75 = sadd.s32 %s74, 1
      %s76 = scalar_select %p73, %s74, %s75
      %p79 = pneg %p73
      %p80 = scmp.eq.s32.totalorder %s26, 7
      %p81 = por %p79, %p80
      %p82 = scmp.ne.s32.totalorder %s74, %s77
      %p83 = scmp.eq.s32.totalorder %s26, 0
      %p84 = por %p82, %p83
      %p85 = scmp.ne.s32.totalorder %s74, %s77
      %p86 = scmp.eq.s32.totalorder %s31, 7
      %p87 = por %p85, %p86
      %p88 = scmp.ne.s32.totalorder %s77, %s78
      %p89 = scmp.eq.s32.totalorder %s31, 0
      %p90 = por %p88, %p89
      %p91 = scmp.ne.s32.totalorder %s77, %s78
      %p92 = scmp.eq.s32.totalorder %s32, 7
      %p93 = por %p91, %p92
      %p95 = scmp.ne.s32.totalorder %s78, %s94
      %p96 = scmp.eq.s32.totalorder %s32, 0
      %p97 = por %p95, %p96
      %s98 = ssub.s32 %s34, %s41
      %p99 = scmp.eq.s32.totalorder %s98, 0
      %s101 = sadd.s32 %s100, 1
      %s102 = scalar_select %p99, %s100, %s101
      %p105 = pneg %p99
      %p106 = scmp.eq.s32.totalorder %s26, 7
      %p107 = por %p105, %p106
      %p108 = scmp.ne.s32.totalorder %s100, %s103
      %p109 = scmp.eq.s32.totalorder %s26, 0
      %p110 = por %p108, %p109
      %p111 = scmp.ne.s32.totalorder %s100, %s103
      %p112 = scmp.eq.s32.totalorder %s31, 7
      %p113 = por %p111, %p112
      %p114 = scmp.ne.s32.totalorder %s103, %s104
      %p115 = scmp.eq.s32.totalorder %s31, 0
      %p116 = por %p114, %p115
      %p117 = scmp.ne.s32.totalorder %s103, %s104
      %p118 = scmp.eq.s32.totalorder %s32, 7
      %p119 = por %p117, %p118
      %p121 = scmp.ne.s32.totalorder %s104, %s120
      %p122 = scmp.eq.s32.totalorder %s32, 0
      %p123 = por %p121, %p122
      %s124 = ssub.s32 %s34, %s41
      %p125 = scmp.eq.s32.totalorder %s124, 0
      %s127 = sadd.s32 %s126, 1
      %s128 = scalar_select %p125, %s126, %s127
      %p131 = pneg %p125
      %p132 = scmp.eq.s32.totalorder %s26, 7
      %p133 = por %p131, %p132
      %p134 = scmp.ne.s32.totalorder %s126, %s129
      %p135 = scmp.eq.s32.totalorder %s26, 0
      %p136 = por %p134, %p135
      %p137 = scmp.ne.s32.totalorder %s126, %s129
      %p138 = scmp.eq.s32.totalorder %s31, 7
      %p139 = por %p137, %p138
      %p140 = scmp.ne.s32.totalorder %s129, %s130
      %p141 = scmp.eq.s32.totalorder %s31, 0
      %p142 = por %p140, %p141
      %p143 = scmp.ne.s32.totalorder %s129, %s130
      %p144 = scmp.eq.s32.totalorder %s32, 7
      %p145 = por %p143, %p144
      %p147 = scmp.ne.s32.totalorder %s130, %s146
      %p148 = scmp.eq.s32.totalorder %s32, 0
      %p149 = por %p147, %p148
      %s150 = ssub.s32 %s34, %s41
      %p151 = scmp.eq.s32.totalorder %s150, 0
      %s153 = sadd.s32 %s152, 1
      %s154 = scalar_select %p151, %s152, %s153
      %p157 = pneg %p151
      %p158 = scmp.eq.s32.totalorder %s26, 7
      %p159 = por %p157, %p158
      %p160 = scmp.ne.s32.totalorder %s152, %s155
      %p161 = scmp.eq.s32.totalorder %s26, 0
      %p162 = por %p160, %p161
      %p163 = scmp.ne.s32.totalorder %s152, %s155
      %p164 = scmp.eq.s32.totalorder %s31, 7
      %p165 = por %p163, %p164
      %p166 = scmp.ne.s32.totalorder %s155, %s156
      %p167 = scmp.eq.s32.totalorder %s31, 0
      %p168 = por %p166, %p167
      %p169 = scmp.ne.s32.totalorder %s155, %s156
      %p170 = scmp.eq.s32.totalorder %s32, 7
      %p171 = por %p169, %p170
      %p173 = scmp.ne.s32.totalorder %s156, %s172
      %p174 = scmp.eq.s32.totalorder %s32, 0
      %p175 = por %p173, %p174
      %s176 = ssub.s32 %s34, %s41
      %p177 = scmp.eq.s32.totalorder %s176, 0
      %s179 = sadd.s32 %s178, 1
      %s180 = scalar_select %p177, %s178, %s179
      %p183 = pneg %p177
      %p184 = scmp.eq.s32.totalorder %s26, 7
      %p185 = por %p183, %p184
      %p186 = scmp.ne.s32.totalorder %s178, %s181
      %p187 = scmp.eq.s32.totalorder %s26, 0
      %p188 = por %p186, %p187
      %p189 = scmp.ne.s32.totalorder %s178, %s181
      %p190 = scmp.eq.s32.totalorder %s31, 7
      %p191 = por %p189, %p190
      %p192 = scmp.ne.s32.totalorder %s181, %s182
      %p193 = scmp.eq.s32.totalorder %s31, 0
      %p194 = por %p192, %p193
      %p195 = scmp.ne.s32.totalorder %s181, %s182
      %p196 = scmp.eq.s32.totalorder %s32, 7
      %p197 = por %p195, %p196
      %p199 = scmp.ne.s32.totalorder %s182, %s198
      %p200 = scmp.eq.s32.totalorder %s32, 0
      %p201 = por %p199, %p200
      %s202 = ssub.s32 %s34, %s41
      %p203 = scmp.eq.s32.totalorder %s202, 0
      %s205 = sadd.s32 %s204, 1
      %s206 = scalar_select %p203, %s204, %s205
      %p209 = pneg %p203
      %p210 = scmp.eq.s32.totalorder %s26, 7
      %p211 = por %p209, %p210
      %p212 = scmp.ne.s32.totalorder %s204, %s207
      %p213 = scmp.eq.s32.totalorder %s26, 0
      %p214 = por %p212, %p213
      %p215 = scmp.ne.s32.totalorder %s204, %s207
      %p216 = scmp.eq.s32.totalorder %s31, 7
      %p217 = por %p215, %p216
      %p218 = scmp.ne.s32.totalorder %s207, %s208
      %p219 = scmp.eq.s32.totalorder %s31, 0
      %p220 = por %p218, %p219
      %p221 = scmp.ne.s32.totalorder %s207, %s208
      %p222 = scmp.eq.s32.totalorder %s32, 7
      %p223 = por %p221, %p222
      %p225 = scmp.ne.s32.totalorder %s208, %s224
      %p226 = scmp.eq.s32.totalorder %s32, 0
      %p227 = por %p225, %p226
      %s228 = ssub.s32 %s34, %s41
      %p229 = scmp.eq.s32.totalorder %s228, 0
      %s231 = sadd.s32 %s230, 1
      %s232 = scalar_select %p229, %s230, %s231
      %p235 = pneg %p229
      %p236 = scmp.eq.s32.totalorder %s26, 7
      %p237 = por %p235, %p236
      %p238 = scmp.ne.s32.totalorder %s230, %s233
      %p239 = scmp.eq.s32.totalorder %s26, 0
      %p240 = por %p238, %p239
      %p241 = scmp.ne.s32.totalorder %s230, %s233
      %p242 = scmp.eq.s32.totalorder %s31, 7
      %p243 = por %p241, %p242
      %p244 = scmp.ne.s32.totalorder %s233, %s234
      %p245 = scmp.eq.s32.totalorder %s31, 0
      %p246 = por %p244, %p245
      %p247 = scmp.ne.s32.totalorder %s233, %s234
      %p248 = scmp.eq.s32.totalorder %s32, 7
      %p249 = por %p247, %p248
      %p251 = scmp.ne.s32.totalorder %s234, %s250
      %p252 = scmp.eq.s32.totalorder %s32, 0
      %p253 = por %p251, %p252
      %s254 = ssub.s32 %s34, %s41
      %p255 = scmp.eq.s32.totalorder %s254, 0
      %s257 = sadd.s32 %s256, 1
      %s258 = scalar_select %p255, %s256, %s257
      %p261 = pneg %p255
      %p262 = scmp.eq.s32.totalorder %s26, 7
      %p263 = por %p261, %p262
      %p264 = scmp.ne.s32.totalorder %s256, %s259
      %p265 = scmp.eq.s32.totalorder %s26, 0
      %p266 = por %p264, %p265
      %p267 = scmp.ne.s32.totalorder %s256, %s259
      %p268 = scmp.eq.s32.totalorder %s31, 7
      %p269 = por %p267, %p268
      %p270 = scmp.ne.s32.totalorder %s259, %s260
      %p271 = scmp.eq.s32.totalorder %s31, 0
      %p272 = por %p270, %p271
      %p273 = scmp.ne.s32.totalorder %s259, %s260
      %p274 = scmp.eq.s32.totalorder %s32, 7
      %p275 = por %p273, %p274
      %p277 = scmp.ne.s32.totalorder %s260, %s276
      %p278 = scmp.eq.s32.totalorder %s32, 0
      %p279 = por %p277, %p278
      %s280 = ssub.s32 %s34, %s41
      %p281 = scmp.eq.s32.totalorder %s280, 0
      %s283 = sadd.s32 %s282, 1
      %s284 = scalar_select %p281, %s282, %s283
      %p287 = pneg %p281
      %p288 = scmp.eq.s32.totalorder %s26, 7
      %p289 = por %p287, %p288
      %p290 = scmp.ne.s32.totalorder %s282, %s285
      %p291 = scmp.eq.s32.totalorder %s26, 0
      %p292 = por %p290, %p291
      %p293 = scmp.ne.s32.totalorder %s282, %s285
      %p294 = scmp.eq.s32.totalorder %s31, 7
      %p295 = por %p293, %p294
      %p296 = scmp.ne.s32.totalorder %s285, %s286
      %p297 = scmp.eq.s32.totalorder %s31, 0
      %p298 = por %p296, %p297
      %p299 = scmp.ne.s32.totalorder %s285, %s286
      %p300 = scmp.eq.s32.totalorder %s32, 7
      %p301 = por %p299, %p300
      %p303 = scmp.ne.s32.totalorder %s286, %s302
      %p304 = scmp.eq.s32.totalorder %s32, 0
      %p305 = por %p303, %p304
      %s306 = ssub.s32 %s34, %s41
      %p307 = scmp.eq.s32.totalorder %s306, 0
      %s309 = sadd.s32 %s308, 1
      %s310 = scalar_select %p307, %s308, %s309
      %p313 = pneg %p307
      %p314 = scmp.eq.s32.totalorder %s26, 7
      %p315 = por %p313, %p314
      %p316 = scmp.ne.s32.totalorder %s308, %s311
      %p317 = scmp.eq.s32.totalorder %s26, 0
      %p318 = por %p316, %p317
      %p319 = scmp.ne.s32.totalorder %s308, %s311
      %p320 = scmp.eq.s32.totalorder %s31, 7
      %p321 = por %p319, %p320
      %p322 = scmp.ne.s32.totalorder %s311, %s312
      %p323 = scmp.eq.s32.totalorder %s31, 0
      %p324 = por %p322, %p323
      %p325 = scmp.ne.s32.totalorder %s311, %s312
      %p326 = scmp.eq.s32.totalorder %s32, 7
      %p327 = por %p325, %p326
      %p329 = scmp.ne.s32.totalorder %s312, %s328
      %p330 = scmp.eq.s32.totalorder %s32, 0
      %p331 = por %p329, %p330
      %s332 = ssub.s32 %s34, %s41
      %p333 = scmp.eq.s32.totalorder %s332, 0
      %s335 = sadd.s32 %s334, 1
      %s336 = scalar_select %p333, %s334, %s335
      %p339 = pneg %p333
      %p340 = scmp.eq.s32.totalorder %s26, 7
      %p341 = por %p339, %p340
      %p342 = scmp.ne.s32.totalorder %s334, %s337
      %p343 = scmp.eq.s32.totalorder %s26, 0
      %p344 = por %p342, %p343
      %p345 = scmp.ne.s32.totalorder %s334, %s337
      %p346 = scmp.eq.s32.totalorder %s31, 7
      %p347 = por %p345, %p346
      %p348 = scmp.ne.s32.totalorder %s337, %s338
      %p349 = scmp.eq.s32.totalorder %s31, 0
      %p350 = por %p348, %p349
      %p351 = scmp.ne.s32.totalorder %s337, %s338
      %p352 = scmp.eq.s32.totalorder %s32, 7
      %p353 = por %p351, %p352
      %p355 = scmp.ne.s32.totalorder %s338, %s354
      %p356 = scmp.eq.s32.totalorder %s32, 0
      %p357 = por %p355, %p356
      %s358 = ssub.s32 %s34, %s41
      %p359 = scmp.eq.s32.totalorder %s358, 0
      %s361 = sadd.s32 %s360, 1
      %s362 = scalar_select %p359, %s360, %s361
      %p365 = pneg %p359
      %p366 = scmp.eq.s32.totalorder %s26, 7
      %p367 = por %p365, %p366
      %p368 = scmp.ne.s32.totalorder %s360, %s363
      %p369 = scmp.eq.s32.totalorder %s26, 0
      %p370 = por %p368, %p369
      %p371 = scmp.ne.s32.totalorder %s360, %s363
      %p372 = scmp.eq.s32.totalorder %s31, 7
      %p373 = por %p371, %p372
      %p374 = scmp.ne.s32.totalorder %s363, %s364
      %p375 = scmp.eq.s32.totalorder %s31, 0
      %p376 = por %p374, %p375
      %p377 = scmp.ne.s32.totalorder %s363, %s364
      %p378 = scmp.eq.s32.totalorder %s32, 7
      %p379 = por %p377, %p378
      %p381 = scmp.ne.s32.totalorder %s364, %s380
      %p382 = scmp.eq.s32.totalorder %s32, 0
      %p383 = por %p381, %p382
      %s384 = ssub.s32 %s34, %s41
      %p385 = scmp.eq.s32.totalorder %s384, 0
      %s387 = sadd.s32 %s386, 1
      %s388 = scalar_select %p385, %s386, %s387
      %p391 = pneg %p385
      %p392 = scmp.eq.s32.totalorder %s26, 7
      %p393 = por %p391, %p392
      %p394 = scmp.ne.s32.totalorder %s386, %s389
      %p395 = scmp.eq.s32.totalorder %s26, 0
      %p396 = por %p394, %p395
      %p397 = scmp.ne.s32.totalorder %s386, %s389
      %p398 = scmp.eq.s32.totalorder %s31, 7
      %p399 = por %p397, %p398
      %p400 = scmp.ne.s32.totalorder %s389, %s390
      %p401 = scmp.eq.s32.totalorder %s31, 0
      %p402 = por %p400, %p401
      %p403 = scmp.ne.s32.totalorder %s389, %s390
      %p404 = scmp.eq.s32.totalorder %s32, 7
      %p405 = por %p403, %p404
      %p407 = scmp.ne.s32.totalorder %s390, %s406
      %p408 = scmp.eq.s32.totalorder %s32, 0
      %p409 = por %p407, %p408
      %s410 = ssub.s32 %s33, %s45
      %p411 = scmp.eq.s32.totalorder %s410, 0
      %s413 = sadd.s32 %s412, 1
      %s414 = scalar_select %p411, %s412, %s413
      %p417 = pneg %p411
      %p418 = scmp.eq.s32.totalorder %s26, 7
      %p419 = por %p417, %p418
      %p420 = scmp.ne.s32.totalorder %s412, %s415
      %p421 = scmp.eq.s32.totalorder %s26, 0
      %p422 = por %p420, %p421
      %p423 = scmp.ne.s32.totalorder %s412, %s415
      %p424 = scmp.eq.s32.totalorder %s31, 7
      %p425 = por %p423, %p424
      %p426 = scmp.ne.s32.totalorder %s415, %s416
      %p427 = scmp.eq.s32.totalorder %s31, 0
      %p428 = por %p426, %p427
      %p429 = scmp.ne.s32.totalorder %s415, %s416
      %p430 = scmp.eq.s32.totalorder %s32, 7
      %p431 = por %p429, %p430
      %p433 = scmp.ne.s32.totalorder %s416, %s432
      %p434 = scmp.eq.s32.totalorder %s32, 0
      %p435 = por %p433, %p434
      %p436 = scmp.le.s32.totalorder 1, %s26
      %p437 = scmp.lt.s32.totalorder %s26, 9
      %p438 = pnand %p436, %p437
      %p439 = pneg %p438
      // Predicated region
      $region9: #{diffusion_head_forward.8} parent=5 // pred_check
        _
      $region10: #{diffusion_head_forward.8} parent=5 // pred_check_branch
        %441 = sbr.rel (%p438) target = $region12
      $region11: #{diffusion_head_forward.8} parent=5 // pred_region
        %s442 = ssub.s32 %s26, 1
      $region12: #{diffusion_head_forward.8} parent=5 // pred_fallthru
        _
      %p443 = scmp.lt.s32.totalorder %s26, 8
      // Predicated region
      $region13: #{diffusion_head_forward.8} parent=5 // pred_check
        %p444 = pneg %p443
      $region14: #{diffusion_head_forward.8} parent=5 // pred_check_branch
        %446 = sbr.rel (%p444) target = $region16
      $region15: #{diffusion_head_forward.8} parent=5 // pred_region
        // Predicated region
        $region17: #{diffusion_head_forward.8} parent=15 // pred_check
          %p447 = pneg %p58
        $region18: #{diffusion_head_forward.8} parent=15 // pred_check_branch
          %449 = sbr.rel (%p447) target = $region20
        $region19: #{diffusion_head_forward.8} parent=15 // pred_region
          %p450 = scmp.lt.s32.totalorder %s33, 1
          %s451 = scalar_select %p450, %s33, 1
          %s452 = scalar_lea.vmem %s0, %s451
        $region20: #{diffusion_head_forward.8} parent=15 // pred_fallthru
          _
        // Predicated region
        $region21: #{diffusion_head_forward.8} parent=15 // pred_check
          %p453 = pneg %p84
        $region22: #{diffusion_head_forward.8} parent=15 // pred_check_branch
          %455 = sbr.rel (%p453) target = $region24
        $region23: #{diffusion_head_forward.8} parent=15 // pred_region
          %p456 = scmp.lt.s32.totalorder %s33, 1
          %s457 = scalar_select %p456, %s33, 1
          %s458 = smul.addr %s457, 2
          %s459 = smul.addr %s458, 8
          %s460 = scalar_lea.vmem %s1, %s459
        $region24: #{diffusion_head_forward.8} parent=15 // pred_fallthru
          _
        // Predicated region
        $region25: #{diffusion_head_forward.8} parent=15 // pred_check
          %p461 = pneg %p110
        $region26: #{diffusion_head_forward.8} parent=15 // pred_check_branch
          %463 = sbr.rel (%p461) target = $region28
        $region27: #{diffusion_head_forward.8} parent=15 // pred_region
          %p464 = scmp.lt.s32.totalorder %s34, 3
          %s465 = scalar_select %p464, %s34, 3
          %s466 = smul.addr %s465, 4
          %s467 = smul.addr %s466, 8
          %s468 = scalar_lea.vmem %s2, %s467
        $region28: #{diffusion_head_forward.8} parent=15 // pred_fallthru
          _
        // Predicated region
        $region29: #{diffusion_head_forward.8} parent=15 // pred_check
          %p469 = pneg %p136
        $region30: #{diffusion_head_forward.8} parent=15 // pred_check_branch
          %471 = sbr.rel (%p469) target = $region32
        $region31: #{diffusion_head_forward.8} parent=15 // pred_region
          %p472 = scmp.lt.s32.totalorder %s34, 3
          %s473 = scalar_select %p472, %s34, 3
          %s474 = scalar_lea.vmem %s3, %s473
        $region32: #{diffusion_head_forward.8} parent=15 // pred_fallthru
          _
        // Predicated region
        $region33: #{diffusion_head_forward.8} parent=15 // pred_check
          %p475 = pneg %p162
        $region34: #{diffusion_head_forward.8} parent=15 // pred_check_branch
          %477 = sbr.rel (%p475) target = $region36
        $region35: #{diffusion_head_forward.8} parent=15 // pred_region
          %p478 = scmp.lt.s32.totalorder %s34, 3
          %s479 = scalar_select %p478, %s34, 3
          %s480 = smul.addr %s479, 4
          %s481 = smul.addr %s480, 8
          %s482 = scalar_lea.vmem %s4, %s481
        $region36: #{diffusion_head_forward.8} parent=15 // pred_fallthru
          _
        // Predicated region
        $region37: #{diffusion_head_forward.8} parent=15 // pred_check
          %p483 = pneg %p188
        $region38: #{diffusion_head_forward.8} parent=15 // pred_check_branch
          %485 = sbr.rel (%p483) target = $region40
        $region39: #{diffusion_head_forward.8} parent=15 // pred_region
          %p486 = scmp.lt.s32.totalorder %s34, 3
          %s487 = scalar_select %p486, %s34, 3
          %s488 = scalar_lea.vmem %s5, %s487
        $region40: #{diffusion_head_forward.8} parent=15 // pred_fallthru
          _
        // Predicated region
        $region41: #{diffusion_head_forward.8} parent=15 // pred_check
          %p489 = pneg %p214
        $region42: #{diffusion_head_forward.8} parent=15 // pred_check_branch
          %491 = sbr.rel (%p489) target = $region44
        $region43: #{diffusion_head_forward.8} parent=15 // pred_region
          %p492 = scmp.lt.s32.totalorder %s34, 3
          %s493 = scalar_select %p492, %s34, 3
          %s494 = smul.addr %s493, 4
          %s495 = smul.addr %s494, 8
          %s496 = scalar_lea.vmem %s6, %s495
        $region44: #{diffusion_head_forward.8} parent=15 // pred_fallthru
          _
        // Predicated region
        $region45: #{diffusion_head_forward.8} parent=15 // pred_check
          %p497 = pneg %p240
        $region46: #{diffusion_head_forward.8} parent=15 // pred_check_branch
          %499 = sbr.rel (%p497) target = $region48
        $region47: #{diffusion_head_forward.8} parent=15 // pred_region
          %p500 = scmp.lt.s32.totalorder %s34, 3
          %s501 = scalar_select %p500, %s34, 3
          %s502 = scalar_lea.vmem %s7, %s501
        $region48: #{diffusion_head_forward.8} parent=15 // pred_fallthru
          _
        // Predicated region
        $region49: #{diffusion_head_forward.8} parent=15 // pred_check
          %p503 = pneg %p266
        $region50: #{diffusion_head_forward.8} parent=15 // pred_check_branch
          %505 = sbr.rel (%p503) target = $region52
        $region51: #{diffusion_head_forward.8} parent=15 // pred_region
          %s506 = sand.u32 %s256, 1
          %s507 = scalar_lea.sflag [#allocation4], %s506
          %s508 = sand.u32 %s256, 1
          %s509 = smul.addr %s508, 32
          %s510 = scalar_lea.vmem [#allocation3], %s509
          %512 = vsyncadd %s507, 0
          %s513 = smul.addr %s34, 4
          %s514 = smul.addr %s513, 8
          %s515 = scalar_lea.hbm %s8, %s514
          %s516 = sshll.u32 %s515, 4
          %s517 = int_to_ptr.hbm [resolvable:$true] %s516
          %s518 = sshll.u32 %s510, 4
          %s519 = int_to_ptr.vmem [resolvable:$true] %s518
          %524 = dma.hbm_to_vmem [thread:$0]  %s517, 512, %s519, %s507, 128, 128, 8
        $region52: #{diffusion_head_forward.8} parent=15 // pred_fallthru
          _
        // Predicated region
        $region53: #{diffusion_head_forward.8} parent=15 // pred_check
          %p525 = pneg %p292
        $region54: #{diffusion_head_forward.8} parent=15 // pred_check_branch
          %527 = sbr.rel (%p525) target = $region56
        $region55: #{diffusion_head_forward.8} parent=15 // pred_region
          %p528 = scmp.lt.s32.totalorder %s34, 3
          %s529 = scalar_select %p528, %s34, 3
          %s530 = scalar_lea.vmem %s9, %s529
        $region56: #{diffusion_head_forward.8} parent=15 // pred_fallthru
          _
        // Predicated region
        $region57: #{diffusion_head_forward.8} parent=15 // pred_check
          %p531 = pneg %p318
        $region58: #{diffusion_head_forward.8} parent=15 // pred_check_branch
          %533 = sbr.rel (%p531) target = $region60
        $region59: #{diffusion_head_forward.8} parent=15 // pred_region
          %s534 = sand.u32 %s308, 1
          %s535 = scalar_lea.sflag [#allocation6], %s534
          %s536 = sand.u32 %s308, 1
          %s537 = smul.addr %s536, 32
          %s538 = scalar_lea.vmem [#allocation5], %s537
          %540 = vsyncadd %s535, 0
          %s541 = smul.addr %s34, 4
          %s542 = smul.addr %s541, 8
          %s543 = scalar_lea.hbm %s10, %s542
          %s544 = sshll.u32 %s543, 4
          %s545 = int_to_ptr.hbm [resolvable:$true] %s544
          %s546 = sshll.u32 %s538, 4
          %s547 = int_to_ptr.vmem [resolvable:$true] %s546
          %552 = dma.hbm_to_vmem [thread:$0]  %s545, 512, %s547, %s535, 128, 128, 8
        $region60: #{diffusion_head_forward.8} parent=15 // pred_fallthru
          _
        // Predicated region
        $region61: #{diffusion_head_forward.8} parent=15 // pred_check
          %p553 = pneg %p344
        $region62: #{diffusion_head_forward.8} parent=15 // pred_check_branch
          %555 = sbr.rel (%p553) target = $region64
        $region63: #{diffusion_head_forward.8} parent=15 // pred_region
          %p556 = scmp.lt.s32.totalorder %s34, 3
          %s557 = scalar_select %p556, %s34, 3
          %s558 = scalar_lea.vmem %s11, %s557
        $region64: #{diffusion_head_forward.8} parent=15 // pred_fallthru
          _
        // Predicated region
        $region65: #{diffusion_head_forward.8} parent=15 // pred_check
          %p559 = pneg %p370
        $region66: #{diffusion_head_forward.8} parent=15 // pred_check_branch
          %561 = sbr.rel (%p559) target = $region68
        $region67: #{diffusion_head_forward.8} parent=15 // pred_region
          %p562 = scmp.lt.s32.totalorder %s34, 3
          %s563 = scalar_select %p562, %s34, 3
          %s564 = smul.addr %s563, 8
          %s565 = smul.addr %s564, 8
          %s566 = scalar_lea.vmem %s12, %s565
        $region68: #{diffusion_head_forward.8} parent=15 // pred_fallthru
          _
        // Predicated region
        $region69: #{diffusion_head_forward.8} parent=15 // pred_check
          %p567 = pneg %p396
        $region70: #{diffusion_head_forward.8} parent=15 // pred_check_branch
          %569 = sbr.rel (%p567) target = $region72
        $region71: #{diffusion_head_forward.8} parent=15 // pred_region
          %p570 = scmp.lt.s32.totalorder %s34, 3
          %s571 = scalar_select %p570, %s34, 3
          %s572 = scalar_lea.vmem %s13, %s571
        $region72: #{diffusion_head_forward.8} parent=15 // pred_fallthru
          _
      $region16: #{diffusion_head_forward.8} parent=5 // pred_fallthru
        _
      %p573 = scmp.le.s32.totalorder 1, %s26
      %p574 = scmp.lt.s32.totalorder %s26, 9
      %p575 = pnand %p573, %p574
      %p576 = pneg %p575
      // Predicated region
      $region73: #{diffusion_head_forward.8} parent=5 // pred_check
        _
      $region74: #{diffusion_head_forward.8} parent=5 // pred_check_branch
        %578 = sbr.rel (%p575) target = $region76
      $region75: #{diffusion_head_forward.8} parent=5 // pred_region
        %s579 = ssub.s32 %s26, 1
        %s580 = sand.u32 %s259, 1
        %s581 = scalar_lea.sflag [#allocation4], %s580
        %s582 = sand.u32 %s259, 1
        %s583 = smul.addr %s582, 32
        %s584 = scalar_lea.vmem [#allocation3], %s583
        // Predicated region
        $region77: #{diffusion_head_forward.8} parent=75 // pred_check
          %p585 = pneg %p272
        $region78: #{diffusion_head_forward.8} parent=75 // pred_check_branch
          %587 = sbr.rel (%p585) target = $region80
        $region79: #{diffusion_head_forward.8} parent=75 // pred_region
          %589 = dma.done %s581, 512
        $region80: #{diffusion_head_forward.8} parent=75 // pred_fallthru
          _
        %s590 = sand.u32 %s311, 1
        %s591 = scalar_lea.sflag [#allocation6], %s590
        %s592 = sand.u32 %s311, 1
        %s593 = smul.addr %s592, 32
        %s594 = scalar_lea.vmem [#allocation5], %s593
        // Predicated region
        $region81: #{diffusion_head_forward.8} parent=75 // pred_check
          %p595 = pneg %p324
        $region82: #{diffusion_head_forward.8} parent=75 // pred_check_branch
          %597 = sbr.rel (%p595) target = $region84
        $region83: #{diffusion_head_forward.8} parent=75 // pred_region
          %599 = dma.done %s591, 512
        $region84: #{diffusion_head_forward.8} parent=75 // pred_fallthru
          _
        %p600 = scmp.lt.s32.totalorder %s35, 1
        %s601 = scalar_select %p600, %s35, 1
        %s602 = scalar_lea.vmem %s0, %s601
        %p603 = pneg %p64
        %p604 = pneg %p61
        %p605 = scmp.lt.s32.totalorder %s35, 1
        %s606 = scalar_select %p605, %s35, 1
        %s607 = smul.addr %s606, 2
        %s608 = smul.addr %s607, 8
        %s609 = scalar_lea.vmem %s1, %s608
        %p610 = pneg %p90
        %p611 = pneg %p87
        %p612 = scmp.lt.s32.totalorder %s36, 3
        %s613 = scalar_select %p612, %s36, 3
        %s614 = smul.addr %s613, 4
        %s615 = smul.addr %s614, 8
        %s616 = scalar_lea.vmem %s2, %s615
        %p617 = pneg %p116
        %p618 = pneg %p113
        %p619 = scmp.lt.s32.totalorder %s36, 3
        %s620 = scalar_select %p619, %s36, 3
        %s621 = scalar_lea.vmem %s3, %s620
        %p622 = pneg %p142
        %p623 = pneg %p139
        %p624 = scmp.lt.s32.totalorder %s36, 3
        %s625 = scalar_select %p624, %s36, 3
        %s626 = smul.addr %s625, 4
        %s627 = smul.addr %s626, 8
        %s628 = scalar_lea.vmem %s4, %s627
        %p629 = pneg %p168
        %p630 = pneg %p165
        %p631 = scmp.lt.s32.totalorder %s36, 3
        %s632 = scalar_select %p631, %s36, 3
        %s633 = scalar_lea.vmem %s5, %s632
        %p634 = pneg %p194
        %p635 = pneg %p191
        %p636 = scmp.lt.s32.totalorder %s36, 3
        %s637 = scalar_select %p636, %s36, 3
        %s638 = smul.addr %s637, 4
        %s639 = smul.addr %s638, 8
        %s640 = scalar_lea.vmem %s6, %s639
        %p641 = pneg %p220
        %p642 = pneg %p217
        %p643 = scmp.lt.s32.totalorder %s36, 3
        %s644 = scalar_select %p643, %s36, 3
        %s645 = scalar_lea.vmem %s7, %s644
        %p646 = pneg %p246
        %p647 = pneg %p243
        %s648 = sand.u32 %s259, 1
        %s649 = scalar_lea.sflag [#allocation4], %s648
        %s650 = sand.u32 %s259, 1
        %s651 = smul.addr %s650, 32
        %s652 = scalar_lea.vmem [#allocation3], %s651
        %p653 = pneg %p272
        %p654 = pneg %p269
        %p655 = scmp.lt.s32.totalorder %s36, 3
        %s656 = scalar_select %p655, %s36, 3
        %s657 = scalar_lea.vmem %s9, %s656
        %p658 = pneg %p298
        %p659 = pneg %p295
        %s660 = sand.u32 %s311, 1
        %s661 = scalar_lea.sflag [#allocation6], %s660
        %s662 = sand.u32 %s311, 1
        %s663 = smul.addr %s662, 32
        %s664 = scalar_lea.vmem [#allocation5], %s663
        %p665 = pneg %p324
        %p666 = pneg %p321
        %p667 = scmp.lt.s32.totalorder %s36, 3
        %s668 = scalar_select %p667, %s36, 3
        %s669 = scalar_lea.vmem %s11, %s668
        %p670 = pneg %p350
        %p671 = pneg %p347
        %p672 = scmp.lt.s32.totalorder %s36, 3
        %s673 = scalar_select %p672, %s36, 3
        %s674 = smul.addr %s673, 8
        %s675 = smul.addr %s674, 8
        %s676 = scalar_lea.vmem %s12, %s675
        %p677 = pneg %p376
        %p678 = pneg %p373
        %p679 = scmp.lt.s32.totalorder %s36, 3
        %s680 = scalar_select %p679, %s36, 3
        %s681 = scalar_lea.vmem %s13, %s680
        %p682 = pneg %p402
        %p683 = pneg %p399
        %p684 = pneg %p428
        %p685 = pneg %p425
        %p686 = scmp.lt.s32.totalorder %s35, 1
        %s687 = scalar_select %p686, %s35, 1
        %s688 = smul.addr %s687, 2
        %s689 = smul.addr %s688, 8
        %s690 = scalar_lea.vmem %s14, %s689
        %p691 = scmp.lt.s32.totalorder %s35, 1
        %s692 = scalar_select %p691, %s35, 1
        %s693 = scalar_lea.vmem %s0, %s692
        %p694 = scmp.lt.s32.totalorder %s35, 1
        %s695 = scalar_select %p694, %s35, 1
        %s696 = smul.addr %s695, 2
        %s697 = smul.addr %s696, 8
        %s698 = scalar_lea.vmem %s1, %s697
        %p699 = scmp.lt.s32.totalorder %s36, 3
        %s700 = scalar_select %p699, %s36, 3
        %s701 = smul.addr %s700, 4
        %s702 = smul.addr %s701, 8
        %s703 = scalar_lea.vmem %s2, %s702
        %p704 = scmp.lt.s32.totalorder %s36, 3
        %s705 = scalar_select %p704, %s36, 3
        %s706 = scalar_lea.vmem %s3, %s705
        %p707 = scmp.lt.s32.totalorder %s36, 3
        %s708 = scalar_select %p707, %s36, 3
        %s709 = smul.addr %s708, 4
        %s710 = smul.addr %s709, 8
        %s711 = scalar_lea.vmem %s4, %s710
        %p712 = scmp.lt.s32.totalorder %s36, 3
        %s713 = scalar_select %p712, %s36, 3
        %s714 = scalar_lea.vmem %s5, %s713
        %p715 = scmp.lt.s32.totalorder %s36, 3
        %s716 = scalar_select %p715, %s36, 3
        %s717 = smul.addr %s716, 4
        %s718 = smul.addr %s717, 8
        %s719 = scalar_lea.vmem %s6, %s718
        %p720 = scmp.lt.s32.totalorder %s36, 3
        %s721 = scalar_select %p720, %s36, 3
        %s722 = scalar_lea.vmem %s7, %s721
        %p723 = scmp.lt.s32.totalorder %s36, 3
        %s724 = scalar_select %p723, %s36, 3
        %s725 = scalar_lea.vmem %s9, %s724
        %p726 = scmp.lt.s32.totalorder %s36, 3
        %s727 = scalar_select %p726, %s36, 3
        %s728 = scalar_lea.vmem %s11, %s727
        %p729 = scmp.lt.s32.totalorder %s36, 3
        %s730 = scalar_select %p729, %s36, 3
        %s731 = smul.addr %s730, 8
        %s732 = smul.addr %s731, 8
        %s733 = scalar_lea.vmem %s12, %s732
        %p734 = scmp.lt.s32.totalorder %s36, 3
        %s735 = scalar_select %p734, %s36, 3
        %s736 = scalar_lea.vmem %s13, %s735
        %p737 = scmp.lt.s32.totalorder %s35, 1
        %s738 = scalar_select %p737, %s35, 1
        %s739 = smul.addr %s738, 2
        %s740 = smul.addr %s739, 8
        %s741 = scalar_lea.vmem %s14, %s740
        %p742 = scmp.eq.s32.totalorder %s36, 0
        // Predicated region
        $region85: #{diffusion_head_forward.8} parent=75 // pred_check
          %p743 = pneg %p742
        $region86: #{diffusion_head_forward.8} parent=75 // pred_check_branch
          %745 = sbr.rel (%p743) target = $region88
        $region87: #{diffusion_head_forward.8} parent=75 // pred_region
          %v746 = vld [vmem:[%s698] sm:$0xff]
          %v747 = vld [vmem:[%s698 + $0x8] sm:$0xf]
          %vm748 = vcmask 261120
          %749 = vst.msk [vmem:[#allocation2] sm:$0xff] %vm748, %v746
          %vm750 = vcmask 257024
          %751 = vst.msk [vmem:[#allocation2 + $0x8] sm:$0xf] %vm750, %v747
        $region88: #{diffusion_head_forward.8} parent=75 // pred_fallthru
          _
        %v752 = vld [vmem:[#allocation2] sm:$0xff]
        %v753 = vld [vmem:[#allocation2 + $0x8] sm:$0xf]
        %v754 = vld [vmem:[%s693] sm:$0x1]
        %v755 = vld [vmem:[%s703] sm:$0xff]
        %v756 = vld [vmem:[%s703 + $0x8] sm:$0xff]
        %v757 = vld [vmem:[%s703 + $0x10] sm:$0xff]
        %v758 = vld [vmem:[%s703 + $0x18] sm:$0xff]
        %v759 = vld [vmem:[%s706] sm:$0x1]
        %vm760 = vcmask 261120
        %v762 = vsel %vm760, %v754, 0
        %764 = vmatpush.msra.mxu0 0.0
        %765 = vmatpush.msra.mxu0 0.0
        %766 = vmatpush.msra.mxu0 0.0
        %767 = vmatpush.msra.mxu0 0.0
        %768 = vmatpush.msra.mxu0 0.0
        %769 = vmatpush.msra.mxu0 0.0
        %770 = vmatpush.msra.mxu0 0.0
        %771 = vmatpush.msra.mxu0 0.0
        %772 = vmatpush.msra.mxu0 0.0
        %773 = vmatpush.msra.mxu0 0.0
        %774 = vmatpush.msra.mxu0 0.0
        %775 = vmatpush.msra.mxu0 0.0
        %776 = vmatpush.msra.mxu0 %v758
        %777 = vmatpush.msra.mxu0 %v757
        %778 = vmatpush.msra.mxu0 %v756
        %779 = vmatpush.msra.mxu0 %v755
        %780 = vmatmul.f32.gmra.mxu0 %v762
        %v781 = vpop.f32.mrf.mxu0
        %v782 = vadd.f32 %v759, %v781
        %783 = vdwg.mxu0
        %v784 = vsel %vm760, %v752, 0.0
        %785 = vadd.xlane.f32.xlu0 %v784
        %v786 = vpop.xlane.xlu0 %785
        %vm787 = vcmask 257024
        %v788 = vsel %vm787, %v753, 0.0
        %789 = vadd.xlane.f32.xlu0 %v788
        %v790 = vpop.xlane.xlu0 %789
        %v791 = vrcp.pop 32.0
        %v792 = vmul.f32 32.0, %v791
        %v793 = vsub.f32 1.0, %v792
        %v794 = vmul.f32 %v791, %v793
        %v795 = vadd.f32 %v791, %v794
        %vm796 = vweird.f32 %v791
        %v797 = vsel %vm796, %v791, %v795
        %v798 = vmul.f32 %v786, %v797
        %v799 = vmul.f32 %v790, %v797
        %v800 = vsub.f32 %v752, %v798
        %v801 = vsub.f32 %v753, %v799
        %v802 = vmul.f32 %v800, %v800
        %v803 = vmul.f32 %v801, %v801
        %v804 = vsel %vm760, %v802, 0.0
        %805 = vadd.xlane.f32.xlu0 %v804
        %v806 = vpop.xlane.xlu0 %805
        %v807 = vsel %vm787, %v803, 0.0
        %808 = vadd.xlane.f32.xlu0 %v807
        %v809 = vpop.xlane.xlu0 %808
        %v810 = vmul.f32 %v806, %v797
        %v811 = vmul.f32 %v809, %v797
        %v812 = vadd.f32 %v810, 1e-05
        %v813 = vadd.f32 %v811, 1e-05
        %v814 = vrsqrt.pop %v812
        %v815 = vmul.f32 %v814, %v812
        %v816 = vmul.f32 %v815, %v814
        %v817 = vmul.f32 0.5, %v816
        %v818 = vsub.f32 1.5, %v817
        %v819 = vmul.f32 %v814, %v818
        %vm820 = vweird.f32 %v812
        %vm821 = vweird.f32 %v814
        %vm822 = vmor %vm820, %vm821
        %v823 = vsel %vm822, %v814, %v819
        %v824 = vrsqrt.pop %v813
        %v825 = vmul.f32 %v824, %v813
        %v826 = vmul.f32 %v825, %v824
        %v827 = vmul.f32 0.5, %v826
        %v828 = vsub.f32 1.5, %v827
        %v829 = vmul.f32 %v824, %v828
        %vm830 = vweird.f32 %v813
        %vm831 = vweird.f32 %v824
        %vm832 = vmor %vm830, %vm831
        %v833 = vsel %vm832, %v824, %v829
        %v834 = vmul.f32 %v800, %v823
        %v835 = vmul.f32 %v801, %v833
        %v836 = vadd.f32 %v782, 1.0
        %v837 = vperm.slane %v836, 0
        %v838 = vmul.f32 %v834, %v837
        %v839 = vmul.f32 %v835, %v837
        %v840 = vperm.slane %v782, 0
        %842 = vrot.lane.b32.xlu0 %v840, 96
        %v843 = vpop.permute.xlu0 %842
        %v845 = vadd.f32 %v838, %v843
        %v846 = vadd.f32 %v839, %v843
        %v847 = vld [vmem:[%s711] sm:$0xff]
        %v848 = vld [vmem:[%s711 + $0x8] sm:$0xff]
        %v849 = vld [vmem:[%s711 + $0x10] sm:$0xff]
        %v850 = vld [vmem:[%s711 + $0x18] sm:$0xff]
        %v851 = vld [vmem:[%s714] sm:$0x1]
        %v853 = vperm.slane %v851, 0
        %v856 = vsel %vm760, %v845, 0
        %v859 = vsel %vm760, %v846, 0
        %861 = vmatpush.msra.mxu0 0.0
        %862 = vmatpush.msra.mxu0 0.0
        %863 = vmatpush.msra.mxu0 0.0
        %864 = vmatpush.msra.mxu0 0.0
        %865 = vmatpush.msra.mxu0 0.0
        %866 = vmatpush.msra.mxu0 0.0
        %867 = vmatpush.msra.mxu0 0.0
        %868 = vmatpush.msra.mxu0 0.0
        %869 = vmatpush.msra.mxu0 0.0
        %870 = vmatpush.msra.mxu0 0.0
        %871 = vmatpush.msra.mxu0 0.0
        %872 = vmatpush.msra.mxu0 0.0
        %873 = vmatpush.msra.mxu0 %v850
        %874 = vmatpush.msra.mxu0 %v849
        %875 = vmatpush.msra.mxu0 %v848
        %876 = vmatpush.msra.mxu0 %v847
        %877 = vmatmul.f32.gmra.mxu0 %v856
        %v878 = vpop.f32.mrf.mxu0
        %v879 = vadd.f32 %v853, %v878
        %880 = vmatmul.f32.gmra.mxu0 %v859
        %v881 = vpop.f32.mrf.mxu0
        %v882 = vadd.f32 %v853, %v881
        %883 = vdwg.mxu0
        %886 = vrot.lane.b32.xlu0 %v879, 96
        %v887 = vpop.permute.xlu0 %886
        %888 = vrot.lane.b32.xlu0 %v882, 96
        %v889 = vpop.permute.xlu0 %888
        %vm890 = vcmask 64512
        %v891 = vsel %vm890, %v879, 0
        %v893 = vsel %vm890, %v882, 0
        %v895 = vsel %vm890, %v887, 0
        %v897 = vsel %vm890, %v889, 0
        %899 = vmatpush.xpose.msra.mxu0 0.0
        %900 = vmatpush.xpose.msra.mxu0 0.0
        %901 = vmatpush.xpose.msra.mxu0 0.0
        %902 = vmatpush.xpose.msra.mxu0 0.0
        %903 = vmatpush.xpose.msra.mxu0 0.0
        %904 = vmatpush.xpose.msra.mxu0 0.0
        %905 = vmatpush.xpose.msra.mxu0 0.0
        %906 = vmatpush.xpose.msra.mxu0 0.0
        %907 = vmatpush.xpose.msra.mxu0 0.0
        %908 = vmatpush.xpose.msra.mxu0 0.0
        %909 = vmatpush.xpose.msra.mxu0 0.0
        %910 = vmatpush.xpose.msra.mxu0 0.0
        %911 = vmatpush.xpose.msra.mxu0 0.0
        %912 = vmatpush.xpose.msra.mxu0 0.0
        %913 = vmatpush.xpose.msra.mxu0 %v897
        %914 = vmatpush.xpose.msra.mxu0 %v895
        %915 = vmatmul.f32.gmra.mxu0 %v891
        %v916 = vpop.f32.mrf.mxu0
        %v917 = vadd.f32 0.0, %v916
        %918 = vmatmul.f32.gmra.mxu0 %v893
        %v919 = vpop.f32.mrf.mxu0
        %v920 = vadd.f32 0.0, %v919
        %921 = vdwg.mxu0
        %v922 = vmul.f32 %v917, 0.35355338
        %v923 = vmul.f32 %v920, 0.35355338
        %vm924 = vcmask 97280
        %v925 = vsel %vm924, %v922, -inf
        %926 = vmax.xlane.f32.xlu0 %v925
        %v927 = vpop.xlane.xlu0 %926
        %vm928 = vcmask 93184
        %v929 = vsel %vm928, %v923, -inf
        %930 = vmax.xlane.f32.xlu0 %v929
        %v931 = vpop.xlane.xlu0 %930
        %v932 = vsub.f32 %v922, %v927
        %v933 = vsub.f32 %v923, %v931
        %v934 = vmul.f32 %v932, 1.442695
        %v935 = vpow.pop %v934
        %v936 = vmul.f32 %v933, 1.442695
        %v937 = vpow.pop %v936
        %v938 = vsel %vm924, %v935, 0.0
        %939 = vadd.xlane.f32.xlu0 %v938
        %v940 = vpop.xlane.xlu0 %939
        %v941 = vsel %vm928, %v937, 0.0
        %942 = vadd.xlane.f32.xlu0 %v941
        %v943 = vpop.xlane.xlu0 %942
        %v944 = vrcp.pop %v940
        %v945 = vrcp.pop %v943
        %v946 = vmul.f32 %v935, %v944
        %v947 = vmul.f32 %v937, %v945
        %948 = vrot.lane.b32.xlu0 %v879, 64
        %v949 = vpop.permute.xlu0 %948
        %950 = vrot.lane.b32.xlu0 %v882, 64
        %v951 = vpop.permute.xlu0 %950
        %v954 = vsel %vm924, %v946, 0
        %v957 = vsel %vm924, %v947, 0
        %vm959 = vcmask 1043456
        %v960 = vsel %vm959, %v951, 0
        %962 = vmatpush.msra.mxu0 0.0
        %963 = vmatpush.msra.mxu0 0.0
        %964 = vmatpush.msra.mxu0 0.0
        %965 = vmatpush.msra.mxu0 0.0
        %966 = vmatpush.msra.mxu0 0.0
        %967 = vmatpush.msra.mxu0 0.0
        %968 = vmatpush.msra.mxu0 0.0
        %969 = vmatpush.msra.mxu0 0.0
        %970 = vmatpush.msra.mxu0 0.0
        %971 = vmatpush.msra.mxu0 0.0
        %972 = vmatpush.msra.mxu0 0.0
        %973 = vmatpush.msra.mxu0 0.0
        %974 = vmatpush.msra.mxu0 0.0
        %975 = vmatpush.msra.mxu0 0.0
        %976 = vmatpush.msra.mxu0 %v960
        %977 = vmatpush.msra.mxu0 %v949
        %978 = vmatmul.f32.gmra.mxu0 %v954
        %v979 = vpop.f32.mrf.mxu0
        %v980 = vadd.f32 0.0, %v979
        %981 = vmatmul.f32.gmra.mxu0 %v957
        %v982 = vpop.f32.mrf.mxu0
        %v983 = vadd.f32 0.0, %v982
        %984 = vdwg.mxu0
        %985 = vrot.lane.b32.xlu0 %v879, 120
        %v986 = vpop.permute.xlu0 %985
        %987 = vrot.lane.b32.xlu0 %v882, 120
        %v988 = vpop.permute.xlu0 %987
        %989 = vrot.lane.b32.xlu0 %v879, 88
        %v990 = vpop.permute.xlu0 %989
        %991 = vrot.lane.b32.xlu0 %v882, 88
        %v992 = vpop.permute.xlu0 %991
        %v993 = vsel %vm890, %v986, 0
        %v995 = vsel %vm890, %v988, 0
        %v997 = vsel %vm890, %v990, 0
        %v999 = vsel %vm890, %v992, 0
        %1001 = vmatpush.xpose.msra.mxu0 0.0
        %1002 = vmatpush.xpose.msra.mxu0 0.0
        %1003 = vmatpush.xpose.msra.mxu0 0.0
        %1004 = vmatpush.xpose.msra.mxu0 0.0
        %1005 = vmatpush.xpose.msra.mxu0 0.0
        %1006 = vmatpush.xpose.msra.mxu0 0.0
        %1007 = vmatpush.xpose.msra.mxu0 0.0
        %1008 = vmatpush.xpose.msra.mxu0 0.0
        %1009 = vmatpush.xpose.msra.mxu0 0.0
        %1010 = vmatpush.xpose.msra.mxu0 0.0
        %1011 = vmatpush.xpose.msra.mxu0 0.0
        %1012 = vmatpush.xpose.msra.mxu0 0.0
        %1013 = vmatpush.xpose.msra.mxu0 0.0
        %1014 = vmatpush.xpose.msra.mxu0 0.0
        %1015 = vmatpush.xpose.msra.mxu0 %v999
        %1016 = vmatpush.xpose.msra.mxu0 %v997
        %1017 = vmatmul.f32.gmra.mxu0 %v993
        %v1018 = vpop.f32.mrf.mxu0
        %v1019 = vadd.f32 0.0, %v1018
        %1020 = vmatmul.f32.gmra.mxu0 %v995
        %v1021 = vpop.f32.mrf.mxu0
        %v1022 = vadd.f32 0.0, %v1021
        %1023 = vdwg.mxu0
        %v1024 = vmul.f32 %v1019, 0.35355338
        %v1025 = vmul.f32 %v1022, 0.35355338
        %v1026 = vsel %vm924, %v1024, -inf
        %1027 = vmax.xlane.f32.xlu0 %v1026
        %v1028 = vpop.xlane.xlu0 %1027
        %v1029 = vsel %vm928, %v1025, -inf
        %1030 = vmax.xlane.f32.xlu0 %v1029
        %v1031 = vpop.xlane.xlu0 %1030
        %v1032 = vsub.f32 %v1024, %v1028
        %v1033 = vsub.f32 %v1025, %v1031
        %v1034 = vmul.f32 %v1032, 1.442695
        %v1035 = vpow.pop %v1034
        %v1036 = vmul.f32 %v1033, 1.442695
        %v1037 = vpow.pop %v1036
        %v1038 = vsel %vm924, %v1035, 0.0
        %1039 = vadd.xlane.f32.xlu0 %v1038
        %v1040 = vpop.xlane.xlu0 %1039
        %v1041 = vsel %vm928, %v1037, 0.0
        %1042 = vadd.xlane.f32.xlu0 %v1041
        %v1043 = vpop.xlane.xlu0 %1042
        %v1044 = vrcp.pop %v1040
        %v1045 = vrcp.pop %v1043
        %v1046 = vmul.f32 %v1035, %v1044
        %v1047 = vmul.f32 %v1037, %v1045
        %1048 = vrot.lane.b32.xlu0 %v879, 56
        %v1049 = vpop.permute.xlu0 %1048
        %1050 = vrot.lane.b32.xlu0 %v882, 56
        %v1051 = vpop.permute.xlu0 %1050
        %v1054 = vsel %vm924, %v1046, 0
        %v1057 = vsel %vm924, %v1047, 0
        %v1059 = vsel %vm959, %v1051, 0
        %1061 = vmatpush.msra.mxu0 0.0
        %1062 = vmatpush.msra.mxu0 0.0
        %1063 = vmatpush.msra.mxu0 0.0
        %1064 = vmatpush.msra.mxu0 0.0
        %1065 = vmatpush.msra.mxu0 0.0
        %1066 = vmatpush.msra.mxu0 0.0
        %1067 = vmatpush.msra.mxu0 0.0
        %1068 = vmatpush.msra.mxu0 0.0
        %1069 = vmatpush.msra.mxu0 0.0
        %1070 = vmatpush.msra.mxu0 0.0
        %1071 = vmatpush.msra.mxu0 0.0
        %1072 = vmatpush.msra.mxu0 0.0
        %1073 = vmatpush.msra.mxu0 0.0
        %1074 = vmatpush.msra.mxu0 0.0
        %1075 = vmatpush.msra.mxu0 %v1059
        %1076 = vmatpush.msra.mxu0 %v1049
        %1077 = vmatmul.f32.gmra.mxu0 %v1054
        %v1078 = vpop.f32.mrf.mxu0
        %v1079 = vadd.f32 0.0, %v1078
        %1080 = vmatmul.f32.gmra.mxu0 %v1057
        %v1081 = vpop.f32.mrf.mxu0
        %v1082 = vadd.f32 0.0, %v1081
        %1083 = vdwg.mxu0
        %1084 = vrot.lane.b32.xlu0 %v879, 112
        %v1085 = vpop.permute.xlu0 %1084
        %1086 = vrot.lane.b32.xlu0 %v882, 112
        %v1087 = vpop.permute.xlu0 %1086
        %1088 = vrot.lane.b32.xlu0 %v879, 80
        %v1089 = vpop.permute.xlu0 %1088
        %1090 = vrot.lane.b32.xlu0 %v882, 80
        %v1091 = vpop.permute.xlu0 %1090
        %v1092 = vsel %vm890, %v1085, 0
        %v1094 = vsel %vm890, %v1087, 0
        %v1096 = vsel %vm890, %v1089, 0
        %v1098 = vsel %vm890, %v1091, 0
        %1100 = vmatpush.xpose.msra.mxu0 0.0
        %1101 = vmatpush.xpose.msra.mxu0 0.0
        %1102 = vmatpush.xpose.msra.mxu0 0.0
        %1103 = vmatpush.xpose.msra.mxu0 0.0
        %1104 = vmatpush.xpose.msra.mxu0 0.0
        %1105 = vmatpush.xpose.msra.mxu0 0.0
        %1106 = vmatpush.xpose.msra.mxu0 0.0
        %1107 = vmatpush.xpose.msra.mxu0 0.0
        %1108 = vmatpush.xpose.msra.mxu0 0.0
        %1109 = vmatpush.xpose.msra.mxu0 0.0
        %1110 = vmatpush.xpose.msra.mxu0 0.0
        %1111 = vmatpush.xpose.msra.mxu0 0.0
        %1112 = vmatpush.xpose.msra.mxu0 0.0
        %1113 = vmatpush.xpose.msra.mxu0 0.0
        %1114 = vmatpush.xpose.msra.mxu0 %v1098
        %1115 = vmatpush.xpose.msra.mxu0 %v1096
        %1116 = vmatmul.f32.gmra.mxu0 %v1092
        %v1117 = vpop.f32.mrf.mxu0
        %v1118 = vadd.f32 0.0, %v1117
        %1119 = vmatmul.f32.gmra.mxu0 %v1094
        %v1120 = vpop.f32.mrf.mxu0
        %v1121 = vadd.f32 0.0, %v1120
        %1122 = vdwg.mxu0
        %v1123 = vmul.f32 %v1118, 0.35355338
        %v1124 = vmul.f32 %v1121, 0.35355338
        %v1125 = vsel %vm924, %v1123, -inf
        %1126 = vmax.xlane.f32.xlu0 %v1125
        %v1127 = vpop.xlane.xlu0 %1126
        %v1128 = vsel %vm928, %v1124, -inf
        %1129 = vmax.xlane.f32.xlu0 %v1128
        %v1130 = vpop.xlane.xlu0 %1129
        %v1131 = vsub.f32 %v1123, %v1127
        %v1132 = vsub.f32 %v1124, %v1130
        %v1133 = vmul.f32 %v1131, 1.442695
        %v1134 = vpow.pop %v1133
        %v1135 = vmul.f32 %v1132, 1.442695
        %v1136 = vpow.pop %v1135
        %v1137 = vsel %vm924, %v1134, 0.0
        %1138 = vadd.xlane.f32.xlu0 %v1137
        %v1139 = vpop.xlane.xlu0 %1138
        %v1140 = vsel %vm928, %v1136, 0.0
        %1141 = vadd.xlane.f32.xlu0 %v1140
        %v1142 = vpop.xlane.xlu0 %1141
        %v1143 = vrcp.pop %v1139
        %v1144 = vrcp.pop %v1142
        %v1145 = vmul.f32 %v1134, %v1143
        %v1146 = vmul.f32 %v1136, %v1144
        %1147 = vrot.lane.b32.xlu0 %v879, 48
        %v1148 = vpop.permute.xlu0 %1147
        %1149 = vrot.lane.b32.xlu0 %v882, 48
        %v1150 = vpop.permute.xlu0 %1149
        %v1153 = vsel %vm924, %v1145, 0
        %v1156 = vsel %vm924, %v1146, 0
        %v1158 = vsel %vm959, %v1150, 0
        %1160 = vmatpush.msra.mxu0 0.0
        %1161 = vmatpush.msra.mxu0 0.0
        %1162 = vmatpush.msra.mxu0 0.0
        %1163 = vmatpush.msra.mxu0 0.0
        %1164 = vmatpush.msra.mxu0 0.0
        %1165 = vmatpush.msra.mxu0 0.0
        %1166 = vmatpush.msra.mxu0 0.0
        %1167 = vmatpush.msra.mxu0 0.0
        %1168 = vmatpush.msra.mxu0 0.0
        %1169 = vmatpush.msra.mxu0 0.0
        %1170 = vmatpush.msra.mxu0 0.0
        %1171 = vmatpush.msra.mxu0 0.0
        %1172 = vmatpush.msra.mxu0 0.0
        %1173 = vmatpush.msra.mxu0 0.0
        %1174 = vmatpush.msra.mxu0 %v1158
        %1175 = vmatpush.msra.mxu0 %v1148
        %1176 = vmatmul.f32.gmra.mxu0 %v1153
        %v1177 = vpop.f32.mrf.mxu0
        %v1178 = vadd.f32 0.0, %v1177
        %1179 = vmatmul.f32.gmra.mxu0 %v1156
        %v1180 = vpop.f32.mrf.mxu0
        %v1181 = vadd.f32 0.0, %v1180
        %1182 = vdwg.mxu0
        %1183 = vrot.lane.b32.xlu0 %v879, 104
        %v1184 = vpop.permute.xlu0 %1183
        %1185 = vrot.lane.b32.xlu0 %v882, 104
        %v1186 = vpop.permute.xlu0 %1185
        %1187 = vrot.lane.b32.xlu0 %v879, 72
        %v1188 = vpop.permute.xlu0 %1187
        %1189 = vrot.lane.b32.xlu0 %v882, 72
        %v1190 = vpop.permute.xlu0 %1189
        %v1191 = vsel %vm890, %v1184, 0
        %v1193 = vsel %vm890, %v1186, 0
        %v1195 = vsel %vm890, %v1188, 0
        %v1197 = vsel %vm890, %v1190, 0
        %1199 = vmatpush.xpose.msra.mxu0 0.0
        %1200 = vmatpush.xpose.msra.mxu0 0.0
        %1201 = vmatpush.xpose.msra.mxu0 0.0
        %1202 = vmatpush.xpose.msra.mxu0 0.0
        %1203 = vmatpush.xpose.msra.mxu0 0.0
        %1204 = vmatpush.xpose.msra.mxu0 0.0
        %1205 = vmatpush.xpose.msra.mxu0 0.0
        %1206 = vmatpush.xpose.msra.mxu0 0.0
        %1207 = vmatpush.xpose.msra.mxu0 0.0
        %1208 = vmatpush.xpose.msra.mxu0 0.0
        %1209 = vmatpush.xpose.msra.mxu0 0.0
        %1210 = vmatpush.xpose.msra.mxu0 0.0
        %1211 = vmatpush.xpose.msra.mxu0 0.0
        %1212 = vmatpush.xpose.msra.mxu0 0.0
        %1213 = vmatpush.xpose.msra.mxu0 %v1197
        %1214 = vmatpush.xpose.msra.mxu0 %v1195
        %1215 = vmatmul.f32.gmra.mxu0 %v1191
        %v1216 = vpop.f32.mrf.mxu0
        %v1217 = vadd.f32 0.0, %v1216
        %1218 = vmatmul.f32.gmra.mxu0 %v1193
        %v1219 = vpop.f32.mrf.mxu0
        %v1220 = vadd.f32 0.0, %v1219
        %1221 = vdwg.mxu0
        %v1222 = vmul.f32 %v1217, 0.35355338
        %v1223 = vmul.f32 %v1220, 0.35355338
        %v1224 = vsel %vm924, %v1222, -inf
        %1225 = vmax.xlane.f32.xlu0 %v1224
        %v1226 = vpop.xlane.xlu0 %1225
        %v1227 = vsel %vm928, %v1223, -inf
        %1228 = vmax.xlane.f32.xlu0 %v1227
        %v1229 = vpop.xlane.xlu0 %1228
        %v1230 = vsub.f32 %v1222, %v1226
        %v1231 = vsub.f32 %v1223, %v1229
        %v1232 = vmul.f32 %v1230, 1.442695
        %v1233 = vpow.pop %v1232
        %v1234 = vmul.f32 %v1231, 1.442695
        %v1235 = vpow.pop %v1234
        %v1236 = vsel %vm924, %v1233, 0.0
        %1237 = vadd.xlane.f32.xlu0 %v1236
        %v1238 = vpop.xlane.xlu0 %1237
        %v1239 = vsel %vm928, %v1235, 0.0
        %1240 = vadd.xlane.f32.xlu0 %v1239
        %v1241 = vpop.xlane.xlu0 %1240
        %v1242 = vrcp.pop %v1238
        %v1243 = vrcp.pop %v1241
        %v1244 = vmul.f32 %v1233, %v1242
        %v1245 = vmul.f32 %v1235, %v1243
        %1246 = vrot.lane.b32.xlu0 %v879, 40
        %v1247 = vpop.permute.xlu0 %1246
        %1248 = vrot.lane.b32.xlu0 %v882, 40
        %v1249 = vpop.permute.xlu0 %1248
        %v1252 = vsel %vm924, %v1244, 0
        %v1255 = vsel %vm924, %v1245, 0
        %v1257 = vsel %vm959, %v1249, 0
        %1259 = vmatpush.msra.mxu0 0.0
        %1260 = vmatpush.msra.mxu0 0.0
        %1261 = vmatpush.msra.mxu0 0.0
        %1262 = vmatpush.msra.mxu0 0.0
        %1263 = vmatpush.msra.mxu0 0.0
        %1264 = vmatpush.msra.mxu0 0.0
        %1265 = vmatpush.msra.mxu0 0.0
        %1266 = vmatpush.msra.mxu0 0.0
        %1267 = vmatpush.msra.mxu0 0.0
        %1268 = vmatpush.msra.mxu0 0.0
        %1269 = vmatpush.msra.mxu0 0.0
        %1270 = vmatpush.msra.mxu0 0.0
        %1271 = vmatpush.msra.mxu0 0.0
        %1272 = vmatpush.msra.mxu0 0.0
        %1273 = vmatpush.msra.mxu0 %v1257
        %1274 = vmatpush.msra.mxu0 %v1247
        %1275 = vmatmul.f32.gmra.mxu0 %v1252
        %v1276 = vpop.f32.mrf.mxu0
        %v1277 = vadd.f32 0.0, %v1276
        %1278 = vmatmul.f32.gmra.mxu0 %v1255
        %v1279 = vpop.f32.mrf.mxu0
        %v1280 = vadd.f32 0.0, %v1279
        %1281 = vdwg.mxu0
        %1284 = vrot.lane.b32.xlu0 %v1079, 8
        %v1285 = vpop.permute.xlu0 %1284
        %1286 = vrot.lane.b32.xlu0 %v1082, 8
        %v1287 = vpop.permute.xlu0 %1286
        %1292 = vrot.lane.b32.xlu0 %v1178, 16
        %v1293 = vpop.permute.xlu0 %1292
        %1294 = vrot.lane.b32.xlu0 %v1181, 16
        %v1295 = vpop.permute.xlu0 %1294
        %1300 = vrot.lane.b32.xlu0 %v1277, 24
        %v1301 = vpop.permute.xlu0 %1300
        %1302 = vrot.lane.b32.xlu0 %v1280, 24
        %v1303 = vpop.permute.xlu0 %1302
        %v1306 = vsel %vm890, %v980, %v1285
        %v1307 = vsel %vm890, %v983, %v1287
        %vm1308 = vcmask 130048
        %v1309 = vsel %vm1308, %v1306, %v1293
        %v1310 = vsel %vm1308, %v1307, %v1295
        %vm1311 = vcmask 195584
        %v1312 = vsel %vm1311, %v1309, %v1301
        %v1313 = vsel %vm1311, %v1310, %v1303
        %v1314 = vld [vmem:[%s719] sm:$0xff]
        %v1315 = vld [vmem:[%s719 + $0x8] sm:$0xff]
        %v1316 = vld [vmem:[%s719 + $0x10] sm:$0xff]
        %v1317 = vld [vmem:[%s719 + $0x18] sm:$0xff]
        %v1319 = vsel %vm760, %v1312, 0
        %v1322 = vsel %vm760, %v1313, 0
        %1324 = vmatpush.msra.mxu0 0.0
        %1325 = vmatpush.msra.mxu0 0.0
        %1326 = vmatpush.msra.mxu0 0.0
        %1327 = vmatpush.msra.mxu0 0.0
        %1328 = vmatpush.msra.mxu0 0.0
        %1329 = vmatpush.msra.mxu0 0.0
        %1330 = vmatpush.msra.mxu0 0.0
        %1331 = vmatpush.msra.mxu0 0.0
        %1332 = vmatpush.msra.mxu0 0.0
        %1333 = vmatpush.msra.mxu0 0.0
        %1334 = vmatpush.msra.mxu0 0.0
        %1335 = vmatpush.msra.mxu0 0.0
        %1336 = vmatpush.msra.mxu0 %v1317
        %1337 = vmatpush.msra.mxu0 %v1316
        %1338 = vmatpush.msra.mxu0 %v1315
        %1339 = vmatpush.msra.mxu0 %v1314
        %1340 = vmatmul.f32.gmra.mxu0 %v1319
        %v1341 = vpop.f32.mrf.mxu0
        %v1342 = vadd.f32 0.0, %v1341
        %1343 = vmatmul.f32.gmra.mxu0 %v1322
        %v1344 = vpop.f32.mrf.mxu0
        %v1345 = vadd.f32 0.0, %v1344
        %1346 = vdwg.mxu0
        %v1347 = vadd.f32 %v752, %v1342
        %v1348 = vadd.f32 %v753, %v1345
        %v1349 = vld [vmem:[%s722] sm:$0x1]
        %v1351 = vperm.slane %v1349, 0
        %v1353 = vadd.f32 %v1347, %v1351
        %v1354 = vadd.f32 %v1348, %v1351
        %v1355 = vld [vmem:[%s584] sm:$0xff]
        %v1356 = vld [vmem:[%s584 + $0x8] sm:$0xff]
        %v1357 = vld [vmem:[%s584 + $0x10] sm:$0xff]
        %v1358 = vld [vmem:[%s584 + $0x18] sm:$0xff]
        %v1359 = vld [vmem:[%s725] sm:$0x1]
        %1360 = vmatpush.msra.mxu0 0.0
        %1361 = vmatpush.msra.mxu0 0.0
        %1362 = vmatpush.msra.mxu0 0.0
        %1363 = vmatpush.msra.mxu0 0.0
        %1364 = vmatpush.msra.mxu0 0.0
        %1365 = vmatpush.msra.mxu0 0.0
        %1366 = vmatpush.msra.mxu0 0.0
        %1367 = vmatpush.msra.mxu0 0.0
        %1368 = vmatpush.msra.mxu0 0.0
        %1369 = vmatpush.msra.mxu0 0.0
        %1370 = vmatpush.msra.mxu0 0.0
        %1371 = vmatpush.msra.mxu0 0.0
        %1372 = vmatpush.msra.mxu0 %v1358
        %1373 = vmatpush.msra.mxu0 %v1357
        %1374 = vmatpush.msra.mxu0 %v1356
        %1375 = vmatpush.msra.mxu0 %v1355
        %1376 = vmatmul.f32.gmra.mxu0 %v762
        %v1377 = vpop.f32.mrf.mxu0
        %v1378 = vadd.f32 %v1359, %v1377
        %1379 = vdwg.mxu0
        %v1380 = vsel %vm760, %v1353, 0.0
        %1381 = vadd.xlane.f32.xlu0 %v1380
        %v1382 = vpop.xlane.xlu0 %1381
        %v1383 = vsel %vm787, %v1354, 0.0
        %1384 = vadd.xlane.f32.xlu0 %v1383
        %v1385 = vpop.xlane.xlu0 %1384
        %v1386 = vmul.f32 %v1382, %v797
        %v1387 = vmul.f32 %v1385, %v797
        %v1388 = vsub.f32 %v1353, %v1386
        %v1389 = vsub.f32 %v1354, %v1387
        %v1390 = vmul.f32 %v1388, %v1388
        %v1391 = vmul.f32 %v1389, %v1389
        %v1392 = vsel %vm760, %v1390, 0.0
        %1393 = vadd.xlane.f32.xlu0 %v1392
        %v1394 = vpop.xlane.xlu0 %1393
        %v1395 = vsel %vm787, %v1391, 0.0
        %1396 = vadd.xlane.f32.xlu0 %v1395
        %v1397 = vpop.xlane.xlu0 %1396
        %v1398 = vmul.f32 %v1394, %v797
        %v1399 = vmul.f32 %v1397, %v797
        %v1400 = vadd.f32 %v1398, 1e-05
        %v1401 = vadd.f32 %v1399, 1e-05
        %v1402 = vrsqrt.pop %v1400
        %v1403 = vmul.f32 %v1402, %v1400
        %v1404 = vmul.f32 %v1403, %v1402
        %v1405 = vmul.f32 0.5, %v1404
        %v1406 = vsub.f32 1.5, %v1405
        %v1407 = vmul.f32 %v1402, %v1406
        %vm1408 = vweird.f32 %v1400
        %vm1409 = vweird.f32 %v1402
        %vm1410 = vmor %vm1408, %vm1409
        %v1411 = vsel %vm1410, %v1402, %v1407
        %v1412 = vrsqrt.pop %v1401
        %v1413 = vmul.f32 %v1412, %v1401
        %v1414 = vmul.f32 %v1413, %v1412
        %v1415 = vmul.f32 0.5, %v1414
        %v1416 = vsub.f32 1.5, %v1415
        %v1417 = vmul.f32 %v1412, %v1416
        %vm1418 = vweird.f32 %v1401
        %vm1419 = vweird.f32 %v1412
        %vm1420 = vmor %vm1418, %vm1419
        %v1421 = vsel %vm1420, %v1412, %v1417
        %v1422 = vmul.f32 %v1388, %v1411
        %v1423 = vmul.f32 %v1389, %v1421
        %v1424 = vadd.f32 %v1378, 1.0
        %v1425 = vperm.slane %v1424, 0
        %v1426 = vmul.f32 %v1422, %v1425
        %v1427 = vmul.f32 %v1423, %v1425
        %v1428 = vperm.slane %v1378, 0
        %1430 = vrot.lane.b32.xlu0 %v1428, 96
        %v1431 = vpop.permute.xlu0 %1430
        %v1433 = vadd.f32 %v1426, %v1431
        %v1434 = vadd.f32 %v1427, %v1431
        %v1435 = vld [vmem:[%s594] sm:$0xff]
        %v1436 = vld [vmem:[%s594 + $0x8] sm:$0xff]
        %v1437 = vld [vmem:[%s594 + $0x10] sm:$0xff]
        %v1438 = vld [vmem:[%s594 + $0x18] sm:$0xff]
        %v1439 = vld [vmem:[%s728] sm:$0x1]
        %v1441 = vperm.slane %v1439, 0
        %v1444 = vsel %vm760, %v1433, 0
        %v1447 = vsel %vm760, %v1434, 0
        %1449 = vmatpush.msra.mxu0 0.0
        %1450 = vmatpush.msra.mxu0 0.0
        %1451 = vmatpush.msra.mxu0 0.0
        %1452 = vmatpush.msra.mxu0 0.0
        %1453 = vmatpush.msra.mxu0 0.0
        %1454 = vmatpush.msra.mxu0 0.0
        %1455 = vmatpush.msra.mxu0 0.0
        %1456 = vmatpush.msra.mxu0 0.0
        %1457 = vmatpush.msra.mxu0 0.0
        %1458 = vmatpush.msra.mxu0 0.0
        %1459 = vmatpush.msra.mxu0 0.0
        %1460 = vmatpush.msra.mxu0 0.0
        %1461 = vmatpush.msra.mxu0 %v1438
        %1462 = vmatpush.msra.mxu0 %v1437
        %1463 = vmatpush.msra.mxu0 %v1436
        %1464 = vmatpush.msra.mxu0 %v1435
        %1465 = vmatmul.f32.gmra.mxu0 %v1444
        %v1466 = vpop.f32.mrf.mxu0
        %v1467 = vadd.f32 %v1441, %v1466
        %1468 = vmatmul.f32.gmra.mxu0 %v1447
        %v1469 = vpop.f32.mrf.mxu0
        %v1470 = vadd.f32 %v1441, %v1469
        %1471 = vdwg.mxu0
        %v1472 = vmax.f32 %v1467, 0.0
        %v1473 = vmax.f32 %v1470, 0.0
        %v1474 = vld [vmem:[%s733] sm:$0xff]
        %v1475 = vld [vmem:[%s733 + $0x8] sm:$0xff]
        %v1476 = vld [vmem:[%s733 + $0x10] sm:$0xff]
        %v1477 = vld [vmem:[%s733 + $0x18] sm:$0xff]
        %v1478 = vld [vmem:[%s733 + $0x20] sm:$0xff]
        %v1479 = vld [vmem:[%s733 + $0x28] sm:$0xff]
        %v1480 = vld [vmem:[%s733 + $0x30] sm:$0xff]
        %v1481 = vld [vmem:[%s733 + $0x38] sm:$0xff]
        %vm1482 = vcmask 523264
        %v1484 = vsel %vm1482, %v1472, 0
        %v1487 = vsel %vm1482, %v1473, 0
        %1489 = vmatpush.msra.mxu0 0.0
        %1490 = vmatpush.msra.mxu0 0.0
        %1491 = vmatpush.msra.mxu0 0.0
        %1492 = vmatpush.msra.mxu0 0.0
        %1493 = vmatpush.msra.mxu0 0.0
        %1494 = vmatpush.msra.mxu0 0.0
        %1495 = vmatpush.msra.mxu0 0.0
        %1496 = vmatpush.msra.mxu0 0.0
        %1497 = vmatpush.msra.mxu0 %v1481
        %1498 = vmatpush.msra.mxu0 %v1480
        %1499 = vmatpush.msra.mxu0 %v1479
        %1500 = vmatpush.msra.mxu0 %v1478
        %1501 = vmatpush.msra.mxu0 %v1477
        %1502 = vmatpush.msra.mxu0 %v1476
        %1503 = vmatpush.msra.mxu0 %v1475
        %1504 = vmatpush.msra.mxu0 %v1474
        %1505 = vmatmul.f32.gmra.mxu0 %v1484
        %v1506 = vpop.f32.mrf.mxu0
        %v1507 = vadd.f32 0.0, %v1506
        %1508 = vmatmul.f32.gmra.mxu0 %v1487
        %v1509 = vpop.f32.mrf.mxu0
        %v1510 = vadd.f32 0.0, %v1509
        %1511 = vdwg.mxu0
        %v1512 = vadd.f32 %v1353, %v1507
        %v1513 = vadd.f32 %v1354, %v1510
        %v1514 = vld [vmem:[%s736] sm:$0x1]
        %v1516 = vperm.slane %v1514, 0
        %v1518 = vadd.f32 %v1512, %v1516
        %v1519 = vadd.f32 %v1513, %v1516
        %1520 = vst.msk [vmem:[#allocation2] sm:$0xff] %vm760, %v1518
        %1521 = vst.msk [vmem:[#allocation2 + $0x8] sm:$0xf] %vm787, %v1519
        %p1522 = scmp.eq.s32.totalorder %s36, 3
        // Predicated region
        $region89: #{diffusion_head_forward.8} parent=75 // pred_check
          %p1523 = pneg %p1522
        $region90: #{diffusion_head_forward.8} parent=75 // pred_check_branch
          %1525 = sbr.rel (%p1523) target = $region92
        $region91: #{diffusion_head_forward.8} parent=75 // pred_region
          %1526 = vst.msk [vmem:[%s741] sm:$0xff] %vm760, %v1518
          %1527 = vst.msk [vmem:[%s741 + $0x8] sm:$0xf] %vm787, %v1519
        $region92: #{diffusion_head_forward.8} parent=75 // pred_fallthru
          _
        %p1528 = scmp.lt.s32.totalorder %s35, 1
        %s1529 = scalar_select %p1528, %s35, 1
        %s1530 = smul.addr %s1529, 2
        %s1531 = smul.addr %s1530, 8
        %s1532 = scalar_lea.vmem %s14, %s1531
        // Predicated region
        $region93: #{diffusion_head_forward.8} parent=75 // pred_check
          %p1533 = pneg %p425
        $region94: #{diffusion_head_forward.8} parent=75 // pred_check_branch
          %1535 = sbr.rel (%p1533) target = $region96
        $region95: #{diffusion_head_forward.8} parent=75 // pred_region
          _
        $region96: #{diffusion_head_forward.8} parent=75 // pred_fallthru
          _
      $region76: #{diffusion_head_forward.8} parent=5 // pred_fallthru
        _
      %p1536 = scmp.le.s32.totalorder 2, %s26
      // Predicated region
      $region97: #{diffusion_head_forward.8} parent=5 // pred_check
        %p1537 = pneg %p1536
      $region98: #{diffusion_head_forward.8} parent=5 // pred_check_branch
        %1539 = sbr.rel (%p1537) target = $region100
      $region99: #{diffusion_head_forward.8} parent=5 // pred_region
        %s1540 = ssub.s32 %s26, 2
        // Predicated region
        $region101: #{diffusion_head_forward.8} parent=99 // pred_check
          %p1541 = pneg %p431
        $region102: #{diffusion_head_forward.8} parent=99 // pred_check_branch
          %1543 = sbr.rel (%p1541) target = $region104
        $region103: #{diffusion_head_forward.8} parent=99 // pred_region
          %p1544 = scmp.lt.s32.totalorder %s37, 1
          %s1545 = scalar_select %p1544, %s37, 1
          %s1546 = smul.addr %s1545, 2
          %s1547 = smul.addr %s1546, 8
          %s1548 = scalar_lea.vmem %s14, %s1547
        $region104: #{diffusion_head_forward.8} parent=99 // pred_fallthru
          _
      $region100: #{diffusion_head_forward.8} parent=5 // pred_fallthru
        _
    $region6: #{diffusion_head_forward.8} parent=1 // loop_footer
      %s30 = sadd.s32 1, %s26
    $region7: #{diffusion_head_forward.8} parent=1 // loop_footer_branch
      %25 = sbr.rel target = $region3
    $region8: #{diffusion_head_forward.8} parent=1 // loop_exit
      _
    %1549 = vsyncpa [#allocation4], 1
    %s1550 = scalar_lea.sflag [#allocation4], 1
    %1551 = vsyncpa %s1550, 1
    %1552 = vsyncpa [#allocation6], 1
    %s1553 = scalar_lea.sflag [#allocation6], 1
    %1554 = vsyncpa %s1553, 1

// kernel: diffusion_head_forward.10
$region0: #{diffusion_head_forward.10}
  #allocation0 [shape = 'u32[]', space=smem, size = 0x4, offset = 0x4, fixed_abs, tag = 'smem constant byte address 0x4 - core index']
  #allocation1 [shape = 'u32[72,128]{1,0:T(1,128)}', space=vmem, size = 0x9000, scoped, tag = 'internal scratch']
  #allocation2 [shape = 'f32[12,32]{1,0:T(8,128)}', space=vmem, size = 0x2000, scoped, tag = 'scratch operand']
  %s0 = inlined_call_operand.vmem [shape: f32[2,1,32], index: 0, kind: input, shape index: {}]
  %s1 = inlined_call_operand.vmem [shape: f32[2,12,32], index: 1, kind: input, shape index: {}]
  %s2 = inlined_call_operand.vmem [shape: f32[2,32,64], index: 2, kind: input, shape index: {}]
  %s3 = inlined_call_operand.vmem [shape: f32[2,1,64], index: 3, kind: input, shape index: {}]
  %s4 = inlined_call_operand.vmem [shape: f32[2,32,96], index: 4, kind: input, shape index: {}]
  %s5 = inlined_call_operand.hbm [shape: f32[2,1,96], index: 5, kind: input, shape index: {}]
  %s6 = inlined_call_operand.hbm [shape: f32[2,32,32], index: 6, kind: input, shape index: {}]
  %s7 = inlined_call_operand.hbm [shape: f32[2,1,32], index: 7, kind: input, shape index: {}]
  %s8 = inlined_call_operand.hbm [shape: f32[2,32,64], index: 8, kind: input, shape index: {}]
  %s9 = inlined_call_operand.hbm [shape: f32[2,1,64], index: 9, kind: input, shape index: {}]
  %s10 = inlined_call_operand.hbm [shape: f32[2,32,64], index: 10, kind: input, shape index: {}]
  %s11 = inlined_call_operand.hbm [shape: f32[2,1,64], index: 11, kind: input, shape index: {}]
  %s12 = inlined_call_operand.vmem [shape: f32[2,64,32], index: 12, kind: input, shape index: {}]
  %s13 = inlined_call_operand.hbm [shape: f32[2,1,32], index: 13, kind: input, shape index: {}]
  %s14 = inlined_call_operand.vmem [shape: f32[2,12,32], index: 14, kind: output, shape index: {}]
  %s15 = sld [smem:[#allocation0]]
  $region129: #{diffusion_head_forward.10} parent=0
    _
  %s17 = ssub.s32 1, %s15
  %s18 = scalar_select 0, %s17, %s15
  $region1: #{diffusion_head_forward.10} parent=0
    #allocation3 [shape = 'u8[1024]{0}', space=vmem, size = 0x400, scoped, tag = 'input window, operand 5']
    #allocation4 [shape = 's32[2]{0}', space=sflag, size = 0x8, scoped, tag = 'scoped memory for diffusion_head_forward.10']
    #allocation5 [shape = 'u8[32768]{0}', space=vmem, size = 0x8000, scoped, tag = 'input window, operand 6']
    #allocation6 [shape = 's32[2]{0}', space=sflag, size = 0x8, scoped, tag = 'scoped memory for diffusion_head_forward.10']
    #allocation7 [shape = 'u8[1024]{0}', space=vmem, size = 0x400, scoped, tag = 'input window, operand 7']
    #allocation8 [shape = 'u8[32768]{0}', space=vmem, size = 0x8000, scoped, tag = 'input window, operand 8']
    #allocation9 [shape = 's32[2]{0}', space=sflag, size = 0x8, scoped, tag = 'scoped memory for diffusion_head_forward.10']
    #allocation10 [shape = 'u8[1024]{0}', space=vmem, size = 0x400, scoped, tag = 'input window, operand 9']
    #allocation11 [shape = 'u8[32768]{0}', space=vmem, size = 0x8000, scoped, tag = 'input window, operand 10']
    #allocation12 [shape = 's32[2]{0}', space=sflag, size = 0x8, scoped, tag = 'scoped memory for diffusion_head_forward.10']
    #allocation13 [shape = 'u8[1024]{0}', space=vmem, size = 0x400, scoped, tag = 'input window, operand 11']
    #allocation14 [shape = 'u8[1024]{0}', space=vmem, size = 0x400, scoped, tag = 'input window, operand 13']
    #allocation15 [shape = 's32[2]{0}', space=sflag, size = 0x8, scoped, tag = 'scoped memory for diffusion_head_forward.10']
    %19 = vsyncpa [#allocation4], 0
    %s20 = scalar_lea.sflag [#allocation4], 1
    %21 = vsyncpa %s20, 0
    %22 = vsyncpa [#allocation6], 0
    %s23 = scalar_lea.sflag [#allocation6], 1
    %24 = vsyncpa %s23, 0
    %25 = vsyncpa [#allocation9], 0
    %s26 = scalar_lea.sflag [#allocation9], 1
    %27 = vsyncpa %s26, 0
    %28 = vsyncpa [#allocation12], 0
    %s29 = scalar_lea.sflag [#allocation12], 1
    %30 = vsyncpa %s29, 0
    %31 = vsyncpa [#allocation15], 0
    %s32 = scalar_lea.sflag [#allocation15], 1
    %33 = vsyncpa %s32, 0
    loop: start=0, step=1, limit=6
    $region2: #{diffusion_head_forward.10} parent=1 // loop_pre_header
      _
    $region3: #{diffusion_head_forward.10} parent=1 // loop_header
      %s35 = sphi 0, %s39
      %p36 = scmp.ge.s32.totalorder %s35, 6
      %s42 = sphi 0, %s54
      %s43 = sphi 0, %s50
      %s44 = sphi 0, %s42
      %s45 = sphi 0, %s43
      %s46 = sphi 0, %s44
      %s47 = sphi 0, %s45
      %s57 = sphi 0, %s59
      %s60 = sphi 0, %s57
      %s61 = sphi 0, %s60
      %s77 = sphi 0, %s61
      %s83 = sphi 0, %s85
      %s86 = sphi 0, %s83
      %s87 = sphi 0, %s86
      %s103 = sphi 0, %s87
      %s109 = sphi 0, %s111
      %s112 = sphi 0, %s109
      %s113 = sphi 0, %s112
      %s129 = sphi 0, %s113
      %s135 = sphi 0, %s137
      %s138 = sphi 0, %s135
      %s139 = sphi 0, %s138
      %s155 = sphi 0, %s139
      %s161 = sphi 0, %s163
      %s164 = sphi 0, %s161
      %s165 = sphi 0, %s164
      %s181 = sphi 0, %s165
      %s187 = sphi 0, %s189
      %s190 = sphi 0, %s187
      %s191 = sphi 0, %s190
      %s207 = sphi 0, %s191
      %s213 = sphi 0, %s215
      %s216 = sphi 0, %s213
      %s217 = sphi 0, %s216
      %s233 = sphi 0, %s217
      %s239 = sphi 0, %s241
      %s242 = sphi 0, %s239
      %s243 = sphi 0, %s242
      %s259 = sphi 0, %s243
      %s265 = sphi 0, %s267
      %s268 = sphi 0, %s265
      %s269 = sphi 0, %s268
      %s285 = sphi 0, %s269
      %s291 = sphi 0, %s293
      %s294 = sphi 0, %s291
      %s295 = sphi 0, %s294
      %s311 = sphi 0, %s295
      %s317 = sphi 0, %s319
      %s320 = sphi 0, %s317
      %s321 = sphi 0, %s320
      %s337 = sphi 0, %s321
      %s343 = sphi 0, %s345
      %s346 = sphi 0, %s343
      %s347 = sphi 0, %s346
      %s363 = sphi 0, %s347
      %s369 = sphi 0, %s371
      %s372 = sphi 0, %s369
      %s373 = sphi 0, %s372
      %s389 = sphi 0, %s373
      %s395 = sphi 0, %s397
      %s398 = sphi 0, %s395
      %s399 = sphi 0, %s398
      %s415 = sphi 0, %s399
      %s421 = sphi 0, %s423
      %s424 = sphi 0, %s421
      %s425 = sphi 0, %s424
      %s441 = sphi 0, %s425
    $region4: #{diffusion_head_forward.10} parent=1 // loop_header_branch
      %38 = sbr.rel (%p36) target = $region8
    $region5: #{diffusion_head_forward.10} parent=1 // loop_body
      %s40 = ssub.s32 %s35, 1
      %s41 = ssub.s32 %s35, 2
      %s48 = sadd.s32 1, %s43
      %p49 = scmp.ge.s32.totalorder %s48, 2
      %s50 = scalar_select %p49, 0, %s48
      %s51 = sadd.s32 1, %s42
      %s52 = scalar_select %p49, %s51, %s42
      %p53 = scmp.ge.s32.totalorder %s52, 2
      %s54 = scalar_select %p53, 0, %s52
      %s55 = ssub.s32 %s42, %s54
      %p56 = scmp.eq.s32.totalorder %s55, 0
      %s58 = sadd.s32 %s57, 1
      %s59 = scalar_select %p56, %s57, %s58
      %p62 = pneg %p56
      %p63 = scmp.eq.s32.totalorder %s35, 3
      %p64 = por %p62, %p63
      %p65 = scmp.ne.s32.totalorder %s57, %s60
      %p66 = scmp.eq.s32.totalorder %s35, 0
      %p67 = por %p65, %p66
      %p68 = scmp.ne.s32.totalorder %s57, %s60
      %p69 = scmp.eq.s32.totalorder %s40, 3
      %p70 = por %p68, %p69
      %p71 = scmp.ne.s32.totalorder %s60, %s61
      %p72 = scmp.eq.s32.totalorder %s40, 0
      %p73 = por %p71, %p72
      %p74 = scmp.ne.s32.totalorder %s60, %s61
      %p75 = scmp.eq.s32.totalorder %s41, 3
      %p76 = por %p74, %p75
      %p78 = scmp.ne.s32.totalorder %s61, %s77
      %p79 = scmp.eq.s32.totalorder %s41, 0
      %p80 = por %p78, %p79
      %s81 = ssub.s32 %s42, %s54
      %p82 = scmp.eq.s32.totalorder %s81, 0
      %s84 = sadd.s32 %s83, 1
      %s85 = scalar_select %p82, %s83, %s84
      %p88 = pneg %p82
      %p89 = scmp.eq.s32.totalorder %s35, 3
      %p90 = por %p88, %p89
      %p91 = scmp.ne.s32.totalorder %s83, %s86
      %p92 = scmp.eq.s32.totalorder %s35, 0
      %p93 = por %p91, %p92
      %p94 = scmp.ne.s32.totalorder %s83, %s86
      %p95 = scmp.eq.s32.totalorder %s40, 3
      %p96 = por %p94, %p95
      %p97 = scmp.ne.s32.totalorder %s86, %s87
      %p98 = scmp.eq.s32.totalorder %s40, 0
      %p99 = por %p97, %p98
      %p100 = scmp.ne.s32.totalorder %s86, %s87
      %p101 = scmp.eq.s32.totalorder %s41, 3
      %p102 = por %p100, %p101
      %p104 = scmp.ne.s32.totalorder %s87, %s103
      %p105 = scmp.eq.s32.totalorder %s41, 0
      %p106 = por %p104, %p105
      %s107 = ssub.s32 %s43, %s50
      %p108 = scmp.eq.s32.totalorder %s107, 0
      %s110 = sadd.s32 %s109, 1
      %s111 = scalar_select %p108, %s109, %s110
      %p114 = pneg %p108
      %p115 = scmp.eq.s32.totalorder %s35, 3
      %p116 = por %p114, %p115
      %p117 = scmp.ne.s32.totalorder %s109, %s112
      %p118 = scmp.eq.s32.totalorder %s35, 0
      %p119 = por %p117, %p118
      %p120 = scmp.ne.s32.totalorder %s109, %s112
      %p121 = scmp.eq.s32.totalorder %s40, 3
      %p122 = por %p120, %p121
      %p123 = scmp.ne.s32.totalorder %s112, %s113
      %p124 = scmp.eq.s32.totalorder %s40, 0
      %p125 = por %p123, %p124
      %p126 = scmp.ne.s32.totalorder %s112, %s113
      %p127 = scmp.eq.s32.totalorder %s41, 3
      %p128 = por %p126, %p127
      %p130 = scmp.ne.s32.totalorder %s113, %s129
      %p131 = scmp.eq.s32.totalorder %s41, 0
      %p132 = por %p130, %p131
      %s133 = ssub.s32 %s43, %s50
      %p134 = scmp.eq.s32.totalorder %s133, 0
      %s136 = sadd.s32 %s135, 1
      %s137 = scalar_select %p134, %s135, %s136
      %p140 = pneg %p134
      %p141 = scmp.eq.s32.totalorder %s35, 3
      %p142 = por %p140, %p141
      %p143 = scmp.ne.s32.totalorder %s135, %s138
      %p144 = scmp.eq.s32.totalorder %s35, 0
      %p145 = por %p143, %p144
      %p146 = scmp.ne.s32.totalorder %s135, %s138
      %p147 = scmp.eq.s32.totalorder %s40, 3
      %p148 = por %p146, %p147
      %p149 = scmp.ne.s32.totalorder %s138, %s139
      %p150 = scmp.eq.s32.totalorder %s40, 0
      %p151 = por %p149, %p150
      %p152 = scmp.ne.s32.totalorder %s138, %s139
      %p153 = scmp.eq.s32.totalorder %s41, 3
      %p154 = por %p152, %p153
      %p156 = scmp.ne.s32.totalorder %s139, %s155
      %p157 = scmp.eq.s32.totalorder %s41, 0
      %p158 = por %p156, %p157
      %s159 = ssub.s32 %s43, %s50
      %p160 = scmp.eq.s32.totalorder %s159, 0
      %s162 = sadd.s32 %s161, 1
      %s163 = scalar_select %p160, %s161, %s162
      %p166 = pneg %p160
      %p167 = scmp.eq.s32.totalorder %s35, 3
      %p168 = por %p166, %p167
      %p169 = scmp.ne.s32.totalorder %s161, %s164
      %p170 = scmp.eq.s32.totalorder %s35, 0
      %p171 = por %p169, %p170
      %p172 = scmp.ne.s32.totalorder %s161, %s164
      %p173 = scmp.eq.s32.totalorder %s40, 3
      %p174 = por %p172, %p173
      %p175 = scmp.ne.s32.totalorder %s164, %s165
      %p176 = scmp.eq.s32.totalorder %s40, 0
      %p177 = por %p175, %p176
      %p178 = scmp.ne.s32.totalorder %s164, %s165
      %p179 = scmp.eq.s32.totalorder %s41, 3
      %p180 = por %p178, %p179
      %p182 = scmp.ne.s32.totalorder %s165, %s181
      %p183 = scmp.eq.s32.totalorder %s41, 0
      %p184 = por %p182, %p183
      %s185 = ssub.s32 %s43, %s50
      %p186 = scmp.eq.s32.totalorder %s185, 0
      %s188 = sadd.s32 %s187, 1
      %s189 = scalar_select %p186, %s187, %s188
      %p192 = pneg %p186
      %p193 = scmp.eq.s32.totalorder %s35, 3
      %p194 = por %p192, %p193
      %p195 = scmp.ne.s32.totalorder %s187, %s190
      %p196 = scmp.eq.s32.totalorder %s35, 0
      %p197 = por %p195, %p196
      %p198 = scmp.ne.s32.totalorder %s187, %s190
      %p199 = scmp.eq.s32.totalorder %s40, 3
      %p200 = por %p198, %p199
      %p201 = scmp.ne.s32.totalorder %s190, %s191
      %p202 = scmp.eq.s32.totalorder %s40, 0
      %p203 = por %p201, %p202
      %p204 = scmp.ne.s32.totalorder %s190, %s191
      %p205 = scmp.eq.s32.totalorder %s41, 3
      %p206 = por %p204, %p205
      %p208 = scmp.ne.s32.totalorder %s191, %s207
      %p209 = scmp.eq.s32.totalorder %s41, 0
      %p210 = por %p208, %p209
      %s211 = ssub.s32 %s43, %s50
      %p212 = scmp.eq.s32.totalorder %s211, 0
      %s214 = sadd.s32 %s213, 1
      %s215 = scalar_select %p212, %s213, %s214
      %p218 = pneg %p212
      %p219 = scmp.eq.s32.totalorder %s35, 3
      %p220 = por %p218, %p219
      %p221 = scmp.ne.s32.totalorder %s213, %s216
      %p222 = scmp.eq.s32.totalorder %s35, 0
      %p223 = por %p221, %p222
      %p224 = scmp.ne.s32.totalorder %s213, %s216
      %p225 = scmp.eq.s32.totalorder %s40, 3
      %p226 = por %p224, %p225
      %p227 = scmp.ne.s32.totalorder %s216, %s217
      %p228 = scmp.eq.s32.totalorder %s40, 0
      %p229 = por %p227, %p228
      %p230 = scmp.ne.s32.totalorder %s216, %s217
      %p231 = scmp.eq.s32.totalorder %s41, 3
      %p232 = por %p230, %p231
      %p234 = scmp.ne.s32.totalorder %s217, %s233
      %p235 = scmp.eq.s32.totalorder %s41, 0
      %p236 = por %p234, %p235
      %s237 = ssub.s32 %s43, %s50
      %p238 = scmp.eq.s32.totalorder %s237, 0
      %s240 = sadd.s32 %s239, 1
      %s241 = scalar_select %p238, %s239, %s240
      %p244 = pneg %p238
      %p245 = scmp.eq.s32.totalorder %s35, 3
      %p246 = por %p244, %p245
      %p247 = scmp.ne.s32.totalorder %s239, %s242
      %p248 = scmp.eq.s32.totalorder %s35, 0
      %p249 = por %p247, %p248
      %p250 = scmp.ne.s32.totalorder %s239, %s242
      %p251 = scmp.eq.s32.totalorder %s40, 3
      %p252 = por %p250, %p251
      %p253 = scmp.ne.s32.totalorder %s242, %s243
      %p254 = scmp.eq.s32.totalorder %s40, 0
      %p255 = por %p253, %p254
      %p256 = scmp.ne.s32.totalorder %s242, %s243
      %p257 = scmp.eq.s32.totalorder %s41, 3
      %p258 = por %p256, %p257
      %p260 = scmp.ne.s32.totalorder %s243, %s259
      %p261 = scmp.eq.s32.totalorder %s41, 0
      %p262 = por %p260, %p261
      %s263 = ssub.s32 %s43, %s50
      %p264 = scmp.eq.s32.totalorder %s263, 0
      %s266 = sadd.s32 %s265, 1
      %s267 = scalar_select %p264, %s265, %s266
      %p270 = pneg %p264
      %p271 = scmp.eq.s32.totalorder %s35, 3
      %p272 = por %p270, %p271
      %p273 = scmp.ne.s32.totalorder %s265, %s268
      %p274 = scmp.eq.s32.totalorder %s35, 0
      %p275 = por %p273, %p274
      %p276 = scmp.ne.s32.totalorder %s265, %s268
      %p277 = scmp.eq.s32.totalorder %s40, 3
      %p278 = por %p276, %p277
      %p279 = scmp.ne.s32.totalorder %s268, %s269
      %p280 = scmp.eq.s32.totalorder %s40, 0
      %p281 = por %p279, %p280
      %p282 = scmp.ne.s32.totalorder %s268, %s269
      %p283 = scmp.eq.s32.totalorder %s41, 3
      %p284 = por %p282, %p283
      %p286 = scmp.ne.s32.totalorder %s269, %s285
      %p287 = scmp.eq.s32.totalorder %s41, 0
      %p288 = por %p286, %p287
      %s289 = ssub.s32 %s43, %s50
      %p290 = scmp.eq.s32.totalorder %s289, 0
      %s292 = sadd.s32 %s291, 1
      %s293 = scalar_select %p290, %s291, %s292
      %p296 = pneg %p290
      %p297 = scmp.eq.s32.totalorder %s35, 3
      %p298 = por %p296, %p297
      %p299 = scmp.ne.s32.totalorder %s291, %s294
      %p300 = scmp.eq.s32.totalorder %s35, 0
      %p301 = por %p299, %p300
      %p302 = scmp.ne.s32.totalorder %s291, %s294
      %p303 = scmp.eq.s32.totalorder %s40, 3
      %p304 = por %p302, %p303
      %p305 = scmp.ne.s32.totalorder %s294, %s295
      %p306 = scmp.eq.s32.totalorder %s40, 0
      %p307 = por %p305, %p306
      %p308 = scmp.ne.s32.totalorder %s294, %s295
      %p309 = scmp.eq.s32.totalorder %s41, 3
      %p310 = por %p308, %p309
      %p312 = scmp.ne.s32.totalorder %s295, %s311
      %p313 = scmp.eq.s32.totalorder %s41, 0
      %p314 = por %p312, %p313
      %s315 = ssub.s32 %s43, %s50
      %p316 = scmp.eq.s32.totalorder %s315, 0
      %s318 = sadd.s32 %s317, 1
      %s319 = scalar_select %p316, %s317, %s318
      %p322 = pneg %p316
      %p323 = scmp.eq.s32.totalorder %s35, 3
      %p324 = por %p322, %p323
      %p325 = scmp.ne.s32.totalorder %s317, %s320
      %p326 = scmp.eq.s32.totalorder %s35, 0
      %p327 = por %p325, %p326
      %p328 = scmp.ne.s32.totalorder %s317, %s320
      %p329 = scmp.eq.s32.totalorder %s40, 3
      %p330 = por %p328, %p329
      %p331 = scmp.ne.s32.totalorder %s320, %s321
      %p332 = scmp.eq.s32.totalorder %s40, 0
      %p333 = por %p331, %p332
      %p334 = scmp.ne.s32.totalorder %s320, %s321
      %p335 = scmp.eq.s32.totalorder %s41, 3
      %p336 = por %p334, %p335
      %p338 = scmp.ne.s32.totalorder %s321, %s337
      %p339 = scmp.eq.s32.totalorder %s41, 0
      %p340 = por %p338, %p339
      %s341 = ssub.s32 %s43, %s50
      %p342 = scmp.eq.s32.totalorder %s341, 0
      %s344 = sadd.s32 %s343, 1
      %s345 = scalar_select %p342, %s343, %s344
      %p348 = pneg %p342
      %p349 = scmp.eq.s32.totalorder %s35, 3
      %p350 = por %p348, %p349
      %p351 = scmp.ne.s32.totalorder %s343, %s346
      %p352 = scmp.eq.s32.totalorder %s35, 0
      %p353 = por %p351, %p352
      %p354 = scmp.ne.s32.totalorder %s343, %s346
      %p355 = scmp.eq.s32.totalorder %s40, 3
      %p356 = por %p354, %p355
      %p357 = scmp.ne.s32.totalorder %s346, %s347
      %p358 = scmp.eq.s32.totalorder %s40, 0
      %p359 = por %p357, %p358
      %p360 = scmp.ne.s32.totalorder %s346, %s347
      %p361 = scmp.eq.s32.totalorder %s41, 3
      %p362 = por %p360, %p361
      %p364 = scmp.ne.s32.totalorder %s347, %s363
      %p365 = scmp.eq.s32.totalorder %s41, 0
      %p366 = por %p364, %p365
      %s367 = ssub.s32 %s43, %s50
      %p368 = scmp.eq.s32.totalorder %s367, 0
      %s370 = sadd.s32 %s369, 1
      %s371 = scalar_select %p368, %s369, %s370
      %p374 = pneg %p368
      %p375 = scmp.eq.s32.totalorder %s35, 3
      %p376 = por %p374, %p375
      %p377 = scmp.ne.s32.totalorder %s369, %s372
      %p378 = scmp.eq.s32.totalorder %s35, 0
      %p379 = por %p377, %p378
      %p380 = scmp.ne.s32.totalorder %s369, %s372
      %p381 = scmp.eq.s32.totalorder %s40, 3
      %p382 = por %p380, %p381
      %p383 = scmp.ne.s32.totalorder %s372, %s373
      %p384 = scmp.eq.s32.totalorder %s40, 0
      %p385 = por %p383, %p384
      %p386 = scmp.ne.s32.totalorder %s372, %s373
      %p387 = scmp.eq.s32.totalorder %s41, 3
      %p388 = por %p386, %p387
      %p390 = scmp.ne.s32.totalorder %s373, %s389
      %p391 = scmp.eq.s32.totalorder %s41, 0
      %p392 = por %p390, %p391
      %s393 = ssub.s32 %s43, %s50
      %p394 = scmp.eq.s32.totalorder %s393, 0
      %s396 = sadd.s32 %s395, 1
      %s397 = scalar_select %p394, %s395, %s396
      %p400 = pneg %p394
      %p401 = scmp.eq.s32.totalorder %s35, 3
      %p402 = por %p400, %p401
      %p403 = scmp.ne.s32.totalorder %s395, %s398
      %p404 = scmp.eq.s32.totalorder %s35, 0
      %p405 = por %p403, %p404
      %p406 = scmp.ne.s32.totalorder %s395, %s398
      %p407 = scmp.eq.s32.totalorder %s40, 3
      %p408 = por %p406, %p407
      %p409 = scmp.ne.s32.totalorder %s398, %s399
      %p410 = scmp.eq.s32.totalorder %s40, 0
      %p411 = por %p409, %p410
      %p412 = scmp.ne.s32.totalorder %s398, %s399
      %p413 = scmp.eq.s32.totalorder %s41, 3
      %p414 = por %p412, %p413
      %p416 = scmp.ne.s32.totalorder %s399, %s415
      %p417 = scmp.eq.s32.totalorder %s41, 0
      %p418 = por %p416, %p417
      %s419 = ssub.s32 %s42, %s54
      %p420 = scmp.eq.s32.totalorder %s419, 0
      %s422 = sadd.s32 %s421, 1
      %s423 = scalar_select %p420, %s421, %s422
      %p426 = pneg %p420
      %p427 = scmp.eq.s32.totalorder %s35, 3
      %p428 = por %p426, %p427
      %p429 = scmp.ne.s32.totalorder %s421, %s424
      %p430 = scmp.eq.s32.totalorder %s35, 0
      %p431 = por %p429, %p430
      %p432 = scmp.ne.s32.totalorder %s421, %s424
      %p433 = scmp.eq.s32.totalorder %s40, 3
      %p434 = por %p432, %p433
      %p435 = scmp.ne.s32.totalorder %s424, %s425
      %p436 = scmp.eq.s32.totalorder %s40, 0
      %p437 = por %p435, %p436
      %p438 = scmp.ne.s32.totalorder %s424, %s425
      %p439 = scmp.eq.s32.totalorder %s41, 3
      %p440 = por %p438, %p439
      %p442 = scmp.ne.s32.totalorder %s425, %s441
      %p443 = scmp.eq.s32.totalorder %s41, 0
      %p444 = por %p442, %p443
      %p445 = scmp.le.s32.totalorder 1, %s35
      %p446 = scmp.lt.s32.totalorder %s35, 5
      %p447 = pnand %p445, %p446
      %p448 = pneg %p447
      // Predicated region
      $region9: #{diffusion_head_forward.10} parent=5 // pred_check
        _
      $region10: #{diffusion_head_forward.10} parent=5 // pred_check_branch
        %450 = sbr.rel (%p447) target = $region12
      $region11: #{diffusion_head_forward.10} parent=5 // pred_region
        %s451 = ssub.s32 %s35, 1
      $region12: #{diffusion_head_forward.10} parent=5 // pred_fallthru
        _
      %p452 = scmp.lt.s32.totalorder %s35, 4
      // Predicated region
      $region13: #{diffusion_head_forward.10} parent=5 // pred_check
        %p453 = pneg %p452
      $region14: #{diffusion_head_forward.10} parent=5 // pred_check_branch
        %455 = sbr.rel (%p453) target = $region16
      $region15: #{diffusion_head_forward.10} parent=5 // pred_region
        // Predicated region
        $region17: #{diffusion_head_forward.10} parent=15 // pred_check
          %p456 = pneg %p67
        $region18: #{diffusion_head_forward.10} parent=15 // pred_check_branch
          %458 = sbr.rel (%p456) target = $region20
        $region19: #{diffusion_head_forward.10} parent=15 // pred_region
          %p459 = scmp.lt.s32.totalorder %s42, 1
          %s460 = scalar_select %p459, %s42, 1
          %s461 = scalar_lea.vmem %s0, %s460
        $region20: #{diffusion_head_forward.10} parent=15 // pred_fallthru
          _
        // Predicated region
        $region21: #{diffusion_head_forward.10} parent=15 // pred_check
          %p462 = pneg %p93
        $region22: #{diffusion_head_forward.10} parent=15 // pred_check_branch
          %464 = sbr.rel (%p462) target = $region24
        $region23: #{diffusion_head_forward.10} parent=15 // pred_region
          %p465 = scmp.lt.s32.totalorder %s42, 1
          %s466 = scalar_select %p465, %s42, 1
          %s467 = smul.addr %s466, 2
          %s468 = smul.addr %s467, 8
          %s469 = scalar_lea.vmem %s1, %s468
        $region24: #{diffusion_head_forward.10} parent=15 // pred_fallthru
          _
        // Predicated region
        $region25: #{diffusion_head_forward.10} parent=15 // pred_check
          %p470 = pneg %p119
        $region26: #{diffusion_head_forward.10} parent=15 // pred_check_branch
          %472 = sbr.rel (%p470) target = $region28
        $region27: #{diffusion_head_forward.10} parent=15 // pred_region
          %p473 = scmp.lt.s32.totalorder %s43, 1
          %s474 = scalar_select %p473, %s43, 1
          %s475 = smul.addr %s474, 4
          %s476 = smul.addr %s475, 8
          %s477 = scalar_lea.vmem %s2, %s476
        $region28: #{diffusion_head_forward.10} parent=15 // pred_fallthru
          _
        // Predicated region
        $region29: #{diffusion_head_forward.10} parent=15 // pred_check
          %p478 = pneg %p145
        $region30: #{diffusion_head_forward.10} parent=15 // pred_check_branch
          %480 = sbr.rel (%p478) target = $region32
        $region31: #{diffusion_head_forward.10} parent=15 // pred_region
          %p481 = scmp.lt.s32.totalorder %s43, 1
          %s482 = scalar_select %p481, %s43, 1
          %s483 = scalar_lea.vmem %s3, %s482
        $region32: #{diffusion_head_forward.10} parent=15 // pred_fallthru
          _
        // Predicated region
        $region33: #{diffusion_head_forward.10} parent=15 // pred_check
          %p484 = pneg %p171
        $region34: #{diffusion_head_forward.10} parent=15 // pred_check_branch
          %486 = sbr.rel (%p484) target = $region36
        $region35: #{diffusion_head_forward.10} parent=15 // pred_region
          %p487 = scmp.lt.s32.totalorder %s43, 1
          %s488 = scalar_select %p487, %s43, 1
          %s489 = smul.addr %s488, 4
          %s490 = smul.addr %s489, 8
          %s491 = scalar_lea.vmem %s4, %s490
        $region36: #{diffusion_head_forward.10} parent=15 // pred_fallthru
          _
        // Predicated region
        $region37: #{diffusion_head_forward.10} parent=15 // pred_check
          %p492 = pneg %p197
        $region38: #{diffusion_head_forward.10} parent=15 // pred_check_branch
          %494 = sbr.rel (%p492) target = $region40
        $region39: #{diffusion_head_forward.10} parent=15 // pred_region
          %s495 = sand.u32 %s187, 1
          %s496 = scalar_lea.sflag [#allocation4], %s495
          %s497 = sand.u32 %s187, 1
          %s498 = scalar_lea.vmem [#allocation3], %s497
          %500 = vsyncadd %s496, 0
          %s501 = scalar_lea.hbm %s5, %s43
          %s503 = sshll.u32 %s501, 4
          %s504 = int_to_ptr.hbm [resolvable:$true] %s503
          %s505 = sshll.u32 %s498, 4
          %s506 = int_to_ptr.vmem [resolvable:$true] %s505
          %508 = dma.hbm_to_vmem [thread:$0]  %s504, 16, %s506, %s496
        $region40: #{diffusion_head_forward.10} parent=15 // pred_fallthru
          _
        // Predicated region
        $region41: #{diffusion_head_forward.10} parent=15 // pred_check
          %p509 = pneg %p223
        $region42: #{diffusion_head_forward.10} parent=15 // pred_check_branch
          %511 = sbr.rel (%p509) target = $region44
        $region43: #{diffusion_head_forward.10} parent=15 // pred_region
          %s512 = sand.u32 %s35, 1
          %s513 = scalar_lea.sflag [#allocation6], %s512
          %s514 = sand.u32 %s213, 1
          %s515 = smul.addr %s514, 32
          %s516 = scalar_lea.vmem [#allocation5], %s515
          %518 = vsyncadd %s513, 0
          %s519 = smul.addr %s43, 4
          %s520 = smul.addr %s519, 8
          %s521 = scalar_lea.hbm %s6, %s520
          %s522 = sshll.u32 %s521, 4
          %s523 = int_to_ptr.hbm [resolvable:$true] %s522
          %s524 = sshll.u32 %s516, 4
          %s525 = int_to_ptr.vmem [resolvable:$true] %s524
          %530 = dma.hbm_to_vmem [thread:$0]  %s523, 512, %s525, %s513, 128, 128, 8
        $region44: #{diffusion_head_forward.10} parent=15 // pred_fallthru
          _
        // Predicated region
        $region45: #{diffusion_head_forward.10} parent=15 // pred_check
          %p531 = pneg %p249
        $region46: #{diffusion_head_forward.10} parent=15 // pred_check_branch
          %533 = sbr.rel (%p531) target = $region48
        $region47: #{diffusion_head_forward.10} parent=15 // pred_region
          %s534 = sand.u32 %s35, 1
          %s535 = scalar_lea.sflag [#allocation6], %s534
          %s536 = sand.u32 %s239, 1
          %s537 = scalar_lea.vmem [#allocation7], %s536
          %539 = vsyncadd %s535, 0
          %s540 = scalar_lea.hbm %s7, %s43
          %s542 = sshll.u32 %s540, 4
          %s543 = int_to_ptr.hbm [resolvable:$true] %s542
          %s544 = sshll.u32 %s537, 4
          %s545 = int_to_ptr.vmem [resolvable:$true] %s544
          %547 = dma.hbm_to_vmem [thread:$0]  %s543, 16, %s545, %s535
        $region48: #{diffusion_head_forward.10} parent=15 // pred_fallthru
          _
        // Predicated region
        $region49: #{diffusion_head_forward.10} parent=15 // pred_check
          %p548 = pneg %p275
        $region50: #{diffusion_head_forward.10} parent=15 // pred_check_branch
          %550 = sbr.rel (%p548) target = $region52
        $region51: #{diffusion_head_forward.10} parent=15 // pred_region
          %s551 = sand.u32 %s35, 1
          %s552 = scalar_lea.sflag [#allocation9], %s551
          %s553 = sand.u32 %s265, 1
          %s554 = smul.addr %s553, 32
          %s555 = scalar_lea.vmem [#allocation8], %s554
          %557 = vsyncadd %s552, 0
          %s558 = smul.addr %s43, 4
          %s559 = smul.addr %s558, 8
          %s560 = scalar_lea.hbm %s8, %s559
          %s561 = sshll.u32 %s560, 4
          %s562 = int_to_ptr.hbm [resolvable:$true] %s561
          %s563 = sshll.u32 %s555, 4
          %s564 = int_to_ptr.vmem [resolvable:$true] %s563
          %569 = dma.hbm_to_vmem [thread:$0]  %s562, 512, %s564, %s552, 128, 128, 8
        $region52: #{diffusion_head_forward.10} parent=15 // pred_fallthru
          _
        // Predicated region
        $region53: #{diffusion_head_forward.10} parent=15 // pred_check
          %p570 = pneg %p301
        $region54: #{diffusion_head_forward.10} parent=15 // pred_check_branch
          %572 = sbr.rel (%p570) target = $region56
        $region55: #{diffusion_head_forward.10} parent=15 // pred_region
          %s573 = sand.u32 %s35, 1
          %s574 = scalar_lea.sflag [#allocation9], %s573
          %s575 = sand.u32 %s291, 1
          %s576 = scalar_lea.vmem [#allocation10], %s575
          %578 = vsyncadd %s574, 0
          %s579 = scalar_lea.hbm %s9, %s43
          %s581 = sshll.u32 %s579, 4
          %s582 = int_to_ptr.hbm [resolvable:$true] %s581
          %s583 = sshll.u32 %s576, 4
          %s584 = int_to_ptr.vmem [resolvable:$true] %s583
          %586 = dma.hbm_to_vmem [thread:$0]  %s582, 16, %s584, %s574
        $region56: #{diffusion_head_forward.10} parent=15 // pred_fallthru
          _
        // Predicated region
        $region57: #{diffusion_head_forward.10} parent=15 // pred_check
          %p587 = pneg %p327
        $region58: #{diffusion_head_forward.10} parent=15 // pred_check_branch
          %589 = sbr.rel (%p587) target = $region60
        $region59: #{diffusion_head_forward.10} parent=15 // pred_region
          %s590 = sand.u32 %s35, 1
          %s591 = scalar_lea.sflag [#allocation12], %s590
          %s592 = sand.u32 %s317, 1
          %s593 = smul.addr %s592, 32
          %s594 = scalar_lea.vmem [#allocation11], %s593
          %596 = vsyncadd %s591, 0
          %s597 = smul.addr %s43, 4
          %s598 = smul.addr %s597, 8
          %s599 = scalar_lea.hbm %s10, %s598
          %s600 = sshll.u32 %s599, 4
          %s601 = int_to_ptr.hbm [resolvable:$true] %s600
          %s602 = sshll.u32 %s594, 4
          %s603 = int_to_ptr.vmem [resolvable:$true] %s602
          %608 = dma.hbm_to_vmem [thread:$0]  %s601, 512, %s603, %s591, 128, 128, 8
        $region60: #{diffusion_head_forward.10} parent=15 // pred_fallthru
          _
        // Predicated region
        $region61: #{diffusion_head_forward.10} parent=15 // pred_check
          %p609 = pneg %p353
        $region62: #{diffusion_head_forward.10} parent=15 // pred_check_branch
          %611 = sbr.rel (%p609) target = $region64
        $region63: #{diffusion_head_forward.10} parent=15 // pred_region
          %s612 = sand.u32 %s35, 1
          %s613 = scalar_lea.sflag [#allocation12], %s612
          %s614 = sand.u32 %s343, 1
          %s615 = scalar_lea.vmem [#allocation13], %s614
          %617 = vsyncadd %s613, 0
          %s618 = scalar_lea.hbm %s11, %s43
          %s620 = sshll.u32 %s618, 4
          %s621 = int_to_ptr.hbm [resolvable:$true] %s620
          %s622 = sshll.u32 %s615, 4
          %s623 = int_to_ptr.vmem [resolvable:$true] %s622
          %625 = dma.hbm_to_vmem [thread:$0]  %s621, 16, %s623, %s613
        $region64: #{diffusion_head_forward.10} parent=15 // pred_fallthru
          _
        // Predicated region
        $region65: #{diffusion_head_forward.10} parent=15 // pred_check
          %p626 = pneg %p379
        $region66: #{diffusion_head_forward.10} parent=15 // pred_check_branch
          %628 = sbr.rel (%p626) target = $region68
        $region67: #{diffusion_head_forward.10} parent=15 // pred_region
          %p629 = scmp.lt.s32.totalorder %s43, 1
          %s630 = scalar_select %p629, %s43, 1
          %s631 = smul.addr %s630, 8
          %s632 = smul.addr %s631, 8
          %s633 = scalar_lea.vmem %s12, %s632
        $region68: #{diffusion_head_forward.10} parent=15 // pred_fallthru
          _
        // Predicated region
        $region69: #{diffusion_head_forward.10} parent=15 // pred_check
          %p634 = pneg %p405
        $region70: #{diffusion_head_forward.10} parent=15 // pred_check_branch
          %636 = sbr.rel (%p634) target = $region72
        $region71: #{diffusion_head_forward.10} parent=15 // pred_region
          %s637 = sand.u32 %s395, 1
          %s638 = scalar_lea.sflag [#allocation15], %s637
          %s639 = sand.u32 %s395, 1
          %s640 = scalar_lea.vmem [#allocation14], %s639
          %642 = vsyncadd %s638, 0
          %s643 = scalar_lea.hbm %s13, %s43
          %s645 = sshll.u32 %s643, 4
          %s646 = int_to_ptr.hbm [resolvable:$true] %s645
          %s647 = sshll.u32 %s640, 4
          %s648 = int_to_ptr.vmem [resolvable:$true] %s647
          %650 = dma.hbm_to_vmem [thread:$0]  %s646, 16, %s648, %s638
        $region72: #{diffusion_head_forward.10} parent=15 // pred_fallthru
          _
      $region16: #{diffusion_head_forward.10} parent=5 // pred_fallthru
        _
      %p651 = scmp.le.s32.totalorder 1, %s35
      %p652 = scmp.lt.s32.totalorder %s35, 5
      %p653 = pnand %p651, %p652
      %p654 = pneg %p653
      // Predicated region
      $region73: #{diffusion_head_forward.10} parent=5 // pred_check
        _
      $region74: #{diffusion_head_forward.10} parent=5 // pred_check_branch
        %656 = sbr.rel (%p653) target = $region76
      $region75: #{diffusion_head_forward.10} parent=5 // pred_region
        %s657 = ssub.s32 %s35, 1
        %s658 = sand.u32 %s190, 1
        %s659 = scalar_lea.sflag [#allocation4], %s658
        %s660 = sand.u32 %s190, 1
        %s661 = scalar_lea.vmem [#allocation3], %s660
        // Predicated region
        $region77: #{diffusion_head_forward.10} parent=75 // pred_check
          %p662 = pneg %p203
        $region78: #{diffusion_head_forward.10} parent=75 // pred_check_branch
          %664 = sbr.rel (%p662) target = $region80
        $region79: #{diffusion_head_forward.10} parent=75 // pred_region
          %666 = dma.done %s659, 16
        $region80: #{diffusion_head_forward.10} parent=75 // pred_fallthru
          _
        %s667 = sand.u32 %s40, 1
        %s668 = scalar_lea.sflag [#allocation6], %s667
        %s669 = sand.u32 %s216, 1
        %s670 = smul.addr %s669, 32
        %s671 = scalar_lea.vmem [#allocation5], %s670
        // Predicated region
        $region81: #{diffusion_head_forward.10} parent=75 // pred_check
          %p672 = pneg %p229
        $region82: #{diffusion_head_forward.10} parent=75 // pred_check_branch
          %674 = sbr.rel (%p672) target = $region84
        $region83: #{diffusion_head_forward.10} parent=75 // pred_region
          %676 = dma.done %s668, 512
        $region84: #{diffusion_head_forward.10} parent=75 // pred_fallthru
          _
        %s677 = sand.u32 %s40, 1
        %s678 = scalar_lea.sflag [#allocation6], %s677
        %s679 = sand.u32 %s242, 1
        %s680 = scalar_lea.vmem [#allocation7], %s679
        // Predicated region
        $region85: #{diffusion_head_forward.10} parent=75 // pred_check
          %p681 = pneg %p255
        $region86: #{diffusion_head_forward.10} parent=75 // pred_check_branch
          %683 = sbr.rel (%p681) target = $region88
        $region87: #{diffusion_head_forward.10} parent=75 // pred_region
          %685 = dma.done %s678, 16
        $region88: #{diffusion_head_forward.10} parent=75 // pred_fallthru
          _
        %s686 = sand.u32 %s40, 1
        %s687 = scalar_lea.sflag [#allocation9], %s686
        %s688 = sand.u32 %s268, 1
        %s689 = smul.addr %s688, 32
        %s690 = scalar_lea.vmem [#allocation8], %s689
        // Predicated region
        $region89: #{diffusion_head_forward.10} parent=75 // pred_check
          %p691 = pneg %p281
        $region90: #{diffusion_head_forward.10} parent=75 // pred_check_branch
          %693 = sbr.rel (%p691) target = $region92
        $region91: #{diffusion_head_forward.10} parent=75 // pred_region
          %695 = dma.done %s687, 512
        $region92: #{diffusion_head_forward.10} parent=75 // pred_fallthru
          _
        %s696 = sand.u32 %s40, 1
        %s697 = scalar_lea.sflag [#allocation9], %s696
        %s698 = sand.u32 %s294, 1
        %s699 = scalar_lea.vmem [#allocation10], %s698
        // Predicated region
        $region93: #{diffusion_head_forward.10} parent=75 // pred_check
          %p700 = pneg %p307
        $region94: #{diffusion_head_forward.10} parent=75 // pred_check_branch
          %702 = sbr.rel (%p700) target = $region96
        $region95: #{diffusion_head_forward.10} parent=75 // pred_region
          %704 = dma.done %s697, 16
        $region96: #{diffusion_head_forward.10} parent=75 // pred_fallthru
          _
        %s705 = sand.u32 %s40, 1
        %s706 = scalar_lea.sflag [#allocation12], %s705
        %s707 = sand.u32 %s320, 1
        %s708 = smul.addr %s707, 32
        %s709 = scalar_lea.vmem [#allocation11], %s708
        // Predicated region
        $region97: #{diffusion_head_forward.10} parent=75 // pred_check
          %p710 = pneg %p333
        $region98: #{diffusion_head_forward.10} parent=75 // pred_check_branch
          %712 = sbr.rel (%p710) target = $region100
        $region99: #{diffusion_head_forward.10} parent=75 // pred_region
          %714 = dma.done %s706, 512
        $region100: #{diffusion_head_forward.10} parent=75 // pred_fallthru
          _
        %s715 = sand.u32 %s40, 1
        %s716 = scalar_lea.sflag [#allocation12], %s715
        %s717 = sand.u32 %s346, 1
        %s718 = scalar_lea.vmem [#allocation13], %s717
        // Predicated region
        $region101: #{diffusion_head_forward.10} parent=75 // pred_check
          %p719 = pneg %p359
        $region102: #{diffusion_head_forward.10} parent=75 // pred_check_branch
          %721 = sbr.rel (%p719) target = $region104
        $region103: #{diffusion_head_forward.10} parent=75 // pred_region
          %723 = dma.done %s716, 16
        $region104: #{diffusion_head_forward.10} parent=75 // pred_fallthru
          _
        %s724 = sand.u32 %s398, 1
        %s725 = scalar_lea.sflag [#allocation15], %s724
        %s726 = sand.u32 %s398, 1
        %s727 = scalar_lea.vmem [#allocation14], %s726
        // Predicated region
        $region105: #{diffusion_head_forward.10} parent=75 // pred_check
          %p728 = pneg %p411
        $region106: #{diffusion_head_forward.10} parent=75 // pred_check_branch
          %730 = sbr.rel (%p728) target = $region108
        $region107: #{diffusion_head_forward.10} parent=75 // pred_region
          %732 = dma.done %s725, 16
        $region108: #{diffusion_head_forward.10} parent=75 // pred_fallthru
          _
        %p733 = scmp.lt.s32.totalorder %s44, 1
        %s734 = scalar_select %p733, %s44, 1
        %s735 = scalar_lea.vmem %s0, %s734
        %p736 = pneg %p73
        %p737 = pneg %p70
        %p738 = scmp.lt.s32.totalorder %s44, 1
        %s739 = scalar_select %p738, %s44, 1
        %s740 = smul.addr %s739, 2
        %s741 = smul.addr %s740, 8
        %s742 = scalar_lea.vmem %s1, %s741
        %p743 = pneg %p99
        %p744 = pneg %p96
        %p745 = scmp.lt.s32.totalorder %s45, 1
        %s746 = scalar_select %p745, %s45, 1
        %s747 = smul.addr %s746, 4
        %s748 = smul.addr %s747, 8
        %s749 = scalar_lea.vmem %s2, %s748
        %p750 = pneg %p125
        %p751 = pneg %p122
        %p752 = scmp.lt.s32.totalorder %s45, 1
        %s753 = scalar_select %p752, %s45, 1
        %s754 = scalar_lea.vmem %s3, %s753
        %p755 = pneg %p151
        %p756 = pneg %p148
        %p757 = scmp.lt.s32.totalorder %s45, 1
        %s758 = scalar_select %p757, %s45, 1
        %s759 = smul.addr %s758, 4
        %s760 = smul.addr %s759, 8
        %s761 = scalar_lea.vmem %s4, %s760
        %p762 = pneg %p177
        %p763 = pneg %p174
        %s764 = sand.u32 %s190, 1
        %s765 = scalar_lea.sflag [#allocation4], %s764
        %s766 = sand.u32 %s190, 1
        %s767 = scalar_lea.vmem [#allocation3], %s766
        %p768 = pneg %p203
        %p769 = pneg %p200
        %s770 = sand.u32 %s40, 1
        %s771 = scalar_lea.sflag [#allocation6], %s770
        %s772 = sand.u32 %s216, 1
        %s773 = smul.addr %s772, 32
        %s774 = scalar_lea.vmem [#allocation5], %s773
        %p775 = pneg %p229
        %p776 = pneg %p226
        %s777 = sand.u32 %s40, 1
        %s778 = scalar_lea.sflag [#allocation6], %s777
        %s779 = sand.u32 %s242, 1
        %s780 = scalar_lea.vmem [#allocation7], %s779
        %p781 = pneg %p255
        %p782 = pneg %p252
        %s783 = sand.u32 %s40, 1
        %s784 = scalar_lea.sflag [#allocation9], %s783
        %s785 = sand.u32 %s268, 1
        %s786 = smul.addr %s785, 32
        %s787 = scalar_lea.vmem [#allocation8], %s786
        %p788 = pneg %p281
        %p789 = pneg %p278
        %s790 = sand.u32 %s40, 1
        %s791 = scalar_lea.sflag [#allocation9], %s790
        %s792 = sand.u32 %s294, 1
        %s793 = scalar_lea.vmem [#allocation10], %s792
        %p794 = pneg %p307
        %p795 = pneg %p304
        %s796 = sand.u32 %s40, 1
        %s797 = scalar_lea.sflag [#allocation12], %s796
        %s798 = sand.u32 %s320, 1
        %s799 = smul.addr %s798, 32
        %s800 = scalar_lea.vmem [#allocation11], %s799
        %p801 = pneg %p333
        %p802 = pneg %p330
        %s803 = sand.u32 %s40, 1
        %s804 = scalar_lea.sflag [#allocation12], %s803
        %s805 = sand.u32 %s346, 1
        %s806 = scalar_lea.vmem [#allocation13], %s805
        %p807 = pneg %p359
        %p808 = pneg %p356
        %p809 = scmp.lt.s32.totalorder %s45, 1
        %s810 = scalar_select %p809, %s45, 1
        %s811 = smul.addr %s810, 8
        %s812 = smul.addr %s811, 8
        %s813 = scalar_lea.vmem %s12, %s812
        %p814 = pneg %p385
        %p815 = pneg %p382
        %s816 = sand.u32 %s398, 1
        %s817 = scalar_lea.sflag [#allocation15], %s816
        %s818 = sand.u32 %s398, 1
        %s819 = scalar_lea.vmem [#allocation14], %s818
        %p820 = pneg %p411
        %p821 = pneg %p408
        %p822 = pneg %p437
        %p823 = pneg %p434
        %p824 = scmp.lt.s32.totalorder %s44, 1
        %s825 = scalar_select %p824, %s44, 1
        %s826 = smul.addr %s825, 2
        %s827 = smul.addr %s826, 8
        %s828 = scalar_lea.vmem %s14, %s827
        %p829 = scmp.lt.s32.totalorder %s44, 1
        %s830 = scalar_select %p829, %s44, 1
        %s831 = scalar_lea.vmem %s0, %s830
        %p832 = scmp.lt.s32.totalorder %s44, 1
        %s833 = scalar_select %p832, %s44, 1
        %s834 = smul.addr %s833, 2
        %s835 = smul.addr %s834, 8
        %s836 = scalar_lea.vmem %s1, %s835
        %p837 = scmp.lt.s32.totalorder %s45, 1
        %s838 = scalar_select %p837, %s45, 1
        %s839 = smul.addr %s838, 4
        %s840 = smul.addr %s839, 8
        %s841 = scalar_lea.vmem %s2, %s840
        %p842 = scmp.lt.s32.totalorder %s45, 1
        %s843 = scalar_select %p842, %s45, 1
        %s844 = scalar_lea.vmem %s3, %s843
        %p845 = scmp.lt.s32.totalorder %s45, 1
        %s846 = scalar_select %p845, %s45, 1
        %s847 = smul.addr %s846, 4
        %s848 = smul.addr %s847, 8
        %s849 = scalar_lea.vmem %s4, %s848
        %p850 = scmp.lt.s32.totalorder %s45, 1
        %s851 = scalar_select %p850, %s45, 1
        %s852 = smul.addr %s851, 8
        %s853 = smul.addr %s852, 8
        %s854 = scalar_lea.vmem %s12, %s853
        %p855 = scmp.lt.s32.totalorder %s44, 1
        %s856 = scalar_select %p855, %s44, 1
        %s857 = smul.addr %s856, 2
        %s858 = smul.addr %s857, 8
        %s859 = scalar_lea.vmem %s14, %s858
        %p860 = scmp.eq.s32.totalorder %s45, 0
        // Predicated region
        $region109: #{diffusion_head_forward.10} parent=75 // pred_check
          %p861 = pneg %p860
        $region110: #{diffusion_head_forward.10} parent=75 // pred_check_branch
          %863 = sbr.rel (%p861) target = $region112
        $region111: #{diffusion_head_forward.10} parent=75 // pred_region
          %v864 = vld [vmem:[%s836] sm:$0xff]
          %v865 = vld [vmem:[%s836 + $0x8] sm:$0xf]
          %vm866 = vcmask 261120
          %867 = vst.msk [vmem:[#allocation2] sm:$0xff] %vm866, %v864
          %vm868 = vcmask 257024
          %869 = vst.msk [vmem:[#allocation2 + $0x8] sm:$0xf] %vm868, %v865
        $region112: #{diffusion_head_forward.10} parent=75 // pred_fallthru
          _
        %v870 = vld [vmem:[#allocation2] sm:$0xff]
        %v871 = vld [vmem:[#allocation2 + $0x8] sm:$0xf]
        %v872 = vld [vmem:[%s831] sm:$0x1]
        %v873 = vld [vmem:[%s841] sm:$0xff]
        %v874 = vld [vmem:[%s841 + $0x8] sm:$0xff]
        %v875 = vld [vmem:[%s841 + $0x10] sm:$0xff]
        %v876 = vld [vmem:[%s841 + $0x18] sm:$0xff]
        %v877 = vld [vmem:[%s844] sm:$0x1]
        %vm878 = vcmask 261120
        %v880 = vsel %vm878, %v872, 0
        %882 = vmatpush.msra.mxu0 0.0
        %883 = vmatpush.msra.mxu0 0.0
        %884 = vmatpush.msra.mxu0 0.0
        %885 = vmatpush.msra.mxu0 0.0
        %886 = vmatpush.msra.mxu0 0.0
        %887 = vmatpush.msra.mxu0 0.0
        %888 = vmatpush.msra.mxu0 0.0
        %889 = vmatpush.msra.mxu0 0.0
        %890 = vmatpush.msra.mxu0 0.0
        %891 = vmatpush.msra.mxu0 0.0
        %892 = vmatpush.msra.mxu0 0.0
        %893 = vmatpush.msra.mxu0 0.0
        %894 = vmatpush.msra.mxu0 %v876
        %895 = vmatpush.msra.mxu0 %v875
        %896 = vmatpush.msra.mxu0 %v874
        %897 = vmatpush.msra.mxu0 %v873
        %898 = vmatmul.f32.gmra.mxu0 %v880
        %v899 = vpop.f32.mrf.mxu0
        %v900 = vadd.f32 %v877, %v899
        %901 = vdwg.mxu0
        %v902 = vsel %vm878, %v870, 0.0
        %903 = vadd.xlane.f32.xlu0 %v902
        %v904 = vpop.xlane.xlu0 %903
        %vm905 = vcmask 257024
        %v906 = vsel %vm905, %v871, 0.0
        %907 = vadd.xlane.f32.xlu0 %v906
        %v908 = vpop.xlane.xlu0 %907
        %v909 = vrcp.pop 32.0
        %v910 = vmul.f32 32.0, %v909
        %v911 = vsub.f32 1.0, %v910
        %v912 = vmul.f32 %v909, %v911
        %v913 = vadd.f32 %v909, %v912
        %vm914 = vweird.f32 %v909
        %v915 = vsel %vm914, %v909, %v913
        %v916 = vmul.f32 %v904, %v915
        %v917 = vmul.f32 %v908, %v915
        %v918 = vsub.f32 %v870, %v916
        %v919 = vsub.f32 %v871, %v917
        %v920 = vmul.f32 %v918, %v918
        %v921 = vmul.f32 %v919, %v919
        %v922 = vsel %vm878, %v920, 0.0
        %923 = vadd.xlane.f32.xlu0 %v922
        %v924 = vpop.xlane.xlu0 %923
        %v925 = vsel %vm905, %v921, 0.0
        %926 = vadd.xlane.f32.xlu0 %v925
        %v927 = vpop.xlane.xlu0 %926
        %v928 = vmul.f32 %v924, %v915
        %v929 = vmul.f32 %v927, %v915
        %v930 = vadd.f32 %v928, 1e-05
        %v931 = vadd.f32 %v929, 1e-05
        %v932 = vrsqrt.pop %v930
        %v933 = vmul.f32 %v932, %v930
        %v934 = vmul.f32 %v933, %v932
        %v935 = vmul.f32 0.5, %v934
        %v936 = vsub.f32 1.5, %v935
        %v937 = vmul.f32 %v932, %v936
        %vm938 = vweird.f32 %v930
        %vm939 = vweird.f32 %v932
        %vm940 = vmor %vm938, %vm939
        %v941 = vsel %vm940, %v932, %v937
        %v942 = vrsqrt.pop %v931
        %v943 = vmul.f32 %v942, %v931
        %v944 = vmul.f32 %v943, %v942
        %v945 = vmul.f32 0.5, %v944
        %v946 = vsub.f32 1.5, %v945
        %v947 = vmul.f32 %v942, %v946
        %vm948 = vweird.f32 %v931
        %vm949 = vweird.f32 %v942
        %vm950 = vmor %vm948, %vm949
        %v951 = vsel %vm950, %v942, %v947
        %v952 = vmul.f32 %v918, %v941
        %v953 = vmul.f32 %v919, %v951
        %v954 = vadd.f32 %v900, 1.0
        %v955 = vperm.slane %v954, 0
        %v956 = vmul.f32 %v952, %v955
        %v957 = vmul.f32 %v953, %v955
        %v958 = vperm.slane %v900, 0
        %960 = vrot.lane.b32.xlu0 %v958, 96
        %v961 = vpop.permute.xlu0 %960
        %v963 = vadd.f32 %v956, %v961
        %v964 = vadd.f32 %v957, %v961
        %v965 = vld [vmem:[%s849] sm:$0xff]
        %v966 = vld [vmem:[%s849 + $0x8] sm:$0xff]
        %v967 = vld [vmem:[%s849 + $0x10] sm:$0xff]
        %v968 = vld [vmem:[%s849 + $0x18] sm:$0xff]
        %v969 = vld [vmem:[%s661] sm:$0x1]
        %v971 = vperm.slane %v969, 0
        %v974 = vsel %vm878, %v963, 0
        %v977 = vsel %vm878, %v964, 0
        %979 = vmatpush.msra.mxu0 0.0
        %980 = vmatpush.msra.mxu0 0.0
        %981 = vmatpush.msra.mxu0 0.0
        %982 = vmatpush.msra.mxu0 0.0
        %983 = vmatpush.msra.mxu0 0.0
        %984 = vmatpush.msra.mxu0 0.0
        %985 = vmatpush.msra.mxu0 0.0
        %986 = vmatpush.msra.mxu0 0.0
        %987 = vmatpush.msra.mxu0 0.0
        %988 = vmatpush.msra.mxu0 0.0
        %989 = vmatpush.msra.mxu0 0.0
        %990 = vmatpush.msra.mxu0 0.0
        %991 = vmatpush.msra.mxu0 %v968
        %992 = vmatpush.msra.mxu0 %v967
        %993 = vmatpush.msra.mxu0 %v966
        %994 = vmatpush.msra.mxu0 %v965
        %995 = vmatmul.f32.gmra.mxu0 %v974
        %v996 = vpop.f32.mrf.mxu0
        %v997 = vadd.f32 %v971, %v996
        %998 = vmatmul.f32.gmra.mxu0 %v977
        %v999 = vpop.f32.mrf.mxu0
        %v1000 = vadd.f32 %v971, %v999
        %1001 = vdwg.mxu0
        %1004 = vrot.lane.b32.xlu0 %v997, 96
        %v1005 = vpop.permute.xlu0 %1004
        %1006 = vrot.lane.b32.xlu0 %v1000, 96
        %v1007 = vpop.permute.xlu0 %1006
        %vm1008 = vcmask 64512
        %v1009 = vsel %vm1008, %v997, 0
        %v1011 = vsel %vm1008, %v1000, 0
        %v1013 = vsel %vm1008, %v1005, 0
        %v1015 = vsel %vm1008, %v1007, 0
        %1017 = vmatpush.xpose.msra.mxu0 0.0
        %1018 = vmatpush.xpose.msra.mxu0 0.0
        %1019 = vmatpush.xpose.msra.mxu0 0.0
        %1020 = vmatpush.xpose.msra.mxu0 0.0
        %1021 = vmatpush.xpose.msra.mxu0 0.0
        %1022 = vmatpush.xpose.msra.mxu0 0.0
        %1023 = vmatpush.xpose.msra.mxu0 0.0
        %1024 = vmatpush.xpose.msra.mxu0 0.0
        %1025 = vmatpush.xpose.msra.mxu0 0.0
        %1026 = vmatpush.xpose.msra.mxu0 0.0
        %1027 = vmatpush.xpose.msra.mxu0 0.0
        %1028 = vmatpush.xpose.msra.mxu0 0.0
        %1029 = vmatpush.xpose.msra.mxu0 0.0
        %1030 = vmatpush.xpose.msra.mxu0 0.0
        %1031 = vmatpush.xpose.msra.mxu0 %v1015
        %1032 = vmatpush.xpose.msra.mxu0 %v1013
        %1033 = vmatmul.f32.gmra.mxu0 %v1009
        %v1034 = vpop.f32.mrf.mxu0
        %v1035 = vadd.f32 0.0, %v1034
        %1036 = vmatmul.f32.gmra.mxu0 %v1011
        %v1037 = vpop.f32.mrf.mxu0
        %v1038 = vadd.f32 0.0, %v1037
        %1039 = vdwg.mxu0
        %v1040 = vmul.f32 %v1035, 0.35355338
        %v1041 = vmul.f32 %v1038, 0.35355338
        %vm1042 = vcmask 97280
        %v1043 = vsel %vm1042, %v1040, -inf
        %1044 = vmax.xlane.f32.xlu0 %v1043
        %v1045 = vpop.xlane.xlu0 %1044
        %vm1046 = vcmask 93184
        %v1047 = vsel %vm1046, %v1041, -inf
        %1048 = vmax.xlane.f32.xlu0 %v1047
        %v1049 = vpop.xlane.xlu0 %1048
        %v1050 = vsub.f32 %v1040, %v1045
        %v1051 = vsub.f32 %v1041, %v1049
        %v1052 = vmul.f32 %v1050, 1.442695
        %v1053 = vpow.pop %v1052
        %v1054 = vmul.f32 %v1051, 1.442695
        %v1055 = vpow.pop %v1054
        %v1056 = vsel %vm1042, %v1053, 0.0
        %1057 = vadd.xlane.f32.xlu0 %v1056
        %v1058 = vpop.xlane.xlu0 %1057
        %v1059 = vsel %vm1046, %v1055, 0.0
        %1060 = vadd.xlane.f32.xlu0 %v1059
        %v1061 = vpop.xlane.xlu0 %1060
        %v1062 = vrcp.pop %v1058
        %v1063 = vrcp.pop %v1061
        %v1064 = vmul.f32 %v1053, %v1062
        %v1065 = vmul.f32 %v1055, %v1063
        %1066 = vrot.lane.b32.xlu0 %v997, 64
        %v1067 = vpop.permute.xlu0 %1066
        %1068 = vrot.lane.b32.xlu0 %v1000, 64
        %v1069 = vpop.permute.xlu0 %1068
        %v1072 = vsel %vm1042, %v1064, 0
        %v1075 = vsel %vm1042, %v1065, 0
        %vm1077 = vcmask 1043456
        %v1078 = vsel %vm1077, %v1069, 0
        %1080 = vmatpush.msra.mxu0 0.0
        %1081 = vmatpush.msra.mxu0 0.0
        %1082 = vmatpush.msra.mxu0 0.0
        %1083 = vmatpush.msra.mxu0 0.0
        %1084 = vmatpush.msra.mxu0 0.0
        %1085 = vmatpush.msra.mxu0 0.0
        %1086 = vmatpush.msra.mxu0 0.0
        %1087 = vmatpush.msra.mxu0 0.0
        %1088 = vmatpush.msra.mxu0 0.0
        %1089 = vmatpush.msra.mxu0 0.0
        %1090 = vmatpush.msra.mxu0 0.0
        %1091 = vmatpush.msra.mxu0 0.0
        %1092 = vmatpush.msra.mxu0 0.0
        %1093 = vmatpush.msra.mxu0 0.0
        %1094 = vmatpush.msra.mxu0 %v1078
        %1095 = vmatpush.msra.mxu0 %v1067
        %1096 = vmatmul.f32.gmra.mxu0 %v1072
        %v1097 = vpop.f32.mrf.mxu0
        %v1098 = vadd.f32 0.0, %v1097
        %1099 = vmatmul.f32.gmra.mxu0 %v1075
        %v1100 = vpop.f32.mrf.mxu0
        %v1101 = vadd.f32 0.0, %v1100
        %1102 = vdwg.mxu0
        %1103 = vrot.lane.b32.xlu0 %v997, 120
        %v1104 = vpop.permute.xlu0 %1103
        %1105 = vrot.lane.b32.xlu0 %v1000, 120
        %v1106 = vpop.permute.xlu0 %1105
        %1107 = vrot.lane.b32.xlu0 %v997, 88
        %v1108 = vpop.permute.xlu0 %1107
        %1109 = vrot.lane.b32.xlu0 %v1000, 88
        %v1110 = vpop.permute.xlu0 %1109
        %v1111 = vsel %vm1008, %v1104, 0
        %v1113 = vsel %vm1008, %v1106, 0
        %v1115 = vsel %vm1008, %v1108, 0
        %v1117 = vsel %vm1008, %v1110, 0
        %1119 = vmatpush.xpose.msra.mxu0 0.0
        %1120 = vmatpush.xpose.msra.mxu0 0.0
        %1121 = vmatpush.xpose.msra.mxu0 0.0
        %1122 = vmatpush.xpose.msra.mxu0 0.0
        %1123 = vmatpush.xpose.msra.mxu0 0.0
        %1124 = vmatpush.xpose.msra.mxu0 0.0
        %1125 = vmatpush.xpose.msra.mxu0 0.0
        %1126 = vmatpush.xpose.msra.mxu0 0.0
        %1127 = vmatpush.xpose.msra.mxu0 0.0
        %1128 = vmatpush.xpose.msra.mxu0 0.0
        %1129 = vmatpush.xpose.msra.mxu0 0.0
        %1130 = vmatpush.xpose.msra.mxu0 0.0
        %1131 = vmatpush.xpose.msra.mxu0 0.0
        %1132 = vmatpush.xpose.msra.mxu0 0.0
        %1133 = vmatpush.xpose.msra.mxu0 %v1117
        %1134 = vmatpush.xpose.msra.mxu0 %v1115
        %1135 = vmatmul.f32.gmra.mxu0 %v1111
        %v1136 = vpop.f32.mrf.mxu0
        %v1137 = vadd.f32 0.0, %v1136
        %1138 = vmatmul.f32.gmra.mxu0 %v1113
        %v1139 = vpop.f32.mrf.mxu0
        %v1140 = vadd.f32 0.0, %v1139
        %1141 = vdwg.mxu0
        %v1142 = vmul.f32 %v1137, 0.35355338
        %v1143 = vmul.f32 %v1140, 0.35355338
        %v1144 = vsel %vm1042, %v1142, -inf
        %1145 = vmax.xlane.f32.xlu0 %v1144
        %v1146 = vpop.xlane.xlu0 %1145
        %v1147 = vsel %vm1046, %v1143, -inf
        %1148 = vmax.xlane.f32.xlu0 %v1147
        %v1149 = vpop.xlane.xlu0 %1148
        %v1150 = vsub.f32 %v1142, %v1146
        %v1151 = vsub.f32 %v1143, %v1149
        %v1152 = vmul.f32 %v1150, 1.442695
        %v1153 = vpow.pop %v1152
        %v1154 = vmul.f32 %v1151, 1.442695
        %v1155 = vpow.pop %v1154
        %v1156 = vsel %vm1042, %v1153, 0.0
        %1157 = vadd.xlane.f32.xlu0 %v1156
        %v1158 = vpop.xlane.xlu0 %1157
        %v1159 = vsel %vm1046, %v1155, 0.0
        %1160 = vadd.xlane.f32.xlu0 %v1159
        %v1161 = vpop.xlane.xlu0 %1160
        %v1162 = vrcp.pop %v1158
        %v1163 = vrcp.pop %v1161
        %v1164 = vmul.f32 %v1153, %v1162
        %v1165 = vmul.f32 %v1155, %v1163
        %1166 = vrot.lane.b32.xlu0 %v997, 56
        %v1167 = vpop.permute.xlu0 %1166
        %1168 = vrot.lane.b32.xlu0 %v1000, 56
        %v1169 = vpop.permute.xlu0 %1168
        %v1172 = vsel %vm1042, %v1164, 0
        %v1175 = vsel %vm1042, %v1165, 0
        %v1177 = vsel %vm1077, %v1169, 0
        %1179 = vmatpush.msra.mxu0 0.0
        %1180 = vmatpush.msra.mxu0 0.0
        %1181 = vmatpush.msra.mxu0 0.0
        %1182 = vmatpush.msra.mxu0 0.0
        %1183 = vmatpush.msra.mxu0 0.0
        %1184 = vmatpush.msra.mxu0 0.0
        %1185 = vmatpush.msra.mxu0 0.0
        %1186 = vmatpush.msra.mxu0 0.0
        %1187 = vmatpush.msra.mxu0 0.0
        %1188 = vmatpush.msra.mxu0 0.0
        %1189 = vmatpush.msra.mxu0 0.0
        %1190 = vmatpush.msra.mxu0 0.0
        %1191 = vmatpush.msra.mxu0 0.0
        %1192 = vmatpush.msra.mxu0 0.0
        %1193 = vmatpush.msra.mxu0 %v1177
        %1194 = vmatpush.msra.mxu0 %v1167
        %1195 = vmatmul.f32.gmra.mxu0 %v1172
        %v1196 = vpop.f32.mrf.mxu0
        %v1197 = vadd.f32 0.0, %v1196
        %1198 = vmatmul.f32.gmra.mxu0 %v1175
        %v1199 = vpop.f32.mrf.mxu0
        %v1200 = vadd.f32 0.0, %v1199
        %1201 = vdwg.mxu0
        %1202 = vrot.lane.b32.xlu0 %v997, 112
        %v1203 = vpop.permute.xlu0 %1202
        %1204 = vrot.lane.b32.xlu0 %v1000, 112
        %v1205 = vpop.permute.xlu0 %1204
        %1206 = vrot.lane.b32.xlu0 %v997, 80
        %v1207 = vpop.permute.xlu0 %1206
        %1208 = vrot.lane.b32.xlu0 %v1000, 80
        %v1209 = vpop.permute.xlu0 %1208
        %v1210 = vsel %vm1008, %v1203, 0
        %v1212 = vsel %vm1008, %v1205, 0
        %v1214 = vsel %vm1008, %v1207, 0
        %v1216 = vsel %vm1008, %v1209, 0
        %1218 = vmatpush.xpose.msra.mxu0 0.0
        %1219 = vmatpush.xpose.msra.mxu0 0.0
        %1220 = vmatpush.xpose.msra.mxu0 0.0
        %1221 = vmatpush.xpose.msra.mxu0 0.0
        %1222 = vmatpush.xpose.msra.mxu0 0.0
        %1223 = vmatpush.xpose.msra.mxu0 0.0
        %1224 = vmatpush.xpose.msra.mxu0 0.0
        %1225 = vmatpush.xpose.msra.mxu0 0.0
        %1226 = vmatpush.xpose.msra.mxu0 0.0
        %1227 = vmatpush.xpose.msra.mxu0 0.0
        %1228 = vmatpush.xpose.msra.mxu0 0.0
        %1229 = vmatpush.xpose.msra.mxu0 0.0
        %1230 = vmatpush.xpose.msra.mxu0 0.0
        %1231 = vmatpush.xpose.msra.mxu0 0.0
        %1232 = vmatpush.xpose.msra.mxu0 %v1216
        %1233 = vmatpush.xpose.msra.mxu0 %v1214
        %1234 = vmatmul.f32.gmra.mxu0 %v1210
        %v1235 = vpop.f32.mrf.mxu0
        %v1236 = vadd.f32 0.0, %v1235
        %1237 = vmatmul.f32.gmra.mxu0 %v1212
        %v1238 = vpop.f32.mrf.mxu0
        %v1239 = vadd.f32 0.0, %v1238
        %1240 = vdwg.mxu0
        %v1241 = vmul.f32 %v1236, 0.35355338
        %v1242 = vmul.f32 %v1239, 0.35355338
        %v1243 = vsel %vm1042, %v1241, -inf
        %1244 = vmax.xlane.f32.xlu0 %v1243
        %v1245 = vpop.xlane.xlu0 %1244
        %v1246 = vsel %vm1046, %v1242, -inf
        %1247 = vmax.xlane.f32.xlu0 %v1246
        %v1248 = vpop.xlane.xlu0 %1247
        %v1249 = vsub.f32 %v1241, %v1245
        %v1250 = vsub.f32 %v1242, %v1248
        %v1251 = vmul.f32 %v1249, 1.442695
        %v1252 = vpow.pop %v1251
        %v1253 = vmul.f32 %v1250, 1.442695
        %v1254 = vpow.pop %v1253
        %v1255 = vsel %vm1042, %v1252, 0.0
        %1256 = vadd.xlane.f32.xlu0 %v1255
        %v1257 = vpop.xlane.xlu0 %1256
        %v1258 = vsel %vm1046, %v1254, 0.0
        %1259 = vadd.xlane.f32.xlu0 %v1258
        %v1260 = vpop.xlane.xlu0 %1259
        %v1261 = vrcp.pop %v1257
        %v1262 = vrcp.pop %v1260
        %v1263 = vmul.f32 %v1252, %v1261
        %v1264 = vmul.f32 %v1254, %v1262
        %1265 = vrot.lane.b32.xlu0 %v997, 48
        %v1266 = vpop.permute.xlu0 %1265
        %1267 = vrot.lane.b32.xlu0 %v1000, 48
        %v1268 = vpop.permute.xlu0 %1267
        %v1271 = vsel %vm1042, %v1263, 0
        %v1274 = vsel %vm1042, %v1264, 0
        %v1276 = vsel %vm1077, %v1268, 0
        %1278 = vmatpush.msra.mxu0 0.0
        %1279 = vmatpush.msra.mxu0 0.0
        %1280 = vmatpush.msra.mxu0 0.0
        %1281 = vmatpush.msra.mxu0 0.0
        %1282 = vmatpush.msra.mxu0 0.0
        %1283 = vmatpush.msra.mxu0 0.0
        %1284 = vmatpush.msra.mxu0 0.0
        %1285 = vmatpush.msra.mxu0 0.0
        %1286 = vmatpush.msra.mxu0 0.0
        %1287 = vmatpush.msra.mxu0 0.0
        %1288 = vmatpush.msra.mxu0 0.0
        %1289 = vmatpush.msra.mxu0 0.0
        %1290 = vmatpush.msra.mxu0 0.0
        %1291 = vmatpush.msra.mxu0 0.0
        %1292 = vmatpush.msra.mxu0 %v1276
        %1293 = vmatpush.msra.mxu0 %v1266
        %1294 = vmatmul.f32.gmra.mxu0 %v1271
        %v1295 = vpop.f32.mrf.mxu0
        %v1296 = vadd.f32 0.0, %v1295
        %1297 = vmatmul.f32.gmra.mxu0 %v1274
        %v1298 = vpop.f32.mrf.mxu0
        %v1299 = vadd.f32 0.0, %v1298
        %1300 = vdwg.mxu0
        %1301 = vrot.lane.b32.xlu0 %v997, 104
        %v1302 = vpop.permute.xlu0 %1301
        %1303 = vrot.lane.b32.xlu0 %v1000, 104
        %v1304 = vpop.permute.xlu0 %1303
        %1305 = vrot.lane.b32.xlu0 %v997, 72
        %v1306 = vpop.permute.xlu0 %1305
        %1307 = vrot.lane.b32.xlu0 %v1000, 72
        %v1308 = vpop.permute.xlu0 %1307
        %v1309 = vsel %vm1008, %v1302, 0
        %v1311 = vsel %vm1008, %v1304, 0
        %v1313 = vsel %vm1008, %v1306, 0
        %v1315 = vsel %vm1008, %v1308, 0
        %1317 = vmatpush.xpose.msra.mxu0 0.0
        %1318 = vmatpush.xpose.msra.mxu0 0.0
        %1319 = vmatpush.xpose.msra.mxu0 0.0
        %1320 = vmatpush.xpose.msra.mxu0 0.0
        %1321 = vmatpush.xpose.msra.mxu0 0.0
        %1322 = vmatpush.xpose.msra.mxu0 0.0
        %1323 = vmatpush.xpose.msra.mxu0 0.0
        %1324 = vmatpush.xpose.msra.mxu0 0.0
        %1325 = vmatpush.xpose.msra.mxu0 0.0
        %1326 = vmatpush.xpose.msra.mxu0 0.0
        %1327 = vmatpush.xpose.msra.mxu0 0.0
        %1328 = vmatpush.xpose.msra.mxu0 0.0
        %1329 = vmatpush.xpose.msra.mxu0 0.0
        %1330 = vmatpush.xpose.msra.mxu0 0.0
        %1331 = vmatpush.xpose.msra.mxu0 %v1315
        %1332 = vmatpush.xpose.msra.mxu0 %v1313
        %1333 = vmatmul.f32.gmra.mxu0 %v1309
        %v1334 = vpop.f32.mrf.mxu0
        %v1335 = vadd.f32 0.0, %v1334
        %1336 = vmatmul.f32.gmra.mxu0 %v1311
        %v1337 = vpop.f32.mrf.mxu0
        %v1338 = vadd.f32 0.0, %v1337
        %1339 = vdwg.mxu0
        %v1340 = vmul.f32 %v1335, 0.35355338
        %v1341 = vmul.f32 %v1338, 0.35355338
        %v1342 = vsel %vm1042, %v1340, -inf
        %1343 = vmax.xlane.f32.xlu0 %v1342
        %v1344 = vpop.xlane.xlu0 %1343
        %v1345 = vsel %vm1046, %v1341, -inf
        %1346 = vmax.xlane.f32.xlu0 %v1345
        %v1347 = vpop.xlane.xlu0 %1346
        %v1348 = vsub.f32 %v1340, %v1344
        %v1349 = vsub.f32 %v1341, %v1347
        %v1350 = vmul.f32 %v1348, 1.442695
        %v1351 = vpow.pop %v1350
        %v1352 = vmul.f32 %v1349, 1.442695
        %v1353 = vpow.pop %v1352
        %v1354 = vsel %vm1042, %v1351, 0.0
        %1355 = vadd.xlane.f32.xlu0 %v1354
        %v1356 = vpop.xlane.xlu0 %1355
        %v1357 = vsel %vm1046, %v1353, 0.0
        %1358 = vadd.xlane.f32.xlu0 %v1357
        %v1359 = vpop.xlane.xlu0 %1358
        %v1360 = vrcp.pop %v1356
        %v1361 = vrcp.pop %v1359
        %v1362 = vmul.f32 %v1351, %v1360
        %v1363 = vmul.f32 %v1353, %v1361
        %1364 = vrot.lane.b32.xlu0 %v997, 40
        %v1365 = vpop.permute.xlu0 %1364
        %1366 = vrot.lane.b32.xlu0 %v1000, 40
        %v1367 = vpop.permute.xlu0 %1366
        %v1370 = vsel %vm1042, %v1362, 0
        %v1373 = vsel %vm1042, %v1363, 0
        %v1375 = vsel %vm1077, %v1367, 0
        %1377 = vmatpush.msra.mxu0 0.0
        %1378 = vmatpush.msra.mxu0 0.0
        %1379 = vmatpush.msra.mxu0 0.0
        %1380 = vmatpush.msra.mxu0 0.0
        %1381 = vmatpush.msra.mxu0 0.0
        %1382 = vmatpush.msra.mxu0 0.0
        %1383 = vmatpush.msra.mxu0 0.0
        %1384 = vmatpush.msra.mxu0 0.0
        %1385 = vmatpush.msra.mxu0 0.0
        %1386 = vmatpush.msra.mxu0 0.0
        %1387 = vmatpush.msra.mxu0 0.0
        %1388 = vmatpush.msra.mxu0 0.0
        %1389 = vmatpush.msra.mxu0 0.0
        %1390 = vmatpush.msra.mxu0 0.0
        %1391 = vmatpush.msra.mxu0 %v1375
        %1392 = vmatpush.msra.mxu0 %v1365
        %1393 = vmatmul.f32.gmra.mxu0 %v1370
        %v1394 = vpop.f32.mrf.mxu0
        %v1395 = vadd.f32 0.0, %v1394
        %1396 = vmatmul.f32.gmra.mxu0 %v1373
        %v1397 = vpop.f32.mrf.mxu0
        %v1398 = vadd.f32 0.0, %v1397
        %1399 = vdwg.mxu0
        %1402 = vrot.lane.b32.xlu0 %v1197, 8
        %v1403 = vpop.permute.xlu0 %1402
        %1404 = vrot.lane.b32.xlu0 %v1200, 8
        %v1405 = vpop.permute.xlu0 %1404
        %1410 = vrot.lane.b32.xlu0 %v1296, 16
        %v1411 = vpop.permute.xlu0 %1410
        %1412 = vrot.lane.b32.xlu0 %v1299, 16
        %v1413 = vpop.permute.xlu0 %1412
        %1418 = vrot.lane.b32.xlu0 %v1395, 24
        %v1419 = vpop.permute.xlu0 %1418
        %1420 = vrot.lane.b32.xlu0 %v1398, 24
        %v1421 = vpop.permute.xlu0 %1420
        %v1424 = vsel %vm1008, %v1098, %v1403
        %v1425 = vsel %vm1008, %v1101, %v1405
        %vm1426 = vcmask 130048
        %v1427 = vsel %vm1426, %v1424, %v1411
        %v1428 = vsel %vm1426, %v1425, %v1413
        %vm1429 = vcmask 195584
        %v1430 = vsel %vm1429, %v1427, %v1419
        %v1431 = vsel %vm1429, %v1428, %v1421
        %v1432 = vld [vmem:[%s671] sm:$0xff]
        %v1433 = vld [vmem:[%s671 + $0x8] sm:$0xff]
        %v1434 = vld [vmem:[%s671 + $0x10] sm:$0xff]
        %v1435 = vld [vmem:[%s671 + $0x18] sm:$0xff]
        %v1437 = vsel %vm878, %v1430, 0
        %v1440 = vsel %vm878, %v1431, 0
        %1442 = vmatpush.msra.mxu0 0.0
        %1443 = vmatpush.msra.mxu0 0.0
        %1444 = vmatpush.msra.mxu0 0.0
        %1445 = vmatpush.msra.mxu0 0.0
        %1446 = vmatpush.msra.mxu0 0.0
        %1447 = vmatpush.msra.mxu0 0.0
        %1448 = vmatpush.msra.mxu0 0.0
        %1449 = vmatpush.msra.mxu0 0.0
        %1450 = vmatpush.msra.mxu0 0.0
        %1451 = vmatpush.msra.mxu0 0.0
        %1452 = vmatpush.msra.mxu0 0.0
        %1453 = vmatpush.msra.mxu0 0.0
        %1454 = vmatpush.msra.mxu0 %v1435
        %1455 = vmatpush.msra.mxu0 %v1434
        %1456 = vmatpush.msra.mxu0 %v1433
        %1457 = vmatpush.msra.mxu0 %v1432
        %1458 = vmatmul.f32.gmra.mxu0 %v1437
        %v1459 = vpop.f32.mrf.mxu0
        %v1460 = vadd.f32 0.0, %v1459
        %1461 = vmatmul.f32.gmra.mxu0 %v1440
        %v1462 = vpop.f32.mrf.mxu0
        %v1463 = vadd.f32 0.0, %v1462
        %1464 = vdwg.mxu0
        %v1465 = vadd.f32 %v870, %v1460
        %v1466 = vadd.f32 %v871, %v1463
        %v1467 = vld [vmem:[%s680] sm:$0x1]
        %v1469 = vperm.slane %v1467, 0
        %v1471 = vadd.f32 %v1465, %v1469
        %v1472 = vadd.f32 %v1466, %v1469
        %v1473 = vld [vmem:[%s690] sm:$0xff]
        %v1474 = vld [vmem:[%s690 + $0x8] sm:$0xff]
        %v1475 = vld [vmem:[%s690 + $0x10] sm:$0xff]
        %v1476 = vld [vmem:[%s690 + $0x18] sm:$0xff]
        %v1477 = vld [vmem:[%s699] sm:$0x1]
        %1478 = vmatpush.msra.mxu0 0.0
        %1479 = vmatpush.msra.mxu0 0.0
        %1480 = vmatpush.msra.mxu0 0.0
        %1481 = vmatpush.msra.mxu0 0.0
        %1482 = vmatpush.msra.mxu0 0.0
        %1483 = vmatpush.msra.mxu0 0.0
        %1484 = vmatpush.msra.mxu0 0.0
        %1485 = vmatpush.msra.mxu0 0.0
        %1486 = vmatpush.msra.mxu0 0.0
        %1487 = vmatpush.msra.mxu0 0.0
        %1488 = vmatpush.msra.mxu0 0.0
        %1489 = vmatpush.msra.mxu0 0.0
        %1490 = vmatpush.msra.mxu0 %v1476
        %1491 = vmatpush.msra.mxu0 %v1475
        %1492 = vmatpush.msra.mxu0 %v1474
        %1493 = vmatpush.msra.mxu0 %v1473
        %1494 = vmatmul.f32.gmra.mxu0 %v880
        %v1495 = vpop.f32.mrf.mxu0
        %v1496 = vadd.f32 %v1477, %v1495
        %1497 = vdwg.mxu0
        %v1498 = vsel %vm878, %v1471, 0.0
        %1499 = vadd.xlane.f32.xlu0 %v1498
        %v1500 = vpop.xlane.xlu0 %1499
        %v1501 = vsel %vm905, %v1472, 0.0
        %1502 = vadd.xlane.f32.xlu0 %v1501
        %v1503 = vpop.xlane.xlu0 %1502
        %v1504 = vmul.f32 %v1500, %v915
        %v1505 = vmul.f32 %v1503, %v915
        %v1506 = vsub.f32 %v1471, %v1504
        %v1507 = vsub.f32 %v1472, %v1505
        %v1508 = vmul.f32 %v1506, %v1506
        %v1509 = vmul.f32 %v1507, %v1507
        %v1510 = vsel %vm878, %v1508, 0.0
        %1511 = vadd.xlane.f32.xlu0 %v1510
        %v1512 = vpop.xlane.xlu0 %1511
        %v1513 = vsel %vm905, %v1509, 0.0
        %1514 = vadd.xlane.f32.xlu0 %v1513
        %v1515 = vpop.xlane.xlu0 %1514
        %v1516 = vmul.f32 %v1512, %v915
        %v1517 = vmul.f32 %v1515, %v915
        %v1518 = vadd.f32 %v1516, 1e-05
        %v1519 = vadd.f32 %v1517, 1e-05
        %v1520 = vrsqrt.pop %v1518
        %v1521 = vmul.f32 %v1520, %v1518
        %v1522 = vmul.f32 %v1521, %v1520
        %v1523 = vmul.f32 0.5, %v1522
        %v1524 = vsub.f32 1.5, %v1523
        %v1525 = vmul.f32 %v1520, %v1524
        %vm1526 = vweird.f32 %v1518
        %vm1527 = vweird.f32 %v1520
        %vm1528 = vmor %vm1526, %vm1527
        %v1529 = vsel %vm1528, %v1520, %v1525
        %v1530 = vrsqrt.pop %v1519
        %v1531 = vmul.f32 %v1530, %v1519
        %v1532 = vmul.f32 %v1531, %v1530
        %v1533 = vmul.f32 0.5, %v1532
        %v1534 = vsub.f32 1.5, %v1533
        %v1535 = vmul.f32 %v1530, %v1534
        %vm1536 = vweird.f32 %v1519
        %vm1537 = vweird.f32 %v1530
        %vm1538 = vmor %vm1536, %vm1537
        %v1539 = vsel %vm1538, %v1530, %v1535
        %v1540 = vmul.f32 %v1506, %v1529
        %v1541 = vmul.f32 %v1507, %v1539
        %v1542 = vadd.f32 %v1496, 1.0
        %v1543 = vperm.slane %v1542, 0
        %v1544 = vmul.f32 %v1540, %v1543
        %v1545 = vmul.f32 %v1541, %v1543
        %v1546 = vperm.slane %v1496, 0
        %1548 = vrot.lane.b32.xlu0 %v1546, 96
        %v1549 = vpop.permute.xlu0 %1548
        %v1551 = vadd.f32 %v1544, %v1549
        %v1552 = vadd.f32 %v1545, %v1549
        %v1553 = vld [vmem:[%s709] sm:$0xff]
        %v1554 = vld [vmem:[%s709 + $0x8] sm:$0xff]
        %v1555 = vld [vmem:[%s709 + $0x10] sm:$0xff]
        %v1556 = vld [vmem:[%s709 + $0x18] sm:$0xff]
        %v1557 = vld [vmem:[%s718] sm:$0x1]
        %v1559 = vperm.slane %v1557, 0
        %v1562 = vsel %vm878, %v1551, 0
        %v1565 = vsel %vm878, %v1552, 0
        %1567 = vmatpush.msra.mxu0 0.0
        %1568 = vmatpush.msra.mxu0 0.0
        %1569 = vmatpush.msra.mxu0 0.0
        %1570 = vmatpush.msra.mxu0 0.0
        %1571 = vmatpush.msra.mxu0 0.0
        %1572 = vmatpush.msra.mxu0 0.0
        %1573 = vmatpush.msra.mxu0 0.0
        %1574 = vmatpush.msra.mxu0 0.0
        %1575 = vmatpush.msra.mxu0 0.0
        %1576 = vmatpush.msra.mxu0 0.0
        %1577 = vmatpush.msra.mxu0 0.0
        %1578 = vmatpush.msra.mxu0 0.0
        %1579 = vmatpush.msra.mxu0 %v1556
        %1580 = vmatpush.msra.mxu0 %v1555
        %1581 = vmatpush.msra.mxu0 %v1554
        %1582 = vmatpush.msra.mxu0 %v1553
        %1583 = vmatmul.f32.gmra.mxu0 %v1562
        %v1584 = vpop.f32.mrf.mxu0
        %v1585 = vadd.f32 %v1559, %v1584
        %1586 = vmatmul.f32.gmra.mxu0 %v1565
        %v1587 = vpop.f32.mrf.mxu0
        %v1588 = vadd.f32 %v1559, %v1587
        %1589 = vdwg.mxu0
        %v1590 = vmax.f32 %v1585, 0.0
        %v1591 = vmax.f32 %v1588, 0.0
        %v1592 = vld [vmem:[%s854] sm:$0xff]
        %v1593 = vld [vmem:[%s854 + $0x8] sm:$0xff]
        %v1594 = vld [vmem:[%s854 + $0x10] sm:$0xff]
        %v1595 = vld [vmem:[%s854 + $0x18] sm:$0xff]
        %v1596 = vld [vmem:[%s854 + $0x20] sm:$0xff]
        %v1597 = vld [vmem:[%s854 + $0x28] sm:$0xff]
        %v1598 = vld [vmem:[%s854 + $0x30] sm:$0xff]
        %v1599 = vld [vmem:[%s854 + $0x38] sm:$0xff]
        %vm1600 = vcmask 523264
        %v1602 = vsel %vm1600, %v1590, 0
        %v1605 = vsel %vm1600, %v1591, 0
        %1607 = vmatpush.msra.mxu0 0.0
        %1608 = vmatpush.msra.mxu0 0.0
        %1609 = vmatpush.msra.mxu0 0.0
        %1610 = vmatpush.msra.mxu0 0.0
        %1611 = vmatpush.msra.mxu0 0.0
        %1612 = vmatpush.msra.mxu0 0.0
        %1613 = vmatpush.msra.mxu0 0.0
        %1614 = vmatpush.msra.mxu0 0.0
        %1615 = vmatpush.msra.mxu0 %v1599
        %1616 = vmatpush.msra.mxu0 %v1598
        %1617 = vmatpush.msra.mxu0 %v1597
        %1618 = vmatpush.msra.mxu0 %v1596
        %1619 = vmatpush.msra.mxu0 %v1595
        %1620 = vmatpush.msra.mxu0 %v1594
        %1621 = vmatpush.msra.mxu0 %v1593
        %1622 = vmatpush.msra.mxu0 %v1592
        %1623 = vmatmul.f32.gmra.mxu0 %v1602
        %v1624 = vpop.f32.mrf.mxu0
        %v1625 = vadd.f32 0.0, %v1624
        %1626 = vmatmul.f32.gmra.mxu0 %v1605
        %v1627 = vpop.f32.mrf.mxu0
        %v1628 = vadd.f32 0.0, %v1627
        %1629 = vdwg.mxu0
        %v1630 = vadd.f32 %v1471, %v1625
        %v1631 = vadd.f32 %v1472, %v1628
        %v1632 = vld [vmem:[%s727] sm:$0x1]
        %v1634 = vperm.slane %v1632, 0
        %v1636 = vadd.f32 %v1630, %v1634
        %v1637 = vadd.f32 %v1631, %v1634
        %1638 = vst.msk [vmem:[#allocation2] sm:$0xff] %vm878, %v1636
        %1639 = vst.msk [vmem:[#allocation2 + $0x8] sm:$0xf] %vm905, %v1637
        %p1640 = scmp.eq.s32.totalorder %s45, 1
        // Predicated region
        $region113: #{diffusion_head_forward.10} parent=75 // pred_check
          %p1641 = pneg %p1640
        $region114: #{diffusion_head_forward.10} parent=75 // pred_check_branch
          %1643 = sbr.rel (%p1641) target = $region116
        $region115: #{diffusion_head_forward.10} parent=75 // pred_region
          %1644 = vst.msk [vmem:[%s859] sm:$0xff] %vm878, %v1636
          %1645 = vst.msk [vmem:[%s859 + $0x8] sm:$0xf] %vm905, %v1637
        $region116: #{diffusion_head_forward.10} parent=75 // pred_fallthru
          _
        %p1646 = scmp.lt.s32.totalorder %s44, 1
        %s1647 = scalar_select %p1646, %s44, 1
        %s1648 = smul.addr %s1647, 2
        %s1649 = smul.addr %s1648, 8
        %s1650 = scalar_lea.vmem %s14, %s1649
        // Predicated region
        $region117: #{diffusion_head_forward.10} parent=75 // pred_check
          %p1651 = pneg %p434
        $region118: #{diffusion_head_forward.10} parent=75 // pred_check_branch
          %1653 = sbr.rel (%p1651) target = $region120
        $region119: #{diffusion_head_forward.10} parent=75 // pred_region
          _
        $region120: #{diffusion_head_forward.10} parent=75 // pred_fallthru
          _
      $region76: #{diffusion_head_forward.10} parent=5 // pred_fallthru
        _
      %p1654 = scmp.le.s32.totalorder 2, %s35
      // Predicated region
      $region121: #{diffusion_head_forward.10} parent=5 // pred_check
        %p1655 = pneg %p1654
      $region122: #{diffusion_head_forward.10} parent=5 // pred_check_branch
        %1657 = sbr.rel (%p1655) target = $region124
      $region123: #{diffusion_head_forward.10} parent=5 // pred_region
        %s1658 = ssub.s32 %s35, 2
        // Predicated region
        $region125: #{diffusion_head_forward.10} parent=123 // pred_check
          %p1659 = pneg %p440
        $region126: #{diffusion_head_forward.10} parent=123 // pred_check_branch
          %1661 = sbr.rel (%p1659) target = $region128
        $region127: #{diffusion_head_forward.10} parent=123 // pred_region
          %p1662 = scmp.lt.s32.totalorder %s46, 1
          %s1663 = scalar_select %p1662, %s46, 1
          %s1664 = smul.addr %s1663, 2
          %s1665 = smul.addr %s1664, 8
          %s1666 = scalar_lea.vmem %s14, %s1665
        $region128: #{diffusion_head_forward.10} parent=123 // pred_fallthru
          _
      $region124: #{diffusion_head_forward.10} parent=5 // pred_fallthru
        _
    $region6: #{diffusion_head_forward.10} parent=1 // loop_footer
      %s39 = sadd.s32 1, %s35
    $region7: #{diffusion_head_forward.10} parent=1 // loop_footer_branch
      %34 = sbr.rel target = $region3
    $region8: #{diffusion_head_forward.10} parent=1 // loop_exit
      _
    %1667 = vsyncpa [#allocation4], 1
    %s1668 = scalar_lea.sflag [#allocation4], 1
    %1669 = vsyncpa %s1668, 1
    %1670 = vsyncpa [#allocation6], 1
    %s1671 = scalar_lea.sflag [#allocation6], 1
    %1672 = vsyncpa %s1671, 1
    %1673 = vsyncpa [#allocation9], 1
    %s1674 = scalar_lea.sflag [#allocation9], 1
    %1675 = vsyncpa %s1674, 1
    %1676 = vsyncpa [#allocation12], 1
    %s1677 = scalar_lea.sflag [#allocation12], 1
    %1678 = vsyncpa %s1677, 1
    %1679 = vsyncpa [#allocation15], 1
    %s1680 = scalar_lea.sflag [#allocation15], 1
    %1681 = vsyncpa %s1680, 1

// kernel: diffusion_head_forward.9
$region0: #{diffusion_head_forward.9}
  #allocation0 [shape = 'u32[]', space=smem, size = 0x4, offset = 0x4, fixed_abs, tag = 'smem constant byte address 0x4 - core index']
  #allocation1 [shape = 'u32[72,128]{1,0:T(1,128)}', space=vmem, size = 0x9000, scoped, tag = 'internal scratch']
  #allocation2 [shape = 'f32[12,32]{1,0:T(8,128)}', space=vmem, size = 0x2000, scoped, tag = 'scratch operand']
  %s0 = inlined_call_operand.vmem [shape: f32[2,1,32], index: 0, kind: input, shape index: {}]
  %s1 = inlined_call_operand.vmem [shape: f32[2,12,32], index: 1, kind: input, shape index: {}]
  %s2 = inlined_call_operand.vmem [shape: f32[2,32,64], index: 2, kind: input, shape index: {}]
  %s3 = inlined_call_operand.vmem [shape: f32[2,1,64], index: 3, kind: input, shape index: {}]
  %s4 = inlined_call_operand.vmem [shape: f32[2,32,96], index: 4, kind: input, shape index: {}]
  %s5 = inlined_call_operand.vmem [shape: f32[2,1,96], index: 5, kind: input, shape index: {}]
  %s6 = inlined_call_operand.vmem [shape: f32[2,32,32], index: 6, kind: input, shape index: {}]
  %s7 = inlined_call_operand.hbm [shape: f32[2,1,32], index: 7, kind: input, shape index: {}]
  %s8 = inlined_call_operand.hbm [shape: f32[2,32,64], index: 8, kind: input, shape index: {}]
  %s9 = inlined_call_operand.hbm [shape: f32[2,1,64], index: 9, kind: input, shape index: {}]
  %s10 = inlined_call_operand.hbm [shape: f32[2,32,64], index: 10, kind: input, shape index: {}]
  %s11 = inlined_call_operand.hbm [shape: f32[2,1,64], index: 11, kind: input, shape index: {}]
  %s12 = inlined_call_operand.vmem [shape: f32[2,64,32], index: 12, kind: input, shape index: {}]
  %s13 = inlined_call_operand.hbm [shape: f32[2,1,32], index: 13, kind: input, shape index: {}]
  %s14 = inlined_call_operand.vmem [shape: f32[2,12,32], index: 14, kind: output, shape index: {}]
  %s15 = sld [smem:[#allocation0]]
  $region121: #{diffusion_head_forward.9} parent=0
    _
  %s17 = ssub.s32 1, %s15
  %s18 = scalar_select 0, %s17, %s15
  $region1: #{diffusion_head_forward.9} parent=0
    #allocation3 [shape = 'u8[1024]{0}', space=vmem, size = 0x400, scoped, tag = 'input window, operand 7']
    #allocation4 [shape = 's32[2]{0}', space=sflag, size = 0x8, scoped, tag = 'scoped memory for diffusion_head_forward.9']
    #allocation5 [shape = 'u8[32768]{0}', space=vmem, size = 0x8000, scoped, tag = 'input window, operand 8']
    #allocation6 [shape = 's32[2]{0}', space=sflag, size = 0x8, scoped, tag = 'scoped memory for diffusion_head_forward.9']
    #allocation7 [shape = 'u8[1024]{0}', space=vmem, size = 0x400, scoped, tag = 'input window, operand 9']
    #allocation8 [shape = 'u8[32768]{0}', space=vmem, size = 0x8000, scoped, tag = 'input window, operand 10']
    #allocation9 [shape = 's32[2]{0}', space=sflag, size = 0x8, scoped, tag = 'scoped memory for diffusion_head_forward.9']
    #allocation10 [shape = 'u8[1024]{0}', space=vmem, size = 0x400, scoped, tag = 'input window, operand 11']
    #allocation11 [shape = 'u8[1024]{0}', space=vmem, size = 0x400, scoped, tag = 'input window, operand 13']
    #allocation12 [shape = 's32[2]{0}', space=sflag, size = 0x8, scoped, tag = 'scoped memory for diffusion_head_forward.9']
    %19 = vsyncpa [#allocation4], 0
    %s20 = scalar_lea.sflag [#allocation4], 1
    %21 = vsyncpa %s20, 0
    %22 = vsyncpa [#allocation6], 0
    %s23 = scalar_lea.sflag [#allocation6], 1
    %24 = vsyncpa %s23, 0
    %25 = vsyncpa [#allocation9], 0
    %s26 = scalar_lea.sflag [#allocation9], 1
    %27 = vsyncpa %s26, 0
    %28 = vsyncpa [#allocation12], 0
    %s29 = scalar_lea.sflag [#allocation12], 1
    %30 = vsyncpa %s29, 0
    loop: start=0, step=1, limit=6
    $region2: #{diffusion_head_forward.9} parent=1 // loop_pre_header
      _
    $region3: #{diffusion_head_forward.9} parent=1 // loop_header
      %s32 = sphi 0, %s36
      %p33 = scmp.ge.s32.totalorder %s32, 6
      %s39 = sphi 0, %s51
      %s40 = sphi 0, %s47
      %s41 = sphi 0, %s39
      %s42 = sphi 0, %s40
      %s43 = sphi 0, %s41
      %s44 = sphi 0, %s42
      %s54 = sphi 0, %s56
      %s57 = sphi 0, %s54
      %s58 = sphi 0, %s57
      %s74 = sphi 0, %s58
      %s80 = sphi 0, %s82
      %s83 = sphi 0, %s80
      %s84 = sphi 0, %s83
      %s100 = sphi 0, %s84
      %s106 = sphi 0, %s108
      %s109 = sphi 0, %s106
      %s110 = sphi 0, %s109
      %s126 = sphi 0, %s110
      %s132 = sphi 0, %s134
      %s135 = sphi 0, %s132
      %s136 = sphi 0, %s135
      %s152 = sphi 0, %s136
      %s158 = sphi 0, %s160
      %s161 = sphi 0, %s158
      %s162 = sphi 0, %s161
      %s178 = sphi 0, %s162
      %s184 = sphi 0, %s186
      %s187 = sphi 0, %s184
      %s188 = sphi 0, %s187
      %s204 = sphi 0, %s188
      %s210 = sphi 0, %s212
      %s213 = sphi 0, %s210
      %s214 = sphi 0, %s213
      %s230 = sphi 0, %s214
      %s236 = sphi 0, %s238
      %s239 = sphi 0, %s236
      %s240 = sphi 0, %s239
      %s256 = sphi 0, %s240
      %s262 = sphi 0, %s264
      %s265 = sphi 0, %s262
      %s266 = sphi 0, %s265
      %s282 = sphi 0, %s266
      %s288 = sphi 0, %s290
      %s291 = sphi 0, %s288
      %s292 = sphi 0, %s291
      %s308 = sphi 0, %s292
      %s314 = sphi 0, %s316
      %s317 = sphi 0, %s314
      %s318 = sphi 0, %s317
      %s334 = sphi 0, %s318
      %s340 = sphi 0, %s342
      %s343 = sphi 0, %s340
      %s344 = sphi 0, %s343
      %s360 = sphi 0, %s344
      %s366 = sphi 0, %s368
      %s369 = sphi 0, %s366
      %s370 = sphi 0, %s369
      %s386 = sphi 0, %s370
      %s392 = sphi 0, %s394
      %s395 = sphi 0, %s392
      %s396 = sphi 0, %s395
      %s412 = sphi 0, %s396
      %s418 = sphi 0, %s420
      %s421 = sphi 0, %s418
      %s422 = sphi 0, %s421
      %s438 = sphi 0, %s422
    $region4: #{diffusion_head_forward.9} parent=1 // loop_header_branch
      %35 = sbr.rel (%p33) target = $region8
    $region5: #{diffusion_head_forward.9} parent=1 // loop_body
      %s37 = ssub.s32 %s32, 1
      %s38 = ssub.s32 %s32, 2
      %s45 = sadd.s32 1, %s40
      %p46 = scmp.ge.s32.totalorder %s45, 2
      %s47 = scalar_select %p46, 0, %s45
      %s48 = sadd.s32 1, %s39
      %s49 = scalar_select %p46, %s48, %s39
      %p50 = scmp.ge.s32.totalorder %s49, 2
      %s51 = scalar_select %p50, 0, %s49
      %s52 = ssub.s32 %s39, %s51
      %p53 = scmp.eq.s32.totalorder %s52, 0
      %s55 = sadd.s32 %s54, 1
      %s56 = scalar_select %p53, %s54, %s55
      %p59 = pneg %p53
      %p60 = scmp.eq.s32.totalorder %s32, 3
      %p61 = por %p59, %p60
      %p62 = scmp.ne.s32.totalorder %s54, %s57
      %p63 = scmp.eq.s32.totalorder %s32, 0
      %p64 = por %p62, %p63
      %p65 = scmp.ne.s32.totalorder %s54, %s57
      %p66 = scmp.eq.s32.totalorder %s37, 3
      %p67 = por %p65, %p66
      %p68 = scmp.ne.s32.totalorder %s57, %s58
      %p69 = scmp.eq.s32.totalorder %s37, 0
      %p70 = por %p68, %p69
      %p71 = scmp.ne.s32.totalorder %s57, %s58
      %p72 = scmp.eq.s32.totalorder %s38, 3
      %p73 = por %p71, %p72
      %p75 = scmp.ne.s32.totalorder %s58, %s74
      %p76 = scmp.eq.s32.totalorder %s38, 0
      %p77 = por %p75, %p76
      %s78 = ssub.s32 %s39, %s51
      %p79 = scmp.eq.s32.totalorder %s78, 0
      %s81 = sadd.s32 %s80, 1
      %s82 = scalar_select %p79, %s80, %s81
      %p85 = pneg %p79
      %p86 = scmp.eq.s32.totalorder %s32, 3
      %p87 = por %p85, %p86
      %p88 = scmp.ne.s32.totalorder %s80, %s83
      %p89 = scmp.eq.s32.totalorder %s32, 0
      %p90 = por %p88, %p89
      %p91 = scmp.ne.s32.totalorder %s80, %s83
      %p92 = scmp.eq.s32.totalorder %s37, 3
      %p93 = por %p91, %p92
      %p94 = scmp.ne.s32.totalorder %s83, %s84
      %p95 = scmp.eq.s32.totalorder %s37, 0
      %p96 = por %p94, %p95
      %p97 = scmp.ne.s32.totalorder %s83, %s84
      %p98 = scmp.eq.s32.totalorder %s38, 3
      %p99 = por %p97, %p98
      %p101 = scmp.ne.s32.totalorder %s84, %s100
      %p102 = scmp.eq.s32.totalorder %s38, 0
      %p103 = por %p101, %p102
      %s104 = ssub.s32 %s40, %s47
      %p105 = scmp.eq.s32.totalorder %s104, 0
      %s107 = sadd.s32 %s106, 1
      %s108 = scalar_select %p105, %s106, %s107
      %p111 = pneg %p105
      %p112 = scmp.eq.s32.totalorder %s32, 3
      %p113 = por %p111, %p112
      %p114 = scmp.ne.s32.totalorder %s106, %s109
      %p115 = scmp.eq.s32.totalorder %s32, 0
      %p116 = por %p114, %p115
      %p117 = scmp.ne.s32.totalorder %s106, %s109
      %p118 = scmp.eq.s32.totalorder %s37, 3
      %p119 = por %p117, %p118
      %p120 = scmp.ne.s32.totalorder %s109, %s110
      %p121 = scmp.eq.s32.totalorder %s37, 0
      %p122 = por %p120, %p121
      %p123 = scmp.ne.s32.totalorder %s109, %s110
      %p124 = scmp.eq.s32.totalorder %s38, 3
      %p125 = por %p123, %p124
      %p127 = scmp.ne.s32.totalorder %s110, %s126
      %p128 = scmp.eq.s32.totalorder %s38, 0
      %p129 = por %p127, %p128
      %s130 = ssub.s32 %s40, %s47
      %p131 = scmp.eq.s32.totalorder %s130, 0
      %s133 = sadd.s32 %s132, 1
      %s134 = scalar_select %p131, %s132, %s133
      %p137 = pneg %p131
      %p138 = scmp.eq.s32.totalorder %s32, 3
      %p139 = por %p137, %p138
      %p140 = scmp.ne.s32.totalorder %s132, %s135
      %p141 = scmp.eq.s32.totalorder %s32, 0
      %p142 = por %p140, %p141
      %p143 = scmp.ne.s32.totalorder %s132, %s135
      %p144 = scmp.eq.s32.totalorder %s37, 3
      %p145 = por %p143, %p144
      %p146 = scmp.ne.s32.totalorder %s135, %s136
      %p147 = scmp.eq.s32.totalorder %s37, 0
      %p148 = por %p146, %p147
      %p149 = scmp.ne.s32.totalorder %s135, %s136
      %p150 = scmp.eq.s32.totalorder %s38, 3
      %p151 = por %p149, %p150
      %p153 = scmp.ne.s32.totalorder %s136, %s152
      %p154 = scmp.eq.s32.totalorder %s38, 0
      %p155 = por %p153, %p154
      %s156 = ssub.s32 %s40, %s47
      %p157 = scmp.eq.s32.totalorder %s156, 0
      %s159 = sadd.s32 %s158, 1
      %s160 = scalar_select %p157, %s158, %s159
      %p163 = pneg %p157
      %p164 = scmp.eq.s32.totalorder %s32, 3
      %p165 = por %p163, %p164
      %p166 = scmp.ne.s32.totalorder %s158, %s161
      %p167 = scmp.eq.s32.totalorder %s32, 0
      %p168 = por %p166, %p167
      %p169 = scmp.ne.s32.totalorder %s158, %s161
      %p170 = scmp.eq.s32.totalorder %s37, 3
      %p171 = por %p169, %p170
      %p172 = scmp.ne.s32.totalorder %s161, %s162
      %p173 = scmp.eq.s32.totalorder %s37, 0
      %p174 = por %p172, %p173
      %p175 = scmp.ne.s32.totalorder %s161, %s162
      %p176 = scmp.eq.s32.totalorder %s38, 3
      %p177 = por %p175, %p176
      %p179 = scmp.ne.s32.totalorder %s162, %s178
      %p180 = scmp.eq.s32.totalorder %s38, 0
      %p181 = por %p179, %p180
      %s182 = ssub.s32 %s40, %s47
      %p183 = scmp.eq.s32.totalorder %s182, 0
      %s185 = sadd.s32 %s184, 1
      %s186 = scalar_select %p183, %s184, %s185
      %p189 = pneg %p183
      %p190 = scmp.eq.s32.totalorder %s32, 3
      %p191 = por %p189, %p190
      %p192 = scmp.ne.s32.totalorder %s184, %s187
      %p193 = scmp.eq.s32.totalorder %s32, 0
      %p194 = por %p192, %p193
      %p195 = scmp.ne.s32.totalorder %s184, %s187
      %p196 = scmp.eq.s32.totalorder %s37, 3
      %p197 = por %p195, %p196
      %p198 = scmp.ne.s32.totalorder %s187, %s188
      %p199 = scmp.eq.s32.totalorder %s37, 0
      %p200 = por %p198, %p199
      %p201 = scmp.ne.s32.totalorder %s187, %s188
      %p202 = scmp.eq.s32.totalorder %s38, 3
      %p203 = por %p201, %p202
      %p205 = scmp.ne.s32.totalorder %s188, %s204
      %p206 = scmp.eq.s32.totalorder %s38, 0
      %p207 = por %p205, %p206
      %s208 = ssub.s32 %s40, %s47
      %p209 = scmp.eq.s32.totalorder %s208, 0
      %s211 = sadd.s32 %s210, 1
      %s212 = scalar_select %p209, %s210, %s211
      %p215 = pneg %p209
      %p216 = scmp.eq.s32.totalorder %s32, 3
      %p217 = por %p215, %p216
      %p218 = scmp.ne.s32.totalorder %s210, %s213
      %p219 = scmp.eq.s32.totalorder %s32, 0
      %p220 = por %p218, %p219
      %p221 = scmp.ne.s32.totalorder %s210, %s213
      %p222 = scmp.eq.s32.totalorder %s37, 3
      %p223 = por %p221, %p222
      %p224 = scmp.ne.s32.totalorder %s213, %s214
      %p225 = scmp.eq.s32.totalorder %s37, 0
      %p226 = por %p224, %p225
      %p227 = scmp.ne.s32.totalorder %s213, %s214
      %p228 = scmp.eq.s32.totalorder %s38, 3
      %p229 = por %p227, %p228
      %p231 = scmp.ne.s32.totalorder %s214, %s230
      %p232 = scmp.eq.s32.totalorder %s38, 0
      %p233 = por %p231, %p232
      %s234 = ssub.s32 %s40, %s47
      %p235 = scmp.eq.s32.totalorder %s234, 0
      %s237 = sadd.s32 %s236, 1
      %s238 = scalar_select %p235, %s236, %s237
      %p241 = pneg %p235
      %p242 = scmp.eq.s32.totalorder %s32, 3
      %p243 = por %p241, %p242
      %p244 = scmp.ne.s32.totalorder %s236, %s239
      %p245 = scmp.eq.s32.totalorder %s32, 0
      %p246 = por %p244, %p245
      %p247 = scmp.ne.s32.totalorder %s236, %s239
      %p248 = scmp.eq.s32.totalorder %s37, 3
      %p249 = por %p247, %p248
      %p250 = scmp.ne.s32.totalorder %s239, %s240
      %p251 = scmp.eq.s32.totalorder %s37, 0
      %p252 = por %p250, %p251
      %p253 = scmp.ne.s32.totalorder %s239, %s240
      %p254 = scmp.eq.s32.totalorder %s38, 3
      %p255 = por %p253, %p254
      %p257 = scmp.ne.s32.totalorder %s240, %s256
      %p258 = scmp.eq.s32.totalorder %s38, 0
      %p259 = por %p257, %p258
      %s260 = ssub.s32 %s40, %s47
      %p261 = scmp.eq.s32.totalorder %s260, 0
      %s263 = sadd.s32 %s262, 1
      %s264 = scalar_select %p261, %s262, %s263
      %p267 = pneg %p261
      %p268 = scmp.eq.s32.totalorder %s32, 3
      %p269 = por %p267, %p268
      %p270 = scmp.ne.s32.totalorder %s262, %s265
      %p271 = scmp.eq.s32.totalorder %s32, 0
      %p272 = por %p270, %p271
      %p273 = scmp.ne.s32.totalorder %s262, %s265
      %p274 = scmp.eq.s32.totalorder %s37, 3
      %p275 = por %p273, %p274
      %p276 = scmp.ne.s32.totalorder %s265, %s266
      %p277 = scmp.eq.s32.totalorder %s37, 0
      %p278 = por %p276, %p277
      %p279 = scmp.ne.s32.totalorder %s265, %s266
      %p280 = scmp.eq.s32.totalorder %s38, 3
      %p281 = por %p279, %p280
      %p283 = scmp.ne.s32.totalorder %s266, %s282
      %p284 = scmp.eq.s32.totalorder %s38, 0
      %p285 = por %p283, %p284
      %s286 = ssub.s32 %s40, %s47
      %p287 = scmp.eq.s32.totalorder %s286, 0
      %s289 = sadd.s32 %s288, 1
      %s290 = scalar_select %p287, %s288, %s289
      %p293 = pneg %p287
      %p294 = scmp.eq.s32.totalorder %s32, 3
      %p295 = por %p293, %p294
      %p296 = scmp.ne.s32.totalorder %s288, %s291
      %p297 = scmp.eq.s32.totalorder %s32, 0
      %p298 = por %p296, %p297
      %p299 = scmp.ne.s32.totalorder %s288, %s291
      %p300 = scmp.eq.s32.totalorder %s37, 3
      %p301 = por %p299, %p300
      %p302 = scmp.ne.s32.totalorder %s291, %s292
      %p303 = scmp.eq.s32.totalorder %s37, 0
      %p304 = por %p302, %p303
      %p305 = scmp.ne.s32.totalorder %s291, %s292
      %p306 = scmp.eq.s32.totalorder %s38, 3
      %p307 = por %p305, %p306
      %p309 = scmp.ne.s32.totalorder %s292, %s308
      %p310 = scmp.eq.s32.totalorder %s38, 0
      %p311 = por %p309, %p310
      %s312 = ssub.s32 %s40, %s47
      %p313 = scmp.eq.s32.totalorder %s312, 0
      %s315 = sadd.s32 %s314, 1
      %s316 = scalar_select %p313, %s314, %s315
      %p319 = pneg %p313
      %p320 = scmp.eq.s32.totalorder %s32, 3
      %p321 = por %p319, %p320
      %p322 = scmp.ne.s32.totalorder %s314, %s317
      %p323 = scmp.eq.s32.totalorder %s32, 0
      %p324 = por %p322, %p323
      %p325 = scmp.ne.s32.totalorder %s314, %s317
      %p326 = scmp.eq.s32.totalorder %s37, 3
      %p327 = por %p325, %p326
      %p328 = scmp.ne.s32.totalorder %s317, %s318
      %p329 = scmp.eq.s32.totalorder %s37, 0
      %p330 = por %p328, %p329
      %p331 = scmp.ne.s32.totalorder %s317, %s318
      %p332 = scmp.eq.s32.totalorder %s38, 3
      %p333 = por %p331, %p332
      %p335 = scmp.ne.s32.totalorder %s318, %s334
      %p336 = scmp.eq.s32.totalorder %s38, 0
      %p337 = por %p335, %p336
      %s338 = ssub.s32 %s40, %s47
      %p339 = scmp.eq.s32.totalorder %s338, 0
      %s341 = sadd.s32 %s340, 1
      %s342 = scalar_select %p339, %s340, %s341
      %p345 = pneg %p339
      %p346 = scmp.eq.s32.totalorder %s32, 3
      %p347 = por %p345, %p346
      %p348 = scmp.ne.s32.totalorder %s340, %s343
      %p349 = scmp.eq.s32.totalorder %s32, 0
      %p350 = por %p348, %p349
      %p351 = scmp.ne.s32.totalorder %s340, %s343
      %p352 = scmp.eq.s32.totalorder %s37, 3
      %p353 = por %p351, %p352
      %p354 = scmp.ne.s32.totalorder %s343, %s344
      %p355 = scmp.eq.s32.totalorder %s37, 0
      %p356 = por %p354, %p355
      %p357 = scmp.ne.s32.totalorder %s343, %s344
      %p358 = scmp.eq.s32.totalorder %s38, 3
      %p359 = por %p357, %p358
      %p361 = scmp.ne.s32.totalorder %s344, %s360
      %p362 = scmp.eq.s32.totalorder %s38, 0
      %p363 = por %p361, %p362
      %s364 = ssub.s32 %s40, %s47
      %p365 = scmp.eq.s32.totalorder %s364, 0
      %s367 = sadd.s32 %s366, 1
      %s368 = scalar_select %p365, %s366, %s367
      %p371 = pneg %p365
      %p372 = scmp.eq.s32.totalorder %s32, 3
      %p373 = por %p371, %p372
      %p374 = scmp.ne.s32.totalorder %s366, %s369
      %p375 = scmp.eq.s32.totalorder %s32, 0
      %p376 = por %p374, %p375
      %p377 = scmp.ne.s32.totalorder %s366, %s369
      %p378 = scmp.eq.s32.totalorder %s37, 3
      %p379 = por %p377, %p378
      %p380 = scmp.ne.s32.totalorder %s369, %s370
      %p381 = scmp.eq.s32.totalorder %s37, 0
      %p382 = por %p380, %p381
      %p383 = scmp.ne.s32.totalorder %s369, %s370
      %p384 = scmp.eq.s32.totalorder %s38, 3
      %p385 = por %p383, %p384
      %p387 = scmp.ne.s32.totalorder %s370, %s386
      %p388 = scmp.eq.s32.totalorder %s38, 0
      %p389 = por %p387, %p388
      %s390 = ssub.s32 %s40, %s47
      %p391 = scmp.eq.s32.totalorder %s390, 0
      %s393 = sadd.s32 %s392, 1
      %s394 = scalar_select %p391, %s392, %s393
      %p397 = pneg %p391
      %p398 = scmp.eq.s32.totalorder %s32, 3
      %p399 = por %p397, %p398
      %p400 = scmp.ne.s32.totalorder %s392, %s395
      %p401 = scmp.eq.s32.totalorder %s32, 0
      %p402 = por %p400, %p401
      %p403 = scmp.ne.s32.totalorder %s392, %s395
      %p404 = scmp.eq.s32.totalorder %s37, 3
      %p405 = por %p403, %p404
      %p406 = scmp.ne.s32.totalorder %s395, %s396
      %p407 = scmp.eq.s32.totalorder %s37, 0
      %p408 = por %p406, %p407
      %p409 = scmp.ne.s32.totalorder %s395, %s396
      %p410 = scmp.eq.s32.totalorder %s38, 3
      %p411 = por %p409, %p410
      %p413 = scmp.ne.s32.totalorder %s396, %s412
      %p414 = scmp.eq.s32.totalorder %s38, 0
      %p415 = por %p413, %p414
      %s416 = ssub.s32 %s39, %s51
      %p417 = scmp.eq.s32.totalorder %s416, 0
      %s419 = sadd.s32 %s418, 1
      %s420 = scalar_select %p417, %s418, %s419
      %p423 = pneg %p417
      %p424 = scmp.eq.s32.totalorder %s32, 3
      %p425 = por %p423, %p424
      %p426 = scmp.ne.s32.totalorder %s418, %s421
      %p427 = scmp.eq.s32.totalorder %s32, 0
      %p428 = por %p426, %p427
      %p429 = scmp.ne.s32.totalorder %s418, %s421
      %p430 = scmp.eq.s32.totalorder %s37, 3
      %p431 = por %p429, %p430
      %p432 = scmp.ne.s32.totalorder %s421, %s422
      %p433 = scmp.eq.s32.totalorder %s37, 0
      %p434 = por %p432, %p433
      %p435 = scmp.ne.s32.totalorder %s421, %s422
      %p436 = scmp.eq.s32.totalorder %s38, 3
      %p437 = por %p435, %p436
      %p439 = scmp.ne.s32.totalorder %s422, %s438
      %p440 = scmp.eq.s32.totalorder %s38, 0
      %p441 = por %p439, %p440
      %p442 = scmp.le.s32.totalorder 1, %s32
      %p443 = scmp.lt.s32.totalorder %s32, 5
      %p444 = pnand %p442, %p443
      %p445 = pneg %p444
      // Predicated region
      $region9: #{diffusion_head_forward.9} parent=5 // pred_check
        _
      $region10: #{diffusion_head_forward.9} parent=5 // pred_check_branch
        %447 = sbr.rel (%p444) target = $region12
      $region11: #{diffusion_head_forward.9} parent=5 // pred_region
        %s448 = ssub.s32 %s32, 1
      $region12: #{diffusion_head_forward.9} parent=5 // pred_fallthru
        _
      %p449 = scmp.lt.s32.totalorder %s32, 4
      // Predicated region
      $region13: #{diffusion_head_forward.9} parent=5 // pred_check
        %p450 = pneg %p449
      $region14: #{diffusion_head_forward.9} parent=5 // pred_check_branch
        %452 = sbr.rel (%p450) target = $region16
      $region15: #{diffusion_head_forward.9} parent=5 // pred_region
        // Predicated region
        $region17: #{diffusion_head_forward.9} parent=15 // pred_check
          %p453 = pneg %p64
        $region18: #{diffusion_head_forward.9} parent=15 // pred_check_branch
          %455 = sbr.rel (%p453) target = $region20
        $region19: #{diffusion_head_forward.9} parent=15 // pred_region
          %p456 = scmp.lt.s32.totalorder %s39, 1
          %s457 = scalar_select %p456, %s39, 1
          %s458 = scalar_lea.vmem %s0, %s457
        $region20: #{diffusion_head_forward.9} parent=15 // pred_fallthru
          _
        // Predicated region
        $region21: #{diffusion_head_forward.9} parent=15 // pred_check
          %p459 = pneg %p90
        $region22: #{diffusion_head_forward.9} parent=15 // pred_check_branch
          %461 = sbr.rel (%p459) target = $region24
        $region23: #{diffusion_head_forward.9} parent=15 // pred_region
          %p462 = scmp.lt.s32.totalorder %s39, 1
          %s463 = scalar_select %p462, %s39, 1
          %s464 = smul.addr %s463, 2
          %s465 = smul.addr %s464, 8
          %s466 = scalar_lea.vmem %s1, %s465
        $region24: #{diffusion_head_forward.9} parent=15 // pred_fallthru
          _
        // Predicated region
        $region25: #{diffusion_head_forward.9} parent=15 // pred_check
          %p467 = pneg %p116
        $region26: #{diffusion_head_forward.9} parent=15 // pred_check_branch
          %469 = sbr.rel (%p467) target = $region28
        $region27: #{diffusion_head_forward.9} parent=15 // pred_region
          %p470 = scmp.lt.s32.totalorder %s40, 1
          %s471 = scalar_select %p470, %s40, 1
          %s472 = smul.addr %s471, 4
          %s473 = smul.addr %s472, 8
          %s474 = scalar_lea.vmem %s2, %s473
        $region28: #{diffusion_head_forward.9} parent=15 // pred_fallthru
          _
        // Predicated region
        $region29: #{diffusion_head_forward.9} parent=15 // pred_check
          %p475 = pneg %p142
        $region30: #{diffusion_head_forward.9} parent=15 // pred_check_branch
          %477 = sbr.rel (%p475) target = $region32
        $region31: #{diffusion_head_forward.9} parent=15 // pred_region
          %p478 = scmp.lt.s32.totalorder %s40, 1
          %s479 = scalar_select %p478, %s40, 1
          %s480 = scalar_lea.vmem %s3, %s479
        $region32: #{diffusion_head_forward.9} parent=15 // pred_fallthru
          _
        // Predicated region
        $region33: #{diffusion_head_forward.9} parent=15 // pred_check
          %p481 = pneg %p168
        $region34: #{diffusion_head_forward.9} parent=15 // pred_check_branch
          %483 = sbr.rel (%p481) target = $region36
        $region35: #{diffusion_head_forward.9} parent=15 // pred_region
          %p484 = scmp.lt.s32.totalorder %s40, 1
          %s485 = scalar_select %p484, %s40, 1
          %s486 = smul.addr %s485, 4
          %s487 = smul.addr %s486, 8
          %s488 = scalar_lea.vmem %s4, %s487
        $region36: #{diffusion_head_forward.9} parent=15 // pred_fallthru
          _
        // Predicated region
        $region37: #{diffusion_head_forward.9} parent=15 // pred_check
          %p489 = pneg %p194
        $region38: #{diffusion_head_forward.9} parent=15 // pred_check_branch
          %491 = sbr.rel (%p489) target = $region40
        $region39: #{diffusion_head_forward.9} parent=15 // pred_region
          %p492 = scmp.lt.s32.totalorder %s40, 1
          %s493 = scalar_select %p492, %s40, 1
          %s494 = scalar_lea.vmem %s5, %s493
        $region40: #{diffusion_head_forward.9} parent=15 // pred_fallthru
          _
        // Predicated region
        $region41: #{diffusion_head_forward.9} parent=15 // pred_check
          %p495 = pneg %p220
        $region42: #{diffusion_head_forward.9} parent=15 // pred_check_branch
          %497 = sbr.rel (%p495) target = $region44
        $region43: #{diffusion_head_forward.9} parent=15 // pred_region
          %p498 = scmp.lt.s32.totalorder %s40, 1
          %s499 = scalar_select %p498, %s40, 1
          %s500 = smul.addr %s499, 4
          %s501 = smul.addr %s500, 8
          %s502 = scalar_lea.vmem %s6, %s501
        $region44: #{diffusion_head_forward.9} parent=15 // pred_fallthru
          _
        // Predicated region
        $region45: #{diffusion_head_forward.9} parent=15 // pred_check
          %p503 = pneg %p246
        $region46: #{diffusion_head_forward.9} parent=15 // pred_check_branch
          %505 = sbr.rel (%p503) target = $region48
        $region47: #{diffusion_head_forward.9} parent=15 // pred_region
          %s506 = sand.u32 %s236, 1
          %s507 = scalar_lea.sflag [#allocation4], %s506
          %s508 = sand.u32 %s236, 1
          %s509 = scalar_lea.vmem [#allocation3], %s508
          %511 = vsyncadd %s507, 0
          %s512 = scalar_lea.hbm %s7, %s40
          %s514 = sshll.u32 %s512, 4
          %s515 = int_to_ptr.hbm [resolvable:$true] %s514
          %s516 = sshll.u32 %s509, 4
          %s517 = int_to_ptr.vmem [resolvable:$true] %s516
          %519 = dma.hbm_to_vmem [thread:$0]  %s515, 16, %s517, %s507
        $region48: #{diffusion_head_forward.9} parent=15 // pred_fallthru
          _
        // Predicated region
        $region49: #{diffusion_head_forward.9} parent=15 // pred_check
          %p520 = pneg %p272
        $region50: #{diffusion_head_forward.9} parent=15 // pred_check_branch
          %522 = sbr.rel (%p520) target = $region52
        $region51: #{diffusion_head_forward.9} parent=15 // pred_region
          %s523 = sand.u32 %s32, 1
          %s524 = scalar_lea.sflag [#allocation6], %s523
          %s525 = sand.u32 %s262, 1
          %s526 = smul.addr %s525, 32
          %s527 = scalar_lea.vmem [#allocation5], %s526
          %529 = vsyncadd %s524, 0
          %s530 = smul.addr %s40, 4
          %s531 = smul.addr %s530, 8
          %s532 = scalar_lea.hbm %s8, %s531
          %s533 = sshll.u32 %s532, 4
          %s534 = int_to_ptr.hbm [resolvable:$true] %s533
          %s535 = sshll.u32 %s527, 4
          %s536 = int_to_ptr.vmem [resolvable:$true] %s535
          %541 = dma.hbm_to_vmem [thread:$0]  %s534, 512, %s536, %s524, 128, 128, 8
        $region52: #{diffusion_head_forward.9} parent=15 // pred_fallthru
          _
        // Predicated region
        $region53: #{diffusion_head_forward.9} parent=15 // pred_check
          %p542 = pneg %p298
        $region54: #{diffusion_head_forward.9} parent=15 // pred_check_branch
          %544 = sbr.rel (%p542) target = $region56
        $region55: #{diffusion_head_forward.9} parent=15 // pred_region
          %s545 = sand.u32 %s32, 1
          %s546 = scalar_lea.sflag [#allocation6], %s545
          %s547 = sand.u32 %s288, 1
          %s548 = scalar_lea.vmem [#allocation7], %s547
          %550 = vsyncadd %s546, 0
          %s551 = scalar_lea.hbm %s9, %s40
          %s553 = sshll.u32 %s551, 4
          %s554 = int_to_ptr.hbm [resolvable:$true] %s553
          %s555 = sshll.u32 %s548, 4
          %s556 = int_to_ptr.vmem [resolvable:$true] %s555
          %558 = dma.hbm_to_vmem [thread:$0]  %s554, 16, %s556, %s546
        $region56: #{diffusion_head_forward.9} parent=15 // pred_fallthru
          _
        // Predicated region
        $region57: #{diffusion_head_forward.9} parent=15 // pred_check
          %p559 = pneg %p324
        $region58: #{diffusion_head_forward.9} parent=15 // pred_check_branch
          %561 = sbr.rel (%p559) target = $region60
        $region59: #{diffusion_head_forward.9} parent=15 // pred_region
          %s562 = sand.u32 %s32, 1
          %s563 = scalar_lea.sflag [#allocation9], %s562
          %s564 = sand.u32 %s314, 1
          %s565 = smul.addr %s564, 32
          %s566 = scalar_lea.vmem [#allocation8], %s565
          %568 = vsyncadd %s563, 0
          %s569 = smul.addr %s40, 4
          %s570 = smul.addr %s569, 8
          %s571 = scalar_lea.hbm %s10, %s570
          %s572 = sshll.u32 %s571, 4
          %s573 = int_to_ptr.hbm [resolvable:$true] %s572
          %s574 = sshll.u32 %s566, 4
          %s575 = int_to_ptr.vmem [resolvable:$true] %s574
          %580 = dma.hbm_to_vmem [thread:$0]  %s573, 512, %s575, %s563, 128, 128, 8
        $region60: #{diffusion_head_forward.9} parent=15 // pred_fallthru
          _
        // Predicated region
        $region61: #{diffusion_head_forward.9} parent=15 // pred_check
          %p581 = pneg %p350
        $region62: #{diffusion_head_forward.9} parent=15 // pred_check_branch
          %583 = sbr.rel (%p581) target = $region64
        $region63: #{diffusion_head_forward.9} parent=15 // pred_region
          %s584 = sand.u32 %s32, 1
          %s585 = scalar_lea.sflag [#allocation9], %s584
          %s586 = sand.u32 %s340, 1
          %s587 = scalar_lea.vmem [#allocation10], %s586
          %589 = vsyncadd %s585, 0
          %s590 = scalar_lea.hbm %s11, %s40
          %s592 = sshll.u32 %s590, 4
          %s593 = int_to_ptr.hbm [resolvable:$true] %s592
          %s594 = sshll.u32 %s587, 4
          %s595 = int_to_ptr.vmem [resolvable:$true] %s594
          %597 = dma.hbm_to_vmem [thread:$0]  %s593, 16, %s595, %s585
        $region64: #{diffusion_head_forward.9} parent=15 // pred_fallthru
          _
        // Predicated region
        $region65: #{diffusion_head_forward.9} parent=15 // pred_check
          %p598 = pneg %p376
        $region66: #{diffusion_head_forward.9} parent=15 // pred_check_branch
          %600 = sbr.rel (%p598) target = $region68
        $region67: #{diffusion_head_forward.9} parent=15 // pred_region
          %p601 = scmp.lt.s32.totalorder %s40, 1
          %s602 = scalar_select %p601, %s40, 1
          %s603 = smul.addr %s602, 8
          %s604 = smul.addr %s603, 8
          %s605 = scalar_lea.vmem %s12, %s604
        $region68: #{diffusion_head_forward.9} parent=15 // pred_fallthru
          _
        // Predicated region
        $region69: #{diffusion_head_forward.9} parent=15 // pred_check
          %p606 = pneg %p402
        $region70: #{diffusion_head_forward.9} parent=15 // pred_check_branch
          %608 = sbr.rel (%p606) target = $region72
        $region71: #{diffusion_head_forward.9} parent=15 // pred_region
          %s609 = sand.u32 %s392, 1
          %s610 = scalar_lea.sflag [#allocation12], %s609
          %s611 = sand.u32 %s392, 1
          %s612 = scalar_lea.vmem [#allocation11], %s611
          %614 = vsyncadd %s610, 0
          %s615 = scalar_lea.hbm %s13, %s40
          %s617 = sshll.u32 %s615, 4
          %s618 = int_to_ptr.hbm [resolvable:$true] %s617
          %s619 = sshll.u32 %s612, 4
          %s620 = int_to_ptr.vmem [resolvable:$true] %s619
          %622 = dma.hbm_to_vmem [thread:$0]  %s618, 16, %s620, %s610
        $region72: #{diffusion_head_forward.9} parent=15 // pred_fallthru
          _
      $region16: #{diffusion_head_forward.9} parent=5 // pred_fallthru
        _
      %p623 = scmp.le.s32.totalorder 1, %s32
      %p624 = scmp.lt.s32.totalorder %s32, 5
      %p625 = pnand %p623, %p624
      %p626 = pneg %p625
      // Predicated region
      $region73: #{diffusion_head_forward.9} parent=5 // pred_check
        _
      $region74: #{diffusion_head_forward.9} parent=5 // pred_check_branch
        %628 = sbr.rel (%p625) target = $region76
      $region75: #{diffusion_head_forward.9} parent=5 // pred_region
        %s629 = ssub.s32 %s32, 1
        %s630 = sand.u32 %s239, 1
        %s631 = scalar_lea.sflag [#allocation4], %s630
        %s632 = sand.u32 %s239, 1
        %s633 = scalar_lea.vmem [#allocation3], %s632
        // Predicated region
        $region77: #{diffusion_head_forward.9} parent=75 // pred_check
          %p634 = pneg %p252
        $region78: #{diffusion_head_forward.9} parent=75 // pred_check_branch
          %636 = sbr.rel (%p634) target = $region80
        $region79: #{diffusion_head_forward.9} parent=75 // pred_region
          %638 = dma.done %s631, 16
        $region80: #{diffusion_head_forward.9} parent=75 // pred_fallthru
          _
        %s639 = sand.u32 %s37, 1
        %s640 = scalar_lea.sflag [#allocation6], %s639
        %s641 = sand.u32 %s265, 1
        %s642 = smul.addr %s641, 32
        %s643 = scalar_lea.vmem [#allocation5], %s642
        // Predicated region
        $region81: #{diffusion_head_forward.9} parent=75 // pred_check
          %p644 = pneg %p278
        $region82: #{diffusion_head_forward.9} parent=75 // pred_check_branch
          %646 = sbr.rel (%p644) target = $region84
        $region83: #{diffusion_head_forward.9} parent=75 // pred_region
          %648 = dma.done %s640, 512
        $region84: #{diffusion_head_forward.9} parent=75 // pred_fallthru
          _
        %s649 = sand.u32 %s37, 1
        %s650 = scalar_lea.sflag [#allocation6], %s649
        %s651 = sand.u32 %s291, 1
        %s652 = scalar_lea.vmem [#allocation7], %s651
        // Predicated region
        $region85: #{diffusion_head_forward.9} parent=75 // pred_check
          %p653 = pneg %p304
        $region86: #{diffusion_head_forward.9} parent=75 // pred_check_branch
          %655 = sbr.rel (%p653) target = $region88
        $region87: #{diffusion_head_forward.9} parent=75 // pred_region
          %657 = dma.done %s650, 16
        $region88: #{diffusion_head_forward.9} parent=75 // pred_fallthru
          _
        %s658 = sand.u32 %s37, 1
        %s659 = scalar_lea.sflag [#allocation9], %s658
        %s660 = sand.u32 %s317, 1
        %s661 = smul.addr %s660, 32
        %s662 = scalar_lea.vmem [#allocation8], %s661
        // Predicated region
        $region89: #{diffusion_head_forward.9} parent=75 // pred_check
          %p663 = pneg %p330
        $region90: #{diffusion_head_forward.9} parent=75 // pred_check_branch
          %665 = sbr.rel (%p663) target = $region92
        $region91: #{diffusion_head_forward.9} parent=75 // pred_region
          %667 = dma.done %s659, 512
        $region92: #{diffusion_head_forward.9} parent=75 // pred_fallthru
          _
        %s668 = sand.u32 %s37, 1
        %s669 = scalar_lea.sflag [#allocation9], %s668
        %s670 = sand.u32 %s343, 1
        %s671 = scalar_lea.vmem [#allocation10], %s670
        // Predicated region
        $region93: #{diffusion_head_forward.9} parent=75 // pred_check
          %p672 = pneg %p356
        $region94: #{diffusion_head_forward.9} parent=75 // pred_check_branch
          %674 = sbr.rel (%p672) target = $region96
        $region95: #{diffusion_head_forward.9} parent=75 // pred_region
          %676 = dma.done %s669, 16
        $region96: #{diffusion_head_forward.9} parent=75 // pred_fallthru
          _
        %s677 = sand.u32 %s395, 1
        %s678 = scalar_lea.sflag [#allocation12], %s677
        %s679 = sand.u32 %s395, 1
        %s680 = scalar_lea.vmem [#allocation11], %s679
        // Predicated region
        $region97: #{diffusion_head_forward.9} parent=75 // pred_check
          %p681 = pneg %p408
        $region98: #{diffusion_head_forward.9} parent=75 // pred_check_branch
          %683 = sbr.rel (%p681) target = $region100
        $region99: #{diffusion_head_forward.9} parent=75 // pred_region
          %685 = dma.done %s678, 16
        $region100: #{diffusion_head_forward.9} parent=75 // pred_fallthru
          _
        %p686 = scmp.lt.s32.totalorder %s41, 1
        %s687 = scalar_select %p686, %s41, 1
        %s688 = scalar_lea.vmem %s0, %s687
        %p689 = pneg %p70
        %p690 = pneg %p67
        %p691 = scmp.lt.s32.totalorder %s41, 1
        %s692 = scalar_select %p691, %s41, 1
        %s693 = smul.addr %s692, 2
        %s694 = smul.addr %s693, 8
        %s695 = scalar_lea.vmem %s1, %s694
        %p696 = pneg %p96
        %p697 = pneg %p93
        %p698 = scmp.lt.s32.totalorder %s42, 1
        %s699 = scalar_select %p698, %s42, 1
        %s700 = smul.addr %s699, 4
        %s701 = smul.addr %s700, 8
        %s702 = scalar_lea.vmem %s2, %s701
        %p703 = pneg %p122
        %p704 = pneg %p119
        %p705 = scmp.lt.s32.totalorder %s42, 1
        %s706 = scalar_select %p705, %s42, 1
        %s707 = scalar_lea.vmem %s3, %s706
        %p708 = pneg %p148
        %p709 = pneg %p145
        %p710 = scmp.lt.s32.totalorder %s42, 1
        %s711 = scalar_select %p710, %s42, 1
        %s712 = smul.addr %s711, 4
        %s713 = smul.addr %s712, 8
        %s714 = scalar_lea.vmem %s4, %s713
        %p715 = pneg %p174
        %p716 = pneg %p171
        %p717 = scmp.lt.s32.totalorder %s42, 1
        %s718 = scalar_select %p717, %s42, 1
        %s719 = scalar_lea.vmem %s5, %s718
        %p720 = pneg %p200
        %p721 = pneg %p197
        %p722 = scmp.lt.s32.totalorder %s42, 1
        %s723 = scalar_select %p722, %s42, 1
        %s724 = smul.addr %s723, 4
        %s725 = smul.addr %s724, 8
        %s726 = scalar_lea.vmem %s6, %s725
        %p727 = pneg %p226
        %p728 = pneg %p223
        %s729 = sand.u32 %s239, 1
        %s730 = scalar_lea.sflag [#allocation4], %s729
        %s731 = sand.u32 %s239, 1
        %s732 = scalar_lea.vmem [#allocation3], %s731
        %p733 = pneg %p252
        %p734 = pneg %p249
        %s735 = sand.u32 %s37, 1
        %s736 = scalar_lea.sflag [#allocation6], %s735
        %s737 = sand.u32 %s265, 1
        %s738 = smul.addr %s737, 32
        %s739 = scalar_lea.vmem [#allocation5], %s738
        %p740 = pneg %p278
        %p741 = pneg %p275
        %s742 = sand.u32 %s37, 1
        %s743 = scalar_lea.sflag [#allocation6], %s742
        %s744 = sand.u32 %s291, 1
        %s745 = scalar_lea.vmem [#allocation7], %s744
        %p746 = pneg %p304
        %p747 = pneg %p301
        %s748 = sand.u32 %s37, 1
        %s749 = scalar_lea.sflag [#allocation9], %s748
        %s750 = sand.u32 %s317, 1
        %s751 = smul.addr %s750, 32
        %s752 = scalar_lea.vmem [#allocation8], %s751
        %p753 = pneg %p330
        %p754 = pneg %p327
        %s755 = sand.u32 %s37, 1
        %s756 = scalar_lea.sflag [#allocation9], %s755
        %s757 = sand.u32 %s343, 1
        %s758 = scalar_lea.vmem [#allocation10], %s757
        %p759 = pneg %p356
        %p760 = pneg %p353
        %p761 = scmp.lt.s32.totalorder %s42, 1
        %s762 = scalar_select %p761, %s42, 1
        %s763 = smul.addr %s762, 8
        %s764 = smul.addr %s763, 8
        %s765 = scalar_lea.vmem %s12, %s764
        %p766 = pneg %p382
        %p767 = pneg %p379
        %s768 = sand.u32 %s395, 1
        %s769 = scalar_lea.sflag [#allocation12], %s768
        %s770 = sand.u32 %s395, 1
        %s771 = scalar_lea.vmem [#allocation11], %s770
        %p772 = pneg %p408
        %p773 = pneg %p405
        %p774 = pneg %p434
        %p775 = pneg %p431
        %p776 = scmp.lt.s32.totalorder %s41, 1
        %s777 = scalar_select %p776, %s41, 1
        %s778 = smul.addr %s777, 2
        %s779 = smul.addr %s778, 8
        %s780 = scalar_lea.vmem %s14, %s779
        %p781 = scmp.lt.s32.totalorder %s41, 1
        %s782 = scalar_select %p781, %s41, 1
        %s783 = scalar_lea.vmem %s0, %s782
        %p784 = scmp.lt.s32.totalorder %s41, 1
        %s785 = scalar_select %p784, %s41, 1
        %s786 = smul.addr %s785, 2
        %s787 = smul.addr %s786, 8
        %s788 = scalar_lea.vmem %s1, %s787
        %p789 = scmp.lt.s32.totalorder %s42, 1
        %s790 = scalar_select %p789, %s42, 1
        %s791 = smul.addr %s790, 4
        %s792 = smul.addr %s791, 8
        %s793 = scalar_lea.vmem %s2, %s792
        %p794 = scmp.lt.s32.totalorder %s42, 1
        %s795 = scalar_select %p794, %s42, 1
        %s796 = scalar_lea.vmem %s3, %s795
        %p797 = scmp.lt.s32.totalorder %s42, 1
        %s798 = scalar_select %p797, %s42, 1
        %s799 = smul.addr %s798, 4
        %s800 = smul.addr %s799, 8
        %s801 = scalar_lea.vmem %s4, %s800
        %p802 = scmp.lt.s32.totalorder %s42, 1
        %s803 = scalar_select %p802, %s42, 1
        %s804 = scalar_lea.vmem %s5, %s803
        %p805 = scmp.lt.s32.totalorder %s42, 1
        %s806 = scalar_select %p805, %s42, 1
        %s807 = smul.addr %s806, 4
        %s808 = smul.addr %s807, 8
        %s809 = scalar_lea.vmem %s6, %s808
        %p810 = scmp.lt.s32.totalorder %s42, 1
        %s811 = scalar_select %p810, %s42, 1
        %s812 = smul.addr %s811, 8
        %s813 = smul.addr %s812, 8
        %s814 = scalar_lea.vmem %s12, %s813
        %p815 = scmp.lt.s32.totalorder %s41, 1
        %s816 = scalar_select %p815, %s41, 1
        %s817 = smul.addr %s816, 2
        %s818 = smul.addr %s817, 8
        %s819 = scalar_lea.vmem %s14, %s818
        %p820 = scmp.eq.s32.totalorder %s42, 0
        // Predicated region
        $region101: #{diffusion_head_forward.9} parent=75 // pred_check
          %p821 = pneg %p820
        $region102: #{diffusion_head_forward.9} parent=75 // pred_check_branch
          %823 = sbr.rel (%p821) target = $region104
        $region103: #{diffusion_head_forward.9} parent=75 // pred_region
          %v824 = vld [vmem:[%s788] sm:$0xff]
          %v825 = vld [vmem:[%s788 + $0x8] sm:$0xf]
          %vm826 = vcmask 261120
          %827 = vst.msk [vmem:[#allocation2] sm:$0xff] %vm826, %v824
          %vm828 = vcmask 257024
          %829 = vst.msk [vmem:[#allocation2 + $0x8] sm:$0xf] %vm828, %v825
        $region104: #{diffusion_head_forward.9} parent=75 // pred_fallthru
          _
        %v830 = vld [vmem:[#allocation2] sm:$0xff]
        %v831 = vld [vmem:[#allocation2 + $0x8] sm:$0xf]
        %v832 = vld [vmem:[%s783] sm:$0x1]
        %v833 = vld [vmem:[%s793] sm:$0xff]
        %v834 = vld [vmem:[%s793 + $0x8] sm:$0xff]
        %v835 = vld [vmem:[%s793 + $0x10] sm:$0xff]
        %v836 = vld [vmem:[%s793 + $0x18] sm:$0xff]
        %v837 = vld [vmem:[%s796] sm:$0x1]
        %vm838 = vcmask 261120
        %v840 = vsel %vm838, %v832, 0
        %842 = vmatpush.msra.mxu0 0.0
        %843 = vmatpush.msra.mxu0 0.0
        %844 = vmatpush.msra.mxu0 0.0
        %845 = vmatpush.msra.mxu0 0.0
        %846 = vmatpush.msra.mxu0 0.0
        %847 = vmatpush.msra.mxu0 0.0
        %848 = vmatpush.msra.mxu0 0.0
        %849 = vmatpush.msra.mxu0 0.0
        %850 = vmatpush.msra.mxu0 0.0
        %851 = vmatpush.msra.mxu0 0.0
        %852 = vmatpush.msra.mxu0 0.0
        %853 = vmatpush.msra.mxu0 0.0
        %854 = vmatpush.msra.mxu0 %v836
        %855 = vmatpush.msra.mxu0 %v835
        %856 = vmatpush.msra.mxu0 %v834
        %857 = vmatpush.msra.mxu0 %v833
        %858 = vmatmul.f32.gmra.mxu0 %v840
        %v859 = vpop.f32.mrf.mxu0
        %v860 = vadd.f32 %v837, %v859
        %861 = vdwg.mxu0
        %v862 = vsel %vm838, %v830, 0.0
        %863 = vadd.xlane.f32.xlu0 %v862
        %v864 = vpop.xlane.xlu0 %863
        %vm865 = vcmask 257024
        %v866 = vsel %vm865, %v831, 0.0
        %867 = vadd.xlane.f32.xlu0 %v866
        %v868 = vpop.xlane.xlu0 %867
        %v869 = vrcp.pop 32.0
        %v870 = vmul.f32 32.0, %v869
        %v871 = vsub.f32 1.0, %v870
        %v872 = vmul.f32 %v869, %v871
        %v873 = vadd.f32 %v869, %v872
        %vm874 = vweird.f32 %v869
        %v875 = vsel %vm874, %v869, %v873
        %v876 = vmul.f32 %v864, %v875
        %v877 = vmul.f32 %v868, %v875
        %v878 = vsub.f32 %v830, %v876
        %v879 = vsub.f32 %v831, %v877
        %v880 = vmul.f32 %v878, %v878
        %v881 = vmul.f32 %v879, %v879
        %v882 = vsel %vm838, %v880, 0.0
        %883 = vadd.xlane.f32.xlu0 %v882
        %v884 = vpop.xlane.xlu0 %883
        %v885 = vsel %vm865, %v881, 0.0
        %886 = vadd.xlane.f32.xlu0 %v885
        %v887 = vpop.xlane.xlu0 %886
        %v888 = vmul.f32 %v884, %v875
        %v889 = vmul.f32 %v887, %v875
        %v890 = vadd.f32 %v888, 1e-05
        %v891 = vadd.f32 %v889, 1e-05
        %v892 = vrsqrt.pop %v890
        %v893 = vmul.f32 %v892, %v890
        %v894 = vmul.f32 %v893, %v892
        %v895 = vmul.f32 0.5, %v894
        %v896 = vsub.f32 1.5, %v895
        %v897 = vmul.f32 %v892, %v896
        %vm898 = vweird.f32 %v890
        %vm899 = vweird.f32 %v892
        %vm900 = vmor %vm898, %vm899
        %v901 = vsel %vm900, %v892, %v897
        %v902 = vrsqrt.pop %v891
        %v903 = vmul.f32 %v902, %v891
        %v904 = vmul.f32 %v903, %v902
        %v905 = vmul.f32 0.5, %v904
        %v906 = vsub.f32 1.5, %v905
        %v907 = vmul.f32 %v902, %v906
        %vm908 = vweird.f32 %v891
        %vm909 = vweird.f32 %v902
        %vm910 = vmor %vm908, %vm909
        %v911 = vsel %vm910, %v902, %v907
        %v912 = vmul.f32 %v878, %v901
        %v913 = vmul.f32 %v879, %v911
        %v914 = vadd.f32 %v860, 1.0
        %v915 = vperm.slane %v914, 0
        %v916 = vmul.f32 %v912, %v915
        %v917 = vmul.f32 %v913, %v915
        %v918 = vperm.slane %v860, 0
        %920 = vrot.lane.b32.xlu0 %v918, 96
        %v921 = vpop.permute.xlu0 %920
        %v923 = vadd.f32 %v916, %v921
        %v924 = vadd.f32 %v917, %v921
        %v925 = vld [vmem:[%s801] sm:$0xff]
        %v926 = vld [vmem:[%s801 + $0x8] sm:$0xff]
        %v927 = vld [vmem:[%s801 + $0x10] sm:$0xff]
        %v928 = vld [vmem:[%s801 + $0x18] sm:$0xff]
        %v929 = vld [vmem:[%s804] sm:$0x1]
        %v931 = vperm.slane %v929, 0
        %v934 = vsel %vm838, %v923, 0
        %v937 = vsel %vm838, %v924, 0
        %939 = vmatpush.msra.mxu0 0.0
        %940 = vmatpush.msra.mxu0 0.0
        %941 = vmatpush.msra.mxu0 0.0
        %942 = vmatpush.msra.mxu0 0.0
        %943 = vmatpush.msra.mxu0 0.0
        %944 = vmatpush.msra.mxu0 0.0
        %945 = vmatpush.msra.mxu0 0.0
        %946 = vmatpush.msra.mxu0 0.0
        %947 = vmatpush.msra.mxu0 0.0
        %948 = vmatpush.msra.mxu0 0.0
        %949 = vmatpush.msra.mxu0 0.0
        %950 = vmatpush.msra.mxu0 0.0
        %951 = vmatpush.msra.mxu0 %v928
        %952 = vmatpush.msra.mxu0 %v927
        %953 = vmatpush.msra.mxu0 %v926
        %954 = vmatpush.msra.mxu0 %v925
        %955 = vmatmul.f32.gmra.mxu0 %v934
        %v956 = vpop.f32.mrf.mxu0
        %v957 = vadd.f32 %v931, %v956
        %958 = vmatmul.f32.gmra.mxu0 %v937
        %v959 = vpop.f32.mrf.mxu0
        %v960 = vadd.f32 %v931, %v959
        %961 = vdwg.mxu0
        %964 = vrot.lane.b32.xlu0 %v957, 96
        %v965 = vpop.permute.xlu0 %964
        %966 = vrot.lane.b32.xlu0 %v960, 96
        %v967 = vpop.permute.xlu0 %966
        %vm968 = vcmask 64512
        %v969 = vsel %vm968, %v957, 0
        %v971 = vsel %vm968, %v960, 0
        %v973 = vsel %vm968, %v965, 0
        %v975 = vsel %vm968, %v967, 0
        %977 = vmatpush.xpose.msra.mxu0 0.0
        %978 = vmatpush.xpose.msra.mxu0 0.0
        %979 = vmatpush.xpose.msra.mxu0 0.0
        %980 = vmatpush.xpose.msra.mxu0 0.0
        %981 = vmatpush.xpose.msra.mxu0 0.0
        %982 = vmatpush.xpose.msra.mxu0 0.0
        %983 = vmatpush.xpose.msra.mxu0 0.0
        %984 = vmatpush.xpose.msra.mxu0 0.0
        %985 = vmatpush.xpose.msra.mxu0 0.0
        %986 = vmatpush.xpose.msra.mxu0 0.0
        %987 = vmatpush.xpose.msra.mxu0 0.0
        %988 = vmatpush.xpose.msra.mxu0 0.0
        %989 = vmatpush.xpose.msra.mxu0 0.0
        %990 = vmatpush.xpose.msra.mxu0 0.0
        %991 = vmatpush.xpose.msra.mxu0 %v975
        %992 = vmatpush.xpose.msra.mxu0 %v973
        %993 = vmatmul.f32.gmra.mxu0 %v969
        %v994 = vpop.f32.mrf.mxu0
        %v995 = vadd.f32 0.0, %v994
        %996 = vmatmul.f32.gmra.mxu0 %v971
        %v997 = vpop.f32.mrf.mxu0
        %v998 = vadd.f32 0.0, %v997
        %999 = vdwg.mxu0
        %v1000 = vmul.f32 %v995, 0.35355338
        %v1001 = vmul.f32 %v998, 0.35355338
        %vm1002 = vcmask 97280
        %v1003 = vsel %vm1002, %v1000, -inf
        %1004 = vmax.xlane.f32.xlu0 %v1003
        %v1005 = vpop.xlane.xlu0 %1004
        %vm1006 = vcmask 93184
        %v1007 = vsel %vm1006, %v1001, -inf
        %1008 = vmax.xlane.f32.xlu0 %v1007
        %v1009 = vpop.xlane.xlu0 %1008
        %v1010 = vsub.f32 %v1000, %v1005
        %v1011 = vsub.f32 %v1001, %v1009
        %v1012 = vmul.f32 %v1010, 1.442695
        %v1013 = vpow.pop %v1012
        %v1014 = vmul.f32 %v1011, 1.442695
        %v1015 = vpow.pop %v1014
        %v1016 = vsel %vm1002, %v1013, 0.0
        %1017 = vadd.xlane.f32.xlu0 %v1016
        %v1018 = vpop.xlane.xlu0 %1017
        %v1019 = vsel %vm1006, %v1015, 0.0
        %1020 = vadd.xlane.f32.xlu0 %v1019
        %v1021 = vpop.xlane.xlu0 %1020
        %v1022 = vrcp.pop %v1018
        %v1023 = vrcp.pop %v1021
        %v1024 = vmul.f32 %v1013, %v1022
        %v1025 = vmul.f32 %v1015, %v1023
        %1026 = vrot.lane.b32.xlu0 %v957, 64
        %v1027 = vpop.permute.xlu0 %1026
        %1028 = vrot.lane.b32.xlu0 %v960, 64
        %v1029 = vpop.permute.xlu0 %1028
        %v1032 = vsel %vm1002, %v1024, 0
        %v1035 = vsel %vm1002, %v1025, 0
        %vm1037 = vcmask 1043456
        %v1038 = vsel %vm1037, %v1029, 0
        %1040 = vmatpush.msra.mxu0 0.0
        %1041 = vmatpush.msra.mxu0 0.0
        %1042 = vmatpush.msra.mxu0 0.0
        %1043 = vmatpush.msra.mxu0 0.0
        %1044 = vmatpush.msra.mxu0 0.0
        %1045 = vmatpush.msra.mxu0 0.0
        %1046 = vmatpush.msra.mxu0 0.0
        %1047 = vmatpush.msra.mxu0 0.0
        %1048 = vmatpush.msra.mxu0 0.0
        %1049 = vmatpush.msra.mxu0 0.0
        %1050 = vmatpush.msra.mxu0 0.0
        %1051 = vmatpush.msra.mxu0 0.0
        %1052 = vmatpush.msra.mxu0 0.0
        %1053 = vmatpush.msra.mxu0 0.0
        %1054 = vmatpush.msra.mxu0 %v1038
        %1055 = vmatpush.msra.mxu0 %v1027
        %1056 = vmatmul.f32.gmra.mxu0 %v1032
        %v1057 = vpop.f32.mrf.mxu0
        %v1058 = vadd.f32 0.0, %v1057
        %1059 = vmatmul.f32.gmra.mxu0 %v1035
        %v1060 = vpop.f32.mrf.mxu0
        %v1061 = vadd.f32 0.0, %v1060
        %1062 = vdwg.mxu0
        %1063 = vrot.lane.b32.xlu0 %v957, 120
        %v1064 = vpop.permute.xlu0 %1063
        %1065 = vrot.lane.b32.xlu0 %v960, 120
        %v1066 = vpop.permute.xlu0 %1065
        %1067 = vrot.lane.b32.xlu0 %v957, 88
        %v1068 = vpop.permute.xlu0 %1067
        %1069 = vrot.lane.b32.xlu0 %v960, 88
        %v1070 = vpop.permute.xlu0 %1069
        %v1071 = vsel %vm968, %v1064, 0
        %v1073 = vsel %vm968, %v1066, 0
        %v1075 = vsel %vm968, %v1068, 0
        %v1077 = vsel %vm968, %v1070, 0
        %1079 = vmatpush.xpose.msra.mxu0 0.0
        %1080 = vmatpush.xpose.msra.mxu0 0.0
        %1081 = vmatpush.xpose.msra.mxu0 0.0
        %1082 = vmatpush.xpose.msra.mxu0 0.0
        %1083 = vmatpush.xpose.msra.mxu0 0.0
        %1084 = vmatpush.xpose.msra.mxu0 0.0
        %1085 = vmatpush.xpose.msra.mxu0 0.0
        %1086 = vmatpush.xpose.msra.mxu0 0.0
        %1087 = vmatpush.xpose.msra.mxu0 0.0
        %1088 = vmatpush.xpose.msra.mxu0 0.0
        %1089 = vmatpush.xpose.msra.mxu0 0.0
        %1090 = vmatpush.xpose.msra.mxu0 0.0
        %1091 = vmatpush.xpose.msra.mxu0 0.0
        %1092 = vmatpush.xpose.msra.mxu0 0.0
        %1093 = vmatpush.xpose.msra.mxu0 %v1077
        %1094 = vmatpush.xpose.msra.mxu0 %v1075
        %1095 = vmatmul.f32.gmra.mxu0 %v1071
        %v1096 = vpop.f32.mrf.mxu0
        %v1097 = vadd.f32 0.0, %v1096
        %1098 = vmatmul.f32.gmra.mxu0 %v1073
        %v1099 = vpop.f32.mrf.mxu0
        %v1100 = vadd.f32 0.0, %v1099
        %1101 = vdwg.mxu0
        %v1102 = vmul.f32 %v1097, 0.35355338
        %v1103 = vmul.f32 %v1100, 0.35355338
        %v1104 = vsel %vm1002, %v1102, -inf
        %1105 = vmax.xlane.f32.xlu0 %v1104
        %v1106 = vpop.xlane.xlu0 %1105
        %v1107 = vsel %vm1006, %v1103, -inf
        %1108 = vmax.xlane.f32.xlu0 %v1107
        %v1109 = vpop.xlane.xlu0 %1108
        %v1110 = vsub.f32 %v1102, %v1106
        %v1111 = vsub.f32 %v1103, %v1109
        %v1112 = vmul.f32 %v1110, 1.442695
        %v1113 = vpow.pop %v1112
        %v1114 = vmul.f32 %v1111, 1.442695
        %v1115 = vpow.pop %v1114
        %v1116 = vsel %vm1002, %v1113, 0.0
        %1117 = vadd.xlane.f32.xlu0 %v1116
        %v1118 = vpop.xlane.xlu0 %1117
        %v1119 = vsel %vm1006, %v1115, 0.0
        %1120 = vadd.xlane.f32.xlu0 %v1119
        %v1121 = vpop.xlane.xlu0 %1120
        %v1122 = vrcp.pop %v1118
        %v1123 = vrcp.pop %v1121
        %v1124 = vmul.f32 %v1113, %v1122
        %v1125 = vmul.f32 %v1115, %v1123
        %1126 = vrot.lane.b32.xlu0 %v957, 56
        %v1127 = vpop.permute.xlu0 %1126
        %1128 = vrot.lane.b32.xlu0 %v960, 56
        %v1129 = vpop.permute.xlu0 %1128
        %v1132 = vsel %vm1002, %v1124, 0
        %v1135 = vsel %vm1002, %v1125, 0
        %v1137 = vsel %vm1037, %v1129, 0
        %1139 = vmatpush.msra.mxu0 0.0
        %1140 = vmatpush.msra.mxu0 0.0
        %1141 = vmatpush.msra.mxu0 0.0
        %1142 = vmatpush.msra.mxu0 0.0
        %1143 = vmatpush.msra.mxu0 0.0
        %1144 = vmatpush.msra.mxu0 0.0
        %1145 = vmatpush.msra.mxu0 0.0
        %1146 = vmatpush.msra.mxu0 0.0
        %1147 = vmatpush.msra.mxu0 0.0
        %1148 = vmatpush.msra.mxu0 0.0
        %1149 = vmatpush.msra.mxu0 0.0
        %1150 = vmatpush.msra.mxu0 0.0
        %1151 = vmatpush.msra.mxu0 0.0
        %1152 = vmatpush.msra.mxu0 0.0
        %1153 = vmatpush.msra.mxu0 %v1137
        %1154 = vmatpush.msra.mxu0 %v1127
        %1155 = vmatmul.f32.gmra.mxu0 %v1132
        %v1156 = vpop.f32.mrf.mxu0
        %v1157 = vadd.f32 0.0, %v1156
        %1158 = vmatmul.f32.gmra.mxu0 %v1135
        %v1159 = vpop.f32.mrf.mxu0
        %v1160 = vadd.f32 0.0, %v1159
        %1161 = vdwg.mxu0
        %1162 = vrot.lane.b32.xlu0 %v957, 112
        %v1163 = vpop.permute.xlu0 %1162
        %1164 = vrot.lane.b32.xlu0 %v960, 112
        %v1165 = vpop.permute.xlu0 %1164
        %1166 = vrot.lane.b32.xlu0 %v957, 80
        %v1167 = vpop.permute.xlu0 %1166
        %1168 = vrot.lane.b32.xlu0 %v960, 80
        %v1169 = vpop.permute.xlu0 %1168
        %v1170 = vsel %vm968, %v1163, 0
        %v1172 = vsel %vm968, %v1165, 0
        %v1174 = vsel %vm968, %v1167, 0
        %v1176 = vsel %vm968, %v1169, 0
        %1178 = vmatpush.xpose.msra.mxu0 0.0
        %1179 = vmatpush.xpose.msra.mxu0 0.0
        %1180 = vmatpush.xpose.msra.mxu0 0.0
        %1181 = vmatpush.xpose.msra.mxu0 0.0
        %1182 = vmatpush.xpose.msra.mxu0 0.0
        %1183 = vmatpush.xpose.msra.mxu0 0.0
        %1184 = vmatpush.xpose.msra.mxu0 0.0
        %1185 = vmatpush.xpose.msra.mxu0 0.0
        %1186 = vmatpush.xpose.msra.mxu0 0.0
        %1187 = vmatpush.xpose.msra.mxu0 0.0
        %1188 = vmatpush.xpose.msra.mxu0 0.0
        %1189 = vmatpush.xpose.msra.mxu0 0.0
        %1190 = vmatpush.xpose.msra.mxu0 0.0
        %1191 = vmatpush.xpose.msra.mxu0 0.0
        %1192 = vmatpush.xpose.msra.mxu0 %v1176
        %1193 = vmatpush.xpose.msra.mxu0 %v1174
        %1194 = vmatmul.f32.gmra.mxu0 %v1170
        %v1195 = vpop.f32.mrf.mxu0
        %v1196 = vadd.f32 0.0, %v1195
        %1197 = vmatmul.f32.gmra.mxu0 %v1172
        %v1198 = vpop.f32.mrf.mxu0
        %v1199 = vadd.f32 0.0, %v1198
        %1200 = vdwg.mxu0
        %v1201 = vmul.f32 %v1196, 0.35355338
        %v1202 = vmul.f32 %v1199, 0.35355338
        %v1203 = vsel %vm1002, %v1201, -inf
        %1204 = vmax.xlane.f32.xlu0 %v1203
        %v1205 = vpop.xlane.xlu0 %1204
        %v1206 = vsel %vm1006, %v1202, -inf
        %1207 = vmax.xlane.f32.xlu0 %v1206
        %v1208 = vpop.xlane.xlu0 %1207
        %v1209 = vsub.f32 %v1201, %v1205
        %v1210 = vsub.f32 %v1202, %v1208
        %v1211 = vmul.f32 %v1209, 1.442695
        %v1212 = vpow.pop %v1211
        %v1213 = vmul.f32 %v1210, 1.442695
        %v1214 = vpow.pop %v1213
        %v1215 = vsel %vm1002, %v1212, 0.0
        %1216 = vadd.xlane.f32.xlu0 %v1215
        %v1217 = vpop.xlane.xlu0 %1216
        %v1218 = vsel %vm1006, %v1214, 0.0
        %1219 = vadd.xlane.f32.xlu0 %v1218
        %v1220 = vpop.xlane.xlu0 %1219
        %v1221 = vrcp.pop %v1217
        %v1222 = vrcp.pop %v1220
        %v1223 = vmul.f32 %v1212, %v1221
        %v1224 = vmul.f32 %v1214, %v1222
        %1225 = vrot.lane.b32.xlu0 %v957, 48
        %v1226 = vpop.permute.xlu0 %1225
        %1227 = vrot.lane.b32.xlu0 %v960, 48
        %v1228 = vpop.permute.xlu0 %1227
        %v1231 = vsel %vm1002, %v1223, 0
        %v1234 = vsel %vm1002, %v1224, 0
        %v1236 = vsel %vm1037, %v1228, 0
        %1238 = vmatpush.msra.mxu0 0.0
        %1239 = vmatpush.msra.mxu0 0.0
        %1240 = vmatpush.msra.mxu0 0.0
        %1241 = vmatpush.msra.mxu0 0.0
        %1242 = vmatpush.msra.mxu0 0.0
        %1243 = vmatpush.msra.mxu0 0.0
        %1244 = vmatpush.msra.mxu0 0.0
        %1245 = vmatpush.msra.mxu0 0.0
        %1246 = vmatpush.msra.mxu0 0.0
        %1247 = vmatpush.msra.mxu0 0.0
        %1248 = vmatpush.msra.mxu0 0.0
        %1249 = vmatpush.msra.mxu0 0.0
        %1250 = vmatpush.msra.mxu0 0.0
        %1251 = vmatpush.msra.mxu0 0.0
        %1252 = vmatpush.msra.mxu0 %v1236
        %1253 = vmatpush.msra.mxu0 %v1226
        %1254 = vmatmul.f32.gmra.mxu0 %v1231
        %v1255 = vpop.f32.mrf.mxu0
        %v1256 = vadd.f32 0.0, %v1255
        %1257 = vmatmul.f32.gmra.mxu0 %v1234
        %v1258 = vpop.f32.mrf.mxu0
        %v1259 = vadd.f32 0.0, %v1258
        %1260 = vdwg.mxu0
        %1261 = vrot.lane.b32.xlu0 %v957, 104
        %v1262 = vpop.permute.xlu0 %1261
        %1263 = vrot.lane.b32.xlu0 %v960, 104
        %v1264 = vpop.permute.xlu0 %1263
        %1265 = vrot.lane.b32.xlu0 %v957, 72
        %v1266 = vpop.permute.xlu0 %1265
        %1267 = vrot.lane.b32.xlu0 %v960, 72
        %v1268 = vpop.permute.xlu0 %1267
        %v1269 = vsel %vm968, %v1262, 0
        %v1271 = vsel %vm968, %v1264, 0
        %v1273 = vsel %vm968, %v1266, 0
        %v1275 = vsel %vm968, %v1268, 0
        %1277 = vmatpush.xpose.msra.mxu0 0.0
        %1278 = vmatpush.xpose.msra.mxu0 0.0
        %1279 = vmatpush.xpose.msra.mxu0 0.0
        %1280 = vmatpush.xpose.msra.mxu0 0.0
        %1281 = vmatpush.xpose.msra.mxu0 0.0
        %1282 = vmatpush.xpose.msra.mxu0 0.0
        %1283 = vmatpush.xpose.msra.mxu0 0.0
        %1284 = vmatpush.xpose.msra.mxu0 0.0
        %1285 = vmatpush.xpose.msra.mxu0 0.0
        %1286 = vmatpush.xpose.msra.mxu0 0.0
        %1287 = vmatpush.xpose.msra.mxu0 0.0
        %1288 = vmatpush.xpose.msra.mxu0 0.0
        %1289 = vmatpush.xpose.msra.mxu0 0.0
        %1290 = vmatpush.xpose.msra.mxu0 0.0
        %1291 = vmatpush.xpose.msra.mxu0 %v1275
        %1292 = vmatpush.xpose.msra.mxu0 %v1273
        %1293 = vmatmul.f32.gmra.mxu0 %v1269
        %v1294 = vpop.f32.mrf.mxu0
        %v1295 = vadd.f32 0.0, %v1294
        %1296 = vmatmul.f32.gmra.mxu0 %v1271
        %v1297 = vpop.f32.mrf.mxu0
        %v1298 = vadd.f32 0.0, %v1297
        %1299 = vdwg.mxu0
        %v1300 = vmul.f32 %v1295, 0.35355338
        %v1301 = vmul.f32 %v1298, 0.35355338
        %v1302 = vsel %vm1002, %v1300, -inf
        %1303 = vmax.xlane.f32.xlu0 %v1302
        %v1304 = vpop.xlane.xlu0 %1303
        %v1305 = vsel %vm1006, %v1301, -inf
        %1306 = vmax.xlane.f32.xlu0 %v1305
        %v1307 = vpop.xlane.xlu0 %1306
        %v1308 = vsub.f32 %v1300, %v1304
        %v1309 = vsub.f32 %v1301, %v1307
        %v1310 = vmul.f32 %v1308, 1.442695
        %v1311 = vpow.pop %v1310
        %v1312 = vmul.f32 %v1309, 1.442695
        %v1313 = vpow.pop %v1312
        %v1314 = vsel %vm1002, %v1311, 0.0
        %1315 = vadd.xlane.f32.xlu0 %v1314
        %v1316 = vpop.xlane.xlu0 %1315
        %v1317 = vsel %vm1006, %v1313, 0.0
        %1318 = vadd.xlane.f32.xlu0 %v1317
        %v1319 = vpop.xlane.xlu0 %1318
        %v1320 = vrcp.pop %v1316
        %v1321 = vrcp.pop %v1319
        %v1322 = vmul.f32 %v1311, %v1320
        %v1323 = vmul.f32 %v1313, %v1321
        %1324 = vrot.lane.b32.xlu0 %v957, 40
        %v1325 = vpop.permute.xlu0 %1324
        %1326 = vrot.lane.b32.xlu0 %v960, 40
        %v1327 = vpop.permute.xlu0 %1326
        %v1330 = vsel %vm1002, %v1322, 0
        %v1333 = vsel %vm1002, %v1323, 0
        %v1335 = vsel %vm1037, %v1327, 0
        %1337 = vmatpush.msra.mxu0 0.0
        %1338 = vmatpush.msra.mxu0 0.0
        %1339 = vmatpush.msra.mxu0 0.0
        %1340 = vmatpush.msra.mxu0 0.0
        %1341 = vmatpush.msra.mxu0 0.0
        %1342 = vmatpush.msra.mxu0 0.0
        %1343 = vmatpush.msra.mxu0 0.0
        %1344 = vmatpush.msra.mxu0 0.0
        %1345 = vmatpush.msra.mxu0 0.0
        %1346 = vmatpush.msra.mxu0 0.0
        %1347 = vmatpush.msra.mxu0 0.0
        %1348 = vmatpush.msra.mxu0 0.0
        %1349 = vmatpush.msra.mxu0 0.0
        %1350 = vmatpush.msra.mxu0 0.0
        %1351 = vmatpush.msra.mxu0 %v1335
        %1352 = vmatpush.msra.mxu0 %v1325
        %1353 = vmatmul.f32.gmra.mxu0 %v1330
        %v1354 = vpop.f32.mrf.mxu0
        %v1355 = vadd.f32 0.0, %v1354
        %1356 = vmatmul.f32.gmra.mxu0 %v1333
        %v1357 = vpop.f32.mrf.mxu0
        %v1358 = vadd.f32 0.0, %v1357
        %1359 = vdwg.mxu0
        %1362 = vrot.lane.b32.xlu0 %v1157, 8
        %v1363 = vpop.permute.xlu0 %1362
        %1364 = vrot.lane.b32.xlu0 %v1160, 8
        %v1365 = vpop.permute.xlu0 %1364
        %1370 = vrot.lane.b32.xlu0 %v1256, 16
        %v1371 = vpop.permute.xlu0 %1370
        %1372 = vrot.lane.b32.xlu0 %v1259, 16
        %v1373 = vpop.permute.xlu0 %1372
        %1378 = vrot.lane.b32.xlu0 %v1355, 24
        %v1379 = vpop.permute.xlu0 %1378
        %1380 = vrot.lane.b32.xlu0 %v1358, 24
        %v1381 = vpop.permute.xlu0 %1380
        %v1384 = vsel %vm968, %v1058, %v1363
        %v1385 = vsel %vm968, %v1061, %v1365
        %vm1386 = vcmask 130048
        %v1387 = vsel %vm1386, %v1384, %v1371
        %v1388 = vsel %vm1386, %v1385, %v1373
        %vm1389 = vcmask 195584
        %v1390 = vsel %vm1389, %v1387, %v1379
        %v1391 = vsel %vm1389, %v1388, %v1381
        %v1392 = vld [vmem:[%s809] sm:$0xff]
        %v1393 = vld [vmem:[%s809 + $0x8] sm:$0xff]
        %v1394 = vld [vmem:[%s809 + $0x10] sm:$0xff]
        %v1395 = vld [vmem:[%s809 + $0x18] sm:$0xff]
        %v1397 = vsel %vm838, %v1390, 0
        %v1400 = vsel %vm838, %v1391, 0
        %1402 = vmatpush.msra.mxu0 0.0
        %1403 = vmatpush.msra.mxu0 0.0
        %1404 = vmatpush.msra.mxu0 0.0
        %1405 = vmatpush.msra.mxu0 0.0
        %1406 = vmatpush.msra.mxu0 0.0
        %1407 = vmatpush.msra.mxu0 0.0
        %1408 = vmatpush.msra.mxu0 0.0
        %1409 = vmatpush.msra.mxu0 0.0
        %1410 = vmatpush.msra.mxu0 0.0
        %1411 = vmatpush.msra.mxu0 0.0
        %1412 = vmatpush.msra.mxu0 0.0
        %1413 = vmatpush.msra.mxu0 0.0
        %1414 = vmatpush.msra.mxu0 %v1395
        %1415 = vmatpush.msra.mxu0 %v1394
        %1416 = vmatpush.msra.mxu0 %v1393
        %1417 = vmatpush.msra.mxu0 %v1392
        %1418 = vmatmul.f32.gmra.mxu0 %v1397
        %v1419 = vpop.f32.mrf.mxu0
        %v1420 = vadd.f32 0.0, %v1419
        %1421 = vmatmul.f32.gmra.mxu0 %v1400
        %v1422 = vpop.f32.mrf.mxu0
        %v1423 = vadd.f32 0.0, %v1422
        %1424 = vdwg.mxu0
        %v1425 = vadd.f32 %v830, %v1420
        %v1426 = vadd.f32 %v831, %v1423
        %v1427 = vld [vmem:[%s633] sm:$0x1]
        %v1429 = vperm.slane %v1427, 0
        %v1431 = vadd.f32 %v1425, %v1429
        %v1432 = vadd.f32 %v1426, %v1429
        %v1433 = vld [vmem:[%s643] sm:$0xff]
        %v1434 = vld [vmem:[%s643 + $0x8] sm:$0xff]
        %v1435 = vld [vmem:[%s643 + $0x10] sm:$0xff]
        %v1436 = vld [vmem:[%s643 + $0x18] sm:$0xff]
        %v1437 = vld [vmem:[%s652] sm:$0x1]
        %1438 = vmatpush.msra.mxu0 0.0
        %1439 = vmatpush.msra.mxu0 0.0
        %1440 = vmatpush.msra.mxu0 0.0
        %1441 = vmatpush.msra.mxu0 0.0
        %1442 = vmatpush.msra.mxu0 0.0
        %1443 = vmatpush.msra.mxu0 0.0
        %1444 = vmatpush.msra.mxu0 0.0
        %1445 = vmatpush.msra.mxu0 0.0
        %1446 = vmatpush.msra.mxu0 0.0
        %1447 = vmatpush.msra.mxu0 0.0
        %1448 = vmatpush.msra.mxu0 0.0
        %1449 = vmatpush.msra.mxu0 0.0
        %1450 = vmatpush.msra.mxu0 %v1436
        %1451 = vmatpush.msra.mxu0 %v1435
        %1452 = vmatpush.msra.mxu0 %v1434
        %1453 = vmatpush.msra.mxu0 %v1433
        %1454 = vmatmul.f32.gmra.mxu0 %v840
        %v1455 = vpop.f32.mrf.mxu0
        %v1456 = vadd.f32 %v1437, %v1455
        %1457 = vdwg.mxu0
        %v1458 = vsel %vm838, %v1431, 0.0
        %1459 = vadd.xlane.f32.xlu0 %v1458
        %v1460 = vpop.xlane.xlu0 %1459
        %v1461 = vsel %vm865, %v1432, 0.0
        %1462 = vadd.xlane.f32.xlu0 %v1461
        %v1463 = vpop.xlane.xlu0 %1462
        %v1464 = vmul.f32 %v1460, %v875
        %v1465 = vmul.f32 %v1463, %v875
        %v1466 = vsub.f32 %v1431, %v1464
        %v1467 = vsub.f32 %v1432, %v1465
        %v1468 = vmul.f32 %v1466, %v1466
        %v1469 = vmul.f32 %v1467, %v1467
        %v1470 = vsel %vm838, %v1468, 0.0
        %1471 = vadd.xlane.f32.xlu0 %v1470
        %v1472 = vpop.xlane.xlu0 %1471
        %v1473 = vsel %vm865, %v1469, 0.0
        %1474 = vadd.xlane.f32.xlu0 %v1473
        %v1475 = vpop.xlane.xlu0 %1474
        %v1476 = vmul.f32 %v1472, %v875
        %v1477 = vmul.f32 %v1475, %v875
        %v1478 = vadd.f32 %v1476, 1e-05
        %v1479 = vadd.f32 %v1477, 1e-05
        %v1480 = vrsqrt.pop %v1478
        %v1481 = vmul.f32 %v1480, %v1478
        %v1482 = vmul.f32 %v1481, %v1480
        %v1483 = vmul.f32 0.5, %v1482
        %v1484 = vsub.f32 1.5, %v1483
        %v1485 = vmul.f32 %v1480, %v1484
        %vm1486 = vweird.f32 %v1478
        %vm1487 = vweird.f32 %v1480
        %vm1488 = vmor %vm1486, %vm1487
        %v1489 = vsel %vm1488, %v1480, %v1485
        %v1490 = vrsqrt.pop %v1479
        %v1491 = vmul.f32 %v1490, %v1479
        %v1492 = vmul.f32 %v1491, %v1490
        %v1493 = vmul.f32 0.5, %v1492
        %v1494 = vsub.f32 1.5, %v1493
        %v1495 = vmul.f32 %v1490, %v1494
        %vm1496 = vweird.f32 %v1479
        %vm1497 = vweird.f32 %v1490
        %vm1498 = vmor %vm1496, %vm1497
        %v1499 = vsel %vm1498, %v1490, %v1495
        %v1500 = vmul.f32 %v1466, %v1489
        %v1501 = vmul.f32 %v1467, %v1499
        %v1502 = vadd.f32 %v1456, 1.0
        %v1503 = vperm.slane %v1502, 0
        %v1504 = vmul.f32 %v1500, %v1503
        %v1505 = vmul.f32 %v1501, %v1503
        %v1506 = vperm.slane %v1456, 0
        %1508 = vrot.lane.b32.xlu0 %v1506, 96
        %v1509 = vpop.permute.xlu0 %1508
        %v1511 = vadd.f32 %v1504, %v1509
        %v1512 = vadd.f32 %v1505, %v1509
        %v1513 = vld [vmem:[%s662] sm:$0xff]
        %v1514 = vld [vmem:[%s662 + $0x8] sm:$0xff]
        %v1515 = vld [vmem:[%s662 + $0x10] sm:$0xff]
        %v1516 = vld [vmem:[%s662 + $0x18] sm:$0xff]
        %v1517 = vld [vmem:[%s671] sm:$0x1]
        %v1519 = vperm.slane %v1517, 0
        %v1522 = vsel %vm838, %v1511, 0
        %v1525 = vsel %vm838, %v1512, 0
        %1527 = vmatpush.msra.mxu0 0.0
        %1528 = vmatpush.msra.mxu0 0.0
        %1529 = vmatpush.msra.mxu0 0.0
        %1530 = vmatpush.msra.mxu0 0.0
        %1531 = vmatpush.msra.mxu0 0.0
        %1532 = vmatpush.msra.mxu0 0.0
        %1533 = vmatpush.msra.mxu0 0.0
        %1534 = vmatpush.msra.mxu0 0.0
        %1535 = vmatpush.msra.mxu0 0.0
        %1536 = vmatpush.msra.mxu0 0.0
        %1537 = vmatpush.msra.mxu0 0.0
        %1538 = vmatpush.msra.mxu0 0.0
        %1539 = vmatpush.msra.mxu0 %v1516
        %1540 = vmatpush.msra.mxu0 %v1515
        %1541 = vmatpush.msra.mxu0 %v1514
        %1542 = vmatpush.msra.mxu0 %v1513
        %1543 = vmatmul.f32.gmra.mxu0 %v1522
        %v1544 = vpop.f32.mrf.mxu0
        %v1545 = vadd.f32 %v1519, %v1544
        %1546 = vmatmul.f32.gmra.mxu0 %v1525
        %v1547 = vpop.f32.mrf.mxu0
        %v1548 = vadd.f32 %v1519, %v1547
        %1549 = vdwg.mxu0
        %v1550 = vmax.f32 %v1545, 0.0
        %v1551 = vmax.f32 %v1548, 0.0
        %v1552 = vld [vmem:[%s814] sm:$0xff]
        %v1553 = vld [vmem:[%s814 + $0x8] sm:$0xff]
        %v1554 = vld [vmem:[%s814 + $0x10] sm:$0xff]
        %v1555 = vld [vmem:[%s814 + $0x18] sm:$0xff]
        %v1556 = vld [vmem:[%s814 + $0x20] sm:$0xff]
        %v1557 = vld [vmem:[%s814 + $0x28] sm:$0xff]
        %v1558 = vld [vmem:[%s814 + $0x30] sm:$0xff]
        %v1559 = vld [vmem:[%s814 + $0x38] sm:$0xff]
        %vm1560 = vcmask 523264
        %v1562 = vsel %vm1560, %v1550, 0
        %v1565 = vsel %vm1560, %v1551, 0
        %1567 = vmatpush.msra.mxu0 0.0
        %1568 = vmatpush.msra.mxu0 0.0
        %1569 = vmatpush.msra.mxu0 0.0
        %1570 = vmatpush.msra.mxu0 0.0
        %1571 = vmatpush.msra.mxu0 0.0
        %1572 = vmatpush.msra.mxu0 0.0
        %1573 = vmatpush.msra.mxu0 0.0
        %1574 = vmatpush.msra.mxu0 0.0
        %1575 = vmatpush.msra.mxu0 %v1559
        %1576 = vmatpush.msra.mxu0 %v1558
        %1577 = vmatpush.msra.mxu0 %v1557
        %1578 = vmatpush.msra.mxu0 %v1556
        %1579 = vmatpush.msra.mxu0 %v1555
        %1580 = vmatpush.msra.mxu0 %v1554
        %1581 = vmatpush.msra.mxu0 %v1553
        %1582 = vmatpush.msra.mxu0 %v1552
        %1583 = vmatmul.f32.gmra.mxu0 %v1562
        %v1584 = vpop.f32.mrf.mxu0
        %v1585 = vadd.f32 0.0, %v1584
        %1586 = vmatmul.f32.gmra.mxu0 %v1565
        %v1587 = vpop.f32.mrf.mxu0
        %v1588 = vadd.f32 0.0, %v1587
        %1589 = vdwg.mxu0
        %v1590 = vadd.f32 %v1431, %v1585
        %v1591 = vadd.f32 %v1432, %v1588
        %v1592 = vld [vmem:[%s680] sm:$0x1]
        %v1594 = vperm.slane %v1592, 0
        %v1596 = vadd.f32 %v1590, %v1594
        %v1597 = vadd.f32 %v1591, %v1594
        %1598 = vst.msk [vmem:[#allocation2] sm:$0xff] %vm838, %v1596
        %1599 = vst.msk [vmem:[#allocation2 + $0x8] sm:$0xf] %vm865, %v1597
        %p1600 = scmp.eq.s32.totalorder %s42, 1
        // Predicated region
        $region105: #{diffusion_head_forward.9} parent=75 // pred_check
          %p1601 = pneg %p1600
        $region106: #{diffusion_head_forward.9} parent=75 // pred_check_branch
          %1603 = sbr.rel (%p1601) target = $region108
        $region107: #{diffusion_head_forward.9} parent=75 // pred_region
          %1604 = vst.msk [vmem:[%s819] sm:$0xff] %vm838, %v1596
          %1605 = vst.msk [vmem:[%s819 + $0x8] sm:$0xf] %vm865, %v1597
        $region108: #{diffusion_head_forward.9} parent=75 // pred_fallthru
          _
        %p1606 = scmp.lt.s32.totalorder %s41, 1
        %s1607 = scalar_select %p1606, %s41, 1
        %s1608 = smul.addr %s1607, 2
        %s1609 = smul.addr %s1608, 8
        %s1610 = scalar_lea.vmem %s14, %s1609
        // Predicated region
        $region109: #{diffusion_head_forward.9} parent=75 // pred_check
          %p1611 = pneg %p431
        $region110: #{diffusion_head_forward.9} parent=75 // pred_check_branch
          %1613 = sbr.rel (%p1611) target = $region112
        $region111: #{diffusion_head_forward.9} parent=75 // pred_region
          _
        $region112: #{diffusion_head_forward.9} parent=75 // pred_fallthru
          _
      $region76: #{diffusion_head_forward.9} parent=5 // pred_fallthru
        _
      %p1614 = scmp.le.s32.totalorder 2, %s32
      // Predicated region
      $region113: #{diffusion_head_forward.9} parent=5 // pred_check
        %p1615 = pneg %p1614
      $region114: #{diffusion_head_forward.9} parent=5 // pred_check_branch
        %1617 = sbr.rel (%p1615) target = $region116
      $region115: #{diffusion_head_forward.9} parent=5 // pred_region
        %s1618 = ssub.s32 %s32, 2
        // Predicated region
        $region117: #{diffusion_head_forward.9} parent=115 // pred_check
          %p1619 = pneg %p437
        $region118: #{diffusion_head_forward.9} parent=115 // pred_check_branch
          %1621 = sbr.rel (%p1619) target = $region120
        $region119: #{diffusion_head_forward.9} parent=115 // pred_region
          %p1622 = scmp.lt.s32.totalorder %s43, 1
          %s1623 = scalar_select %p1622, %s43, 1
          %s1624 = smul.addr %s1623, 2
          %s1625 = smul.addr %s1624, 8
          %s1626 = scalar_lea.vmem %s14, %s1625
        $region120: #{diffusion_head_forward.9} parent=115 // pred_fallthru
          _
      $region116: #{diffusion_head_forward.9} parent=5 // pred_fallthru
        _
    $region6: #{diffusion_head_forward.9} parent=1 // loop_footer
      %s36 = sadd.s32 1, %s32
    $region7: #{diffusion_head_forward.9} parent=1 // loop_footer_branch
      %31 = sbr.rel target = $region3
    $region8: #{diffusion_head_forward.9} parent=1 // loop_exit
      _
    %1627 = vsyncpa [#allocation4], 1
    %s1628 = scalar_lea.sflag [#allocation4], 1
    %1629 = vsyncpa %s1628, 1
    %1630 = vsyncpa [#allocation6], 1
    %s1631 = scalar_lea.sflag [#allocation6], 1
    %1632 = vsyncpa %s1631, 1
    %1633 = vsyncpa [#allocation9], 1
    %s1634 = scalar_lea.sflag [#allocation9], 1
    %1635 = vsyncpa %s1634, 1
    %1636 = vsyncpa [#allocation12], 1
    %s1637 = scalar_lea.sflag [#allocation12], 1
    %1638 = vsyncpa %s1637, 1

// kernel: diffusion_head_forward.11
$region0: #{diffusion_head_forward.11}
  #allocation0 [shape = 'u32[]', space=smem, size = 0x4, offset = 0x4, fixed_abs, tag = 'smem constant byte address 0x4 - core index']
  #allocation1 [shape = 'u32[72,128]{1,0:T(1,128)}', space=vmem, size = 0x9000, scoped, tag = 'internal scratch']
  %s0 = inlined_call_operand.vmem [shape: f32[2,32], index: 0, kind: input, shape index: {}]
  %s1 = inlined_call_operand.vmem [shape: f32[2,32], index: 1, kind: input, shape index: {}]
  %s2 = inlined_call_operand.vmem [shape: f32[32,32], index: 2, kind: input, shape index: {}]
  %s3 = inlined_call_operand.vmem [shape: f32[1,32], index: 3, kind: input, shape index: {}]
  %s4 = inlined_call_operand.vmem [shape: f32[32,32], index: 4, kind: input, shape index: {}]
  %s5 = inlined_call_operand.vmem [shape: f32[1,32], index: 5, kind: input, shape index: {}]
  %s6 = inlined_call_operand.vmem [shape: f32[32,4], index: 6, kind: input, shape index: {}]
  %s7 = inlined_call_operand.vmem [shape: f32[1,4], index: 7, kind: input, shape index: {}]
  %s8 = inlined_call_operand.vmem [shape: f32[32,32], index: 8, kind: input, shape index: {}]
  %s9 = inlined_call_operand.vmem [shape: f32[1,32], index: 9, kind: input, shape index: {}]
  %s10 = inlined_call_operand.vmem [shape: f32[32,64], index: 10, kind: input, shape index: {}]
  %s11 = inlined_call_operand.vmem [shape: f32[1,64], index: 11, kind: input, shape index: {}]
  %s12 = inlined_call_operand.vmem [shape: f32[64,4], index: 12, kind: input, shape index: {}]
  %s13 = inlined_call_operand.vmem [shape: f32[1,4], index: 13, kind: input, shape index: {}]
  %s14 = inlined_call_operand.vmem [shape: f32[2,3], index: 14, kind: output, shape index: {0}]
  %s15 = inlined_call_operand.vmem [shape: f32[2,4], index: 15, kind: output, shape index: {1}]
  %s16 = inlined_call_operand.vmem [shape: f32[2,1], index: 16, kind: output, shape index: {2}]
  %17 = xla_tuple %s14, %s15, %s16
  %s18 = sld [smem:[#allocation0]]
  $region82: #{diffusion_head_forward.11} parent=0
    _
  %s20 = ssub.s32 1, %s18
  %s21 = scalar_select 0, %s20, %s18
  // Predicated region
  $region2: #{diffusion_head_forward.11} parent=0 // pred_check
    _
  $region3: #{diffusion_head_forward.11} parent=0 // pred_check_branch
    %23 = sbr.rel (0) target = $region5
  $region4: #{diffusion_head_forward.11} parent=0 // pred_region
    _
  $region5: #{diffusion_head_forward.11} parent=0 // pred_fallthru
    _
  // Predicated region
  $region6: #{diffusion_head_forward.11} parent=0 // pred_check
    _
  $region7: #{diffusion_head_forward.11} parent=0 // pred_check_branch
    %25 = sbr.rel (0) target = $region9
  $region8: #{diffusion_head_forward.11} parent=0 // pred_region
    _
  $region9: #{diffusion_head_forward.11} parent=0 // pred_fallthru
    _
  // Predicated region
  $region10: #{diffusion_head_forward.11} parent=0 // pred_check
    _
  $region11: #{diffusion_head_forward.11} parent=0 // pred_check_branch
    %27 = sbr.rel (0) target = $region13
  $region12: #{diffusion_head_forward.11} parent=0 // pred_region
    _
  $region13: #{diffusion_head_forward.11} parent=0 // pred_fallthru
    _
  // Predicated region
  $region14: #{diffusion_head_forward.11} parent=0 // pred_check
    _
  $region15: #{diffusion_head_forward.11} parent=0 // pred_check_branch
    %29 = sbr.rel (0) target = $region17
  $region16: #{diffusion_head_forward.11} parent=0 // pred_region
    _
  $region17: #{diffusion_head_forward.11} parent=0 // pred_fallthru
    _
  // Predicated region
  $region18: #{diffusion_head_forward.11} parent=0 // pred_check
    _
  $region19: #{diffusion_head_forward.11} parent=0 // pred_check_branch
    %31 = sbr.rel (0) target = $region21
  $region20: #{diffusion_head_forward.11} parent=0 // pred_region
    _
  $region21: #{diffusion_head_forward.11} parent=0 // pred_fallthru
    _
  // Predicated region
  $region22: #{diffusion_head_forward.11} parent=0 // pred_check
    _
  $region23: #{diffusion_head_forward.11} parent=0 // pred_check_branch
    %33 = sbr.rel (0) target = $region25
  $region24: #{diffusion_head_forward.11} parent=0 // pred_region
    _
  $region25: #{diffusion_head_forward.11} parent=0 // pred_fallthru
    _
  // Predicated region
  $region26: #{diffusion_head_forward.11} parent=0 // pred_check
    _
  $region27: #{diffusion_head_forward.11} parent=0 // pred_check_branch
    %35 = sbr.rel (0) target = $region29
  $region28: #{diffusion_head_forward.11} parent=0 // pred_region
    _
  $region29: #{diffusion_head_forward.11} parent=0 // pred_fallthru
    _
  // Predicated region
  $region30: #{diffusion_head_forward.11} parent=0 // pred_check
    _
  $region31: #{diffusion_head_forward.11} parent=0 // pred_check_branch
    %37 = sbr.rel (0) target = $region33
  $region32: #{diffusion_head_forward.11} parent=0 // pred_region
    _
  $region33: #{diffusion_head_forward.11} parent=0 // pred_fallthru
    _
  // Predicated region
  $region34: #{diffusion_head_forward.11} parent=0 // pred_check
    _
  $region35: #{diffusion_head_forward.11} parent=0 // pred_check_branch
    %39 = sbr.rel (0) target = $region37
  $region36: #{diffusion_head_forward.11} parent=0 // pred_region
    _
  $region37: #{diffusion_head_forward.11} parent=0 // pred_fallthru
    _
  // Predicated region
  $region38: #{diffusion_head_forward.11} parent=0 // pred_check
    _
  $region39: #{diffusion_head_forward.11} parent=0 // pred_check_branch
    %41 = sbr.rel (0) target = $region41
  $region40: #{diffusion_head_forward.11} parent=0 // pred_region
    _
  $region41: #{diffusion_head_forward.11} parent=0 // pred_fallthru
    _
  // Predicated region
  $region42: #{diffusion_head_forward.11} parent=0 // pred_check
    _
  $region43: #{diffusion_head_forward.11} parent=0 // pred_check_branch
    %43 = sbr.rel (0) target = $region45
  $region44: #{diffusion_head_forward.11} parent=0 // pred_region
    _
  $region45: #{diffusion_head_forward.11} parent=0 // pred_fallthru
    _
  // Predicated region
  $region46: #{diffusion_head_forward.11} parent=0 // pred_check
    _
  $region47: #{diffusion_head_forward.11} parent=0 // pred_check_branch
    %45 = sbr.rel (0) target = $region49
  $region48: #{diffusion_head_forward.11} parent=0 // pred_region
    _
  $region49: #{diffusion_head_forward.11} parent=0 // pred_fallthru
    _
  // Predicated region
  $region50: #{diffusion_head_forward.11} parent=0 // pred_check
    _
  $region51: #{diffusion_head_forward.11} parent=0 // pred_check_branch
    %47 = sbr.rel (0) target = $region53
  $region52: #{diffusion_head_forward.11} parent=0 // pred_region
    _
  $region53: #{diffusion_head_forward.11} parent=0 // pred_fallthru
    _
  // Predicated region
  $region54: #{diffusion_head_forward.11} parent=0 // pred_check
    _
  $region55: #{diffusion_head_forward.11} parent=0 // pred_check_branch
    %49 = sbr.rel (0) target = $region57
  $region56: #{diffusion_head_forward.11} parent=0 // pred_region
    _
  $region57: #{diffusion_head_forward.11} parent=0 // pred_fallthru
    _
  %v50 = vld [vmem:[%s0] sm:$0x3]
  %v51 = vld [vmem:[%s2] sm:$0xff]
  %v52 = vld [vmem:[%s2 + $0x8] sm:$0xff]
  %v53 = vld [vmem:[%s2 + $0x10] sm:$0xff]
  %v54 = vld [vmem:[%s2 + $0x18] sm:$0xff]
  %v55 = vld [vmem:[%s3] sm:$0x1]
  %v57 = vperm.slane %v55, 0
  %vm59 = vcmask 261120
  %v61 = vsel %vm59, %v50, 0
  %63 = vmatpush.msra.mxu0 0.0
  %64 = vmatpush.msra.mxu0 0.0
  %65 = vmatpush.msra.mxu0 0.0
  %66 = vmatpush.msra.mxu0 0.0
  %67 = vmatpush.msra.mxu0 0.0
  %68 = vmatpush.msra.mxu0 0.0
  %69 = vmatpush.msra.mxu0 0.0
  %70 = vmatpush.msra.mxu0 0.0
  %71 = vmatpush.msra.mxu0 0.0
  %72 = vmatpush.msra.mxu0 0.0
  %73 = vmatpush.msra.mxu0 0.0
  %74 = vmatpush.msra.mxu0 0.0
  %75 = vmatpush.msra.mxu0 %v54
  %76 = vmatpush.msra.mxu0 %v53
  %77 = vmatpush.msra.mxu0 %v52
  %78 = vmatpush.msra.mxu0 %v51
  %79 = vmatmul.f32.gmra.mxu0 %v61
  %v80 = vpop.f32.mrf.mxu0
  %v81 = vadd.f32 %v57, %v80
  %82 = vdwg.mxu0
  %v83 = vld [vmem:[%s4] sm:$0xff]
  %v84 = vld [vmem:[%s4 + $0x8] sm:$0xff]
  %v85 = vld [vmem:[%s4 + $0x10] sm:$0xff]
  %v86 = vld [vmem:[%s4 + $0x18] sm:$0xff]
  %v87 = vld [vmem:[%s5] sm:$0x1]
  %v89 = vperm.slane %v87, 0
  %v92 = vsel %vm59, %v81, 0
  %94 = vmatpush.msra.mxu0 0.0
  %95 = vmatpush.msra.mxu0 0.0
  %96 = vmatpush.msra.mxu0 0.0
  %97 = vmatpush.msra.mxu0 0.0
  %98 = vmatpush.msra.mxu0 0.0
  %99 = vmatpush.msra.mxu0 0.0
  %100 = vmatpush.msra.mxu0 0.0
  %101 = vmatpush.msra.mxu0 0.0
  %102 = vmatpush.msra.mxu0 0.0
  %103 = vmatpush.msra.mxu0 0.0
  %104 = vmatpush.msra.mxu0 0.0
  %105 = vmatpush.msra.mxu0 0.0
  %106 = vmatpush.msra.mxu0 %v86
  %107 = vmatpush.msra.mxu0 %v85
  %108 = vmatpush.msra.mxu0 %v84
  %109 = vmatpush.msra.mxu0 %v83
  %110 = vmatmul.f32.gmra.mxu0 %v92
  %v111 = vpop.f32.mrf.mxu0
  %v112 = vadd.f32 %v89, %v111
  %113 = vdwg.mxu0
  %v114 = vmax.f32 %v112, 0.0
  %v115 = vld [vmem:[%s6] sm:$0xff]
  %v116 = vld [vmem:[%s6 + $0x8] sm:$0xff]
  %v117 = vld [vmem:[%s6 + $0x10] sm:$0xff]
  %v118 = vld [vmem:[%s6 + $0x18] sm:$0xff]
  %v119 = vld [vmem:[%s7] sm:$0x1]
  %v121 = vperm.slane %v119, 0
  %v124 = vsel %vm59, %v114, 0
  %126 = vmatpush.msra.mxu0 0.0
  %127 = vmatpush.msra.mxu0 0.0
  %128 = vmatpush.msra.mxu0 0.0
  %129 = vmatpush.msra.mxu0 0.0
  %130 = vmatpush.msra.mxu0 0.0
  %131 = vmatpush.msra.mxu0 0.0
  %132 = vmatpush.msra.mxu0 0.0
  %133 = vmatpush.msra.mxu0 0.0
  %134 = vmatpush.msra.mxu0 0.0
  %135 = vmatpush.msra.mxu0 0.0
  %136 = vmatpush.msra.mxu0 0.0
  %137 = vmatpush.msra.mxu0 0.0
  %138 = vmatpush.msra.mxu0 %v118
  %139 = vmatpush.msra.mxu0 %v117
  %140 = vmatpush.msra.mxu0 %v116
  %141 = vmatpush.msra.mxu0 %v115
  %142 = vmatmul.f32.gmra.mxu0 %v124
  %v143 = vpop.f32.mrf.mxu0
  %v144 = vadd.f32 %v121, %v143
  %145 = vdwg.mxu0
  %v146 = vld [vmem:[%s1] sm:$0x3]
  %v147 = vld [vmem:[%s8] sm:$0xff]
  %v148 = vld [vmem:[%s8 + $0x8] sm:$0xff]
  %v149 = vld [vmem:[%s8 + $0x10] sm:$0xff]
  %v150 = vld [vmem:[%s8 + $0x18] sm:$0xff]
  %v151 = vld [vmem:[%s9] sm:$0x1]
  %v153 = vperm.slane %v151, 0
  %v156 = vsel %vm59, %v146, 0
  %158 = vmatpush.msra.mxu0 0.0
  %159 = vmatpush.msra.mxu0 0.0
  %160 = vmatpush.msra.mxu0 0.0
  %161 = vmatpush.msra.mxu0 0.0
  %162 = vmatpush.msra.mxu0 0.0
  %163 = vmatpush.msra.mxu0 0.0
  %164 = vmatpush.msra.mxu0 0.0
  %165 = vmatpush.msra.mxu0 0.0
  %166 = vmatpush.msra.mxu0 0.0
  %167 = vmatpush.msra.mxu0 0.0
  %168 = vmatpush.msra.mxu0 0.0
  %169 = vmatpush.msra.mxu0 0.0
  %170 = vmatpush.msra.mxu0 %v150
  %171 = vmatpush.msra.mxu0 %v149
  %172 = vmatpush.msra.mxu0 %v148
  %173 = vmatpush.msra.mxu0 %v147
  %174 = vmatmul.f32.gmra.mxu0 %v156
  %v175 = vpop.f32.mrf.mxu0
  %v176 = vadd.f32 %v153, %v175
  %177 = vdwg.mxu0
  %v178 = vld [vmem:[%s10] sm:$0xff]
  %v179 = vld [vmem:[%s10 + $0x8] sm:$0xff]
  %v180 = vld [vmem:[%s10 + $0x10] sm:$0xff]
  %v181 = vld [vmem:[%s10 + $0x18] sm:$0xff]
  %v182 = vld [vmem:[%s11] sm:$0x1]
  %v184 = vperm.slane %v182, 0
  %v187 = vsel %vm59, %v176, 0
  %189 = vmatpush.msra.mxu0 0.0
  %190 = vmatpush.msra.mxu0 0.0
  %191 = vmatpush.msra.mxu0 0.0
  %192 = vmatpush.msra.mxu0 0.0
  %193 = vmatpush.msra.mxu0 0.0
  %194 = vmatpush.msra.mxu0 0.0
  %195 = vmatpush.msra.mxu0 0.0
  %196 = vmatpush.msra.mxu0 0.0
  %197 = vmatpush.msra.mxu0 0.0
  %198 = vmatpush.msra.mxu0 0.0
  %199 = vmatpush.msra.mxu0 0.0
  %200 = vmatpush.msra.mxu0 0.0
  %201 = vmatpush.msra.mxu0 %v181
  %202 = vmatpush.msra.mxu0 %v180
  %203 = vmatpush.msra.mxu0 %v179
  %204 = vmatpush.msra.mxu0 %v178
  %205 = vmatmul.f32.gmra.mxu0 %v187
  %v206 = vpop.f32.mrf.mxu0
  %v207 = vadd.f32 %v184, %v206
  %208 = vdwg.mxu0
  %v209 = vmax.f32 %v207, 0.0
  %v210 = vld [vmem:[%s12] sm:$0xff]
  %v211 = vld [vmem:[%s12 + $0x8] sm:$0xff]
  %v212 = vld [vmem:[%s12 + $0x10] sm:$0xff]
  %v213 = vld [vmem:[%s12 + $0x18] sm:$0xff]
  %v214 = vld [vmem:[%s12 + $0x20] sm:$0xff]
  %v215 = vld [vmem:[%s12 + $0x28] sm:$0xff]
  %v216 = vld [vmem:[%s12 + $0x30] sm:$0xff]
  %v217 = vld [vmem:[%s12 + $0x38] sm:$0xff]
  %v218 = vld [vmem:[%s13] sm:$0x1]
  %v220 = vperm.slane %v218, 0
  %vm222 = vcmask 523264
  %v224 = vsel %vm222, %v209, 0
  %226 = vmatpush.msra.mxu0 0.0
  %227 = vmatpush.msra.mxu0 0.0
  %228 = vmatpush.msra.mxu0 0.0
  %229 = vmatpush.msra.mxu0 0.0
  %230 = vmatpush.msra.mxu0 0.0
  %231 = vmatpush.msra.mxu0 0.0
  %232 = vmatpush.msra.mxu0 0.0
  %233 = vmatpush.msra.mxu0 0.0
  %234 = vmatpush.msra.mxu0 %v217
  %235 = vmatpush.msra.mxu0 %v216
  %236 = vmatpush.msra.mxu0 %v215
  %237 = vmatpush.msra.mxu0 %v214
  %238 = vmatpush.msra.mxu0 %v213
  %239 = vmatpush.msra.mxu0 %v212
  %240 = vmatpush.msra.mxu0 %v211
  %241 = vmatpush.msra.mxu0 %v210
  %242 = vmatmul.f32.gmra.mxu0 %v224
  %v243 = vpop.f32.mrf.mxu0
  %v244 = vadd.f32 %v220, %v243
  %245 = vdwg.mxu0
  %vm246 = vcmask 17408
  %247 = vst.msk [vmem:[%s14] sm:$0x3] %vm246, %v244
  %249 = vrot.lane.b32.xlu0 %v244, 125
  %v250 = vpop.permute.xlu0 %249
  %vm252 = vcmask 1024
  %253 = vst.msk [vmem:[%s16] sm:$0x3] %vm252, %v250
  %vm254 = vcmask 25600
  %255 = vst.msk [vmem:[%s15] sm:$0x3] %vm254, %v144
  // Predicated region
  $region58: #{diffusion_head_forward.11} parent=0 // pred_check
    _
  $region59: #{diffusion_head_forward.11} parent=0 // pred_check_branch
    %257 = sbr.rel (0) target = $region61
  $region60: #{diffusion_head_forward.11} parent=0 // pred_region
    _
  $region61: #{diffusion_head_forward.11} parent=0 // pred_fallthru
    _
  // Predicated region
  $region62: #{diffusion_head_forward.11} parent=0 // pred_check
    _
  $region63: #{diffusion_head_forward.11} parent=0 // pred_check_branch
    %259 = sbr.rel (0) target = $region65
  $region64: #{diffusion_head_forward.11} parent=0 // pred_region
    _
  $region65: #{diffusion_head_forward.11} parent=0 // pred_fallthru
    _
  // Predicated region
  $region66: #{diffusion_head_forward.11} parent=0 // pred_check
    _
  $region67: #{diffusion_head_forward.11} parent=0 // pred_check_branch
    %261 = sbr.rel (0) target = $region69
  $region68: #{diffusion_head_forward.11} parent=0 // pred_region
    _
  $region69: #{diffusion_head_forward.11} parent=0 // pred_fallthru
    _
  // Predicated region
  $region70: #{diffusion_head_forward.11} parent=0 // pred_check
    _
  $region71: #{diffusion_head_forward.11} parent=0 // pred_check_branch
    %263 = sbr.rel (0) target = $region73
  $region72: #{diffusion_head_forward.11} parent=0 // pred_region
    _
  $region73: #{diffusion_head_forward.11} parent=0 // pred_fallthru
    _
  // Predicated region
  $region74: #{diffusion_head_forward.11} parent=0 // pred_check
    _
  $region75: #{diffusion_head_forward.11} parent=0 // pred_check_branch
    %265 = sbr.rel (0) target = $region77
  $region76: #{diffusion_head_forward.11} parent=0 // pred_region
    _
  $region77: #{diffusion_head_forward.11} parent=0 // pred_fallthru
    _
  // Predicated region
  $region78: #{diffusion_head_forward.11} parent=0 // pred_check
    _
  $region79: #{diffusion_head_forward.11} parent=0 // pred_check_branch
    %267 = sbr.rel (0) target = $region81
  $region80: #{diffusion_head_forward.11} parent=0 // pred_region
    _
  $region81: #{diffusion_head_forward.11} parent=0 // pred_fallthru
    _

</llo_original>
